<compile_context>
chip_gen: v7x
topology: tpu7x:2x2x1
jax: 0.10.0
libtpu: 0.0.40
codegen_flags: <defaults>
</compile_context>

<pallas_src>
import functools

import jax
import jax.numpy as jnp
from jax.experimental import pallas as pl
from jax.experimental.pallas import tpu as pltpu

COMPUTE_DTYPE = jnp.bfloat16   # streamed operands: MXU-native, halves HBM bytes
ACT_DTYPE = jnp.bfloat16       # inter-layer activations
MAX_TILE_M = 8192              # lanes per output tile (review item 3)


def _round_up(x, m):
    return (x + m - 1) // m * m


def _cdiv(a, b):
    return -(-a // b)


def _choose_tiles(L, max_off):
    """Pick (tile_m, n_tiles, m_pad).

    Tiles are multiples of 128, padding waste is <= ~128 lanes per tile
    (review item 7), and n_tiles >= 2 whenever M allows it so the 'parallel'
    grid axis actually shards across both v7x TensorCores (item 4)."""
    m128 = _round_up(max(L, 1), 128)
    n = _cdiv(m128, MAX_TILE_M)
    if n < 2 and m128 >= 256:
        n = 2
    tile_m = _round_up(_cdiv(m128, n), 128)
    # every tap offset must land inside [current tile | next tile]
    tile_m = max(tile_m, _round_up(max(max_off, 1), 128))
    n = _cdiv(m128, tile_m)
    return tile_m, n, n * tile_m


# ---------------------------------------------------------------------------
# Pallas kernel: fused im2col + matmul + bias + optional LeakyReLU(0.2)
# ---------------------------------------------------------------------------
def _conv_tap_kernel(w_ref, b_ref, xc_ref, xn_ref, o_ref, *, offsets, tile_m, leaky):
    # xc_ref: current (Cin_f, TILE_M) tile of the flat padded frame.
    # xn_ref: the next tile (halo).  Each conv tap is a constant flat offset
    # off = dy*Wf + dx (< TILE_M), so its shifted view is a static lane slice
    # of [current | next]: im2col happens in VMEM/vregs, never in HBM.
    wide = jnp.concatenate([xc_ref[...], xn_ref[...]], axis=1)   # (Cin_f, 2*TILE_M)
    acc = None
    for t, off in enumerate(offsets):
        xt = wide[:, off:off + tile_m]                           # (Cin_f, TILE_M)
        part = jnp.dot(w_ref[t], xt, preferred_element_type=jnp.float32)
        acc = part if acc is None else acc + part
    acc = acc + b_ref[...]                                       # + (Cout, 1)
    if leaky:
        acc = jnp.where(acc >= 0, acc, 0.2 * acc)                # LeakyReLU(0.2)
    o_ref[...] = acc.astype(o_ref.dtype)                         # lane-dense store


def _tap_conv(x_flat, w_taps, bias, offsets, leaky, out_dtype):
    """x_flat: (Cin_f, L) flat padded frame (bf16).  w_taps: (T, Cout, Cin_f).
    offsets[t]: flat lane offset of tap t.  Returns (Cout, m_pad)."""
    cin_f, L = x_flat.shape
    T, cout, _ = w_taps.shape
    max_off = max(offsets)
    tile_m, n_tiles, m_pad = _choose_tiles(L, max_off)
    L_in = m_pad + tile_m              # one extra zero tile: halo reads stay in-bounds
    x_flat = jnp.pad(x_flat, ((0, 0), (0, L_in - L)))
    b2 = bias.reshape(cout, 1).astype(jnp.float32)

    in_isz = x_flat.dtype.itemsize
    out_isz = jnp.dtype(out_dtype).itemsize
    flops = 2 * T * cout * cin_f * m_pad
    bytes_accessed = (2 * cin_f * m_pad * in_isz                 # current + halo stream
                      + w_taps.size * w_taps.dtype.itemsize
                      + cout * (4 + m_pad * out_isz))
    # Per-step working set is a few MiB at most; 48 MiB keeps headroom on every
    # generation (v7x: 64 MiB physical / 32 MiB scoped default per core).
    vmem_limit = int(min(
        48 * 2**20,
        max(8 * 2**20,
            4 * (2 * cin_f * tile_m * in_isz + cout * tile_m * max(out_isz, 4))
            + 2 * w_taps.size * w_taps.dtype.itemsize + (2 << 20))))

    kernel = functools.partial(
        _conv_tap_kernel, offsets=tuple(int(o) for o in offsets),
        tile_m=tile_m, leaky=leaky)
    return pl.pallas_call(
        kernel,
        out_shape=jax.ShapeDtypeStruct((cout, m_pad), out_dtype),
        grid=(n_tiles,),
        in_specs=[
            pl.BlockSpec((T, cout, cin_f), lambda i: (0, 0, 0)),  # taps: VMEM-resident
            pl.BlockSpec((cout, 1), lambda i: (0, 0)),            # bias: VMEM-resident
            pl.BlockSpec((cin_f, tile_m), lambda i: (0, i)),      # current tile (streamed)
            pl.BlockSpec((cin_f, tile_m), lambda i: (0, i + 1)),  # next tile = halo
        ],
        out_specs=pl.BlockSpec((cout, tile_m), lambda i: (0, i)),
        compiler_params=pltpu.CompilerParams(
            dimension_semantics=("parallel",),                    # megacore on v7x
            vmem_limit_bytes=vmem_limit),
        cost_estimate=pl.CostEstimate(
            flops=flops, transcendentals=0, bytes_accessed=bytes_accessed),
    )(w_taps, b2, x_flat, x_flat)


# ---------------------------------------------------------------------------
# Conv wrappers (layout glue in plain JAX; all FLOPs in the Pallas kernel)
# ---------------------------------------------------------------------------
def conv3x3_s1(x, w, b, leaky=True, out_dtype=ACT_DTYPE):
    """3x3, stride 1, pad 1.  x: (Cin, N, H, W), w: (Cout, 3, 3, Cin)."""
    Cin, N, H, W = x.shape
    Cout = w.shape[0]
    # TODO(synk): the explicit zero-pad is one extra full-res HBM round trip;
    # it could be absorbed by in-kernel halo masking.
    xp = jnp.pad(x.astype(COMPUTE_DTYPE), ((0, 0), (0, 0), (1, 1), (1, 1)))
    Hf, Wf = H + 2, W + 2
    L = N * Hf * Wf
    w_taps = jnp.transpose(w, (1, 2, 0, 3)).reshape(9, Cout, Cin).astype(COMPUTE_DTYPE)
    offsets = [i * Wf + j for i in range(3) for j in range(3)]
    out = _tap_conv(xp.reshape(Cin, L), w_taps, b, offsets, leaky, out_dtype)
    return out[:, :L].reshape(Cout, N, Hf, Wf)[:, :, :H, :W]


def conv4x4_s2(x, w, b, leaky=True, out_dtype=ACT_DTYPE):
    """4x4, stride 2, pad 1 via space-to-depth -> 2x2 stride-1 taps (item 8).
    x: (Cin, N, H, W), w: (Cout, 4, 4, Cin)."""
    Cin, N, H, W = x.shape
    assert H % 2 == 0 and W % 2 == 0, "encoder expects even spatial dims"
    Cout = w.shape[0]
    xp = jnp.pad(x.astype(COMPUTE_DTYPE), ((0, 0), (0, 0), (1, 1), (1, 1)))
    Hh, Wh = (H + 2) // 2, (W + 2) // 2
    # space-to-depth: (Cin, N, 2a+dy, 2b+dx) -> channel c' = (dy*2+dx)*Cin + c
    xs = xp.reshape(Cin, N, Hh, 2, Wh, 2)
    xs = jnp.transpose(xs, (3, 5, 0, 1, 2, 4)).reshape(4 * Cin, N, Hh, Wh)
    # weights: (Cout, 2ti+dy, 2tj+dx, c) -> (Cout, ti, tj, c')
    w2 = w.reshape(Cout, 2, 2, 2, 2, Cin)
    w2 = jnp.transpose(w2, (0, 1, 3, 2, 4, 5)).reshape(Cout, 2, 2, 4 * Cin)
    w_taps = jnp.transpose(w2, (1, 2, 0, 3)).reshape(4, Cout, 4 * Cin).astype(COMPUTE_DTYPE)
    offsets = [ti * Wh + tj for ti in range(2) for tj in range(2)]
    L = N * Hh * Wh
    out = _tap_conv(xs.reshape(4 * Cin, L), w_taps, b, offsets, leaky, out_dtype)
    Ho, Wo = Hh - 1, Wh - 1            # = H // 2, W // 2
    return out[:, :L].reshape(Cout, N, Hh, Wh)[:, :, :Ho, :Wo]


def upsample_nearest2x(x):
    # x: (C, N, H, W)
    # TODO(synk): fold the upsample + skip concat into the consuming conv's tap
    # accumulation (two streamed sources) to drop two full-res HBM round trips
    # per decoder stage (review item 6).
    return jnp.repeat(jnp.repeat(x, 2, axis=2), 2, axis=3)


# ---------------------------------------------------------------------------
# Parameter init (deterministic, matches shapes implied by UNetwork.__init__)
# ---------------------------------------------------------------------------
def _conv_init(key, kh, kw, cin, cout):
    kw_, kb_ = jax.random.split(key)
    fan_in = kh * kw * cin
    bound = 1.0 / (fan_in ** 0.5)
    w = jax.random.uniform(kw_, (cout, kh, kw, cin), jnp.float32, -bound, bound)
    b = jax.random.uniform(kb_, (cout,), jnp.float32, -bound, bound)
    return w, b


def init_unet_params(key, enc_nf, dec_nf):
    params = {"enc": [], "dec": []}
    keys = jax.random.split(key, 16)
    ki = 0
    # encoder: kernel 4, stride 2, padding 1
    for i in range(len(enc_nf)):
        prev_nf = 2 if i == 0 else enc_nf[i - 1]
        params["enc"].append(_conv_init(keys[ki], 4, 4, prev_nf, enc_nf[i])); ki += 1
    # decoder: kernel 3, stride 1, padding 1.  Same in-channel bookkeeping as
    # the reference module (assumes enc/dec widths match at the skips).
    dec_in = [enc_nf[-1],
              dec_nf[0] * 2,
              dec_nf[1] * 2,
              dec_nf[2] + enc_nf[0],
              dec_nf[3],
              dec_nf[4] + 2]
    for i in range(6):
        params["dec"].append(_conv_init(keys[ki], 3, 3, dec_in[i], dec_nf[i])); ki += 1
    # flow conv: weight ~ Normal(0, 1e-5), bias = 0  (dim = 2)
    fw = jax.random.normal(keys[ki], (2, 3, 3, dec_nf[-1]), jnp.float32) * 1e-5
    fb = jnp.zeros((2,), jnp.float32)
    params["flow"] = (fw, fb)
    return params


# ---------------------------------------------------------------------------
# UNetwork forward (dim=2, bn=None, full_size=True, vm2=False)
# ---------------------------------------------------------------------------
def unetwork_forward(params, src, tgt):
    # src, tgt: (N, 1, H, W) (NCHW like the PyTorch reference)
    x = jnp.concatenate([src, tgt], axis=1)                  # (N, 2, H, W)
    x = jnp.transpose(x, (1, 0, 2, 3)).astype(ACT_DTYPE)     # (2, N, H, W)
    x_enc = [x]
    for (w, b) in params["enc"]:
        x_enc.append(conv4x4_s2(x_enc[-1], w, b, leaky=True))

    y = x_enc[-1]
    for i in range(3):
        w, b = params["dec"][i]
        y = conv3x3_s1(y, w, b, leaky=True)
        y = upsample_nearest2x(y)
        y = jnp.concatenate([y, x_enc[-(i + 2)]], axis=0)

    w, b = params["dec"][3]
    y = conv3x3_s1(y, w, b, leaky=True)
    w, b = params["dec"][4]
    y = conv3x3_s1(y, w, b, leaky=True)

    # full_size branch
    y = upsample_nearest2x(y)
    y = jnp.concatenate([y, x_enc[0]], axis=0)
    w, b = params["dec"][5]
    y = conv3x3_s1(y, w, b, leaky=True)

    # TODO(synk): vm2_conv (len(dec_nf)==7) and the BatchNorm-on-flow branch are
    # inactive for this configuration (len(dec_nf)==6, bn=None) and are skipped.
    # Flow head: bf16 streams, f32 accumulation, f32 output (review item 2).
    fw, fb = params["flow"]
    flow = conv3x3_s1(y, fw, fb, leaky=False, out_dtype=jnp.float32)
    return jnp.transpose(flow, (1, 0, 2, 3))                 # (N, 2, H, W)


if __name__ == "__main__":
    key = jax.random.PRNGKey(0)
    enc_nf = [4, 8, 8, 8]
    dec_nf = [8, 8, 8, 8, 4, 4]

    k_params, k_src, k_tgt = jax.random.split(key, 3)
    params = init_unet_params(k_params, enc_nf, dec_nf)

    N, H, W = 2, 16, 16
    src = jax.random.normal(k_src, (N, 1, H, W), jnp.float32)
    tgt = jax.random.normal(k_tgt, (N, 1, H, W), jnp.float32)

    flow = jax.jit(unetwork_forward)(params, src, tgt)
    flow = jax.block_until_ready(flow)
    assert flow.shape == (N, 2, H, W), flow.shape
    assert bool(jnp.all(jnp.isfinite(flow)))
    print("KERNEL_OK")
</pallas_src>

<mosaic_0001>
module attributes {stable_mosaic.version = 11 : i64} {
  func.func @_conv_tap_kernel(%arg0: i32, %arg1: memref<4x4x8xbf16, #tpu.memory_space<vmem>>, %arg2: memref<4x1xf32, #tpu.memory_space<vmem>>, %arg3: memref<8x128xbf16, #tpu.memory_space<vmem>>, %arg4: memref<8x128xbf16, #tpu.memory_space<vmem>>, %arg5: memref<4x128xbf16, #tpu.memory_space<vmem>>) attributes {dimension_semantics = [#tpu.dimension_semantics<parallel>], iteration_bounds = array<i64: 2>, scalar_prefetch = 0 : i64, scratch_operands = 0 : i64, tpu.core_type = #tpu.core_type<tc>, window_params = [{pipeline_mode = #tpu.pipeline_mode<synchronous>, transform_indices = @transform_0, window_bounds = array<i64: 4, 4, 8>}, {pipeline_mode = #tpu.pipeline_mode<synchronous>, transform_indices = @transform_1, window_bounds = array<i64: 4, 1>}, {transform_indices = @transform_2, window_bounds = array<i64: 8, 128>}, {transform_indices = @transform_3, window_bounds = array<i64: 8, 128>}, {transform_indices = @transform_4, window_bounds = array<i64: 4, 128>}]} {
    %c0 = arith.constant 0 : index
    %c0_0 = arith.constant 0 : index
    %0 = vector.load %arg3[%c0, %c0_0] : memref<8x128xbf16, #tpu.memory_space<vmem>>, vector<8x128xbf16>
    %c0_1 = arith.constant 0 : index
    %c0_2 = arith.constant 0 : index
    %1 = vector.load %arg4[%c0_1, %c0_2] : memref<8x128xbf16, #tpu.memory_space<vmem>>, vector<8x128xbf16>
    %2 = tpu.concatenate %0, %1 in 1 : vector<8x128xbf16>, vector<8x128xbf16> -> vector<8x256xbf16>
    %3 = vector.extract_strided_slice %2 {offsets = [0, 0], sizes = [8, 128], strides = [1, 1]} : vector<8x256xbf16> to vector<8x128xbf16>
    %c0_3 = arith.constant 0 : index
    %c0_4 = arith.constant 0 : index
    %c0_5 = arith.constant 0 : index
    %4 = vector.load %arg1[%c0_3, %c0_4, %c0_5] : memref<4x4x8xbf16, #tpu.memory_space<vmem>>, vector<1x4x8xbf16>
    %5 = vector.shape_cast %4 : vector<1x4x8xbf16> to vector<4x8xbf16>
    %cst = arith.constant dense<0.000000e+00> : vector<4x128xf32>
    %6 = tpu.matmul %5, %3, %cst {dimension_numbers = #tpu.dot_dimension_numbers<[1], [0], [0], [1], [0, 0, 1, 1], [], []>} : vector<4x8xbf16>, vector<8x128xbf16>, vector<4x128xf32> -> vector<4x128xf32>
    %7 = vector.extract_strided_slice %2 {offsets = [0, 1], sizes = [8, 128], strides = [1, 1]} : vector<8x256xbf16> to vector<8x128xbf16>
    %c1 = arith.constant 1 : index
    %c0_6 = arith.constant 0 : index
    %c0_7 = arith.constant 0 : index
    %8 = vector.load %arg1[%c1, %c0_6, %c0_7] : memref<4x4x8xbf16, #tpu.memory_space<vmem>>, vector<1x4x8xbf16>
    %9 = vector.shape_cast %8 : vector<1x4x8xbf16> to vector<4x8xbf16>
    %cst_8 = arith.constant dense<0.000000e+00> : vector<4x128xf32>
    %10 = tpu.matmul %9, %7, %cst_8 {dimension_numbers = #tpu.dot_dimension_numbers<[1], [0], [0], [1], [0, 0, 1, 1], [], []>} : vector<4x8xbf16>, vector<8x128xbf16>, vector<4x128xf32> -> vector<4x128xf32>
    %11 = arith.addf %6, %10 : vector<4x128xf32>
    %12 = vector.extract_strided_slice %2 {offsets = [0, 9], sizes = [8, 128], strides = [1, 1]} : vector<8x256xbf16> to vector<8x128xbf16>
    %c2 = arith.constant 2 : index
    %c0_9 = arith.constant 0 : index
    %c0_10 = arith.constant 0 : index
    %13 = vector.load %arg1[%c2, %c0_9, %c0_10] : memref<4x4x8xbf16, #tpu.memory_space<vmem>>, vector<1x4x8xbf16>
    %14 = vector.shape_cast %13 : vector<1x4x8xbf16> to vector<4x8xbf16>
    %cst_11 = arith.constant dense<0.000000e+00> : vector<4x128xf32>
    %15 = tpu.matmul %14, %12, %cst_11 {dimension_numbers = #tpu.dot_dimension_numbers<[1], [0], [0], [1], [0, 0, 1, 1], [], []>} : vector<4x8xbf16>, vector<8x128xbf16>, vector<4x128xf32> -> vector<4x128xf32>
    %16 = arith.addf %11, %15 : vector<4x128xf32>
    %17 = vector.extract_strided_slice %2 {offsets = [0, 10], sizes = [8, 128], strides = [1, 1]} : vector<8x256xbf16> to vector<8x128xbf16>
    %c3 = arith.constant 3 : index
    %c0_12 = arith.constant 0 : index
    %c0_13 = arith.constant 0 : index
    %18 = vector.load %arg1[%c3, %c0_12, %c0_13] : memref<4x4x8xbf16, #tpu.memory_space<vmem>>, vector<1x4x8xbf16>
    %19 = vector.shape_cast %18 : vector<1x4x8xbf16> to vector<4x8xbf16>
    %cst_14 = arith.constant dense<0.000000e+00> : vector<4x128xf32>
    %20 = tpu.matmul %19, %17, %cst_14 {dimension_numbers = #tpu.dot_dimension_numbers<[1], [0], [0], [1], [0, 0, 1, 1], [], []>} : vector<4x8xbf16>, vector<8x128xbf16>, vector<4x128xf32> -> vector<4x128xf32>
    %21 = arith.addf %16, %20 : vector<4x128xf32>
    %c0_15 = arith.constant 0 : index
    %c0_16 = arith.constant 0 : index
    %22 = vector.load %arg2[%c0_15, %c0_16] : memref<4x1xf32, #tpu.memory_space<vmem>>, vector<4x1xf32>
    %23 = vector.broadcast %22 : vector<4x1xf32> to vector<4x128xf32>
    %24 = arith.addf %21, %23 : vector<4x128xf32>
    %cst_17 = arith.constant 0.000000e+00 : f32
    %25 = vector.broadcast %cst_17 : f32 to vector<4x128xf32>
    %26 = arith.cmpf oge, %24, %25 : vector<4x128xf32>
    %cst_18 = arith.constant 2.000000e-01 : f32
    %27 = vector.broadcast %cst_18 : f32 to vector<4x128xf32>
    %28 = arith.mulf %27, %24 : vector<4x128xf32>
    %29 = arith.select %26, %24, %28 : vector<4x128xi1>, vector<4x128xf32>
    %30 = arith.truncf %29 : vector<4x128xf32> to vector<4x128xbf16>
    %c0_19 = arith.constant 0 : index
    %c0_20 = arith.constant 0 : index
    %31 = vector.load %arg5[%c0_19, %c0_20] : memref<4x128xbf16, #tpu.memory_space<vmem>>, vector<4x128xbf16>
    tpu.vector_store %arg5[%c0_19, %c0_20], %30 {strides = array<i32>} : memref<4x128xbf16, #tpu.memory_space<vmem>>, vector<4x128xbf16>,
    return
  }
  func.func @transform_0(%arg0: i32) -> (i32, i32, i32) {
    %c0_i32 = arith.constant 0 : i32
    %c0_i32_0 = arith.constant 0 : i32
    %c0_i32_1 = arith.constant 0 : i32
    %c0_i32_2 = arith.constant 0 : i32
    return %c0_i32, %c0_i32_0, %c0_i32_1 : i32, i32, i32
  }
  func.func @transform_1(%arg0: i32) -> (i32, i32) {
    %c0_i32 = arith.constant 0 : i32
    %c0_i32_0 = arith.constant 0 : i32
    %c0_i32_1 = arith.constant 0 : i32
    return %c0_i32, %c0_i32_0 : i32, i32
  }
  func.func @transform_2(%arg0: i32) -> (i32, i32) {
    %c0_i32 = arith.constant 0 : i32
    %c0_i32_0 = arith.constant 0 : i32
    return %c0_i32, %arg0 : i32, i32
  }
  func.func @transform_3(%arg0: i32) -> (i32, i32) {
    %c1_i32 = arith.constant 1 : i32
    %0 = arith.addi %arg0, %c1_i32 : i32
    %c0_i32 = arith.constant 0 : i32
    %c0_i32_0 = arith.constant 0 : i32
    return %c0_i32, %0 : i32, i32
  }
  func.func @transform_4(%arg0: i32) -> (i32, i32) {
    %c0_i32 = arith.constant 0 : i32
    %c0_i32_0 = arith.constant 0 : i32
    return %c0_i32, %arg0 : i32, i32
  }
}

module attributes {stable_mosaic.version = 11 : i64} {
  func.func @_conv_tap_kernel(%arg0: i32, %arg1: memref<4x8x16xbf16, #tpu.memory_space<vmem>>, %arg2: memref<8x1xf32, #tpu.memory_space<vmem>>, %arg3: memref<16x128xbf16, #tpu.memory_space<vmem>>, %arg4: memref<16x128xbf16, #tpu.memory_space<vmem>>, %arg5: memref<8x128xbf16, #tpu.memory_space<vmem>>) attributes {dimension_semantics = [#tpu.dimension_semantics<parallel>], iteration_bounds = array<i64: 1>, scalar_prefetch = 0 : i64, scratch_operands = 0 : i64, tpu.core_type = #tpu.core_type<tc>, window_params = [{pipeline_mode = #tpu.pipeline_mode<synchronous>, transform_indices = @transform_0, window_bounds = array<i64: 4, 8, 16>}, {pipeline_mode = #tpu.pipeline_mode<synchronous>, transform_indices = @transform_1, window_bounds = array<i64: 8, 1>}, {transform_indices = @transform_2, window_bounds = array<i64: 16, 128>}, {transform_indices = @transform_3, window_bounds = array<i64: 16, 128>}, {transform_indices = @transform_4, window_bounds = array<i64: 8, 128>}]} {
    %c0 = arith.constant 0 : index
    %c0_0 = arith.constant 0 : index
    %0 = vector.load %arg3[%c0, %c0_0] : memref<16x128xbf16, #tpu.memory_space<vmem>>, vector<16x128xbf16>
    %c0_1 = arith.constant 0 : index
    %c0_2 = arith.constant 0 : index
    %1 = vector.load %arg4[%c0_1, %c0_2] : memref<16x128xbf16, #tpu.memory_space<vmem>>, vector<16x128xbf16>
    %2 = tpu.concatenate %0, %1 in 1 : vector<16x128xbf16>, vector<16x128xbf16> -> vector<16x256xbf16>
    %3 = vector.extract_strided_slice %2 {offsets = [0, 0], sizes = [16, 128], strides = [1, 1]} : vector<16x256xbf16> to vector<16x128xbf16>
    %c0_3 = arith.constant 0 : index
    %c0_4 = arith.constant 0 : index
    %c0_5 = arith.constant 0 : index
    %4 = vector.load %arg1[%c0_3, %c0_4, %c0_5] : memref<4x8x16xbf16, #tpu.memory_space<vmem>>, vector<1x8x16xbf16>
    %5 = vector.shape_cast %4 : vector<1x8x16xbf16> to vector<8x16xbf16>
    %cst = arith.constant dense<0.000000e+00> : vector<8x128xf32>
    %6 = tpu.matmul %5, %3, %cst {dimension_numbers = #tpu.dot_dimension_numbers<[1], [0], [0], [1], [0, 0, 1, 1], [], []>} : vector<8x16xbf16>, vector<16x128xbf16>, vector<8x128xf32> -> vector<8x128xf32>
    %7 = vector.extract_strided_slice %2 {offsets = [0, 1], sizes = [16, 128], strides = [1, 1]} : vector<16x256xbf16> to vector<16x128xbf16>
    %c1 = arith.constant 1 : index
    %c0_6 = arith.constant 0 : index
    %c0_7 = arith.constant 0 : index
    %8 = vector.load %arg1[%c1, %c0_6, %c0_7] : memref<4x8x16xbf16, #tpu.memory_space<vmem>>, vector<1x8x16xbf16>
    %9 = vector.shape_cast %8 : vector<1x8x16xbf16> to vector<8x16xbf16>
    %cst_8 = arith.constant dense<0.000000e+00> : vector<8x128xf32>
    %10 = tpu.matmul %9, %7, %cst_8 {dimension_numbers = #tpu.dot_dimension_numbers<[1], [0], [0], [1], [0, 0, 1, 1], [], []>} : vector<8x16xbf16>, vector<16x128xbf16>, vector<8x128xf32> -> vector<8x128xf32>
    %11 = arith.addf %6, %10 : vector<8x128xf32>
    %12 = vector.extract_strided_slice %2 {offsets = [0, 5], sizes = [16, 128], strides = [1, 1]} : vector<16x256xbf16> to vector<16x128xbf16>
    %c2 = arith.constant 2 : index
    %c0_9 = arith.constant 0 : index
    %c0_10 = arith.constant 0 : index
    %13 = vector.load %arg1[%c2, %c0_9, %c0_10] : memref<4x8x16xbf16, #tpu.memory_space<vmem>>, vector<1x8x16xbf16>
    %14 = vector.shape_cast %13 : vector<1x8x16xbf16> to vector<8x16xbf16>
    %cst_11 = arith.constant dense<0.000000e+00> : vector<8x128xf32>
    %15 = tpu.matmul %14, %12, %cst_11 {dimension_numbers = #tpu.dot_dimension_numbers<[1], [0], [0], [1], [0, 0, 1, 1], [], []>} : vector<8x16xbf16>, vector<16x128xbf16>, vector<8x128xf32> -> vector<8x128xf32>
    %16 = arith.addf %11, %15 : vector<8x128xf32>
    %17 = vector.extract_strided_slice %2 {offsets = [0, 6], sizes = [16, 128], strides = [1, 1]} : vector<16x256xbf16> to vector<16x128xbf16>
    %c3 = arith.constant 3 : index
    %c0_12 = arith.constant 0 : index
    %c0_13 = arith.constant 0 : index
    %18 = vector.load %arg1[%c3, %c0_12, %c0_13] : memref<4x8x16xbf16, #tpu.memory_space<vmem>>, vector<1x8x16xbf16>
    %19 = vector.shape_cast %18 : vector<1x8x16xbf16> to vector<8x16xbf16>
    %cst_14 = arith.constant dense<0.000000e+00> : vector<8x128xf32>
    %20 = tpu.matmul %19, %17, %cst_14 {dimension_numbers = #tpu.dot_dimension_numbers<[1], [0], [0], [1], [0, 0, 1, 1], [], []>} : vector<8x16xbf16>, vector<16x128xbf16>, vector<8x128xf32> -> vector<8x128xf32>
    %21 = arith.addf %16, %20 : vector<8x128xf32>
    %c0_15 = arith.constant 0 : index
    %c0_16 = arith.constant 0 : index
    %22 = vector.load %arg2[%c0_15, %c0_16] : memref<8x1xf32, #tpu.memory_space<vmem>>, vector<8x1xf32>
    %23 = vector.broadcast %22 : vector<8x1xf32> to vector<8x128xf32>
    %24 = arith.addf %21, %23 : vector<8x128xf32>
    %cst_17 = arith.constant 0.000000e+00 : f32
    %25 = vector.broadcast %cst_17 : f32 to vector<8x128xf32>
    %26 = arith.cmpf oge, %24, %25 : vector<8x128xf32>
    %cst_18 = arith.constant 2.000000e-01 : f32
    %27 = vector.broadcast %cst_18 : f32 to vector<8x128xf32>
    %28 = arith.mulf %27, %24 : vector<8x128xf32>
    %29 = arith.select %26, %24, %28 : vector<8x128xi1>, vector<8x128xf32>
    %30 = arith.truncf %29 : vector<8x128xf32> to vector<8x128xbf16>
    %c0_19 = arith.constant 0 : index
    %c0_20 = arith.constant 0 : index
    %31 = vector.load %arg5[%c0_19, %c0_20] : memref<8x128xbf16, #tpu.memory_space<vmem>>, vector<8x128xbf16>
    tpu.vector_store %arg5[%c0_19, %c0_20], %30 {strides = array<i32>} : memref<8x128xbf16, #tpu.memory_space<vmem>>, vector<8x128xbf16>,
    return
  }
  func.func @transform_0(%arg0: i32) -> (i32, i32, i32) {
    %c0_i32 = arith.constant 0 : i32
    %c0_i32_0 = arith.constant 0 : i32
    %c0_i32_1 = arith.constant 0 : i32
    %c0_i32_2 = arith.constant 0 : i32
    return %c0_i32, %c0_i32_0, %c0_i32_1 : i32, i32, i32
  }
  func.func @transform_1(%arg0: i32) -> (i32, i32) {
    %c0_i32 = arith.constant 0 : i32
    %c0_i32_0 = arith.constant 0 : i32
    %c0_i32_1 = arith.constant 0 : i32
    return %c0_i32, %c0_i32_0 : i32, i32
  }
  func.func @transform_2(%arg0: i32) -> (i32, i32) {
    %c0_i32 = arith.constant 0 : i32
    %c0_i32_0 = arith.constant 0 : i32
    return %c0_i32, %arg0 : i32, i32
  }
  func.func @transform_3(%arg0: i32) -> (i32, i32) {
    %c1_i32 = arith.constant 1 : i32
    %0 = arith.addi %arg0, %c1_i32 : i32
    %c0_i32 = arith.constant 0 : i32
    %c0_i32_0 = arith.constant 0 : i32
    return %c0_i32, %0 : i32, i32
  }
  func.func @transform_4(%arg0: i32) -> (i32, i32) {
    %c0_i32 = arith.constant 0 : i32
    %c0_i32_0 = arith.constant 0 : i32
    return %c0_i32, %arg0 : i32, i32
  }
}

module attributes {stable_mosaic.version = 11 : i64} {
  func.func @_conv_tap_kernel(%arg0: i32, %arg1: memref<4x8x32xbf16, #tpu.memory_space<vmem>>, %arg2: memref<8x1xf32, #tpu.memory_space<vmem>>, %arg3: memref<32x128xbf16, #tpu.memory_space<vmem>>, %arg4: memref<32x128xbf16, #tpu.memory_space<vmem>>, %arg5: memref<8x128xbf16, #tpu.memory_space<vmem>>) attributes {dimension_semantics = [#tpu.dimension_semantics<parallel>], iteration_bounds = array<i64: 1>, scalar_prefetch = 0 : i64, scratch_operands = 0 : i64, tpu.core_type = #tpu.core_type<tc>, window_params = [{pipeline_mode = #tpu.pipeline_mode<synchronous>, transform_indices = @transform_0, window_bounds = array<i64: 4, 8, 32>}, {pipeline_mode = #tpu.pipeline_mode<synchronous>, transform_indices = @transform_1, window_bounds = array<i64: 8, 1>}, {transform_indices = @transform_2, window_bounds = array<i64: 32, 128>}, {transform_indices = @transform_3, window_bounds = array<i64: 32, 128>}, {transform_indices = @transform_4, window_bounds = array<i64: 8, 128>}]} {
    %c0 = arith.constant 0 : index
    %c0_0 = arith.constant 0 : index
    %0 = vector.load %arg3[%c0, %c0_0] : memref<32x128xbf16, #tpu.memory_space<vmem>>, vector<32x128xbf16>
    %c0_1 = arith.constant 0 : index
    %c0_2 = arith.constant 0 : index
    %1 = vector.load %arg4[%c0_1, %c0_2] : memref<32x128xbf16, #tpu.memory_space<vmem>>, vector<32x128xbf16>
    %2 = tpu.concatenate %0, %1 in 1 : vector<32x128xbf16>, vector<32x128xbf16> -> vector<32x256xbf16>
    %3 = vector.extract_strided_slice %2 {offsets = [0, 0], sizes = [32, 128], strides = [1, 1]} : vector<32x256xbf16> to vector<32x128xbf16>
    %c0_3 = arith.constant 0 : index
    %c0_4 = arith.constant 0 : index
    %c0_5 = arith.constant 0 : index
    %4 = vector.load %arg1[%c0_3, %c0_4, %c0_5] : memref<4x8x32xbf16, #tpu.memory_space<vmem>>, vector<1x8x32xbf16>
    %5 = vector.shape_cast %4 : vector<1x8x32xbf16> to vector<8x32xbf16>
    %cst = arith.constant dense<0.000000e+00> : vector<8x128xf32>
    %6 = tpu.matmul %5, %3, %cst {dimension_numbers = #tpu.dot_dimension_numbers<[1], [0], [0], [1], [0, 0, 1, 1], [], []>} : vector<8x32xbf16>, vector<32x128xbf16>, vector<8x128xf32> -> vector<8x128xf32>
    %7 = vector.extract_strided_slice %2 {offsets = [0, 1], sizes = [32, 128], strides = [1, 1]} : vector<32x256xbf16> to vector<32x128xbf16>
    %c1 = arith.constant 1 : index
    %c0_6 = arith.constant 0 : index
    %c0_7 = arith.constant 0 : index
    %8 = vector.load %arg1[%c1, %c0_6, %c0_7] : memref<4x8x32xbf16, #tpu.memory_space<vmem>>, vector<1x8x32xbf16>
    %9 = vector.shape_cast %8 : vector<1x8x32xbf16> to vector<8x32xbf16>
    %cst_8 = arith.constant dense<0.000000e+00> : vector<8x128xf32>
    %10 = tpu.matmul %9, %7, %cst_8 {dimension_numbers = #tpu.dot_dimension_numbers<[1], [0], [0], [1], [0, 0, 1, 1], [], []>} : vector<8x32xbf16>, vector<32x128xbf16>, vector<8x128xf32> -> vector<8x128xf32>
    %11 = arith.addf %6, %10 : vector<8x128xf32>
    %12 = vector.extract_strided_slice %2 {offsets = [0, 3], sizes = [32, 128], strides = [1, 1]} : vector<32x256xbf16> to vector<32x128xbf16>
    %c2 = arith.constant 2 : index
    %c0_9 = arith.constant 0 : index
    %c0_10 = arith.constant 0 : index
    %13 = vector.load %arg1[%c2, %c0_9, %c0_10] : memref<4x8x32xbf16, #tpu.memory_space<vmem>>, vector<1x8x32xbf16>
    %14 = vector.shape_cast %13 : vector<1x8x32xbf16> to vector<8x32xbf16>
    %cst_11 = arith.constant dense<0.000000e+00> : vector<8x128xf32>
    %15 = tpu.matmul %14, %12, %cst_11 {dimension_numbers = #tpu.dot_dimension_numbers<[1], [0], [0], [1], [0, 0, 1, 1], [], []>} : vector<8x32xbf16>, vector<32x128xbf16>, vector<8x128xf32> -> vector<8x128xf32>
    %16 = arith.addf %11, %15 : vector<8x128xf32>
    %17 = vector.extract_strided_slice %2 {offsets = [0, 4], sizes = [32, 128], strides = [1, 1]} : vector<32x256xbf16> to vector<32x128xbf16>
    %c3 = arith.constant 3 : index
    %c0_12 = arith.constant 0 : index
    %c0_13 = arith.constant 0 : index
    %18 = vector.load %arg1[%c3, %c0_12, %c0_13] : memref<4x8x32xbf16, #tpu.memory_space<vmem>>, vector<1x8x32xbf16>
    %19 = vector.shape_cast %18 : vector<1x8x32xbf16> to vector<8x32xbf16>
    %cst_14 = arith.constant dense<0.000000e+00> : vector<8x128xf32>
    %20 = tpu.matmul %19, %17, %cst_14 {dimension_numbers = #tpu.dot_dimension_numbers<[1], [0], [0], [1], [0, 0, 1, 1], [], []>} : vector<8x32xbf16>, vector<32x128xbf16>, vector<8x128xf32> -> vector<8x128xf32>
    %21 = arith.addf %16, %20 : vector<8x128xf32>
    %c0_15 = arith.constant 0 : index
    %c0_16 = arith.constant 0 : index
    %22 = vector.load %arg2[%c0_15, %c0_16] : memref<8x1xf32, #tpu.memory_space<vmem>>, vector<8x1xf32>
    %23 = vector.broadcast %22 : vector<8x1xf32> to vector<8x128xf32>
    %24 = arith.addf %21, %23 : vector<8x128xf32>
    %cst_17 = arith.constant 0.000000e+00 : f32
    %25 = vector.broadcast %cst_17 : f32 to vector<8x128xf32>
    %26 = arith.cmpf oge, %24, %25 : vector<8x128xf32>
    %cst_18 = arith.constant 2.000000e-01 : f32
    %27 = vector.broadcast %cst_18 : f32 to vector<8x128xf32>
    %28 = arith.mulf %27, %24 : vector<8x128xf32>
    %29 = arith.select %26, %24, %28 : vector<8x128xi1>, vector<8x128xf32>
    %30 = arith.truncf %29 : vector<8x128xf32> to vector<8x128xbf16>
    %c0_19 = arith.constant 0 : index
    %c0_20 = arith.constant 0 : index
    %31 = vector.load %arg5[%c0_19, %c0_20] : memref<8x128xbf16, #tpu.memory_space<vmem>>, vector<8x128xbf16>
    tpu.vector_store %arg5[%c0_19, %c0_20], %30 {strides = array<i32>} : memref<8x128xbf16, #tpu.memory_space<vmem>>, vector<8x128xbf16>,
    return
  }
  func.func @transform_0(%arg0: i32) -> (i32, i32, i32) {
    %c0_i32 = arith.constant 0 : i32
    %c0_i32_0 = arith.constant 0 : i32
    %c0_i32_1 = arith.constant 0 : i32
    %c0_i32_2 = arith.constant 0 : i32
    return %c0_i32, %c0_i32_0, %c0_i32_1 : i32, i32, i32
  }
  func.func @transform_1(%arg0: i32) -> (i32, i32) {
    %c0_i32 = arith.constant 0 : i32
    %c0_i32_0 = arith.constant 0 : i32
    %c0_i32_1 = arith.constant 0 : i32
    return %c0_i32, %c0_i32_0 : i32, i32
  }
  func.func @transform_2(%arg0: i32) -> (i32, i32) {
    %c0_i32 = arith.constant 0 : i32
    %c0_i32_0 = arith.constant 0 : i32
    return %c0_i32, %arg0 : i32, i32
  }
  func.func @transform_3(%arg0: i32) -> (i32, i32) {
    %c1_i32 = arith.constant 1 : i32
    %0 = arith.addi %arg0, %c1_i32 : i32
    %c0_i32 = arith.constant 0 : i32
    %c0_i32_0 = arith.constant 0 : i32
    return %c0_i32, %0 : i32, i32
  }
  func.func @transform_4(%arg0: i32) -> (i32, i32) {
    %c0_i32 = arith.constant 0 : i32
    %c0_i32_0 = arith.constant 0 : i32
    return %c0_i32, %arg0 : i32, i32
  }
}

module attributes {stable_mosaic.version = 11 : i64} {
  func.func @_conv_tap_kernel(%arg0: i32, %arg1: memref<9x8x8xbf16, #tpu.memory_space<vmem>>, %arg2: memref<8x1xf32, #tpu.memory_space<vmem>>, %arg3: memref<8x128xbf16, #tpu.memory_space<vmem>>, %arg4: memref<8x128xbf16, #tpu.memory_space<vmem>>, %arg5: memref<8x128xbf16, #tpu.memory_space<vmem>>) attributes {dimension_semantics = [#tpu.dimension_semantics<parallel>], iteration_bounds = array<i64: 1>, scalar_prefetch = 0 : i64, scratch_operands = 0 : i64, tpu.core_type = #tpu.core_type<tc>, window_params = [{pipeline_mode = #tpu.pipeline_mode<synchronous>, transform_indices = @transform_0, window_bounds = array<i64: 9, 8, 8>}, {pipeline_mode = #tpu.pipeline_mode<synchronous>, transform_indices = @transform_1, window_bounds = array<i64: 8, 1>}, {transform_indices = @transform_2, window_bounds = array<i64: 8, 128>}, {transform_indices = @transform_3, window_bounds = array<i64: 8, 128>}, {transform_indices = @transform_4, window_bounds = array<i64: 8, 128>}]} {
    %c0 = arith.constant 0 : index
    %c0_0 = arith.constant 0 : index
    %0 = vector.load %arg3[%c0, %c0_0] : memref<8x128xbf16, #tpu.memory_space<vmem>>, vector<8x128xbf16>
    %c0_1 = arith.constant 0 : index
    %c0_2 = arith.constant 0 : index
    %1 = vector.load %arg4[%c0_1, %c0_2] : memref<8x128xbf16, #tpu.memory_space<vmem>>, vector<8x128xbf16>
    %2 = tpu.concatenate %0, %1 in 1 : vector<8x128xbf16>, vector<8x128xbf16> -> vector<8x256xbf16>
    %3 = vector.extract_strided_slice %2 {offsets = [0, 0], sizes = [8, 128], strides = [1, 1]} : vector<8x256xbf16> to vector<8x128xbf16>
    %c0_3 = arith.constant 0 : index
    %c0_4 = arith.constant 0 : index
    %c0_5 = arith.constant 0 : index
    %4 = vector.load %arg1[%c0_3, %c0_4, %c0_5] : memref<9x8x8xbf16, #tpu.memory_space<vmem>>, vector<1x8x8xbf16>
    %5 = vector.shape_cast %4 : vector<1x8x8xbf16> to vector<8x8xbf16>
    %cst = arith.constant dense<0.000000e+00> : vector<8x128xf32>
    %6 = tpu.matmul %5, %3, %cst {dimension_numbers = #tpu.dot_dimension_numbers<[1], [0], [0], [1], [0, 0, 1, 1], [], []>} : vector<8x8xbf16>, vector<8x128xbf16>, vector<8x128xf32> -> vector<8x128xf32>
    %7 = vector.extract_strided_slice %2 {offsets = [0, 1], sizes = [8, 128], strides = [1, 1]} : vector<8x256xbf16> to vector<8x128xbf16>
    %c1 = arith.constant 1 : index
    %c0_6 = arith.constant 0 : index
    %c0_7 = arith.constant 0 : index
    %8 = vector.load %arg1[%c1, %c0_6, %c0_7] : memref<9x8x8xbf16, #tpu.memory_space<vmem>>, vector<1x8x8xbf16>
    %9 = vector.shape_cast %8 : vector<1x8x8xbf16> to vector<8x8xbf16>
    %cst_8 = arith.constant dense<0.000000e+00> : vector<8x128xf32>
    %10 = tpu.matmul %9, %7, %cst_8 {dimension_numbers = #tpu.dot_dimension_numbers<[1], [0], [0], [1], [0, 0, 1, 1], [], []>} : vector<8x8xbf16>, vector<8x128xbf16>, vector<8x128xf32> -> vector<8x128xf32>
    %11 = arith.addf %6, %10 : vector<8x128xf32>
    %12 = vector.extract_strided_slice %2 {offsets = [0, 2], sizes = [8, 128], strides = [1, 1]} : vector<8x256xbf16> to vector<8x128xbf16>
    %c2 = arith.constant 2 : index
    %c0_9 = arith.constant 0 : index
    %c0_10 = arith.constant 0 : index
    %13 = vector.load %arg1[%c2, %c0_9, %c0_10] : memref<9x8x8xbf16, #tpu.memory_space<vmem>>, vector<1x8x8xbf16>
    %14 = vector.shape_cast %13 : vector<1x8x8xbf16> to vector<8x8xbf16>
    %cst_11 = arith.constant dense<0.000000e+00> : vector<8x128xf32>
    %15 = tpu.matmul %14, %12, %cst_11 {dimension_numbers = #tpu.dot_dimension_numbers<[1], [0], [0], [1], [0, 0, 1, 1], [], []>} : vector<8x8xbf16>, vector<8x128xbf16>, vector<8x128xf32> -> vector<8x128xf32>
    %16 = arith.addf %11, %15 : vector<8x128xf32>
    %17 = vector.extract_strided_slice %2 {offsets = [0, 3], sizes = [8, 128], strides = [1, 1]} : vector<8x256xbf16> to vector<8x128xbf16>
    %c3 = arith.constant 3 : index
    %c0_12 = arith.constant 0 : index
    %c0_13 = arith.constant 0 : index
    %18 = vector.load %arg1[%c3, %c0_12, %c0_13] : memref<9x8x8xbf16, #tpu.memory_space<vmem>>, vector<1x8x8xbf16>
    %19 = vector.shape_cast %18 : vector<1x8x8xbf16> to vector<8x8xbf16>
    %cst_14 = arith.constant dense<0.000000e+00> : vector<8x128xf32>
    %20 = tpu.matmul %19, %17, %cst_14 {dimension_numbers = #tpu.dot_dimension_numbers<[1], [0], [0], [1], [0, 0, 1, 1], [], []>} : vector<8x8xbf16>, vector<8x128xbf16>, vector<8x128xf32> -> vector<8x128xf32>
    %21 = arith.addf %16, %20 : vector<8x128xf32>
    %22 = vector.extract_strided_slice %2 {offsets = [0, 4], sizes = [8, 128], strides = [1, 1]} : vector<8x256xbf16> to vector<8x128xbf16>
    %c4 = arith.constant 4 : index
    %c0_15 = arith.constant 0 : index
    %c0_16 = arith.constant 0 : index
    %23 = vector.load %arg1[%c4, %c0_15, %c0_16] : memref<9x8x8xbf16, #tpu.memory_space<vmem>>, vector<1x8x8xbf16>
    %24 = vector.shape_cast %23 : vector<1x8x8xbf16> to vector<8x8xbf16>
    %cst_17 = arith.constant dense<0.000000e+00> : vector<8x128xf32>
    %25 = tpu.matmul %24, %22, %cst_17 {dimension_numbers = #tpu.dot_dimension_numbers<[1], [0], [0], [1], [0, 0, 1, 1], [], []>} : vector<8x8xbf16>, vector<8x128xbf16>, vector<8x128xf32> -> vector<8x128xf32>
    %26 = arith.addf %21, %25 : vector<8x128xf32>
    %27 = vector.extract_strided_slice %2 {offsets = [0, 5], sizes = [8, 128], strides = [1, 1]} : vector<8x256xbf16> to vector<8x128xbf16>
    %c5 = arith.constant 5 : index
    %c0_18 = arith.constant 0 : index
    %c0_19 = arith.constant 0 : index
    %28 = vector.load %arg1[%c5, %c0_18, %c0_19] : memref<9x8x8xbf16, #tpu.memory_space<vmem>>, vector<1x8x8xbf16>
    %29 = vector.shape_cast %28 : vector<1x8x8xbf16> to vector<8x8xbf16>
    %cst_20 = arith.constant dense<0.000000e+00> : vector<8x128xf32>
    %30 = tpu.matmul %29, %27, %cst_20 {dimension_numbers = #tpu.dot_dimension_numbers<[1], [0], [0], [1], [0, 0, 1, 1], [], []>} : vector<8x8xbf16>, vector<8x128xbf16>, vector<8x128xf32> -> vector<8x128xf32>
    %31 = arith.addf %26, %30 : vector<8x128xf32>
    %32 = vector.extract_strided_slice %2 {offsets = [0, 6], sizes = [8, 128], strides = [1, 1]} : vector<8x256xbf16> to vector<8x128xbf16>
    %c6 = arith.constant 6 : index
    %c0_21 = arith.constant 0 : index
    %c0_22 = arith.constant 0 : index
    %33 = vector.load %arg1[%c6, %c0_21, %c0_22] : memref<9x8x8xbf16, #tpu.memory_space<vmem>>, vector<1x8x8xbf16>
    %34 = vector.shape_cast %33 : vector<1x8x8xbf16> to vector<8x8xbf16>
    %cst_23 = arith.constant dense<0.000000e+00> : vector<8x128xf32>
    %35 = tpu.matmul %34, %32, %cst_23 {dimension_numbers = #tpu.dot_dimension_numbers<[1], [0], [0], [1], [0, 0, 1, 1], [], []>} : vector<8x8xbf16>, vector<8x128xbf16>, vector<8x128xf32> -> vector<8x128xf32>
    %36 = arith.addf %31, %35 : vector<8x128xf32>
    %37 = vector.extract_strided_slice %2 {offsets = [0, 7], sizes = [8, 128], strides = [1, 1]} : vector<8x256xbf16> to vector<8x128xbf16>
    %c7 = arith.constant 7 : index
    %c0_24 = arith.constant 0 : index
    %c0_25 = arith.constant 0 : index
    %38 = vector.load %arg1[%c7, %c0_24, %c0_25] : memref<9x8x8xbf16, #tpu.memory_space<vmem>>, vector<1x8x8xbf16>
    %39 = vector.shape_cast %38 : vector<1x8x8xbf16> to vector<8x8xbf16>
    %cst_26 = arith.constant dense<0.000000e+00> : vector<8x128xf32>
    %40 = tpu.matmul %39, %37, %cst_26 {dimension_numbers = #tpu.dot_dimension_numbers<[1], [0], [0], [1], [0, 0, 1, 1], [], []>} : vector<8x8xbf16>, vector<8x128xbf16>, vector<8x128xf32> -> vector<8x128xf32>
    %41 = arith.addf %36, %40 : vector<8x128xf32>
    %42 = vector.extract_strided_slice %2 {offsets = [0, 8], sizes = [8, 128], strides = [1, 1]} : vector<8x256xbf16> to vector<8x128xbf16>
    %c8 = arith.constant 8 : index
    %c0_27 = arith.constant 0 : index
    %c0_28 = arith.constant 0 : index
    %43 = vector.load %arg1[%c8, %c0_27, %c0_28] : memref<9x8x8xbf16, #tpu.memory_space<vmem>>, vector<1x8x8xbf16>
    %44 = vector.shape_cast %43 : vector<1x8x8xbf16> to vector<8x8xbf16>
    %cst_29 = arith.constant dense<0.000000e+00> : vector<8x128xf32>
    %45 = tpu.matmul %44, %42, %cst_29 {dimension_numbers = #tpu.dot_dimension_numbers<[1], [0], [0], [1], [0, 0, 1, 1], [], []>} : vector<8x8xbf16>, vector<8x128xbf16>, vector<8x128xf32> -> vector<8x128xf32>
    %46 = arith.addf %41, %45 : vector<8x128xf32>
    %c0_30 = arith.constant 0 : index
    %c0_31 = arith.constant 0 : index
    %47 = vector.load %arg2[%c0_30, %c0_31] : memref<8x1xf32, #tpu.memory_space<vmem>>, vector<8x1xf32>
    %48 = vector.broadcast %47 : vector<8x1xf32> to vector<8x128xf32>
    %49 = arith.addf %46, %48 : vector<8x128xf32>
    %cst_32 = arith.constant 0.000000e+00 : f32
    %50 = vector.broadcast %cst_32 : f32 to vector<8x128xf32>
    %51 = arith.cmpf oge, %49, %50 : vector<8x128xf32>
    %cst_33 = arith.constant 2.000000e-01 : f32
    %52 = vector.broadcast %cst_33 : f32 to vector<8x128xf32>
    %53 = arith.mulf %52, %49 : vector<8x128xf32>
    %54 = arith.select %51, %49, %53 : vector<8x128xi1>, vector<8x128xf32>
    %55 = arith.truncf %54 : vector<8x128xf32> to vector<8x128xbf16>
    %c0_34 = arith.constant 0 : index
    %c0_35 = arith.constant 0 : index
    %56 = vector.load %arg5[%c0_34, %c0_35] : memref<8x128xbf16, #tpu.memory_space<vmem>>, vector<8x128xbf16>
    tpu.vector_store %arg5[%c0_34, %c0_35], %55 {strides = array<i32>} : memref<8x128xbf16, #tpu.memory_space<vmem>>, vector<8x128xbf16>,
    return
  }
  func.func @transform_0(%arg0: i32) -> (i32, i32, i32) {
    %c0_i32 = arith.constant 0 : i32
    %c0_i32_0 = arith.constant 0 : i32
    %c0_i32_1 = arith.constant 0 : i32
    %c0_i32_2 = arith.constant 0 : i32
    return %c0_i32, %c0_i32_0, %c0_i32_1 : i32, i32, i32
  }
  func.func @transform_1(%arg0: i32) -> (i32, i32) {
    %c0_i32 = arith.constant 0 : i32
    %c0_i32_0 = arith.constant 0 : i32
    %c0_i32_1 = arith.constant 0 : i32
    return %c0_i32, %c0_i32_0 : i32, i32
  }
  func.func @transform_2(%arg0: i32) -> (i32, i32) {
    %c0_i32 = arith.constant 0 : i32
    %c0_i32_0 = arith.constant 0 : i32
    return %c0_i32, %arg0 : i32, i32
  }
  func.func @transform_3(%arg0: i32) -> (i32, i32) {
    %c1_i32 = arith.constant 1 : i32
    %0 = arith.addi %arg0, %c1_i32 : i32
    %c0_i32 = arith.constant 0 : i32
    %c0_i32_0 = arith.constant 0 : i32
    return %c0_i32, %0 : i32, i32
  }
  func.func @transform_4(%arg0: i32) -> (i32, i32) {
    %c0_i32 = arith.constant 0 : i32
    %c0_i32_0 = arith.constant 0 : i32
    return %c0_i32, %arg0 : i32, i32
  }
}

module attributes {stable_mosaic.version = 11 : i64} {
  func.func @_conv_tap_kernel(%arg0: i32, %arg1: memref<4x8x32xbf16, #tpu.memory_space<vmem>>, %arg2: memref<8x1xf32, #tpu.memory_space<vmem>>, %arg3: memref<32x128xbf16, #tpu.memory_space<vmem>>, %arg4: memref<32x128xbf16, #tpu.memory_space<vmem>>, %arg5: memref<8x128xbf16, #tpu.memory_space<vmem>>) attributes {dimension_semantics = [#tpu.dimension_semantics<parallel>], iteration_bounds = array<i64: 1>, scalar_prefetch = 0 : i64, scratch_operands = 0 : i64, tpu.core_type = #tpu.core_type<tc>, window_params = [{pipeline_mode = #tpu.pipeline_mode<synchronous>, transform_indices = @transform_0, window_bounds = array<i64: 4, 8, 32>}, {pipeline_mode = #tpu.pipeline_mode<synchronous>, transform_indices = @transform_1, window_bounds = array<i64: 8, 1>}, {transform_indices = @transform_2, window_bounds = array<i64: 32, 128>}, {transform_indices = @transform_3, window_bounds = array<i64: 32, 128>}, {transform_indices = @transform_4, window_bounds = array<i64: 8, 128>}]} {
    %c0 = arith.constant 0 : index
    %c0_0 = arith.constant 0 : index
    %0 = vector.load %arg3[%c0, %c0_0] : memref<32x128xbf16, #tpu.memory_space<vmem>>, vector<32x128xbf16>
    %c0_1 = arith.constant 0 : index
    %c0_2 = arith.constant 0 : index
    %1 = vector.load %arg4[%c0_1, %c0_2] : memref<32x128xbf16, #tpu.memory_space<vmem>>, vector<32x128xbf16>
    %2 = tpu.concatenate %0, %1 in 1 : vector<32x128xbf16>, vector<32x128xbf16> -> vector<32x256xbf16>
    %3 = vector.extract_strided_slice %2 {offsets = [0, 0], sizes = [32, 128], strides = [1, 1]} : vector<32x256xbf16> to vector<32x128xbf16>
    %c0_3 = arith.constant 0 : index
    %c0_4 = arith.constant 0 : index
    %c0_5 = arith.constant 0 : index
    %4 = vector.load %arg1[%c0_3, %c0_4, %c0_5] : memref<4x8x32xbf16, #tpu.memory_space<vmem>>, vector<1x8x32xbf16>
    %5 = vector.shape_cast %4 : vector<1x8x32xbf16> to vector<8x32xbf16>
    %cst = arith.constant dense<0.000000e+00> : vector<8x128xf32>
    %6 = tpu.matmul %5, %3, %cst {dimension_numbers = #tpu.dot_dimension_numbers<[1], [0], [0], [1], [0, 0, 1, 1], [], []>} : vector<8x32xbf16>, vector<32x128xbf16>, vector<8x128xf32> -> vector<8x128xf32>
    %7 = vector.extract_strided_slice %2 {offsets = [0, 1], sizes = [32, 128], strides = [1, 1]} : vector<32x256xbf16> to vector<32x128xbf16>
    %c1 = arith.constant 1 : index
    %c0_6 = arith.constant 0 : index
    %c0_7 = arith.constant 0 : index
    %8 = vector.load %arg1[%c1, %c0_6, %c0_7] : memref<4x8x32xbf16, #tpu.memory_space<vmem>>, vector<1x8x32xbf16>
    %9 = vector.shape_cast %8 : vector<1x8x32xbf16> to vector<8x32xbf16>
    %cst_8 = arith.constant dense<0.000000e+00> : vector<8x128xf32>
    %10 = tpu.matmul %9, %7, %cst_8 {dimension_numbers = #tpu.dot_dimension_numbers<[1], [0], [0], [1], [0, 0, 1, 1], [], []>} : vector<8x32xbf16>, vector<32x128xbf16>, vector<8x128xf32> -> vector<8x128xf32>
    %11 = arith.addf %6, %10 : vector<8x128xf32>
    %12 = vector.extract_strided_slice %2 {offsets = [0, 2], sizes = [32, 128], strides = [1, 1]} : vector<32x256xbf16> to vector<32x128xbf16>
    %c2 = arith.constant 2 : index
    %c0_9 = arith.constant 0 : index
    %c0_10 = arith.constant 0 : index
    %13 = vector.load %arg1[%c2, %c0_9, %c0_10] : memref<4x8x32xbf16, #tpu.memory_space<vmem>>, vector<1x8x32xbf16>
    %14 = vector.shape_cast %13 : vector<1x8x32xbf16> to vector<8x32xbf16>
    %cst_11 = arith.constant dense<0.000000e+00> : vector<8x128xf32>
    %15 = tpu.matmul %14, %12, %cst_11 {dimension_numbers = #tpu.dot_dimension_numbers<[1], [0], [0], [1], [0, 0, 1, 1], [], []>} : vector<8x32xbf16>, vector<32x128xbf16>, vector<8x128xf32> -> vector<8x128xf32>
    %16 = arith.addf %11, %15 : vector<8x128xf32>
    %17 = vector.extract_strided_slice %2 {offsets = [0, 3], sizes = [32, 128], strides = [1, 1]} : vector<32x256xbf16> to vector<32x128xbf16>
    %c3 = arith.constant 3 : index
    %c0_12 = arith.constant 0 : index
    %c0_13 = arith.constant 0 : index
    %18 = vector.load %arg1[%c3, %c0_12, %c0_13] : memref<4x8x32xbf16, #tpu.memory_space<vmem>>, vector<1x8x32xbf16>
    %19 = vector.shape_cast %18 : vector<1x8x32xbf16> to vector<8x32xbf16>
    %cst_14 = arith.constant dense<0.000000e+00> : vector<8x128xf32>
    %20 = tpu.matmul %19, %17, %cst_14 {dimension_numbers = #tpu.dot_dimension_numbers<[1], [0], [0], [1], [0, 0, 1, 1], [], []>} : vector<8x32xbf16>, vector<32x128xbf16>, vector<8x128xf32> -> vector<8x128xf32>
    %21 = arith.addf %16, %20 : vector<8x128xf32>
    %c0_15 = arith.constant 0 : index
    %c0_16 = arith.constant 0 : index
    %22 = vector.load %arg2[%c0_15, %c0_16] : memref<8x1xf32, #tpu.memory_space<vmem>>, vector<8x1xf32>
    %23 = vector.broadcast %22 : vector<8x1xf32> to vector<8x128xf32>
    %24 = arith.addf %21, %23 : vector<8x128xf32>
    %cst_17 = arith.constant 0.000000e+00 : f32
    %25 = vector.broadcast %cst_17 : f32 to vector<8x128xf32>
    %26 = arith.cmpf oge, %24, %25 : vector<8x128xf32>
    %cst_18 = arith.constant 2.000000e-01 : f32
    %27 = vector.broadcast %cst_18 : f32 to vector<8x128xf32>
    %28 = arith.mulf %27, %24 : vector<8x128xf32>
    %29 = arith.select %26, %24, %28 : vector<8x128xi1>, vector<8x128xf32>
    %30 = arith.truncf %29 : vector<8x128xf32> to vector<8x128xbf16>
    %c0_19 = arith.constant 0 : index
    %c0_20 = arith.constant 0 : index
    %31 = vector.load %arg5[%c0_19, %c0_20] : memref<8x128xbf16, #tpu.memory_space<vmem>>, vector<8x128xbf16>
    tpu.vector_store %arg5[%c0_19, %c0_20], %30 {strides = array<i32>} : memref<8x128xbf16, #tpu.memory_space<vmem>>, vector<8x128xbf16>,
    return
  }
  func.func @transform_0(%arg0: i32) -> (i32, i32, i32) {
    %c0_i32 = arith.constant 0 : i32
    %c0_i32_0 = arith.constant 0 : i32
    %c0_i32_1 = arith.constant 0 : i32
    %c0_i32_2 = arith.constant 0 : i32
    return %c0_i32, %c0_i32_0, %c0_i32_1 : i32, i32, i32
  }
  func.func @transform_1(%arg0: i32) -> (i32, i32) {
    %c0_i32 = arith.constant 0 : i32
    %c0_i32_0 = arith.constant 0 : i32
    %c0_i32_1 = arith.constant 0 : i32
    return %c0_i32, %c0_i32_0 : i32, i32
  }
  func.func @transform_2(%arg0: i32) -> (i32, i32) {
    %c0_i32 = arith.constant 0 : i32
    %c0_i32_0 = arith.constant 0 : i32
    return %c0_i32, %arg0 : i32, i32
  }
  func.func @transform_3(%arg0: i32) -> (i32, i32) {
    %c1_i32 = arith.constant 1 : i32
    %0 = arith.addi %arg0, %c1_i32 : i32
    %c0_i32 = arith.constant 0 : i32
    %c0_i32_0 = arith.constant 0 : i32
    return %c0_i32, %0 : i32, i32
  }
  func.func @transform_4(%arg0: i32) -> (i32, i32) {
    %c0_i32 = arith.constant 0 : i32
    %c0_i32_0 = arith.constant 0 : i32
    return %c0_i32, %arg0 : i32, i32
  }
}

module attributes {stable_mosaic.version = 11 : i64} {
  func.func @_conv_tap_kernel(%arg0: i32, %arg1: memref<9x8x16xbf16, #tpu.memory_space<vmem>>, %arg2: memref<8x1xf32, #tpu.memory_space<vmem>>, %arg3: memref<16x128xbf16, #tpu.memory_space<vmem>>, %arg4: memref<16x128xbf16, #tpu.memory_space<vmem>>, %arg5: memref<8x128xbf16, #tpu.memory_space<vmem>>) attributes {dimension_semantics = [#tpu.dimension_semantics<parallel>], iteration_bounds = array<i64: 1>, scalar_prefetch = 0 : i64, scratch_operands = 0 : i64, tpu.core_type = #tpu.core_type<tc>, window_params = [{pipeline_mode = #tpu.pipeline_mode<synchronous>, transform_indices = @transform_0, window_bounds = array<i64: 9, 8, 16>}, {pipeline_mode = #tpu.pipeline_mode<synchronous>, transform_indices = @transform_1, window_bounds = array<i64: 8, 1>}, {transform_indices = @transform_2, window_bounds = array<i64: 16, 128>}, {transform_indices = @transform_3, window_bounds = array<i64: 16, 128>}, {transform_indices = @transform_4, window_bounds = array<i64: 8, 128>}]} {
    %c0 = arith.constant 0 : index
    %c0_0 = arith.constant 0 : index
    %0 = vector.load %arg3[%c0, %c0_0] : memref<16x128xbf16, #tpu.memory_space<vmem>>, vector<16x128xbf16>
    %c0_1 = arith.constant 0 : index
    %c0_2 = arith.constant 0 : index
    %1 = vector.load %arg4[%c0_1, %c0_2] : memref<16x128xbf16, #tpu.memory_space<vmem>>, vector<16x128xbf16>
    %2 = tpu.concatenate %0, %1 in 1 : vector<16x128xbf16>, vector<16x128xbf16> -> vector<16x256xbf16>
    %3 = vector.extract_strided_slice %2 {offsets = [0, 0], sizes = [16, 128], strides = [1, 1]} : vector<16x256xbf16> to vector<16x128xbf16>
    %c0_3 = arith.constant 0 : index
    %c0_4 = arith.constant 0 : index
    %c0_5 = arith.constant 0 : index
    %4 = vector.load %arg1[%c0_3, %c0_4, %c0_5] : memref<9x8x16xbf16, #tpu.memory_space<vmem>>, vector<1x8x16xbf16>
    %5 = vector.shape_cast %4 : vector<1x8x16xbf16> to vector<8x16xbf16>
    %cst = arith.constant dense<0.000000e+00> : vector<8x128xf32>
    %6 = tpu.matmul %5, %3, %cst {dimension_numbers = #tpu.dot_dimension_numbers<[1], [0], [0], [1], [0, 0, 1, 1], [], []>} : vector<8x16xbf16>, vector<16x128xbf16>, vector<8x128xf32> -> vector<8x128xf32>
    %7 = vector.extract_strided_slice %2 {offsets = [0, 1], sizes = [16, 128], strides = [1, 1]} : vector<16x256xbf16> to vector<16x128xbf16>
    %c1 = arith.constant 1 : index
    %c0_6 = arith.constant 0 : index
    %c0_7 = arith.constant 0 : index
    %8 = vector.load %arg1[%c1, %c0_6, %c0_7] : memref<9x8x16xbf16, #tpu.memory_space<vmem>>, vector<1x8x16xbf16>
    %9 = vector.shape_cast %8 : vector<1x8x16xbf16> to vector<8x16xbf16>
    %cst_8 = arith.constant dense<0.000000e+00> : vector<8x128xf32>
    %10 = tpu.matmul %9, %7, %cst_8 {dimension_numbers = #tpu.dot_dimension_numbers<[1], [0], [0], [1], [0, 0, 1, 1], [], []>} : vector<8x16xbf16>, vector<16x128xbf16>, vector<8x128xf32> -> vector<8x128xf32>
    %11 = arith.addf %6, %10 : vector<8x128xf32>
    %12 = vector.extract_strided_slice %2 {offsets = [0, 2], sizes = [16, 128], strides = [1, 1]} : vector<16x256xbf16> to vector<16x128xbf16>
    %c2 = arith.constant 2 : index
    %c0_9 = arith.constant 0 : index
    %c0_10 = arith.constant 0 : index
    %13 = vector.load %arg1[%c2, %c0_9, %c0_10] : memref<9x8x16xbf16, #tpu.memory_space<vmem>>, vector<1x8x16xbf16>
    %14 = vector.shape_cast %13 : vector<1x8x16xbf16> to vector<8x16xbf16>
    %cst_11 = arith.constant dense<0.000000e+00> : vector<8x128xf32>
    %15 = tpu.matmul %14, %12, %cst_11 {dimension_numbers = #tpu.dot_dimension_numbers<[1], [0], [0], [1], [0, 0, 1, 1], [], []>} : vector<8x16xbf16>, vector<16x128xbf16>, vector<8x128xf32> -> vector<8x128xf32>
    %16 = arith.addf %11, %15 : vector<8x128xf32>
    %17 = vector.extract_strided_slice %2 {offsets = [0, 4], sizes = [16, 128], strides = [1, 1]} : vector<16x256xbf16> to vector<16x128xbf16>
    %c3 = arith.constant 3 : index
    %c0_12 = arith.constant 0 : index
    %c0_13 = arith.constant 0 : index
    %18 = vector.load %arg1[%c3, %c0_12, %c0_13] : memref<9x8x16xbf16, #tpu.memory_space<vmem>>, vector<1x8x16xbf16>
    %19 = vector.shape_cast %18 : vector<1x8x16xbf16> to vector<8x16xbf16>
    %cst_14 = arith.constant dense<0.000000e+00> : vector<8x128xf32>
    %20 = tpu.matmul %19, %17, %cst_14 {dimension_numbers = #tpu.dot_dimension_numbers<[1], [0], [0], [1], [0, 0, 1, 1], [], []>} : vector<8x16xbf16>, vector<16x128xbf16>, vector<8x128xf32> -> vector<8x128xf32>
    %21 = arith.addf %16, %20 : vector<8x128xf32>
    %22 = vector.extract_strided_slice %2 {offsets = [0, 5], sizes = [16, 128], strides = [1, 1]} : vector<16x256xbf16> to vector<16x128xbf16>
    %c4 = arith.constant 4 : index
    %c0_15 = arith.constant 0 : index
    %c0_16 = arith.constant 0 : index
    %23 = vector.load %arg1[%c4, %c0_15, %c0_16] : memref<9x8x16xbf16, #tpu.memory_space<vmem>>, vector<1x8x16xbf16>
    %24 = vector.shape_cast %23 : vector<1x8x16xbf16> to vector<8x16xbf16>
    %cst_17 = arith.constant dense<0.000000e+00> : vector<8x128xf32>
    %25 = tpu.matmul %24, %22, %cst_17 {dimension_numbers = #tpu.dot_dimension_numbers<[1], [0], [0], [1], [0, 0, 1, 1], [], []>} : vector<8x16xbf16>, vector<16x128xbf16>, vector<8x128xf32> -> vector<8x128xf32>
    %26 = arith.addf %21, %25 : vector<8x128xf32>
    %27 = vector.extract_strided_slice %2 {offsets = [0, 6], sizes = [16, 128], strides = [1, 1]} : vector<16x256xbf16> to vector<16x128xbf16>
    %c5 = arith.constant 5 : index
    %c0_18 = arith.constant 0 : index
    %c0_19 = arith.constant 0 : index
    %28 = vector.load %arg1[%c5, %c0_18, %c0_19] : memref<9x8x16xbf16, #tpu.memory_space<vmem>>, vector<1x8x16xbf16>
    %29 = vector.shape_cast %28 : vector<1x8x16xbf16> to vector<8x16xbf16>
    %cst_20 = arith.constant dense<0.000000e+00> : vector<8x128xf32>
    %30 = tpu.matmul %29, %27, %cst_20 {dimension_numbers = #tpu.dot_dimension_numbers<[1], [0], [0], [1], [0, 0, 1, 1], [], []>} : vector<8x16xbf16>, vector<16x128xbf16>, vector<8x128xf32> -> vector<8x128xf32>
    %31 = arith.addf %26, %30 : vector<8x128xf32>
    %32 = vector.extract_strided_slice %2 {offsets = [0, 8], sizes = [16, 128], strides = [1, 1]} : vector<16x256xbf16> to vector<16x128xbf16>
    %c6 = arith.constant 6 : index
    %c0_21 = arith.constant 0 : index
    %c0_22 = arith.constant 0 : index
    %33 = vector.load %arg1[%c6, %c0_21, %c0_22] : memref<9x8x16xbf16, #tpu.memory_space<vmem>>, vector<1x8x16xbf16>
    %34 = vector.shape_cast %33 : vector<1x8x16xbf16> to vector<8x16xbf16>
    %cst_23 = arith.constant dense<0.000000e+00> : vector<8x128xf32>
    %35 = tpu.matmul %34, %32, %cst_23 {dimension_numbers = #tpu.dot_dimension_numbers<[1], [0], [0], [1], [0, 0, 1, 1], [], []>} : vector<8x16xbf16>, vector<16x128xbf16>, vector<8x128xf32> -> vector<8x128xf32>
    %36 = arith.addf %31, %35 : vector<8x128xf32>
    %37 = vector.extract_strided_slice %2 {offsets = [0, 9], sizes = [16, 128], strides = [1, 1]} : vector<16x256xbf16> to vector<16x128xbf16>
    %c7 = arith.constant 7 : index
    %c0_24 = arith.constant 0 : index
    %c0_25 = arith.constant 0 : index
    %38 = vector.load %arg1[%c7, %c0_24, %c0_25] : memref<9x8x16xbf16, #tpu.memory_space<vmem>>, vector<1x8x16xbf16>
    %39 = vector.shape_cast %38 : vector<1x8x16xbf16> to vector<8x16xbf16>
    %cst_26 = arith.constant dense<0.000000e+00> : vector<8x128xf32>
    %40 = tpu.matmul %39, %37, %cst_26 {dimension_numbers = #tpu.dot_dimension_numbers<[1], [0], [0], [1], [0, 0, 1, 1], [], []>} : vector<8x16xbf16>, vector<16x128xbf16>, vector<8x128xf32> -> vector<8x128xf32>
    %41 = arith.addf %36, %40 : vector<8x128xf32>
    %42 = vector.extract_strided_slice %2 {offsets = [0, 10], sizes = [16, 128], strides = [1, 1]} : vector<16x256xbf16> to vector<16x128xbf16>
    %c8 = arith.constant 8 : index
    %c0_27 = arith.constant 0 : index
    %c0_28 = arith.constant 0 : index
    %43 = vector.load %arg1[%c8, %c0_27, %c0_28] : memref<9x8x16xbf16, #tpu.memory_space<vmem>>, vector<1x8x16xbf16>
    %44 = vector.shape_cast %43 : vector<1x8x16xbf16> to vector<8x16xbf16>
    %cst_29 = arith.constant dense<0.000000e+00> : vector<8x128xf32>
    %45 = tpu.matmul %44, %42, %cst_29 {dimension_numbers = #tpu.dot_dimension_numbers<[1], [0], [0], [1], [0, 0, 1, 1], [], []>} : vector<8x16xbf16>, vector<16x128xbf16>, vector<8x128xf32> -> vector<8x128xf32>
    %46 = arith.addf %41, %45 : vector<8x128xf32>
    %c0_30 = arith.constant 0 : index
    %c0_31 = arith.constant 0 : index
    %47 = vector.load %arg2[%c0_30, %c0_31] : memref<8x1xf32, #tpu.memory_space<vmem>>, vector<8x1xf32>
    %48 = vector.broadcast %47 : vector<8x1xf32> to vector<8x128xf32>
    %49 = arith.addf %46, %48 : vector<8x128xf32>
    %cst_32 = arith.constant 0.000000e+00 : f32
    %50 = vector.broadcast %cst_32 : f32 to vector<8x128xf32>
    %51 = arith.cmpf oge, %49, %50 : vector<8x128xf32>
    %cst_33 = arith.constant 2.000000e-01 : f32
    %52 = vector.broadcast %cst_33 : f32 to vector<8x128xf32>
    %53 = arith.mulf %52, %49 : vector<8x128xf32>
    %54 = arith.select %51, %49, %53 : vector<8x128xi1>, vector<8x128xf32>
    %55 = arith.truncf %54 : vector<8x128xf32> to vector<8x128xbf16>
    %c0_34 = arith.constant 0 : index
    %c0_35 = arith.constant 0 : index
    %56 = vector.load %arg5[%c0_34, %c0_35] : memref<8x128xbf16, #tpu.memory_space<vmem>>, vector<8x128xbf16>
    tpu.vector_store %arg5[%c0_34, %c0_35], %55 {strides = array<i32>} : memref<8x128xbf16, #tpu.memory_space<vmem>>, vector<8x128xbf16>,
    return
  }
  func.func @transform_0(%arg0: i32) -> (i32, i32, i32) {
    %c0_i32 = arith.constant 0 : i32
    %c0_i32_0 = arith.constant 0 : i32
    %c0_i32_1 = arith.constant 0 : i32
    %c0_i32_2 = arith.constant 0 : i32
    return %c0_i32, %c0_i32_0, %c0_i32_1 : i32, i32, i32
  }
  func.func @transform_1(%arg0: i32) -> (i32, i32) {
    %c0_i32 = arith.constant 0 : i32
    %c0_i32_0 = arith.constant 0 : i32
    %c0_i32_1 = arith.constant 0 : i32
    return %c0_i32, %c0_i32_0 : i32, i32
  }
  func.func @transform_2(%arg0: i32) -> (i32, i32) {
    %c0_i32 = arith.constant 0 : i32
    %c0_i32_0 = arith.constant 0 : i32
    return %c0_i32, %arg0 : i32, i32
  }
  func.func @transform_3(%arg0: i32) -> (i32, i32) {
    %c1_i32 = arith.constant 1 : i32
    %0 = arith.addi %arg0, %c1_i32 : i32
    %c0_i32 = arith.constant 0 : i32
    %c0_i32_0 = arith.constant 0 : i32
    return %c0_i32, %0 : i32, i32
  }
  func.func @transform_4(%arg0: i32) -> (i32, i32) {
    %c0_i32 = arith.constant 0 : i32
    %c0_i32_0 = arith.constant 0 : i32
    return %c0_i32, %arg0 : i32, i32
  }
}

module attributes {stable_mosaic.version = 11 : i64} {
  func.func @_conv_tap_kernel(%arg0: i32, %arg1: memref<9x8x16xbf16, #tpu.memory_space<vmem>>, %arg2: memref<8x1xf32, #tpu.memory_space<vmem>>, %arg3: memref<16x128xbf16, #tpu.memory_space<vmem>>, %arg4: memref<16x128xbf16, #tpu.memory_space<vmem>>, %arg5: memref<8x128xbf16, #tpu.memory_space<vmem>>) attributes {dimension_semantics = [#tpu.dimension_semantics<parallel>], iteration_bounds = array<i64: 1>, scalar_prefetch = 0 : i64, scratch_operands = 0 : i64, tpu.core_type = #tpu.core_type<tc>, window_params = [{pipeline_mode = #tpu.pipeline_mode<synchronous>, transform_indices = @transform_0, window_bounds = array<i64: 9, 8, 16>}, {pipeline_mode = #tpu.pipeline_mode<synchronous>, transform_indices = @transform_1, window_bounds = array<i64: 8, 1>}, {transform_indices = @transform_2, window_bounds = array<i64: 16, 128>}, {transform_indices = @transform_3, window_bounds = array<i64: 16, 128>}, {transform_indices = @transform_4, window_bounds = array<i64: 8, 128>}]} {
    %c0 = arith.constant 0 : index
    %c0_0 = arith.constant 0 : index
    %0 = vector.load %arg3[%c0, %c0_0] : memref<16x128xbf16, #tpu.memory_space<vmem>>, vector<16x128xbf16>
    %c0_1 = arith.constant 0 : index
    %c0_2 = arith.constant 0 : index
    %1 = vector.load %arg4[%c0_1, %c0_2] : memref<16x128xbf16, #tpu.memory_space<vmem>>, vector<16x128xbf16>
    %2 = tpu.concatenate %0, %1 in 1 : vector<16x128xbf16>, vector<16x128xbf16> -> vector<16x256xbf16>
    %3 = vector.extract_strided_slice %2 {offsets = [0, 0], sizes = [16, 128], strides = [1, 1]} : vector<16x256xbf16> to vector<16x128xbf16>
    %c0_3 = arith.constant 0 : index
    %c0_4 = arith.constant 0 : index
    %c0_5 = arith.constant 0 : index
    %4 = vector.load %arg1[%c0_3, %c0_4, %c0_5] : memref<9x8x16xbf16, #tpu.memory_space<vmem>>, vector<1x8x16xbf16>
    %5 = vector.shape_cast %4 : vector<1x8x16xbf16> to vector<8x16xbf16>
    %cst = arith.constant dense<0.000000e+00> : vector<8x128xf32>
    %6 = tpu.matmul %5, %3, %cst {dimension_numbers = #tpu.dot_dimension_numbers<[1], [0], [0], [1], [0, 0, 1, 1], [], []>} : vector<8x16xbf16>, vector<16x128xbf16>, vector<8x128xf32> -> vector<8x128xf32>
    %7 = vector.extract_strided_slice %2 {offsets = [0, 1], sizes = [16, 128], strides = [1, 1]} : vector<16x256xbf16> to vector<16x128xbf16>
    %c1 = arith.constant 1 : index
    %c0_6 = arith.constant 0 : index
    %c0_7 = arith.constant 0 : index
    %8 = vector.load %arg1[%c1, %c0_6, %c0_7] : memref<9x8x16xbf16, #tpu.memory_space<vmem>>, vector<1x8x16xbf16>
    %9 = vector.shape_cast %8 : vector<1x8x16xbf16> to vector<8x16xbf16>
    %cst_8 = arith.constant dense<0.000000e+00> : vector<8x128xf32>
    %10 = tpu.matmul %9, %7, %cst_8 {dimension_numbers = #tpu.dot_dimension_numbers<[1], [0], [0], [1], [0, 0, 1, 1], [], []>} : vector<8x16xbf16>, vector<16x128xbf16>, vector<8x128xf32> -> vector<8x128xf32>
    %11 = arith.addf %6, %10 : vector<8x128xf32>
    %12 = vector.extract_strided_slice %2 {offsets = [0, 2], sizes = [16, 128], strides = [1, 1]} : vector<16x256xbf16> to vector<16x128xbf16>
    %c2 = arith.constant 2 : index
    %c0_9 = arith.constant 0 : index
    %c0_10 = arith.constant 0 : index
    %13 = vector.load %arg1[%c2, %c0_9, %c0_10] : memref<9x8x16xbf16, #tpu.memory_space<vmem>>, vector<1x8x16xbf16>
    %14 = vector.shape_cast %13 : vector<1x8x16xbf16> to vector<8x16xbf16>
    %cst_11 = arith.constant dense<0.000000e+00> : vector<8x128xf32>
    %15 = tpu.matmul %14, %12, %cst_11 {dimension_numbers = #tpu.dot_dimension_numbers<[1], [0], [0], [1], [0, 0, 1, 1], [], []>} : vector<8x16xbf16>, vector<16x128xbf16>, vector<8x128xf32> -> vector<8x128xf32>
    %16 = arith.addf %11, %15 : vector<8x128xf32>
    %17 = vector.extract_strided_slice %2 {offsets = [0, 6], sizes = [16, 128], strides = [1, 1]} : vector<16x256xbf16> to vector<16x128xbf16>
    %c3 = arith.constant 3 : index
    %c0_12 = arith.constant 0 : index
    %c0_13 = arith.constant 0 : index
    %18 = vector.load %arg1[%c3, %c0_12, %c0_13] : memref<9x8x16xbf16, #tpu.memory_space<vmem>>, vector<1x8x16xbf16>
    %19 = vector.shape_cast %18 : vector<1x8x16xbf16> to vector<8x16xbf16>
    %cst_14 = arith.constant dense<0.000000e+00> : vector<8x128xf32>
    %20 = tpu.matmul %19, %17, %cst_14 {dimension_numbers = #tpu.dot_dimension_numbers<[1], [0], [0], [1], [0, 0, 1, 1], [], []>} : vector<8x16xbf16>, vector<16x128xbf16>, vector<8x128xf32> -> vector<8x128xf32>
    %21 = arith.addf %16, %20 : vector<8x128xf32>
    %22 = vector.extract_strided_slice %2 {offsets = [0, 7], sizes = [16, 128], strides = [1, 1]} : vector<16x256xbf16> to vector<16x128xbf16>
    %c4 = arith.constant 4 : index
    %c0_15 = arith.constant 0 : index
    %c0_16 = arith.constant 0 : index
    %23 = vector.load %arg1[%c4, %c0_15, %c0_16] : memref<9x8x16xbf16, #tpu.memory_space<vmem>>, vector<1x8x16xbf16>
    %24 = vector.shape_cast %23 : vector<1x8x16xbf16> to vector<8x16xbf16>
    %cst_17 = arith.constant dense<0.000000e+00> : vector<8x128xf32>
    %25 = tpu.matmul %24, %22, %cst_17 {dimension_numbers = #tpu.dot_dimension_numbers<[1], [0], [0], [1], [0, 0, 1, 1], [], []>} : vector<8x16xbf16>, vector<16x128xbf16>, vector<8x128xf32> -> vector<8x128xf32>
    %26 = arith.addf %21, %25 : vector<8x128xf32>
    %27 = vector.extract_strided_slice %2 {offsets = [0, 8], sizes = [16, 128], strides = [1, 1]} : vector<16x256xbf16> to vector<16x128xbf16>
    %c5 = arith.constant 5 : index
    %c0_18 = arith.constant 0 : index
    %c0_19 = arith.constant 0 : index
    %28 = vector.load %arg1[%c5, %c0_18, %c0_19] : memref<9x8x16xbf16, #tpu.memory_space<vmem>>, vector<1x8x16xbf16>
    %29 = vector.shape_cast %28 : vector<1x8x16xbf16> to vector<8x16xbf16>
    %cst_20 = arith.constant dense<0.000000e+00> : vector<8x128xf32>
    %30 = tpu.matmul %29, %27, %cst_20 {dimension_numbers = #tpu.dot_dimension_numbers<[1], [0], [0], [1], [0, 0, 1, 1], [], []>} : vector<8x16xbf16>, vector<16x128xbf16>, vector<8x128xf32> -> vector<8x128xf32>
    %31 = arith.addf %26, %30 : vector<8x128xf32>
    %32 = vector.extract_strided_slice %2 {offsets = [0, 12], sizes = [16, 128], strides = [1, 1]} : vector<16x256xbf16> to vector<16x128xbf16>
    %c6 = arith.constant 6 : index
    %c0_21 = arith.constant 0 : index
    %c0_22 = arith.constant 0 : index
    %33 = vector.load %arg1[%c6, %c0_21, %c0_22] : memref<9x8x16xbf16, #tpu.memory_space<vmem>>, vector<1x8x16xbf16>
    %34 = vector.shape_cast %33 : vector<1x8x16xbf16> to vector<8x16xbf16>
    %cst_23 = arith.constant dense<0.000000e+00> : vector<8x128xf32>
    %35 = tpu.matmul %34, %32, %cst_23 {dimension_numbers = #tpu.dot_dimension_numbers<[1], [0], [0], [1], [0, 0, 1, 1], [], []>} : vector<8x16xbf16>, vector<16x128xbf16>, vector<8x128xf32> -> vector<8x128xf32>
    %36 = arith.addf %31, %35 : vector<8x128xf32>
    %37 = vector.extract_strided_slice %2 {offsets = [0, 13], sizes = [16, 128], strides = [1, 1]} : vector<16x256xbf16> to vector<16x128xbf16>
    %c7 = arith.constant 7 : index
    %c0_24 = arith.constant 0 : index
    %c0_25 = arith.constant 0 : index
    %38 = vector.load %arg1[%c7, %c0_24, %c0_25] : memref<9x8x16xbf16, #tpu.memory_space<vmem>>, vector<1x8x16xbf16>
    %39 = vector.shape_cast %38 : vector<1x8x16xbf16> to vector<8x16xbf16>
    %cst_26 = arith.constant dense<0.000000e+00> : vector<8x128xf32>
    %40 = tpu.matmul %39, %37, %cst_26 {dimension_numbers = #tpu.dot_dimension_numbers<[1], [0], [0], [1], [0, 0, 1, 1], [], []>} : vector<8x16xbf16>, vector<16x128xbf16>, vector<8x128xf32> -> vector<8x128xf32>
    %41 = arith.addf %36, %40 : vector<8x128xf32>
    %42 = vector.extract_strided_slice %2 {offsets = [0, 14], sizes = [16, 128], strides = [1, 1]} : vector<16x256xbf16> to vector<16x128xbf16>
    %c8 = arith.constant 8 : index
    %c0_27 = arith.constant 0 : index
    %c0_28 = arith.constant 0 : index
    %43 = vector.load %arg1[%c8, %c0_27, %c0_28] : memref<9x8x16xbf16, #tpu.memory_space<vmem>>, vector<1x8x16xbf16>
    %44 = vector.shape_cast %43 : vector<1x8x16xbf16> to vector<8x16xbf16>
    %cst_29 = arith.constant dense<0.000000e+00> : vector<8x128xf32>
    %45 = tpu.matmul %44, %42, %cst_29 {dimension_numbers = #tpu.dot_dimension_numbers<[1], [0], [0], [1], [0, 0, 1, 1], [], []>} : vector<8x16xbf16>, vector<16x128xbf16>, vector<8x128xf32> -> vector<8x128xf32>
    %46 = arith.addf %41, %45 : vector<8x128xf32>
    %c0_30 = arith.constant 0 : index
    %c0_31 = arith.constant 0 : index
    %47 = vector.load %arg2[%c0_30, %c0_31] : memref<8x1xf32, #tpu.memory_space<vmem>>, vector<8x1xf32>
    %48 = vector.broadcast %47 : vector<8x1xf32> to vector<8x128xf32>
    %49 = arith.addf %46, %48 : vector<8x128xf32>
    %cst_32 = arith.constant 0.000000e+00 : f32
    %50 = vector.broadcast %cst_32 : f32 to vector<8x128xf32>
    %51 = arith.cmpf oge, %49, %50 : vector<8x128xf32>
    %cst_33 = arith.constant 2.000000e-01 : f32
    %52 = vector.broadcast %cst_33 : f32 to vector<8x128xf32>
    %53 = arith.mulf %52, %49 : vector<8x128xf32>
    %54 = arith.select %51, %49, %53 : vector<8x128xi1>, vector<8x128xf32>
    %55 = arith.truncf %54 : vector<8x128xf32> to vector<8x128xbf16>
    %c0_34 = arith.constant 0 : index
    %c0_35 = arith.constant 0 : index
    %56 = vector.load %arg5[%c0_34, %c0_35] : memref<8x128xbf16, #tpu.memory_space<vmem>>, vector<8x128xbf16>
    tpu.vector_store %arg5[%c0_34, %c0_35], %55 {strides = array<i32>} : memref<8x128xbf16, #tpu.memory_space<vmem>>, vector<8x128xbf16>,
    return
  }
  func.func @transform_0(%arg0: i32) -> (i32, i32, i32) {
    %c0_i32 = arith.constant 0 : i32
    %c0_i32_0 = arith.constant 0 : i32
    %c0_i32_1 = arith.constant 0 : i32
    %c0_i32_2 = arith.constant 0 : i32
    return %c0_i32, %c0_i32_0, %c0_i32_1 : i32, i32, i32
  }
  func.func @transform_1(%arg0: i32) -> (i32, i32) {
    %c0_i32 = arith.constant 0 : i32
    %c0_i32_0 = arith.constant 0 : i32
    %c0_i32_1 = arith.constant 0 : i32
    return %c0_i32, %c0_i32_0 : i32, i32
  }
  func.func @transform_2(%arg0: i32) -> (i32, i32) {
    %c0_i32 = arith.constant 0 : i32
    %c0_i32_0 = arith.constant 0 : i32
    return %c0_i32, %arg0 : i32, i32
  }
  func.func @transform_3(%arg0: i32) -> (i32, i32) {
    %c1_i32 = arith.constant 1 : i32
    %0 = arith.addi %arg0, %c1_i32 : i32
    %c0_i32 = arith.constant 0 : i32
    %c0_i32_0 = arith.constant 0 : i32
    return %c0_i32, %0 : i32, i32
  }
  func.func @transform_4(%arg0: i32) -> (i32, i32) {
    %c0_i32 = arith.constant 0 : i32
    %c0_i32_0 = arith.constant 0 : i32
    return %c0_i32, %arg0 : i32, i32
  }
}

module attributes {stable_mosaic.version = 11 : i64} {
  func.func @_conv_tap_kernel(%arg0: i32, %arg1: memref<9x8x12xbf16, #tpu.memory_space<vmem>>, %arg2: memref<8x1xf32, #tpu.memory_space<vmem>>, %arg3: memref<12x128xbf16, #tpu.memory_space<vmem>>, %arg4: memref<12x128xbf16, #tpu.memory_space<vmem>>, %arg5: memref<8x128xbf16, #tpu.memory_space<vmem>>) attributes {dimension_semantics = [#tpu.dimension_semantics<parallel>], iteration_bounds = array<i64: 2>, scalar_prefetch = 0 : i64, scratch_operands = 0 : i64, tpu.core_type = #tpu.core_type<tc>, window_params = [{pipeline_mode = #tpu.pipeline_mode<synchronous>, transform_indices = @transform_0, window_bounds = array<i64: 9, 8, 12>}, {pipeline_mode = #tpu.pipeline_mode<synchronous>, transform_indices = @transform_1, window_bounds = array<i64: 8, 1>}, {transform_indices = @transform_2, window_bounds = array<i64: 12, 128>}, {transform_indices = @transform_3, window_bounds = array<i64: 12, 128>}, {transform_indices = @transform_4, window_bounds = array<i64: 8, 128>}]} {
    %c0 = arith.constant 0 : index
    %c0_0 = arith.constant 0 : index
    %0 = vector.load %arg3[%c0, %c0_0] : memref<12x128xbf16, #tpu.memory_space<vmem>>, vector<12x128xbf16>
    %c0_1 = arith.constant 0 : index
    %c0_2 = arith.constant 0 : index
    %1 = vector.load %arg4[%c0_1, %c0_2] : memref<12x128xbf16, #tpu.memory_space<vmem>>, vector<12x128xbf16>
    %2 = tpu.concatenate %0, %1 in 1 : vector<12x128xbf16>, vector<12x128xbf16> -> vector<12x256xbf16>
    %3 = vector.extract_strided_slice %2 {offsets = [0, 0], sizes = [12, 128], strides = [1, 1]} : vector<12x256xbf16> to vector<12x128xbf16>
    %c0_3 = arith.constant 0 : index
    %c0_4 = arith.constant 0 : index
    %c0_5 = arith.constant 0 : index
    %4 = vector.load %arg1[%c0_3, %c0_4, %c0_5] : memref<9x8x12xbf16, #tpu.memory_space<vmem>>, vector<1x8x12xbf16>
    %5 = vector.shape_cast %4 : vector<1x8x12xbf16> to vector<8x12xbf16>
    %cst = arith.constant dense<0.000000e+00> : vector<8x128xf32>
    %6 = tpu.matmul %5, %3, %cst {dimension_numbers = #tpu.dot_dimension_numbers<[1], [0], [0], [1], [0, 0, 1, 1], [], []>} : vector<8x12xbf16>, vector<12x128xbf16>, vector<8x128xf32> -> vector<8x128xf32>
    %7 = vector.extract_strided_slice %2 {offsets = [0, 1], sizes = [12, 128], strides = [1, 1]} : vector<12x256xbf16> to vector<12x128xbf16>
    %c1 = arith.constant 1 : index
    %c0_6 = arith.constant 0 : index
    %c0_7 = arith.constant 0 : index
    %8 = vector.load %arg1[%c1, %c0_6, %c0_7] : memref<9x8x12xbf16, #tpu.memory_space<vmem>>, vector<1x8x12xbf16>
    %9 = vector.shape_cast %8 : vector<1x8x12xbf16> to vector<8x12xbf16>
    %cst_8 = arith.constant dense<0.000000e+00> : vector<8x128xf32>
    %10 = tpu.matmul %9, %7, %cst_8 {dimension_numbers = #tpu.dot_dimension_numbers<[1], [0], [0], [1], [0, 0, 1, 1], [], []>} : vector<8x12xbf16>, vector<12x128xbf16>, vector<8x128xf32> -> vector<8x128xf32>
    %11 = arith.addf %6, %10 : vector<8x128xf32>
    %12 = vector.extract_strided_slice %2 {offsets = [0, 2], sizes = [12, 128], strides = [1, 1]} : vector<12x256xbf16> to vector<12x128xbf16>
    %c2 = arith.constant 2 : index
    %c0_9 = arith.constant 0 : index
    %c0_10 = arith.constant 0 : index
    %13 = vector.load %arg1[%c2, %c0_9, %c0_10] : memref<9x8x12xbf16, #tpu.memory_space<vmem>>, vector<1x8x12xbf16>
    %14 = vector.shape_cast %13 : vector<1x8x12xbf16> to vector<8x12xbf16>
    %cst_11 = arith.constant dense<0.000000e+00> : vector<8x128xf32>
    %15 = tpu.matmul %14, %12, %cst_11 {dimension_numbers = #tpu.dot_dimension_numbers<[1], [0], [0], [1], [0, 0, 1, 1], [], []>} : vector<8x12xbf16>, vector<12x128xbf16>, vector<8x128xf32> -> vector<8x128xf32>
    %16 = arith.addf %11, %15 : vector<8x128xf32>
    %17 = vector.extract_strided_slice %2 {offsets = [0, 10], sizes = [12, 128], strides = [1, 1]} : vector<12x256xbf16> to vector<12x128xbf16>
    %c3 = arith.constant 3 : index
    %c0_12 = arith.constant 0 : index
    %c0_13 = arith.constant 0 : index
    %18 = vector.load %arg1[%c3, %c0_12, %c0_13] : memref<9x8x12xbf16, #tpu.memory_space<vmem>>, vector<1x8x12xbf16>
    %19 = vector.shape_cast %18 : vector<1x8x12xbf16> to vector<8x12xbf16>
    %cst_14 = arith.constant dense<0.000000e+00> : vector<8x128xf32>
    %20 = tpu.matmul %19, %17, %cst_14 {dimension_numbers = #tpu.dot_dimension_numbers<[1], [0], [0], [1], [0, 0, 1, 1], [], []>} : vector<8x12xbf16>, vector<12x128xbf16>, vector<8x128xf32> -> vector<8x128xf32>
    %21 = arith.addf %16, %20 : vector<8x128xf32>
    %22 = vector.extract_strided_slice %2 {offsets = [0, 11], sizes = [12, 128], strides = [1, 1]} : vector<12x256xbf16> to vector<12x128xbf16>
    %c4 = arith.constant 4 : index
    %c0_15 = arith.constant 0 : index
    %c0_16 = arith.constant 0 : index
    %23 = vector.load %arg1[%c4, %c0_15, %c0_16] : memref<9x8x12xbf16, #tpu.memory_space<vmem>>, vector<1x8x12xbf16>
    %24 = vector.shape_cast %23 : vector<1x8x12xbf16> to vector<8x12xbf16>
    %cst_17 = arith.constant dense<0.000000e+00> : vector<8x128xf32>
    %25 = tpu.matmul %24, %22, %cst_17 {dimension_numbers = #tpu.dot_dimension_numbers<[1], [0], [0], [1], [0, 0, 1, 1], [], []>} : vector<8x12xbf16>, vector<12x128xbf16>, vector<8x128xf32> -> vector<8x128xf32>
    %26 = arith.addf %21, %25 : vector<8x128xf32>
    %27 = vector.extract_strided_slice %2 {offsets = [0, 12], sizes = [12, 128], strides = [1, 1]} : vector<12x256xbf16> to vector<12x128xbf16>
    %c5 = arith.constant 5 : index
    %c0_18 = arith.constant 0 : index
    %c0_19 = arith.constant 0 : index
    %28 = vector.load %arg1[%c5, %c0_18, %c0_19] : memref<9x8x12xbf16, #tpu.memory_space<vmem>>, vector<1x8x12xbf16>
    %29 = vector.shape_cast %28 : vector<1x8x12xbf16> to vector<8x12xbf16>
    %cst_20 = arith.constant dense<0.000000e+00> : vector<8x128xf32>
    %30 = tpu.matmul %29, %27, %cst_20 {dimension_numbers = #tpu.dot_dimension_numbers<[1], [0], [0], [1], [0, 0, 1, 1], [], []>} : vector<8x12xbf16>, vector<12x128xbf16>, vector<8x128xf32> -> vector<8x128xf32>
    %31 = arith.addf %26, %30 : vector<8x128xf32>
    %32 = vector.extract_strided_slice %2 {offsets = [0, 20], sizes = [12, 128], strides = [1, 1]} : vector<12x256xbf16> to vector<12x128xbf16>
    %c6 = arith.constant 6 : index
    %c0_21 = arith.constant 0 : index
    %c0_22 = arith.constant 0 : index
    %33 = vector.load %arg1[%c6, %c0_21, %c0_22] : memref<9x8x12xbf16, #tpu.memory_space<vmem>>, vector<1x8x12xbf16>
    %34 = vector.shape_cast %33 : vector<1x8x12xbf16> to vector<8x12xbf16>
    %cst_23 = arith.constant dense<0.000000e+00> : vector<8x128xf32>
    %35 = tpu.matmul %34, %32, %cst_23 {dimension_numbers = #tpu.dot_dimension_numbers<[1], [0], [0], [1], [0, 0, 1, 1], [], []>} : vector<8x12xbf16>, vector<12x128xbf16>, vector<8x128xf32> -> vector<8x128xf32>
    %36 = arith.addf %31, %35 : vector<8x128xf32>
    %37 = vector.extract_strided_slice %2 {offsets = [0, 21], sizes = [12, 128], strides = [1, 1]} : vector<12x256xbf16> to vector<12x128xbf16>
    %c7 = arith.constant 7 : index
    %c0_24 = arith.constant 0 : index
    %c0_25 = arith.constant 0 : index
    %38 = vector.load %arg1[%c7, %c0_24, %c0_25] : memref<9x8x12xbf16, #tpu.memory_space<vmem>>, vector<1x8x12xbf16>
    %39 = vector.shape_cast %38 : vector<1x8x12xbf16> to vector<8x12xbf16>
    %cst_26 = arith.constant dense<0.000000e+00> : vector<8x128xf32>
    %40 = tpu.matmul %39, %37, %cst_26 {dimension_numbers = #tpu.dot_dimension_numbers<[1], [0], [0], [1], [0, 0, 1, 1], [], []>} : vector<8x12xbf16>, vector<12x128xbf16>, vector<8x128xf32> -> vector<8x128xf32>
    %41 = arith.addf %36, %40 : vector<8x128xf32>
    %42 = vector.extract_strided_slice %2 {offsets = [0, 22], sizes = [12, 128], strides = [1, 1]} : vector<12x256xbf16> to vector<12x128xbf16>
    %c8 = arith.constant 8 : index
    %c0_27 = arith.constant 0 : index
    %c0_28 = arith.constant 0 : index
    %43 = vector.load %arg1[%c8, %c0_27, %c0_28] : memref<9x8x12xbf16, #tpu.memory_space<vmem>>, vector<1x8x12xbf16>
    %44 = vector.shape_cast %43 : vector<1x8x12xbf16> to vector<8x12xbf16>
    %cst_29 = arith.constant dense<0.000000e+00> : vector<8x128xf32>
    %45 = tpu.matmul %44, %42, %cst_29 {dimension_numbers = #tpu.dot_dimension_numbers<[1], [0], [0], [1], [0, 0, 1, 1], [], []>} : vector<8x12xbf16>, vector<12x128xbf16>, vector<8x128xf32> -> vector<8x128xf32>
    %46 = arith.addf %41, %45 : vector<8x128xf32>
    %c0_30 = arith.constant 0 : index
    %c0_31 = arith.constant 0 : index
    %47 = vector.load %arg2[%c0_30, %c0_31] : memref<8x1xf32, #tpu.memory_space<vmem>>, vector<8x1xf32>
    %48 = vector.broadcast %47 : vector<8x1xf32> to vector<8x128xf32>
    %49 = arith.addf %46, %48 : vector<8x128xf32>
    %cst_32 = arith.constant 0.000000e+00 : f32
    %50 = vector.broadcast %cst_32 : f32 to vector<8x128xf32>
    %51 = arith.cmpf oge, %49, %50 : vector<8x128xf32>
    %cst_33 = arith.constant 2.000000e-01 : f32
    %52 = vector.broadcast %cst_33 : f32 to vector<8x128xf32>
    %53 = arith.mulf %52, %49 : vector<8x128xf32>
    %54 = arith.select %51, %49, %53 : vector<8x128xi1>, vector<8x128xf32>
    %55 = arith.truncf %54 : vector<8x128xf32> to vector<8x128xbf16>
    %c0_34 = arith.constant 0 : index
    %c0_35 = arith.constant 0 : index
    %56 = vector.load %arg5[%c0_34, %c0_35] : memref<8x128xbf16, #tpu.memory_space<vmem>>, vector<8x128xbf16>
    tpu.vector_store %arg5[%c0_34, %c0_35], %55 {strides = array<i32>} : memref<8x128xbf16, #tpu.memory_space<vmem>>, vector<8x128xbf16>,
    return
  }
  func.func @transform_0(%arg0: i32) -> (i32, i32, i32) {
    %c0_i32 = arith.constant 0 : i32
    %c0_i32_0 = arith.constant 0 : i32
    %c0_i32_1 = arith.constant 0 : i32
    %c0_i32_2 = arith.constant 0 : i32
    return %c0_i32, %c0_i32_0, %c0_i32_1 : i32, i32, i32
  }
  func.func @transform_1(%arg0: i32) -> (i32, i32) {
    %c0_i32 = arith.constant 0 : i32
    %c0_i32_0 = arith.constant 0 : i32
    %c0_i32_1 = arith.constant 0 : i32
    return %c0_i32, %c0_i32_0 : i32, i32
  }
  func.func @transform_2(%arg0: i32) -> (i32, i32) {
    %c0_i32 = arith.constant 0 : i32
    %c0_i32_0 = arith.constant 0 : i32
    return %c0_i32, %arg0 : i32, i32
  }
  func.func @transform_3(%arg0: i32) -> (i32, i32) {
    %c1_i32 = arith.constant 1 : i32
    %0 = arith.addi %arg0, %c1_i32 : i32
    %c0_i32 = arith.constant 0 : i32
    %c0_i32_0 = arith.constant 0 : i32
    return %c0_i32, %0 : i32, i32
  }
  func.func @transform_4(%arg0: i32) -> (i32, i32) {
    %c0_i32 = arith.constant 0 : i32
    %c0_i32_0 = arith.constant 0 : i32
    return %c0_i32, %arg0 : i32, i32
  }
}

module attributes {stable_mosaic.version = 11 : i64} {
  func.func @_conv_tap_kernel(%arg0: i32, %arg1: memref<9x4x8xbf16, #tpu.memory_space<vmem>>, %arg2: memref<4x1xf32, #tpu.memory_space<vmem>>, %arg3: memref<8x128xbf16, #tpu.memory_space<vmem>>, %arg4: memref<8x128xbf16, #tpu.memory_space<vmem>>, %arg5: memref<4x128xbf16, #tpu.memory_space<vmem>>) attributes {dimension_semantics = [#tpu.dimension_semantics<parallel>], iteration_bounds = array<i64: 2>, scalar_prefetch = 0 : i64, scratch_operands = 0 : i64, tpu.core_type = #tpu.core_type<tc>, window_params = [{pipeline_mode = #tpu.pipeline_mode<synchronous>, transform_indices = @transform_0, window_bounds = array<i64: 9, 4, 8>}, {pipeline_mode = #tpu.pipeline_mode<synchronous>, transform_indices = @transform_1, window_bounds = array<i64: 4, 1>}, {transform_indices = @transform_2, window_bounds = array<i64: 8, 128>}, {transform_indices = @transform_3, window_bounds = array<i64: 8, 128>}, {transform_indices = @transform_4, window_bounds = array<i64: 4, 128>}]} {
    %c0 = arith.constant 0 : index
    %c0_0 = arith.constant 0 : index
    %0 = vector.load %arg3[%c0, %c0_0] : memref<8x128xbf16, #tpu.memory_space<vmem>>, vector<8x128xbf16>
    %c0_1 = arith.constant 0 : index
    %c0_2 = arith.constant 0 : index
    %1 = vector.load %arg4[%c0_1, %c0_2] : memref<8x128xbf16, #tpu.memory_space<vmem>>, vector<8x128xbf16>
    %2 = tpu.concatenate %0, %1 in 1 : vector<8x128xbf16>, vector<8x128xbf16> -> vector<8x256xbf16>
    %3 = vector.extract_strided_slice %2 {offsets = [0, 0], sizes = [8, 128], strides = [1, 1]} : vector<8x256xbf16> to vector<8x128xbf16>
    %c0_3 = arith.constant 0 : index
    %c0_4 = arith.constant 0 : index
    %c0_5 = arith.constant 0 : index
    %4 = vector.load %arg1[%c0_3, %c0_4, %c0_5] : memref<9x4x8xbf16, #tpu.memory_space<vmem>>, vector<1x4x8xbf16>
    %5 = vector.shape_cast %4 : vector<1x4x8xbf16> to vector<4x8xbf16>
    %cst = arith.constant dense<0.000000e+00> : vector<4x128xf32>
    %6 = tpu.matmul %5, %3, %cst {dimension_numbers = #tpu.dot_dimension_numbers<[1], [0], [0], [1], [0, 0, 1, 1], [], []>} : vector<4x8xbf16>, vector<8x128xbf16>, vector<4x128xf32> -> vector<4x128xf32>
    %7 = vector.extract_strided_slice %2 {offsets = [0, 1], sizes = [8, 128], strides = [1, 1]} : vector<8x256xbf16> to vector<8x128xbf16>
    %c1 = arith.constant 1 : index
    %c0_6 = arith.constant 0 : index
    %c0_7 = arith.constant 0 : index
    %8 = vector.load %arg1[%c1, %c0_6, %c0_7] : memref<9x4x8xbf16, #tpu.memory_space<vmem>>, vector<1x4x8xbf16>
    %9 = vector.shape_cast %8 : vector<1x4x8xbf16> to vector<4x8xbf16>
    %cst_8 = arith.constant dense<0.000000e+00> : vector<4x128xf32>
    %10 = tpu.matmul %9, %7, %cst_8 {dimension_numbers = #tpu.dot_dimension_numbers<[1], [0], [0], [1], [0, 0, 1, 1], [], []>} : vector<4x8xbf16>, vector<8x128xbf16>, vector<4x128xf32> -> vector<4x128xf32>
    %11 = arith.addf %6, %10 : vector<4x128xf32>
    %12 = vector.extract_strided_slice %2 {offsets = [0, 2], sizes = [8, 128], strides = [1, 1]} : vector<8x256xbf16> to vector<8x128xbf16>
    %c2 = arith.constant 2 : index
    %c0_9 = arith.constant 0 : index
    %c0_10 = arith.constant 0 : index
    %13 = vector.load %arg1[%c2, %c0_9, %c0_10] : memref<9x4x8xbf16, #tpu.memory_space<vmem>>, vector<1x4x8xbf16>
    %14 = vector.shape_cast %13 : vector<1x4x8xbf16> to vector<4x8xbf16>
    %cst_11 = arith.constant dense<0.000000e+00> : vector<4x128xf32>
    %15 = tpu.matmul %14, %12, %cst_11 {dimension_numbers = #tpu.dot_dimension_numbers<[1], [0], [0], [1], [0, 0, 1, 1], [], []>} : vector<4x8xbf16>, vector<8x128xbf16>, vector<4x128xf32> -> vector<4x128xf32>
    %16 = arith.addf %11, %15 : vector<4x128xf32>
    %17 = vector.extract_strided_slice %2 {offsets = [0, 10], sizes = [8, 128], strides = [1, 1]} : vector<8x256xbf16> to vector<8x128xbf16>
    %c3 = arith.constant 3 : index
    %c0_12 = arith.constant 0 : index
    %c0_13 = arith.constant 0 : index
    %18 = vector.load %arg1[%c3, %c0_12, %c0_13] : memref<9x4x8xbf16, #tpu.memory_space<vmem>>, vector<1x4x8xbf16>
    %19 = vector.shape_cast %18 : vector<1x4x8xbf16> to vector<4x8xbf16>
    %cst_14 = arith.constant dense<0.000000e+00> : vector<4x128xf32>
    %20 = tpu.matmul %19, %17, %cst_14 {dimension_numbers = #tpu.dot_dimension_numbers<[1], [0], [0], [1], [0, 0, 1, 1], [], []>} : vector<4x8xbf16>, vector<8x128xbf16>, vector<4x128xf32> -> vector<4x128xf32>
    %21 = arith.addf %16, %20 : vector<4x128xf32>
    %22 = vector.extract_strided_slice %2 {offsets = [0, 11], sizes = [8, 128], strides = [1, 1]} : vector<8x256xbf16> to vector<8x128xbf16>
    %c4 = arith.constant 4 : index
    %c0_15 = arith.constant 0 : index
    %c0_16 = arith.constant 0 : index
    %23 = vector.load %arg1[%c4, %c0_15, %c0_16] : memref<9x4x8xbf16, #tpu.memory_space<vmem>>, vector<1x4x8xbf16>
    %24 = vector.shape_cast %23 : vector<1x4x8xbf16> to vector<4x8xbf16>
    %cst_17 = arith.constant dense<0.000000e+00> : vector<4x128xf32>
    %25 = tpu.matmul %24, %22, %cst_17 {dimension_numbers = #tpu.dot_dimension_numbers<[1], [0], [0], [1], [0, 0, 1, 1], [], []>} : vector<4x8xbf16>, vector<8x128xbf16>, vector<4x128xf32> -> vector<4x128xf32>
    %26 = arith.addf %21, %25 : vector<4x128xf32>
    %27 = vector.extract_strided_slice %2 {offsets = [0, 12], sizes = [8, 128], strides = [1, 1]} : vector<8x256xbf16> to vector<8x128xbf16>
    %c5 = arith.constant 5 : index
    %c0_18 = arith.constant 0 : index
    %c0_19 = arith.constant 0 : index
    %28 = vector.load %arg1[%c5, %c0_18, %c0_19] : memref<9x4x8xbf16, #tpu.memory_space<vmem>>, vector<1x4x8xbf16>
    %29 = vector.shape_cast %28 : vector<1x4x8xbf16> to vector<4x8xbf16>
    %cst_20 = arith.constant dense<0.000000e+00> : vector<4x128xf32>
    %30 = tpu.matmul %29, %27, %cst_20 {dimension_numbers = #tpu.dot_dimension_numbers<[1], [0], [0], [1], [0, 0, 1, 1], [], []>} : vector<4x8xbf16>, vector<8x128xbf16>, vector<4x128xf32> -> vector<4x128xf32>
    %31 = arith.addf %26, %30 : vector<4x128xf32>
    %32 = vector.extract_strided_slice %2 {offsets = [0, 20], sizes = [8, 128], strides = [1, 1]} : vector<8x256xbf16> to vector<8x128xbf16>
    %c6 = arith.constant 6 : index
    %c0_21 = arith.constant 0 : index
    %c0_22 = arith.constant 0 : index
    %33 = vector.load %arg1[%c6, %c0_21, %c0_22] : memref<9x4x8xbf16, #tpu.memory_space<vmem>>, vector<1x4x8xbf16>
    %34 = vector.shape_cast %33 : vector<1x4x8xbf16> to vector<4x8xbf16>
    %cst_23 = arith.constant dense<0.000000e+00> : vector<4x128xf32>
    %35 = tpu.matmul %34, %32, %cst_23 {dimension_numbers = #tpu.dot_dimension_numbers<[1], [0], [0], [1], [0, 0, 1, 1], [], []>} : vector<4x8xbf16>, vector<8x128xbf16>, vector<4x128xf32> -> vector<4x128xf32>
    %36 = arith.addf %31, %35 : vector<4x128xf32>
    %37 = vector.extract_strided_slice %2 {offsets = [0, 21], sizes = [8, 128], strides = [1, 1]} : vector<8x256xbf16> to vector<8x128xbf16>
    %c7 = arith.constant 7 : index
    %c0_24 = arith.constant 0 : index
    %c0_25 = arith.constant 0 : index
    %38 = vector.load %arg1[%c7, %c0_24, %c0_25] : memref<9x4x8xbf16, #tpu.memory_space<vmem>>, vector<1x4x8xbf16>
    %39 = vector.shape_cast %38 : vector<1x4x8xbf16> to vector<4x8xbf16>
    %cst_26 = arith.constant dense<0.000000e+00> : vector<4x128xf32>
    %40 = tpu.matmul %39, %37, %cst_26 {dimension_numbers = #tpu.dot_dimension_numbers<[1], [0], [0], [1], [0, 0, 1, 1], [], []>} : vector<4x8xbf16>, vector<8x128xbf16>, vector<4x128xf32> -> vector<4x128xf32>
    %41 = arith.addf %36, %40 : vector<4x128xf32>
    %42 = vector.extract_strided_slice %2 {offsets = [0, 22], sizes = [8, 128], strides = [1, 1]} : vector<8x256xbf16> to vector<8x128xbf16>
    %c8 = arith.constant 8 : index
    %c0_27 = arith.constant 0 : index
    %c0_28 = arith.constant 0 : index
    %43 = vector.load %arg1[%c8, %c0_27, %c0_28] : memref<9x4x8xbf16, #tpu.memory_space<vmem>>, vector<1x4x8xbf16>
    %44 = vector.shape_cast %43 : vector<1x4x8xbf16> to vector<4x8xbf16>
    %cst_29 = arith.constant dense<0.000000e+00> : vector<4x128xf32>
    %45 = tpu.matmul %44, %42, %cst_29 {dimension_numbers = #tpu.dot_dimension_numbers<[1], [0], [0], [1], [0, 0, 1, 1], [], []>} : vector<4x8xbf16>, vector<8x128xbf16>, vector<4x128xf32> -> vector<4x128xf32>
    %46 = arith.addf %41, %45 : vector<4x128xf32>
    %c0_30 = arith.constant 0 : index
    %c0_31 = arith.constant 0 : index
    %47 = vector.load %arg2[%c0_30, %c0_31] : memref<4x1xf32, #tpu.memory_space<vmem>>, vector<4x1xf32>
    %48 = vector.broadcast %47 : vector<4x1xf32> to vector<4x128xf32>
    %49 = arith.addf %46, %48 : vector<4x128xf32>
    %cst_32 = arith.constant 0.000000e+00 : f32
    %50 = vector.broadcast %cst_32 : f32 to vector<4x128xf32>
    %51 = arith.cmpf oge, %49, %50 : vector<4x128xf32>
    %cst_33 = arith.constant 2.000000e-01 : f32
    %52 = vector.broadcast %cst_33 : f32 to vector<4x128xf32>
    %53 = arith.mulf %52, %49 : vector<4x128xf32>
    %54 = arith.select %51, %49, %53 : vector<4x128xi1>, vector<4x128xf32>
    %55 = arith.truncf %54 : vector<4x128xf32> to vector<4x128xbf16>
    %c0_34 = arith.constant 0 : index
    %c0_35 = arith.constant 0 : index
    %56 = vector.load %arg5[%c0_34, %c0_35] : memref<4x128xbf16, #tpu.memory_space<vmem>>, vector<4x128xbf16>
    tpu.vector_store %arg5[%c0_34, %c0_35], %55 {strides = array<i32>} : memref<4x128xbf16, #tpu.memory_space<vmem>>, vector<4x128xbf16>,
    return
  }
  func.func @transform_0(%arg0: i32) -> (i32, i32, i32) {
    %c0_i32 = arith.constant 0 : i32
    %c0_i32_0 = arith.constant 0 : i32
    %c0_i32_1 = arith.constant 0 : i32
    %c0_i32_2 = arith.constant 0 : i32
    return %c0_i32, %c0_i32_0, %c0_i32_1 : i32, i32, i32
  }
  func.func @transform_1(%arg0: i32) -> (i32, i32) {
    %c0_i32 = arith.constant 0 : i32
    %c0_i32_0 = arith.constant 0 : i32
    %c0_i32_1 = arith.constant 0 : i32
    return %c0_i32, %c0_i32_0 : i32, i32
  }
  func.func @transform_2(%arg0: i32) -> (i32, i32) {
    %c0_i32 = arith.constant 0 : i32
    %c0_i32_0 = arith.constant 0 : i32
    return %c0_i32, %arg0 : i32, i32
  }
  func.func @transform_3(%arg0: i32) -> (i32, i32) {
    %c1_i32 = arith.constant 1 : i32
    %0 = arith.addi %arg0, %c1_i32 : i32
    %c0_i32 = arith.constant 0 : i32
    %c0_i32_0 = arith.constant 0 : i32
    return %c0_i32, %0 : i32, i32
  }
  func.func @transform_4(%arg0: i32) -> (i32, i32) {
    %c0_i32 = arith.constant 0 : i32
    %c0_i32_0 = arith.constant 0 : i32
    return %c0_i32, %arg0 : i32, i32
  }
}

module attributes {stable_mosaic.version = 11 : i64} {
  func.func @_conv_tap_kernel(%arg0: i32, %arg1: memref<9x4x6xbf16, #tpu.memory_space<vmem>>, %arg2: memref<4x1xf32, #tpu.memory_space<vmem>>, %arg3: memref<6x384xbf16, #tpu.memory_space<vmem>>, %arg4: memref<6x384xbf16, #tpu.memory_space<vmem>>, %arg5: memref<4x384xbf16, #tpu.memory_space<vmem>>) attributes {dimension_semantics = [#tpu.dimension_semantics<parallel>], iteration_bounds = array<i64: 2>, scalar_prefetch = 0 : i64, scratch_operands = 0 : i64, tpu.core_type = #tpu.core_type<tc>, window_params = [{pipeline_mode = #tpu.pipeline_mode<synchronous>, transform_indices = @transform_0, window_bounds = array<i64: 9, 4, 6>}, {pipeline_mode = #tpu.pipeline_mode<synchronous>, transform_indices = @transform_1, window_bounds = array<i64: 4, 1>}, {transform_indices = @transform_2, window_bounds = array<i64: 6, 384>}, {transform_indices = @transform_3, window_bounds = array<i64: 6, 384>}, {transform_indices = @transform_4, window_bounds = array<i64: 4, 384>}]} {
    %c0 = arith.constant 0 : index
    %c0_0 = arith.constant 0 : index
    %0 = vector.load %arg3[%c0, %c0_0] : memref<6x384xbf16, #tpu.memory_space<vmem>>, vector<6x384xbf16>
    %c0_1 = arith.constant 0 : index
    %c0_2 = arith.constant 0 : index
    %1 = vector.load %arg4[%c0_1, %c0_2] : memref<6x384xbf16, #tpu.memory_space<vmem>>, vector<6x384xbf16>
    %2 = tpu.concatenate %0, %1 in 1 : vector<6x384xbf16>, vector<6x384xbf16> -> vector<6x768xbf16>
    %3 = vector.extract_strided_slice %2 {offsets = [0, 0], sizes = [6, 384], strides = [1, 1]} : vector<6x768xbf16> to vector<6x384xbf16>
    %c0_3 = arith.constant 0 : index
    %c0_4 = arith.constant 0 : index
    %c0_5 = arith.constant 0 : index
    %4 = vector.load %arg1[%c0_3, %c0_4, %c0_5] : memref<9x4x6xbf16, #tpu.memory_space<vmem>>, vector<1x4x6xbf16>
    %5 = vector.shape_cast %4 : vector<1x4x6xbf16> to vector<4x6xbf16>
    %cst = arith.constant dense<0.000000e+00> : vector<4x384xf32>
    %6 = tpu.matmul %5, %3, %cst {dimension_numbers = #tpu.dot_dimension_numbers<[1], [0], [0], [1], [0, 0, 1, 1], [], []>} : vector<4x6xbf16>, vector<6x384xbf16>, vector<4x384xf32> -> vector<4x384xf32>
    %7 = vector.extract_strided_slice %2 {offsets = [0, 1], sizes = [6, 384], strides = [1, 1]} : vector<6x768xbf16> to vector<6x384xbf16>
    %c1 = arith.constant 1 : index
    %c0_6 = arith.constant 0 : index
    %c0_7 = arith.constant 0 : index
    %8 = vector.load %arg1[%c1, %c0_6, %c0_7] : memref<9x4x6xbf16, #tpu.memory_space<vmem>>, vector<1x4x6xbf16>
    %9 = vector.shape_cast %8 : vector<1x4x6xbf16> to vector<4x6xbf16>
    %cst_8 = arith.constant dense<0.000000e+00> : vector<4x384xf32>
    %10 = tpu.matmul %9, %7, %cst_8 {dimension_numbers = #tpu.dot_dimension_numbers<[1], [0], [0], [1], [0, 0, 1, 1], [], []>} : vector<4x6xbf16>, vector<6x384xbf16>, vector<4x384xf32> -> vector<4x384xf32>
    %11 = arith.addf %6, %10 : vector<4x384xf32>
    %12 = vector.extract_strided_slice %2 {offsets = [0, 2], sizes = [6, 384], strides = [1, 1]} : vector<6x768xbf16> to vector<6x384xbf16>
    %c2 = arith.constant 2 : index
    %c0_9 = arith.constant 0 : index
    %c0_10 = arith.constant 0 : index
    %13 = vector.load %arg1[%c2, %c0_9, %c0_10] : memref<9x4x6xbf16, #tpu.memory_space<vmem>>, vector<1x4x6xbf16>
    %14 = vector.shape_cast %13 : vector<1x4x6xbf16> to vector<4x6xbf16>
    %cst_11 = arith.constant dense<0.000000e+00> : vector<4x384xf32>
    %15 = tpu.matmul %14, %12, %cst_11 {dimension_numbers = #tpu.dot_dimension_numbers<[1], [0], [0], [1], [0, 0, 1, 1], [], []>} : vector<4x6xbf16>, vector<6x384xbf16>, vector<4x384xf32> -> vector<4x384xf32>
    %16 = arith.addf %11, %15 : vector<4x384xf32>
    %17 = vector.extract_strided_slice %2 {offsets = [0, 18], sizes = [6, 384], strides = [1, 1]} : vector<6x768xbf16> to vector<6x384xbf16>
    %c3 = arith.constant 3 : index
    %c0_12 = arith.constant 0 : index
    %c0_13 = arith.constant 0 : index
    %18 = vector.load %arg1[%c3, %c0_12, %c0_13] : memref<9x4x6xbf16, #tpu.memory_space<vmem>>, vector<1x4x6xbf16>
    %19 = vector.shape_cast %18 : vector<1x4x6xbf16> to vector<4x6xbf16>
    %cst_14 = arith.constant dense<0.000000e+00> : vector<4x384xf32>
    %20 = tpu.matmul %19, %17, %cst_14 {dimension_numbers = #tpu.dot_dimension_numbers<[1], [0], [0], [1], [0, 0, 1, 1], [], []>} : vector<4x6xbf16>, vector<6x384xbf16>, vector<4x384xf32> -> vector<4x384xf32>
    %21 = arith.addf %16, %20 : vector<4x384xf32>
    %22 = vector.extract_strided_slice %2 {offsets = [0, 19], sizes = [6, 384], strides = [1, 1]} : vector<6x768xbf16> to vector<6x384xbf16>
    %c4 = arith.constant 4 : index
    %c0_15 = arith.constant 0 : index
    %c0_16 = arith.constant 0 : index
    %23 = vector.load %arg1[%c4, %c0_15, %c0_16] : memref<9x4x6xbf16, #tpu.memory_space<vmem>>, vector<1x4x6xbf16>
    %24 = vector.shape_cast %23 : vector<1x4x6xbf16> to vector<4x6xbf16>
    %cst_17 = arith.constant dense<0.000000e+00> : vector<4x384xf32>
    %25 = tpu.matmul %24, %22, %cst_17 {dimension_numbers = #tpu.dot_dimension_numbers<[1], [0], [0], [1], [0, 0, 1, 1], [], []>} : vector<4x6xbf16>, vector<6x384xbf16>, vector<4x384xf32> -> vector<4x384xf32>
    %26 = arith.addf %21, %25 : vector<4x384xf32>
    %27 = vector.extract_strided_slice %2 {offsets = [0, 20], sizes = [6, 384], strides = [1, 1]} : vector<6x768xbf16> to vector<6x384xbf16>
    %c5 = arith.constant 5 : index
    %c0_18 = arith.constant 0 : index
    %c0_19 = arith.constant 0 : index
    %28 = vector.load %arg1[%c5, %c0_18, %c0_19] : memref<9x4x6xbf16, #tpu.memory_space<vmem>>, vector<1x4x6xbf16>
    %29 = vector.shape_cast %28 : vector<1x4x6xbf16> to vector<4x6xbf16>
    %cst_20 = arith.constant dense<0.000000e+00> : vector<4x384xf32>
    %30 = tpu.matmul %29, %27, %cst_20 {dimension_numbers = #tpu.dot_dimension_numbers<[1], [0], [0], [1], [0, 0, 1, 1], [], []>} : vector<4x6xbf16>, vector<6x384xbf16>, vector<4x384xf32> -> vector<4x384xf32>
    %31 = arith.addf %26, %30 : vector<4x384xf32>
    %32 = vector.extract_strided_slice %2 {offsets = [0, 36], sizes = [6, 384], strides = [1, 1]} : vector<6x768xbf16> to vector<6x384xbf16>
    %c6 = arith.constant 6 : index
    %c0_21 = arith.constant 0 : index
    %c0_22 = arith.constant 0 : index
    %33 = vector.load %arg1[%c6, %c0_21, %c0_22] : memref<9x4x6xbf16, #tpu.memory_space<vmem>>, vector<1x4x6xbf16>
    %34 = vector.shape_cast %33 : vector<1x4x6xbf16> to vector<4x6xbf16>
    %cst_23 = arith.constant dense<0.000000e+00> : vector<4x384xf32>
    %35 = tpu.matmul %34, %32, %cst_23 {dimension_numbers = #tpu.dot_dimension_numbers<[1], [0], [0], [1], [0, 0, 1, 1], [], []>} : vector<4x6xbf16>, vector<6x384xbf16>, vector<4x384xf32> -> vector<4x384xf32>
    %36 = arith.addf %31, %35 : vector<4x384xf32>
    %37 = vector.extract_strided_slice %2 {offsets = [0, 37], sizes = [6, 384], strides = [1, 1]} : vector<6x768xbf16> to vector<6x384xbf16>
    %c7 = arith.constant 7 : index
    %c0_24 = arith.constant 0 : index
    %c0_25 = arith.constant 0 : index
    %38 = vector.load %arg1[%c7, %c0_24, %c0_25] : memref<9x4x6xbf16, #tpu.memory_space<vmem>>, vector<1x4x6xbf16>
    %39 = vector.shape_cast %38 : vector<1x4x6xbf16> to vector<4x6xbf16>
    %cst_26 = arith.constant dense<0.000000e+00> : vector<4x384xf32>
    %40 = tpu.matmul %39, %37, %cst_26 {dimension_numbers = #tpu.dot_dimension_numbers<[1], [0], [0], [1], [0, 0, 1, 1], [], []>} : vector<4x6xbf16>, vector<6x384xbf16>, vector<4x384xf32> -> vector<4x384xf32>
    %41 = arith.addf %36, %40 : vector<4x384xf32>
    %42 = vector.extract_strided_slice %2 {offsets = [0, 38], sizes = [6, 384], strides = [1, 1]} : vector<6x768xbf16> to vector<6x384xbf16>
    %c8 = arith.constant 8 : index
    %c0_27 = arith.constant 0 : index
    %c0_28 = arith.constant 0 : index
    %43 = vector.load %arg1[%c8, %c0_27, %c0_28] : memref<9x4x6xbf16, #tpu.memory_space<vmem>>, vector<1x4x6xbf16>
    %44 = vector.shape_cast %43 : vector<1x4x6xbf16> to vector<4x6xbf16>
    %cst_29 = arith.constant dense<0.000000e+00> : vector<4x384xf32>
    %45 = tpu.matmul %44, %42, %cst_29 {dimension_numbers = #tpu.dot_dimension_numbers<[1], [0], [0], [1], [0, 0, 1, 1], [], []>} : vector<4x6xbf16>, vector<6x384xbf16>, vector<4x384xf32> -> vector<4x384xf32>
    %46 = arith.addf %41, %45 : vector<4x384xf32>
    %c0_30 = arith.constant 0 : index
    %c0_31 = arith.constant 0 : index
    %47 = vector.load %arg2[%c0_30, %c0_31] : memref<4x1xf32, #tpu.memory_space<vmem>>, vector<4x1xf32>
    %48 = vector.broadcast %47 : vector<4x1xf32> to vector<4x384xf32>
    %49 = arith.addf %46, %48 : vector<4x384xf32>
    %cst_32 = arith.constant 0.000000e+00 : f32
    %50 = vector.broadcast %cst_32 : f32 to vector<4x384xf32>
    %51 = arith.cmpf oge, %49, %50 : vector<4x384xf32>
    %cst_33 = arith.constant 2.000000e-01 : f32
    %52 = vector.broadcast %cst_33 : f32 to vector<4x384xf32>
    %53 = arith.mulf %52, %49 : vector<4x384xf32>
    %54 = arith.select %51, %49, %53 : vector<4x384xi1>, vector<4x384xf32>
    %55 = arith.truncf %54 : vector<4x384xf32> to vector<4x384xbf16>
    %c0_34 = arith.constant 0 : index
    %c0_35 = arith.constant 0 : index
    %56 = vector.load %arg5[%c0_34, %c0_35] : memref<4x384xbf16, #tpu.memory_space<vmem>>, vector<4x384xbf16>
    tpu.vector_store %arg5[%c0_34, %c0_35], %55 {strides = array<i32>} : memref<4x384xbf16, #tpu.memory_space<vmem>>, vector<4x384xbf16>,
    return
  }
  func.func @transform_0(%arg0: i32) -> (i32, i32, i32) {
    %c0_i32 = arith.constant 0 : i32
    %c0_i32_0 = arith.constant 0 : i32
    %c0_i32_1 = arith.constant 0 : i32
    %c0_i32_2 = arith.constant 0 : i32
    return %c0_i32, %c0_i32_0, %c0_i32_1 : i32, i32, i32
  }
  func.func @transform_1(%arg0: i32) -> (i32, i32) {
    %c0_i32 = arith.constant 0 : i32
    %c0_i32_0 = arith.constant 0 : i32
    %c0_i32_1 = arith.constant 0 : i32
    return %c0_i32, %c0_i32_0 : i32, i32
  }
  func.func @transform_2(%arg0: i32) -> (i32, i32) {
    %c0_i32 = arith.constant 0 : i32
    %c0_i32_0 = arith.constant 0 : i32
    return %c0_i32, %arg0 : i32, i32
  }
  func.func @transform_3(%arg0: i32) -> (i32, i32) {
    %c1_i32 = arith.constant 1 : i32
    %0 = arith.addi %arg0, %c1_i32 : i32
    %c0_i32 = arith.constant 0 : i32
    %c0_i32_0 = arith.constant 0 : i32
    return %c0_i32, %0 : i32, i32
  }
  func.func @transform_4(%arg0: i32) -> (i32, i32) {
    %c0_i32 = arith.constant 0 : i32
    %c0_i32_0 = arith.constant 0 : i32
    return %c0_i32, %arg0 : i32, i32
  }
}

module attributes {stable_mosaic.version = 11 : i64} {
  func.func @_conv_tap_kernel(%arg0: i32, %arg1: memref<9x2x4xbf16, #tpu.memory_space<vmem>>, %arg2: memref<2x1xf32, #tpu.memory_space<vmem>>, %arg3: memref<4x384xbf16, #tpu.memory_space<vmem>>, %arg4: memref<4x384xbf16, #tpu.memory_space<vmem>>, %arg5: memref<2x384xf32, #tpu.memory_space<vmem>>) attributes {dimension_semantics = [#tpu.dimension_semantics<parallel>], iteration_bounds = array<i64: 2>, scalar_prefetch = 0 : i64, scratch_operands = 0 : i64, tpu.core_type = #tpu.core_type<tc>, window_params = [{pipeline_mode = #tpu.pipeline_mode<synchronous>, transform_indices = @transform_0, window_bounds = array<i64: 9, 2, 4>}, {pipeline_mode = #tpu.pipeline_mode<synchronous>, transform_indices = @transform_1, window_bounds = array<i64: 2, 1>}, {transform_indices = @transform_2, window_bounds = array<i64: 4, 384>}, {transform_indices = @transform_3, window_bounds = array<i64: 4, 384>}, {transform_indices = @transform_4, window_bounds = array<i64: 2, 384>}]} {
    %c0 = arith.constant 0 : index
    %c0_0 = arith.constant 0 : index
    %0 = vector.load %arg3[%c0, %c0_0] : memref<4x384xbf16, #tpu.memory_space<vmem>>, vector<4x384xbf16>
    %c0_1 = arith.constant 0 : index
    %c0_2 = arith.constant 0 : index
    %1 = vector.load %arg4[%c0_1, %c0_2] : memref<4x384xbf16, #tpu.memory_space<vmem>>, vector<4x384xbf16>
    %2 = tpu.concatenate %0, %1 in 1 : vector<4x384xbf16>, vector<4x384xbf16> -> vector<4x768xbf16>
    %3 = vector.extract_strided_slice %2 {offsets = [0, 0], sizes = [4, 384], strides = [1, 1]} : vector<4x768xbf16> to vector<4x384xbf16>
    %c0_3 = arith.constant 0 : index
    %c0_4 = arith.constant 0 : index
    %c0_5 = arith.constant 0 : index
    %4 = vector.load %arg1[%c0_3, %c0_4, %c0_5] : memref<9x2x4xbf16, #tpu.memory_space<vmem>>, vector<1x2x4xbf16>
    %5 = vector.shape_cast %4 : vector<1x2x4xbf16> to vector<2x4xbf16>
    %cst = arith.constant dense<0.000000e+00> : vector<2x384xf32>
    %6 = tpu.matmul %5, %3, %cst {dimension_numbers = #tpu.dot_dimension_numbers<[1], [0], [0], [1], [0, 0, 1, 1], [], []>} : vector<2x4xbf16>, vector<4x384xbf16>, vector<2x384xf32> -> vector<2x384xf32>
    %7 = vector.extract_strided_slice %2 {offsets = [0, 1], sizes = [4, 384], strides = [1, 1]} : vector<4x768xbf16> to vector<4x384xbf16>
    %c1 = arith.constant 1 : index
    %c0_6 = arith.constant 0 : index
    %c0_7 = arith.constant 0 : index
    %8 = vector.load %arg1[%c1, %c0_6, %c0_7] : memref<9x2x4xbf16, #tpu.memory_space<vmem>>, vector<1x2x4xbf16>
    %9 = vector.shape_cast %8 : vector<1x2x4xbf16> to vector<2x4xbf16>
    %cst_8 = arith.constant dense<0.000000e+00> : vector<2x384xf32>
    %10 = tpu.matmul %9, %7, %cst_8 {dimension_numbers = #tpu.dot_dimension_numbers<[1], [0], [0], [1], [0, 0, 1, 1], [], []>} : vector<2x4xbf16>, vector<4x384xbf16>, vector<2x384xf32> -> vector<2x384xf32>
    %11 = arith.addf %6, %10 : vector<2x384xf32>
    %12 = vector.extract_strided_slice %2 {offsets = [0, 2], sizes = [4, 384], strides = [1, 1]} : vector<4x768xbf16> to vector<4x384xbf16>
    %c2 = arith.constant 2 : index
    %c0_9 = arith.constant 0 : index
    %c0_10 = arith.constant 0 : index
    %13 = vector.load %arg1[%c2, %c0_9, %c0_10] : memref<9x2x4xbf16, #tpu.memory_space<vmem>>, vector<1x2x4xbf16>
    %14 = vector.shape_cast %13 : vector<1x2x4xbf16> to vector<2x4xbf16>
    %cst_11 = arith.constant dense<0.000000e+00> : vector<2x384xf32>
    %15 = tpu.matmul %14, %12, %cst_11 {dimension_numbers = #tpu.dot_dimension_numbers<[1], [0], [0], [1], [0, 0, 1, 1], [], []>} : vector<2x4xbf16>, vector<4x384xbf16>, vector<2x384xf32> -> vector<2x384xf32>
    %16 = arith.addf %11, %15 : vector<2x384xf32>
    %17 = vector.extract_strided_slice %2 {offsets = [0, 18], sizes = [4, 384], strides = [1, 1]} : vector<4x768xbf16> to vector<4x384xbf16>
    %c3 = arith.constant 3 : index
    %c0_12 = arith.constant 0 : index
    %c0_13 = arith.constant 0 : index
    %18 = vector.load %arg1[%c3, %c0_12, %c0_13] : memref<9x2x4xbf16, #tpu.memory_space<vmem>>, vector<1x2x4xbf16>
    %19 = vector.shape_cast %18 : vector<1x2x4xbf16> to vector<2x4xbf16>
    %cst_14 = arith.constant dense<0.000000e+00> : vector<2x384xf32>
    %20 = tpu.matmul %19, %17, %cst_14 {dimension_numbers = #tpu.dot_dimension_numbers<[1], [0], [0], [1], [0, 0, 1, 1], [], []>} : vector<2x4xbf16>, vector<4x384xbf16>, vector<2x384xf32> -> vector<2x384xf32>
    %21 = arith.addf %16, %20 : vector<2x384xf32>
    %22 = vector.extract_strided_slice %2 {offsets = [0, 19], sizes = [4, 384], strides = [1, 1]} : vector<4x768xbf16> to vector<4x384xbf16>
    %c4 = arith.constant 4 : index
    %c0_15 = arith.constant 0 : index
    %c0_16 = arith.constant 0 : index
    %23 = vector.load %arg1[%c4, %c0_15, %c0_16] : memref<9x2x4xbf16, #tpu.memory_space<vmem>>, vector<1x2x4xbf16>
    %24 = vector.shape_cast %23 : vector<1x2x4xbf16> to vector<2x4xbf16>
    %cst_17 = arith.constant dense<0.000000e+00> : vector<2x384xf32>
    %25 = tpu.matmul %24, %22, %cst_17 {dimension_numbers = #tpu.dot_dimension_numbers<[1], [0], [0], [1], [0, 0, 1, 1], [], []>} : vector<2x4xbf16>, vector<4x384xbf16>, vector<2x384xf32> -> vector<2x384xf32>
    %26 = arith.addf %21, %25 : vector<2x384xf32>
    %27 = vector.extract_strided_slice %2 {offsets = [0, 20], sizes = [4, 384], strides = [1, 1]} : vector<4x768xbf16> to vector<4x384xbf16>
    %c5 = arith.constant 5 : index
    %c0_18 = arith.constant 0 : index
    %c0_19 = arith.constant 0 : index
    %28 = vector.load %arg1[%c5, %c0_18, %c0_19] : memref<9x2x4xbf16, #tpu.memory_space<vmem>>, vector<1x2x4xbf16>
    %29 = vector.shape_cast %28 : vector<1x2x4xbf16> to vector<2x4xbf16>
    %cst_20 = arith.constant dense<0.000000e+00> : vector<2x384xf32>
    %30 = tpu.matmul %29, %27, %cst_20 {dimension_numbers = #tpu.dot_dimension_numbers<[1], [0], [0], [1], [0, 0, 1, 1], [], []>} : vector<2x4xbf16>, vector<4x384xbf16>, vector<2x384xf32> -> vector<2x384xf32>
    %31 = arith.addf %26, %30 : vector<2x384xf32>
    %32 = vector.extract_strided_slice %2 {offsets = [0, 36], sizes = [4, 384], strides = [1, 1]} : vector<4x768xbf16> to vector<4x384xbf16>
    %c6 = arith.constant 6 : index
    %c0_21 = arith.constant 0 : index
    %c0_22 = arith.constant 0 : index
    %33 = vector.load %arg1[%c6, %c0_21, %c0_22] : memref<9x2x4xbf16, #tpu.memory_space<vmem>>, vector<1x2x4xbf16>
    %34 = vector.shape_cast %33 : vector<1x2x4xbf16> to vector<2x4xbf16>
    %cst_23 = arith.constant dense<0.000000e+00> : vector<2x384xf32>
    %35 = tpu.matmul %34, %32, %cst_23 {dimension_numbers = #tpu.dot_dimension_numbers<[1], [0], [0], [1], [0, 0, 1, 1], [], []>} : vector<2x4xbf16>, vector<4x384xbf16>, vector<2x384xf32> -> vector<2x384xf32>
    %36 = arith.addf %31, %35 : vector<2x384xf32>
    %37 = vector.extract_strided_slice %2 {offsets = [0, 37], sizes = [4, 384], strides = [1, 1]} : vector<4x768xbf16> to vector<4x384xbf16>
    %c7 = arith.constant 7 : index
    %c0_24 = arith.constant 0 : index
    %c0_25 = arith.constant 0 : index
    %38 = vector.load %arg1[%c7, %c0_24, %c0_25] : memref<9x2x4xbf16, #tpu.memory_space<vmem>>, vector<1x2x4xbf16>
    %39 = vector.shape_cast %38 : vector<1x2x4xbf16> to vector<2x4xbf16>
    %cst_26 = arith.constant dense<0.000000e+00> : vector<2x384xf32>
    %40 = tpu.matmul %39, %37, %cst_26 {dimension_numbers = #tpu.dot_dimension_numbers<[1], [0], [0], [1], [0, 0, 1, 1], [], []>} : vector<2x4xbf16>, vector<4x384xbf16>, vector<2x384xf32> -> vector<2x384xf32>
    %41 = arith.addf %36, %40 : vector<2x384xf32>
    %42 = vector.extract_strided_slice %2 {offsets = [0, 38], sizes = [4, 384], strides = [1, 1]} : vector<4x768xbf16> to vector<4x384xbf16>
    %c8 = arith.constant 8 : index
    %c0_27 = arith.constant 0 : index
    %c0_28 = arith.constant 0 : index
    %43 = vector.load %arg1[%c8, %c0_27, %c0_28] : memref<9x2x4xbf16, #tpu.memory_space<vmem>>, vector<1x2x4xbf16>
    %44 = vector.shape_cast %43 : vector<1x2x4xbf16> to vector<2x4xbf16>
    %cst_29 = arith.constant dense<0.000000e+00> : vector<2x384xf32>
    %45 = tpu.matmul %44, %42, %cst_29 {dimension_numbers = #tpu.dot_dimension_numbers<[1], [0], [0], [1], [0, 0, 1, 1], [], []>} : vector<2x4xbf16>, vector<4x384xbf16>, vector<2x384xf32> -> vector<2x384xf32>
    %46 = arith.addf %41, %45 : vector<2x384xf32>
    %c0_30 = arith.constant 0 : index
    %c0_31 = arith.constant 0 : index
    %47 = vector.load %arg2[%c0_30, %c0_31] : memref<2x1xf32, #tpu.memory_space<vmem>>, vector<2x1xf32>
    %48 = vector.broadcast %47 : vector<2x1xf32> to vector<2x384xf32>
    %49 = arith.addf %46, %48 : vector<2x384xf32>
    %c0_32 = arith.constant 0 : index
    %c0_33 = arith.constant 0 : index
    %50 = vector.load %arg5[%c0_32, %c0_33] : memref<2x384xf32, #tpu.memory_space<vmem>>, vector<2x384xf32>
    tpu.vector_store %arg5[%c0_32, %c0_33], %49 {strides = array<i32>} : memref<2x384xf32, #tpu.memory_space<vmem>>, vector<2x384xf32>,
    return
  }
  func.func @transform_0(%arg0: i32) -> (i32, i32, i32) {
    %c0_i32 = arith.constant 0 : i32
    %c0_i32_0 = arith.constant 0 : i32
    %c0_i32_1 = arith.constant 0 : i32
    %c0_i32_2 = arith.constant 0 : i32
    return %c0_i32, %c0_i32_0, %c0_i32_1 : i32, i32, i32
  }
  func.func @transform_1(%arg0: i32) -> (i32, i32) {
    %c0_i32 = arith.constant 0 : i32
    %c0_i32_0 = arith.constant 0 : i32
    %c0_i32_1 = arith.constant 0 : i32
    return %c0_i32, %c0_i32_0 : i32, i32
  }
  func.func @transform_2(%arg0: i32) -> (i32, i32) {
    %c0_i32 = arith.constant 0 : i32
    %c0_i32_0 = arith.constant 0 : i32
    return %c0_i32, %arg0 : i32, i32
  }
  func.func @transform_3(%arg0: i32) -> (i32, i32) {
    %c1_i32 = arith.constant 1 : i32
    %0 = arith.addi %arg0, %c1_i32 : i32
    %c0_i32 = arith.constant 0 : i32
    %c0_i32_0 = arith.constant 0 : i32
    return %c0_i32, %0 : i32, i32
  }
  func.func @transform_4(%arg0: i32) -> (i32, i32) {
    %c0_i32 = arith.constant 0 : i32
    %c0_i32_0 = arith.constant 0 : i32
    return %c0_i32, %arg0 : i32, i32
  }
}

</mosaic_0001>

<llo_original>
// kernel: unetwork_forward.11
$region0: #{unetwork_forward.11}
  #allocation0 [shape = 'u32[]', space=smem, size = 0x4, offset = 0x4, fixed_abs, tag = 'smem constant byte address 0x4 - core index']
  #allocation1 [shape = 'u32[144,128]{1,0:T(1,128)}', space=vmem, size = 0x12000, scoped, tag = 'internal scratch']
  %s0 = inlined_call_operand.vmem [shape: bf16[4,4,8], index: 0, kind: input, shape index: {}]
  %s1 = inlined_call_operand.vmem [shape: f32[4,1], index: 1, kind: input, shape index: {}]
  %s2 = inlined_call_operand.vmem [shape: bf16[8,384], index: 2, kind: input, shape index: {}, may-alias: {2,3}]
  %s3 = inlined_call_operand.vmem [shape: bf16[8,384], index: 3, kind: input, shape index: {}, may-alias: {2,3}]
  %s4 = inlined_call_operand.vmem [shape: bf16[4,256], index: 4, kind: output, shape index: {}]
  %s5 = sld [smem:[#allocation0]]
  $region49: #{unetwork_forward.11} parent=0
    _
  %s7 = ssub.s32 1, %s5
  %s8 = scalar_select 0, %s7, %s5
  loop: start=0, step=1, limit=4
  $region2: #{unetwork_forward.11} parent=0 // loop_pre_header
    _
  $region3: #{unetwork_forward.11} parent=0 // loop_header
    %s10 = sphi 0, %s14
    %p11 = scmp.ge.s32.totalorder %s10, 4
    %s18 = sphi 0, %s18
    %s20 = sphi 0, %s18
    %s21 = sphi 0, %s20
    %s35 = sphi 0, %s21
    %s39 = sphi 0, %s39
    %s41 = sphi 0, %s39
    %s42 = sphi 0, %s41
    %s56 = sphi 0, %s42
    %s62 = sphi 0, %s64
    %s65 = sphi 0, %s62
    %s66 = sphi 0, %s65
    %s82 = sphi 0, %s66
    %s90 = sphi 0, %s92
    %s93 = sphi 0, %s90
    %s94 = sphi 0, %s93
    %s110 = sphi 0, %s94
    %s116 = sphi 0, %s118
    %s119 = sphi 0, %s116
    %s120 = sphi 0, %s119
    %s136 = sphi 0, %s120
  $region4: #{unetwork_forward.11} parent=0 // loop_header_branch
    %13 = sbr.rel (%p11) target = $region8
  $region5: #{unetwork_forward.11} parent=0 // loop_body
    %s15 = ssub.s32 %s10, 1
    %s16 = ssub.s32 %s10, 2
    %s17 = sadd.s32 %s10, 1
    %s19 = sadd.s32 %s18, 1
    %p22 = scmp.eq.s32.totalorder %s10, 1
    %p23 = scmp.ne.s32.totalorder %s18, %s20
    %p24 = scmp.eq.s32.totalorder %s10, 0
    %p25 = por %p23, %p24
    %p26 = scmp.ne.s32.totalorder %s18, %s20
    %p27 = scmp.eq.s32.totalorder %s15, 1
    %p28 = por %p26, %p27
    %p29 = scmp.ne.s32.totalorder %s20, %s21
    %p30 = scmp.eq.s32.totalorder %s15, 0
    %p31 = por %p29, %p30
    %p32 = scmp.ne.s32.totalorder %s20, %s21
    %p33 = scmp.eq.s32.totalorder %s16, 1
    %p34 = por %p32, %p33
    %p36 = scmp.ne.s32.totalorder %s21, %s35
    %p37 = scmp.eq.s32.totalorder %s16, 0
    %p38 = por %p36, %p37
    %s40 = sadd.s32 %s39, 1
    %p43 = scmp.eq.s32.totalorder %s10, 1
    %p44 = scmp.ne.s32.totalorder %s39, %s41
    %p45 = scmp.eq.s32.totalorder %s10, 0
    %p46 = por %p44, %p45
    %p47 = scmp.ne.s32.totalorder %s39, %s41
    %p48 = scmp.eq.s32.totalorder %s15, 1
    %p49 = por %p47, %p48
    %p50 = scmp.ne.s32.totalorder %s41, %s42
    %p51 = scmp.eq.s32.totalorder %s15, 0
    %p52 = por %p50, %p51
    %p53 = scmp.ne.s32.totalorder %s41, %s42
    %p54 = scmp.eq.s32.totalorder %s16, 1
    %p55 = por %p53, %p54
    %p57 = scmp.ne.s32.totalorder %s42, %s56
    %p58 = scmp.eq.s32.totalorder %s16, 0
    %p59 = por %p57, %p58
    %s60 = ssub.s32 %s10, %s17
    %p61 = scmp.eq.s32.totalorder %s60, 0
    %s63 = sadd.s32 %s62, 1
    %s64 = scalar_select %p61, %s62, %s63
    %p67 = pneg %p61
    %p68 = scmp.eq.s32.totalorder %s10, 1
    %p69 = por %p67, %p68
    %p70 = scmp.ne.s32.totalorder %s62, %s65
    %p71 = scmp.eq.s32.totalorder %s10, 0
    %p72 = por %p70, %p71
    %p73 = scmp.ne.s32.totalorder %s62, %s65
    %p74 = scmp.eq.s32.totalorder %s15, 1
    %p75 = por %p73, %p74
    %p76 = scmp.ne.s32.totalorder %s65, %s66
    %p77 = scmp.eq.s32.totalorder %s15, 0
    %p78 = por %p76, %p77
    %p79 = scmp.ne.s32.totalorder %s65, %s66
    %p80 = scmp.eq.s32.totalorder %s16, 1
    %p81 = por %p79, %p80
    %p83 = scmp.ne.s32.totalorder %s66, %s82
    %p84 = scmp.eq.s32.totalorder %s16, 0
    %p85 = por %p83, %p84
    %s86 = sadd.s32 %s10, 1
    %s87 = sadd.s32 %s17, 1
    %s88 = ssub.s32 %s86, %s87
    %p89 = scmp.eq.s32.totalorder %s88, 0
    %s91 = sadd.s32 %s90, 1
    %s92 = scalar_select %p89, %s90, %s91
    %p95 = pneg %p89
    %p96 = scmp.eq.s32.totalorder %s10, 1
    %p97 = por %p95, %p96
    %p98 = scmp.ne.s32.totalorder %s90, %s93
    %p99 = scmp.eq.s32.totalorder %s10, 0
    %p100 = por %p98, %p99
    %p101 = scmp.ne.s32.totalorder %s90, %s93
    %p102 = scmp.eq.s32.totalorder %s15, 1
    %p103 = por %p101, %p102
    %p104 = scmp.ne.s32.totalorder %s93, %s94
    %p105 = scmp.eq.s32.totalorder %s15, 0
    %p106 = por %p104, %p105
    %p107 = scmp.ne.s32.totalorder %s93, %s94
    %p108 = scmp.eq.s32.totalorder %s16, 1
    %p109 = por %p107, %p108
    %p111 = scmp.ne.s32.totalorder %s94, %s110
    %p112 = scmp.eq.s32.totalorder %s16, 0
    %p113 = por %p111, %p112
    %s114 = ssub.s32 %s10, %s17
    %p115 = scmp.eq.s32.totalorder %s114, 0
    %s117 = sadd.s32 %s116, 1
    %s118 = scalar_select %p115, %s116, %s117
    %p121 = pneg %p115
    %p122 = scmp.eq.s32.totalorder %s10, 1
    %p123 = por %p121, %p122
    %p124 = scmp.ne.s32.totalorder %s116, %s119
    %p125 = scmp.eq.s32.totalorder %s10, 0
    %p126 = por %p124, %p125
    %p127 = scmp.ne.s32.totalorder %s116, %s119
    %p128 = scmp.eq.s32.totalorder %s15, 1
    %p129 = por %p127, %p128
    %p130 = scmp.ne.s32.totalorder %s119, %s120
    %p131 = scmp.eq.s32.totalorder %s15, 0
    %p132 = por %p130, %p131
    %p133 = scmp.ne.s32.totalorder %s119, %s120
    %p134 = scmp.eq.s32.totalorder %s16, 1
    %p135 = por %p133, %p134
    %p137 = scmp.ne.s32.totalorder %s120, %s136
    %p138 = scmp.eq.s32.totalorder %s16, 0
    %p139 = por %p137, %p138
    %p140 = scmp.le.s32.totalorder 1, %s10
    %p141 = scmp.lt.s32.totalorder %s10, 3
    %p142 = pnand %p140, %p141
    %p143 = pneg %p142
    // Predicated region
    $region9: #{unetwork_forward.11} parent=5 // pred_check
      _
    $region10: #{unetwork_forward.11} parent=5 // pred_check_branch
      %145 = sbr.rel (%p142) target = $region12
    $region11: #{unetwork_forward.11} parent=5 // pred_region
      %s146 = ssub.s32 %s10, 1
      // Predicated region
      $region13: #{unetwork_forward.11} parent=11 // pred_check
        %p147 = pneg %p31
      $region14: #{unetwork_forward.11} parent=11 // pred_check_branch
        %149 = sbr.rel (%p147) target = $region16
      $region15: #{unetwork_forward.11} parent=11 // pred_region
        _
      $region16: #{unetwork_forward.11} parent=11 // pred_fallthru
        _
      // Predicated region
      $region17: #{unetwork_forward.11} parent=11 // pred_check
        %p150 = pneg %p52
      $region18: #{unetwork_forward.11} parent=11 // pred_check_branch
        %152 = sbr.rel (%p150) target = $region20
      $region19: #{unetwork_forward.11} parent=11 // pred_region
        _
      $region20: #{unetwork_forward.11} parent=11 // pred_fallthru
        _
    $region12: #{unetwork_forward.11} parent=5 // pred_fallthru
      _
    %p153 = scmp.lt.s32.totalorder %s10, 2
    // Predicated region
    $region21: #{unetwork_forward.11} parent=5 // pred_check
      %p154 = pneg %p153
    $region22: #{unetwork_forward.11} parent=5 // pred_check_branch
      %156 = sbr.rel (%p154) target = $region24
    $region23: #{unetwork_forward.11} parent=5 // pred_region
      // Predicated region
      $region25: #{unetwork_forward.11} parent=23 // pred_check
        %p157 = pneg %p72
      $region26: #{unetwork_forward.11} parent=23 // pred_check_branch
        %159 = sbr.rel (%p157) target = $region28
      $region27: #{unetwork_forward.11} parent=23 // pred_region
        %p160 = scmp.lt.s32.totalorder %s10, 2
        %s161 = scalar_select %p160, %s10, 2
        %s162 = smul.addr %s161, 4
        %s163 = scalar_lea.vmem %s2, %s162
      $region28: #{unetwork_forward.11} parent=23 // pred_fallthru
        _
      // Predicated region
      $region29: #{unetwork_forward.11} parent=23 // pred_check
        %p164 = pneg %p100
      $region30: #{unetwork_forward.11} parent=23 // pred_check_branch
        %166 = sbr.rel (%p164) target = $region32
      $region31: #{unetwork_forward.11} parent=23 // pred_region
        %s167 = sadd.s32 %s10, 1
        %p168 = scmp.lt.s32.totalorder %s167, 2
        %s169 = scalar_select %p168, %s167, 2
        %s170 = smul.addr %s169, 4
        %s171 = scalar_lea.vmem %s3, %s170
        %s172 = sadd.s32 %s10, 1
      $region32: #{unetwork_forward.11} parent=23 // pred_fallthru
        _
    $region24: #{unetwork_forward.11} parent=5 // pred_fallthru
      _
    %p173 = scmp.le.s32.totalorder 1, %s10
    %p174 = scmp.lt.s32.totalorder %s10, 3
    %p175 = pnand %p173, %p174
    %p176 = pneg %p175
    // Predicated region
    $region33: #{unetwork_forward.11} parent=5 // pred_check
      _
    $region34: #{unetwork_forward.11} parent=5 // pred_check_branch
      %178 = sbr.rel (%p175) target = $region36
    $region35: #{unetwork_forward.11} parent=5 // pred_region
      %s179 = ssub.s32 %s10, 1
      %p180 = pneg %p31
      %p181 = pneg %p28
      %p182 = pneg %p52
      %p183 = pneg %p49
      %p184 = scmp.lt.s32.totalorder %s15, 2
      %s185 = scalar_select %p184, %s15, 2
      %s186 = smul.addr %s185, 4
      %s187 = scalar_lea.vmem %s2, %s186
      %p188 = pneg %p78
      %p189 = pneg %p75
      %s190 = sadd.s32 %s15, 1
      %p191 = scmp.lt.s32.totalorder %s190, 2
      %s192 = scalar_select %p191, %s190, 2
      %s193 = smul.addr %s192, 4
      %s194 = scalar_lea.vmem %s3, %s193
      %p195 = pneg %p106
      %p196 = pneg %p103
      %p197 = pneg %p132
      %p198 = pneg %p129
      %p199 = scmp.lt.s32.totalorder %s15, 1
      %s200 = scalar_select %p199, %s15, 1
      %s201 = smul.addr %s200, 2
      %s202 = scalar_lea.vmem %s4, %s201
      %p203 = scmp.lt.s32.totalorder %s15, 2
      %s204 = scalar_select %p203, %s15, 2
      %s205 = smul.addr %s204, 4
      %s206 = scalar_lea.vmem %s2, %s205
      %s207 = sadd.s32 %s15, 1
      %p208 = scmp.lt.s32.totalorder %s207, 2
      %s209 = scalar_select %p208, %s207, 2
      %s210 = smul.addr %s209, 4
      %s211 = scalar_lea.vmem %s3, %s210
      %s212 = sadd.s32 %s15, 1
      %p213 = scmp.lt.s32.totalorder %s15, 1
      %s214 = scalar_select %p213, %s15, 1
      %s215 = smul.addr %s214, 2
      %s216 = scalar_lea.vmem %s4, %s215
      %v218 = vld [vmem:[%s206] sm:$0xf]
      %v219 = vld [vmem:[%s211] sm:$0xf]
      %v220 = vld [vmem:[%s0] sm:$0x3]
      %s221 = scalar_lea.vmem %s0, 2
      %v222 = vld [vmem:[%s221] sm:$0x3]
      %225 = vrot.lane.b32.xlu0 %v218, 127
      %v226 = vpop.permute.xlu0 %225
      %227 = vrot.lane.b32.xlu0 %v219, 127
      %v228 = vpop.permute.xlu0 %227
      %vm229 = vcmask 1039360
      %v230 = vsel %vm229, %v226, %v228
      %vm231 = vcmask 64512
      %v233 = vsel %vm231, %v222, 0
      %vm235 = vcmask 1043456
      %v237 = vsel %vm235, %v230, 0
      %239 = vmatprep.subr.bf16.mxu0 0
      %240 = vmatpush1.bf16.msra.mxu0 %v237
      %241 = vmatprep.subr.bf16.mxu0 0
      %242 = vmatpush1.bf16.msra.mxu0 0
      %243 = vmatprep.subr.bf16.mxu0 0
      %244 = vmatpush1.bf16.msra.mxu0 0
      %245 = vmatprep.subr.bf16.mxu0 0
      %246 = vmatpush1.bf16.msra.mxu0 0
      %247 = vmatprep.subr.bf16.mxu0 0
      %248 = vmatpush1.bf16.msra.mxu0 0
      %249 = vmatprep.subr.bf16.mxu0 0
      %250 = vmatpush1.bf16.msra.mxu0 0
      %251 = vmatprep.subr.bf16.mxu0 0
      %252 = vmatpush1.bf16.msra.mxu0 0
      %253 = vmatprep.subr.bf16.mxu0 0
      %254 = vmatpush1.bf16.msra.mxu0 0
      %255 = vmatprep.subr.bf16.mxu0 0
      %256 = vmatpush1.bf16.msra.mxu0 0
      %257 = vmatprep.subr.bf16.mxu0 0
      %258 = vmatpush1.bf16.msra.mxu0 0
      %259 = vmatprep.subr.bf16.mxu0 0
      %260 = vmatpush1.bf16.msra.mxu0 0
      %261 = vmatprep.subr.bf16.mxu0 0
      %262 = vmatpush1.bf16.msra.mxu0 0
      %263 = vmatprep.subr.bf16.mxu0 0
      %264 = vmatpush1.bf16.msra.mxu0 0
      %265 = vmatprep.subr.bf16.mxu0 0
      %266 = vmatpush1.bf16.msra.mxu0 0
      %267 = vmatprep.subr.bf16.mxu0 0
      %268 = vmatpush1.bf16.msra.mxu0 0
      %269 = vmatprep.subr.bf16.mxu0 0
      %270 = vmatpush1.bf16.msra.mxu0 0
      %271 = vmatprep.mubr.bf16.mxu0 0
      %272 = vmatmul.mubr.bf16.gmra.mrb[0].mxu0 %v233
      %v273 = vpop.f32.mrb[0].mxu0
      %v274 = vadd.f32 0.0, %v273
      %v275 = vpop.f32.mrb[0].mxu0
      %v276 = vpop.f32.mrb[0].mxu0
      %v277 = vpop.f32.mrb[0].mxu0
      %278 = vdwg.mxu0
      %v280 = vsel %vm231, %v220, 0
      %v283 = vsel %vm235, %v218, 0
      %285 = vmatprep.subr.bf16.mxu0 0
      %286 = vmatpush1.bf16.msra.mxu0 %v283
      %287 = vmatprep.subr.bf16.mxu0 0
      %288 = vmatpush1.bf16.msra.mxu0 0
      %289 = vmatprep.subr.bf16.mxu0 0
      %290 = vmatpush1.bf16.msra.mxu0 0
      %291 = vmatprep.subr.bf16.mxu0 0
      %292 = vmatpush1.bf16.msra.mxu0 0
      %293 = vmatprep.subr.bf16.mxu0 0
      %294 = vmatpush1.bf16.msra.mxu0 0
      %295 = vmatprep.subr.bf16.mxu0 0
      %296 = vmatpush1.bf16.msra.mxu0 0
      %297 = vmatprep.subr.bf16.mxu0 0
      %298 = vmatpush1.bf16.msra.mxu0 0
      %299 = vmatprep.subr.bf16.mxu0 0
      %300 = vmatpush1.bf16.msra.mxu0 0
      %301 = vmatprep.subr.bf16.mxu0 0
      %302 = vmatpush1.bf16.msra.mxu0 0
      %303 = vmatprep.subr.bf16.mxu0 0
      %304 = vmatpush1.bf16.msra.mxu0 0
      %305 = vmatprep.subr.bf16.mxu0 0
      %306 = vmatpush1.bf16.msra.mxu0 0
      %307 = vmatprep.subr.bf16.mxu0 0
      %308 = vmatpush1.bf16.msra.mxu0 0
      %309 = vmatprep.subr.bf16.mxu0 0
      %310 = vmatpush1.bf16.msra.mxu0 0
      %311 = vmatprep.subr.bf16.mxu0 0
      %312 = vmatpush1.bf16.msra.mxu0 0
      %313 = vmatprep.subr.bf16.mxu0 0
      %314 = vmatpush1.bf16.msra.mxu0 0
      %315 = vmatprep.subr.bf16.mxu0 0
      %316 = vmatpush1.bf16.msra.mxu0 0
      %317 = vmatprep.mubr.bf16.mxu0 0
      %318 = vmatmul.mubr.bf16.gmra.mrb[0].mxu0 %v280
      %v319 = vpop.f32.mrb[0].mxu0
      %v320 = vadd.f32 %v274, %v319
      %v321 = vpop.f32.mrb[0].mxu0
      %v322 = vpop.f32.mrb[0].mxu0
      %v323 = vpop.f32.mrb[0].mxu0
      %324 = vdwg.mxu0
      %s325 = scalar_lea.vmem %s0, 4
      %v326 = vld [vmem:[%s325] sm:$0x3]
      %327 = vrot.lane.b32.xlu0 %v218, 119
      %v328 = vpop.permute.xlu0 %327
      %329 = vrot.lane.b32.xlu0 %v219, 119
      %v330 = vpop.permute.xlu0 %329
      %vm331 = vcmask 973824
      %v332 = vsel %vm331, %v328, %v330
      %v334 = vsel %vm231, %v326, 0
      %v337 = vsel %vm235, %v332, 0
      %339 = vmatprep.subr.bf16.mxu0 0
      %340 = vmatpush1.bf16.msra.mxu0 %v337
      %341 = vmatprep.subr.bf16.mxu0 0
      %342 = vmatpush1.bf16.msra.mxu0 0
      %343 = vmatprep.subr.bf16.mxu0 0
      %344 = vmatpush1.bf16.msra.mxu0 0
      %345 = vmatprep.subr.bf16.mxu0 0
      %346 = vmatpush1.bf16.msra.mxu0 0
      %347 = vmatprep.subr.bf16.mxu0 0
      %348 = vmatpush1.bf16.msra.mxu0 0
      %349 = vmatprep.subr.bf16.mxu0 0
      %350 = vmatpush1.bf16.msra.mxu0 0
      %351 = vmatprep.subr.bf16.mxu0 0
      %352 = vmatpush1.bf16.msra.mxu0 0
      %353 = vmatprep.subr.bf16.mxu0 0
      %354 = vmatpush1.bf16.msra.mxu0 0
      %355 = vmatprep.subr.bf16.mxu0 0
      %356 = vmatpush1.bf16.msra.mxu0 0
      %357 = vmatprep.subr.bf16.mxu0 0
      %358 = vmatpush1.bf16.msra.mxu0 0
      %359 = vmatprep.subr.bf16.mxu0 0
      %360 = vmatpush1.bf16.msra.mxu0 0
      %361 = vmatprep.subr.bf16.mxu0 0
      %362 = vmatpush1.bf16.msra.mxu0 0
      %363 = vmatprep.subr.bf16.mxu0 0
      %364 = vmatpush1.bf16.msra.mxu0 0
      %365 = vmatprep.subr.bf16.mxu0 0
      %366 = vmatpush1.bf16.msra.mxu0 0
      %367 = vmatprep.subr.bf16.mxu0 0
      %368 = vmatpush1.bf16.msra.mxu0 0
      %369 = vmatprep.subr.bf16.mxu0 0
      %370 = vmatpush1.bf16.msra.mxu0 0
      %371 = vmatprep.mubr.bf16.mxu0 0
      %372 = vmatmul.mubr.bf16.gmra.mrb[0].mxu0 %v334
      %v373 = vpop.f32.mrb[0].mxu0
      %v374 = vadd.f32 0.0, %v373
      %v375 = vpop.f32.mrb[0].mxu0
      %v376 = vpop.f32.mrb[0].mxu0
      %v377 = vpop.f32.mrb[0].mxu0
      %378 = vdwg.mxu0
      %v379 = vadd.f32 %v320, %v374
      %s380 = scalar_lea.vmem %s0, 6
      %v381 = vld [vmem:[%s380] sm:$0x3]
      %382 = vrot.lane.b32.xlu0 %v218, 118
      %v383 = vpop.permute.xlu0 %382
      %384 = vrot.lane.b32.xlu0 %v219, 118
      %v385 = vpop.permute.xlu0 %384
      %vm386 = vcmask 965632
      %v387 = vsel %vm386, %v383, %v385
      %v389 = vsel %vm231, %v381, 0
      %v392 = vsel %vm235, %v387, 0
      %394 = vmatprep.subr.bf16.mxu0 0
      %395 = vmatpush1.bf16.msra.mxu0 %v392
      %396 = vmatprep.subr.bf16.mxu0 0
      %397 = vmatpush1.bf16.msra.mxu0 0
      %398 = vmatprep.subr.bf16.mxu0 0
      %399 = vmatpush1.bf16.msra.mxu0 0
      %400 = vmatprep.subr.bf16.mxu0 0
      %401 = vmatpush1.bf16.msra.mxu0 0
      %402 = vmatprep.subr.bf16.mxu0 0
      %403 = vmatpush1.bf16.msra.mxu0 0
      %404 = vmatprep.subr.bf16.mxu0 0
      %405 = vmatpush1.bf16.msra.mxu0 0
      %406 = vmatprep.subr.bf16.mxu0 0
      %407 = vmatpush1.bf16.msra.mxu0 0
      %408 = vmatprep.subr.bf16.mxu0 0
      %409 = vmatpush1.bf16.msra.mxu0 0
      %410 = vmatprep.subr.bf16.mxu0 0
      %411 = vmatpush1.bf16.msra.mxu0 0
      %412 = vmatprep.subr.bf16.mxu0 0
      %413 = vmatpush1.bf16.msra.mxu0 0
      %414 = vmatprep.subr.bf16.mxu0 0
      %415 = vmatpush1.bf16.msra.mxu0 0
      %416 = vmatprep.subr.bf16.mxu0 0
      %417 = vmatpush1.bf16.msra.mxu0 0
      %418 = vmatprep.subr.bf16.mxu0 0
      %419 = vmatpush1.bf16.msra.mxu0 0
      %420 = vmatprep.subr.bf16.mxu0 0
      %421 = vmatpush1.bf16.msra.mxu0 0
      %422 = vmatprep.subr.bf16.mxu0 0
      %423 = vmatpush1.bf16.msra.mxu0 0
      %424 = vmatprep.subr.bf16.mxu0 0
      %425 = vmatpush1.bf16.msra.mxu0 0
      %426 = vmatprep.mubr.bf16.mxu0 0
      %427 = vmatmul.mubr.bf16.gmra.mrb[0].mxu0 %v389
      %v428 = vpop.f32.mrb[0].mxu0
      %v429 = vadd.f32 0.0, %v428
      %v430 = vpop.f32.mrb[0].mxu0
      %v431 = vpop.f32.mrb[0].mxu0
      %v432 = vpop.f32.mrb[0].mxu0
      %433 = vdwg.mxu0
      %v434 = vadd.f32 %v379, %v429
      %v435 = vld [vmem:[%s1] sm:$0xf]
      %437 = vset.pattern.permute.xlu0 0
      %438 = vperm.xlu0 %437, %v435
      %v439 = vpop.permute.xlu0 %438
      %v441 = vadd.f32 %v434, %v439
      %vm442 = vcmp.ge.f32.partialorder %v441, 0.0
      %v443 = vmul.f32 %v441, 0.2
      %v444 = vsel %vm442, %v441, %v443
      %v445 = vpack.c.bf16 %v444, %v444
      %446 = vst [vmem:[%s216] sm:$0x3] %v445
      %p447 = scmp.lt.s32.totalorder %s15, 1
      %s448 = scalar_select %p447, %s15, 1
      %s449 = smul.addr %s448, 2
      %s450 = scalar_lea.vmem %s4, %s449
      // Predicated region
      $region37: #{unetwork_forward.11} parent=35 // pred_check
        %p451 = pneg %p129
      $region38: #{unetwork_forward.11} parent=35 // pred_check_branch
        %453 = sbr.rel (%p451) target = $region40
      $region39: #{unetwork_forward.11} parent=35 // pred_region
        _
      $region40: #{unetwork_forward.11} parent=35 // pred_fallthru
        _
    $region36: #{unetwork_forward.11} parent=5 // pred_fallthru
      _
    %p454 = scmp.le.s32.totalorder 2, %s10
    // Predicated region
    $region41: #{unetwork_forward.11} parent=5 // pred_check
      %p455 = pneg %p454
    $region42: #{unetwork_forward.11} parent=5 // pred_check_branch
      %457 = sbr.rel (%p455) target = $region44
    $region43: #{unetwork_forward.11} parent=5 // pred_region
      %s458 = ssub.s32 %s10, 2
      // Predicated region
      $region45: #{unetwork_forward.11} parent=43 // pred_check
        %p459 = pneg %p135
      $region46: #{unetwork_forward.11} parent=43 // pred_check_branch
        %461 = sbr.rel (%p459) target = $region48
      $region47: #{unetwork_forward.11} parent=43 // pred_region
        %p462 = scmp.lt.s32.totalorder %s16, 1
        %s463 = scalar_select %p462, %s16, 1
        %s464 = smul.addr %s463, 2
        %s465 = scalar_lea.vmem %s4, %s464
      $region48: #{unetwork_forward.11} parent=43 // pred_fallthru
        _
    $region44: #{unetwork_forward.11} parent=5 // pred_fallthru
      _
  $region6: #{unetwork_forward.11} parent=0 // loop_footer
    %s14 = sadd.s32 1, %s10
  $region7: #{unetwork_forward.11} parent=0 // loop_footer_branch
    %9 = sbr.rel target = $region3
  $region8: #{unetwork_forward.11} parent=0 // loop_exit
    _

// kernel: unetwork_forward.12
$region0: #{unetwork_forward.12}
  #allocation0 [shape = 'u32[]', space=smem, size = 0x4, offset = 0x4, fixed_abs, tag = 'smem constant byte address 0x4 - core index']
  #allocation1 [shape = 'u32[144,128]{1,0:T(1,128)}', space=vmem, size = 0x12000, scoped, tag = 'internal scratch']
  %s0 = inlined_call_operand.vmem [shape: bf16[4,8,16], index: 0, kind: input, shape index: {}]
  %s1 = inlined_call_operand.vmem [shape: f32[8,1], index: 1, kind: input, shape index: {}]
  %s2 = inlined_call_operand.vmem [shape: bf16[16,256], index: 2, kind: input, shape index: {}, may-alias: {2,3}]
  %s3 = inlined_call_operand.vmem [shape: bf16[16,256], index: 3, kind: input, shape index: {}, may-alias: {2,3}]
  %s4 = inlined_call_operand.vmem [shape: bf16[8,128], index: 4, kind: output, shape index: {}]
  %s5 = sld [smem:[#allocation0]]
  $region108: #{unetwork_forward.12} parent=0
    _
  %s7 = ssub.s32 1, %s5
  %s8 = scalar_select 0, %s7, %s5
  $region1: #{unetwork_forward.12} parent=0
    #allocation2 [shape = 'u8[4096]{0}', space=vmem, size = 0x1000, scoped, tag = 'input window, operand 2, single buffered']
    #allocation3 [shape = 'u8[4096]{0}', space=vmem, size = 0x1000, scoped, tag = 'input window, operand 3, single buffered']
    // Predicated region
    $region2: #{unetwork_forward.12} parent=1 // pred_check
      _
    $region3: #{unetwork_forward.12} parent=1 // pred_check_branch
      %10 = sbr.rel (0) target = $region5
    $region4: #{unetwork_forward.12} parent=1 // pred_region
      _
    $region5: #{unetwork_forward.12} parent=1 // pred_fallthru
      _
    // Predicated region
    $region6: #{unetwork_forward.12} parent=1 // pred_check
      _
    $region7: #{unetwork_forward.12} parent=1 // pred_check_branch
      %12 = sbr.rel (0) target = $region9
    $region8: #{unetwork_forward.12} parent=1 // pred_region
      _
    $region9: #{unetwork_forward.12} parent=1 // pred_fallthru
      _
    // Predicated region
    $region10: #{unetwork_forward.12} parent=1 // pred_check
      _
    $region11: #{unetwork_forward.12} parent=1 // pred_check_branch
      %14 = sbr.rel (0) target = $region13
    $region12: #{unetwork_forward.12} parent=1 // pred_region
      // Predicated region
      $region14: #{unetwork_forward.12} parent=12 // pred_check
        _
      $region15: #{unetwork_forward.12} parent=12 // pred_check_branch
        %16 = sbr.rel (0) target = $region17
      $region16: #{unetwork_forward.12} parent=12 // pred_region
        // Predicated region
        $region18: #{unetwork_forward.12} parent=16 // pred_check
          _
        $region19: #{unetwork_forward.12} parent=16 // pred_check_branch
          %18 = sbr.rel target = $region21
        $region20: #{unetwork_forward.12} parent=16 // pred_region
          // Predicated region
          $region33: #{unetwork_forward.12} parent=20 // pred_check
            _
          $region34: #{unetwork_forward.12} parent=20 // pred_check_branch
            %35 = sbr.rel (0) target = $region36
          $region35: #{unetwork_forward.12} parent=20 // pred_region
            loop: start=0, step=1, limit=1
            $region37: #{unetwork_forward.12} parent=35 // loop_pre_header
              _
            $region38: #{unetwork_forward.12} parent=35 // loop_header
              %s37 = sphi 0, %s41
              %p38 = scmp.ge.s32.totalorder %s37, 1
              %s42 = sphi %s2, %s2
              %s43 = sphi [#allocation2], [#allocation2]
            $region39: #{unetwork_forward.12} parent=35 // loop_header_branch
              %40 = sbr.rel (%p38) target = $region43
            $region40: #{unetwork_forward.12} parent=35 // loop_body
              _
            $region41: #{unetwork_forward.12} parent=35 // loop_footer
              %s41 = sadd.s32 1, %s37
            $region42: #{unetwork_forward.12} parent=35 // loop_footer_branch
              %36 = sbr.rel target = $region38
            $region43: #{unetwork_forward.12} parent=35 // loop_exit
              _
            loop: start=0, step=1, limit=1
            $region44: #{unetwork_forward.12} parent=35 // loop_pre_header
              _
            $region45: #{unetwork_forward.12} parent=35 // loop_header
              %s46 = sphi 0, %s50
              %p47 = scmp.ge.s32.totalorder %s46, 1
              %s51 = sphi %s2, %s2
              %s52 = sphi [#allocation2], [#allocation2]
            $region46: #{unetwork_forward.12} parent=35 // loop_header_branch
              %49 = sbr.rel (%p47) target = $region50
            $region47: #{unetwork_forward.12} parent=35 // loop_body
              %v53 = vld [vmem:[%s51] sm:$0xf]
              %54 = vst [vmem:[%s52] sm:$0xf] %v53
              %v55 = vld [vmem:[%s51 + $0x8] sm:$0xf]
              %56 = vst [vmem:[%s52 + $0x4] sm:$0xf] %v55
            $region48: #{unetwork_forward.12} parent=35 // loop_footer
              %s50 = sadd.s32 1, %s46
            $region49: #{unetwork_forward.12} parent=35 // loop_footer_branch
              %45 = sbr.rel target = $region45
            $region50: #{unetwork_forward.12} parent=35 // loop_exit
              _
          $region36: #{unetwork_forward.12} parent=20 // pred_fallthru
            _
        $region21: #{unetwork_forward.12} parent=16 // pred_fallthru
          _
        // Predicated region
        $region22: #{unetwork_forward.12} parent=16 // pred_check
          _
        $region23: #{unetwork_forward.12} parent=16 // pred_check_branch
          %20 = sbr.rel (0) target = $region25
        $region24: #{unetwork_forward.12} parent=16 // pred_region
          loop: start=0, step=1, limit=1
          $region26: #{unetwork_forward.12} parent=24 // loop_pre_header
            _
          $region27: #{unetwork_forward.12} parent=24 // loop_header
            %s23 = sphi 0, %s27
            %p24 = scmp.ge.s32.totalorder %s23, 1
            %s28 = sphi %s2, %s2
            %s29 = sphi [#allocation2], [#allocation2]
          $region28: #{unetwork_forward.12} parent=24 // loop_header_branch
            %26 = sbr.rel (%p24) target = $region32
          $region29: #{unetwork_forward.12} parent=24 // loop_body
            %v30 = vld [vmem:[%s28] sm:$0xf]
            %31 = vst [vmem:[%s29] sm:$0xf] %v30
            %v32 = vld [vmem:[%s28 + $0x8] sm:$0xf]
            %33 = vst [vmem:[%s29 + $0x4] sm:$0xf] %v32
          $region30: #{unetwork_forward.12} parent=24 // loop_footer
            %s27 = sadd.s32 1, %s23
          $region31: #{unetwork_forward.12} parent=24 // loop_footer_branch
            %22 = sbr.rel target = $region27
          $region32: #{unetwork_forward.12} parent=24 // loop_exit
            _
        $region25: #{unetwork_forward.12} parent=16 // pred_fallthru
          _
      $region17: #{unetwork_forward.12} parent=12 // pred_fallthru
        _
      %57 = vnop
    $region13: #{unetwork_forward.12} parent=1 // pred_fallthru
      _
    // Predicated region
    $region51: #{unetwork_forward.12} parent=1 // pred_check
      _
    $region52: #{unetwork_forward.12} parent=1 // pred_check_branch
      %59 = sbr.rel (0) target = $region54
    $region53: #{unetwork_forward.12} parent=1 // pred_region
      %s60 = sadd.s32 0, 1
      %s61 = smul.addr %s60, 4
      %s62 = scalar_lea.vmem %s3, %s61
      // Predicated region
      $region55: #{unetwork_forward.12} parent=53 // pred_check
        _
      $region56: #{unetwork_forward.12} parent=53 // pred_check_branch
        %64 = sbr.rel (0) target = $region58
      $region57: #{unetwork_forward.12} parent=53 // pred_region
        // Predicated region
        $region59: #{unetwork_forward.12} parent=57 // pred_check
          _
        $region60: #{unetwork_forward.12} parent=57 // pred_check_branch
          %66 = sbr.rel target = $region62
        $region61: #{unetwork_forward.12} parent=57 // pred_region
          // Predicated region
          $region74: #{unetwork_forward.12} parent=61 // pred_check
            _
          $region75: #{unetwork_forward.12} parent=61 // pred_check_branch
            %83 = sbr.rel (0) target = $region77
          $region76: #{unetwork_forward.12} parent=61 // pred_region
            loop: start=0, step=1, limit=1
            $region78: #{unetwork_forward.12} parent=76 // loop_pre_header
              _
            $region79: #{unetwork_forward.12} parent=76 // loop_header
              %s85 = sphi 0, %s89
              %p86 = scmp.ge.s32.totalorder %s85, 1
              %s90 = sphi %s62, %s62
              %s91 = sphi [#allocation3], [#allocation3]
            $region80: #{unetwork_forward.12} parent=76 // loop_header_branch
              %88 = sbr.rel (%p86) target = $region84
            $region81: #{unetwork_forward.12} parent=76 // loop_body
              _
            $region82: #{unetwork_forward.12} parent=76 // loop_footer
              %s89 = sadd.s32 1, %s85
            $region83: #{unetwork_forward.12} parent=76 // loop_footer_branch
              %84 = sbr.rel target = $region79
            $region84: #{unetwork_forward.12} parent=76 // loop_exit
              _
            loop: start=0, step=1, limit=1
            $region85: #{unetwork_forward.12} parent=76 // loop_pre_header
              _
            $region86: #{unetwork_forward.12} parent=76 // loop_header
              %s94 = sphi 0, %s98
              %p95 = scmp.ge.s32.totalorder %s94, 1
              %s99 = sphi %s62, %s62
              %s100 = sphi [#allocation3], [#allocation3]
            $region87: #{unetwork_forward.12} parent=76 // loop_header_branch
              %97 = sbr.rel (%p95) target = $region91
            $region88: #{unetwork_forward.12} parent=76 // loop_body
              %v101 = vld [vmem:[%s99] sm:$0xf]
              %102 = vst [vmem:[%s100] sm:$0xf] %v101
              %v103 = vld [vmem:[%s99 + $0x8] sm:$0xf]
              %104 = vst [vmem:[%s100 + $0x4] sm:$0xf] %v103
            $region89: #{unetwork_forward.12} parent=76 // loop_footer
              %s98 = sadd.s32 1, %s94
            $region90: #{unetwork_forward.12} parent=76 // loop_footer_branch
              %93 = sbr.rel target = $region86
            $region91: #{unetwork_forward.12} parent=76 // loop_exit
              _
          $region77: #{unetwork_forward.12} parent=61 // pred_fallthru
            _
        $region62: #{unetwork_forward.12} parent=57 // pred_fallthru
          _
        // Predicated region
        $region63: #{unetwork_forward.12} parent=57 // pred_check
          _
        $region64: #{unetwork_forward.12} parent=57 // pred_check_branch
          %68 = sbr.rel (0) target = $region66
        $region65: #{unetwork_forward.12} parent=57 // pred_region
          loop: start=0, step=1, limit=1
          $region67: #{unetwork_forward.12} parent=65 // loop_pre_header
            _
          $region68: #{unetwork_forward.12} parent=65 // loop_header
            %s71 = sphi 0, %s75
            %p72 = scmp.ge.s32.totalorder %s71, 1
            %s76 = sphi %s62, %s62
            %s77 = sphi [#allocation3], [#allocation3]
          $region69: #{unetwork_forward.12} parent=65 // loop_header_branch
            %74 = sbr.rel (%p72) target = $region73
          $region70: #{unetwork_forward.12} parent=65 // loop_body
            %v78 = vld [vmem:[%s76] sm:$0xf]
            %79 = vst [vmem:[%s77] sm:$0xf] %v78
            %v80 = vld [vmem:[%s76 + $0x8] sm:$0xf]
            %81 = vst [vmem:[%s77 + $0x4] sm:$0xf] %v80
          $region71: #{unetwork_forward.12} parent=65 // loop_footer
            %s75 = sadd.s32 1, %s71
          $region72: #{unetwork_forward.12} parent=65 // loop_footer_branch
            %70 = sbr.rel target = $region68
          $region73: #{unetwork_forward.12} parent=65 // loop_exit
            _
        $region66: #{unetwork_forward.12} parent=57 // pred_fallthru
          _
      $region58: #{unetwork_forward.12} parent=53 // pred_fallthru
        _
      %105 = vnop
    $region54: #{unetwork_forward.12} parent=1 // pred_fallthru
      _
    // Predicated region
    $region92: #{unetwork_forward.12} parent=1 // pred_check
      _
    $region93: #{unetwork_forward.12} parent=1 // pred_check_branch
      %107 = sbr.rel (0) target = $region95
    $region94: #{unetwork_forward.12} parent=1 // pred_region
      _
    $region95: #{unetwork_forward.12} parent=1 // pred_fallthru
      _
    // Predicated region
    $region96: #{unetwork_forward.12} parent=1 // pred_check
      _
    $region97: #{unetwork_forward.12} parent=1 // pred_check_branch
      %109 = sbr.rel (0) target = $region99
    $region98: #{unetwork_forward.12} parent=1 // pred_region
      _
    $region99: #{unetwork_forward.12} parent=1 // pred_fallthru
      _
    %s110 = sadd.s32 0, 1
    %v112 = vld [vmem:[#allocation2] sm:$0xf]
    %v113 = vld [vmem:[#allocation2 + $0x4] sm:$0xf]
    %v114 = vld [vmem:[#allocation3] sm:$0xf]
    %v115 = vld [vmem:[#allocation3 + $0x4] sm:$0xf]
    %v118 = vunpack.c.l.b16 %v112
    %v119 = vunpack.c.l.b16 %v113
    %v120 = vpack.c.b16 %v119, %v118
    %v124 = vunpack.c.l.b16 %v114
    %v125 = vunpack.c.l.b16 %v115
    %v126 = vpack.c.b16 %v125, %v124
    %v127 = vld [vmem:[%s0] sm:$0xf]
    %s128 = scalar_lea.vmem %s0, 4
    %v129 = vld [vmem:[%s128] sm:$0xf]
    %130 = vrot.lane.b32.xlu0 %v120, 127
    %v131 = vpop.permute.xlu0 %130
    %132 = vrot.lane.b32.xlu0 %v126, 127
    %v133 = vpop.permute.xlu0 %132
    %vm134 = vcmask 1039360
    %v135 = vsel %vm134, %v131, %v133
    %vm137 = vcmask 130048
    %v139 = vsel %vm137, %v129, 0
    %141 = vmatprep.subr.bf16.mxu0 0
    %142 = vmatpush1.bf16.msra.mxu0 %v135
    %143 = vmatprep.subr.bf16.mxu0 0
    %144 = vmatpush1.bf16.msra.mxu0 0
    %145 = vmatprep.subr.bf16.mxu0 0
    %146 = vmatpush1.bf16.msra.mxu0 0
    %147 = vmatprep.subr.bf16.mxu0 0
    %148 = vmatpush1.bf16.msra.mxu0 0
    %149 = vmatprep.subr.bf16.mxu0 0
    %150 = vmatpush1.bf16.msra.mxu0 0
    %151 = vmatprep.subr.bf16.mxu0 0
    %152 = vmatpush1.bf16.msra.mxu0 0
    %153 = vmatprep.subr.bf16.mxu0 0
    %154 = vmatpush1.bf16.msra.mxu0 0
    %155 = vmatprep.subr.bf16.mxu0 0
    %156 = vmatpush1.bf16.msra.mxu0 0
    %157 = vmatprep.subr.bf16.mxu0 0
    %158 = vmatpush1.bf16.msra.mxu0 0
    %159 = vmatprep.subr.bf16.mxu0 0
    %160 = vmatpush1.bf16.msra.mxu0 0
    %161 = vmatprep.subr.bf16.mxu0 0
    %162 = vmatpush1.bf16.msra.mxu0 0
    %163 = vmatprep.subr.bf16.mxu0 0
    %164 = vmatpush1.bf16.msra.mxu0 0
    %165 = vmatprep.subr.bf16.mxu0 0
    %166 = vmatpush1.bf16.msra.mxu0 0
    %167 = vmatprep.subr.bf16.mxu0 0
    %168 = vmatpush1.bf16.msra.mxu0 0
    %169 = vmatprep.subr.bf16.mxu0 0
    %170 = vmatpush1.bf16.msra.mxu0 0
    %171 = vmatprep.subr.bf16.mxu0 0
    %172 = vmatpush1.bf16.msra.mxu0 0
    %173 = vmatprep.mubr.bf16.mxu0 0
    %174 = vmatmul.mubr.bf16.gmra.mrb[0].mxu0 %v139
    %v175 = vpop.f32.mrb[0].mxu0
    %v176 = vadd.f32 0.0, %v175
    %v177 = vpop.f32.mrb[0].mxu0
    %v178 = vpop.f32.mrb[0].mxu0
    %v179 = vpop.f32.mrb[0].mxu0
    %180 = vdwg.mxu0
    %v182 = vsel %vm137, %v127, 0
    %184 = vmatprep.subr.bf16.mxu0 0
    %185 = vmatpush1.bf16.msra.mxu0 %v120
    %186 = vmatprep.subr.bf16.mxu0 0
    %187 = vmatpush1.bf16.msra.mxu0 0
    %188 = vmatprep.subr.bf16.mxu0 0
    %189 = vmatpush1.bf16.msra.mxu0 0
    %190 = vmatprep.subr.bf16.mxu0 0
    %191 = vmatpush1.bf16.msra.mxu0 0
    %192 = vmatprep.subr.bf16.mxu0 0
    %193 = vmatpush1.bf16.msra.mxu0 0
    %194 = vmatprep.subr.bf16.mxu0 0
    %195 = vmatpush1.bf16.msra.mxu0 0
    %196 = vmatprep.subr.bf16.mxu0 0
    %197 = vmatpush1.bf16.msra.mxu0 0
    %198 = vmatprep.subr.bf16.mxu0 0
    %199 = vmatpush1.bf16.msra.mxu0 0
    %200 = vmatprep.subr.bf16.mxu0 0
    %201 = vmatpush1.bf16.msra.mxu0 0
    %202 = vmatprep.subr.bf16.mxu0 0
    %203 = vmatpush1.bf16.msra.mxu0 0
    %204 = vmatprep.subr.bf16.mxu0 0
    %205 = vmatpush1.bf16.msra.mxu0 0
    %206 = vmatprep.subr.bf16.mxu0 0
    %207 = vmatpush1.bf16.msra.mxu0 0
    %208 = vmatprep.subr.bf16.mxu0 0
    %209 = vmatpush1.bf16.msra.mxu0 0
    %210 = vmatprep.subr.bf16.mxu0 0
    %211 = vmatpush1.bf16.msra.mxu0 0
    %212 = vmatprep.subr.bf16.mxu0 0
    %213 = vmatpush1.bf16.msra.mxu0 0
    %214 = vmatprep.subr.bf16.mxu0 0
    %215 = vmatpush1.bf16.msra.mxu0 0
    %216 = vmatprep.mubr.bf16.mxu0 0
    %217 = vmatmul.mubr.bf16.gmra.mrb[0].mxu0 %v182
    %v218 = vpop.f32.mrb[0].mxu0
    %v219 = vadd.f32 %v176, %v218
    %v220 = vpop.f32.mrb[0].mxu0
    %v221 = vpop.f32.mrb[0].mxu0
    %v222 = vpop.f32.mrb[0].mxu0
    %223 = vdwg.mxu0
    %s224 = scalar_lea.vmem %s0, 8
    %v225 = vld [vmem:[%s224] sm:$0xf]
    %226 = vrot.lane.b32.xlu0 %v120, 123
    %v227 = vpop.permute.xlu0 %226
    %228 = vrot.lane.b32.xlu0 %v126, 123
    %v229 = vpop.permute.xlu0 %228
    %vm230 = vcmask 1006592
    %v231 = vsel %vm230, %v227, %v229
    %v234 = vsel %vm137, %v225, 0
    %236 = vmatprep.subr.bf16.mxu0 0
    %237 = vmatpush1.bf16.msra.mxu0 %v231
    %238 = vmatprep.subr.bf16.mxu0 0
    %239 = vmatpush1.bf16.msra.mxu0 0
    %240 = vmatprep.subr.bf16.mxu0 0
    %241 = vmatpush1.bf16.msra.mxu0 0
    %242 = vmatprep.subr.bf16.mxu0 0
    %243 = vmatpush1.bf16.msra.mxu0 0
    %244 = vmatprep.subr.bf16.mxu0 0
    %245 = vmatpush1.bf16.msra.mxu0 0
    %246 = vmatprep.subr.bf16.mxu0 0
    %247 = vmatpush1.bf16.msra.mxu0 0
    %248 = vmatprep.subr.bf16.mxu0 0
    %249 = vmatpush1.bf16.msra.mxu0 0
    %250 = vmatprep.subr.bf16.mxu0 0
    %251 = vmatpush1.bf16.msra.mxu0 0
    %252 = vmatprep.subr.bf16.mxu0 0
    %253 = vmatpush1.bf16.msra.mxu0 0
    %254 = vmatprep.subr.bf16.mxu0 0
    %255 = vmatpush1.bf16.msra.mxu0 0
    %256 = vmatprep.subr.bf16.mxu0 0
    %257 = vmatpush1.bf16.msra.mxu0 0
    %258 = vmatprep.subr.bf16.mxu0 0
    %259 = vmatpush1.bf16.msra.mxu0 0
    %260 = vmatprep.subr.bf16.mxu0 0
    %261 = vmatpush1.bf16.msra.mxu0 0
    %262 = vmatprep.subr.bf16.mxu0 0
    %263 = vmatpush1.bf16.msra.mxu0 0
    %264 = vmatprep.subr.bf16.mxu0 0
    %265 = vmatpush1.bf16.msra.mxu0 0
    %266 = vmatprep.subr.bf16.mxu0 0
    %267 = vmatpush1.bf16.msra.mxu0 0
    %268 = vmatprep.mubr.bf16.mxu0 0
    %269 = vmatmul.mubr.bf16.gmra.mrb[0].mxu0 %v234
    %v270 = vpop.f32.mrb[0].mxu0
    %v271 = vadd.f32 0.0, %v270
    %v272 = vpop.f32.mrb[0].mxu0
    %v273 = vpop.f32.mrb[0].mxu0
    %v274 = vpop.f32.mrb[0].mxu0
    %275 = vdwg.mxu0
    %v276 = vadd.f32 %v219, %v271
    %s277 = scalar_lea.vmem %s0, 12
    %v278 = vld [vmem:[%s277] sm:$0xf]
    %279 = vrot.lane.b32.xlu0 %v120, 122
    %v280 = vpop.permute.xlu0 %279
    %281 = vrot.lane.b32.xlu0 %v126, 122
    %v282 = vpop.permute.xlu0 %281
    %vm283 = vcmask 998400
    %v284 = vsel %vm283, %v280, %v282
    %v287 = vsel %vm137, %v278, 0
    %289 = vmatprep.subr.bf16.mxu0 0
    %290 = vmatpush1.bf16.msra.mxu0 %v284
    %291 = vmatprep.subr.bf16.mxu0 0
    %292 = vmatpush1.bf16.msra.mxu0 0
    %293 = vmatprep.subr.bf16.mxu0 0
    %294 = vmatpush1.bf16.msra.mxu0 0
    %295 = vmatprep.subr.bf16.mxu0 0
    %296 = vmatpush1.bf16.msra.mxu0 0
    %297 = vmatprep.subr.bf16.mxu0 0
    %298 = vmatpush1.bf16.msra.mxu0 0
    %299 = vmatprep.subr.bf16.mxu0 0
    %300 = vmatpush1.bf16.msra.mxu0 0
    %301 = vmatprep.subr.bf16.mxu0 0
    %302 = vmatpush1.bf16.msra.mxu0 0
    %303 = vmatprep.subr.bf16.mxu0 0
    %304 = vmatpush1.bf16.msra.mxu0 0
    %305 = vmatprep.subr.bf16.mxu0 0
    %306 = vmatpush1.bf16.msra.mxu0 0
    %307 = vmatprep.subr.bf16.mxu0 0
    %308 = vmatpush1.bf16.msra.mxu0 0
    %309 = vmatprep.subr.bf16.mxu0 0
    %310 = vmatpush1.bf16.msra.mxu0 0
    %311 = vmatprep.subr.bf16.mxu0 0
    %312 = vmatpush1.bf16.msra.mxu0 0
    %313 = vmatprep.subr.bf16.mxu0 0
    %314 = vmatpush1.bf16.msra.mxu0 0
    %315 = vmatprep.subr.bf16.mxu0 0
    %316 = vmatpush1.bf16.msra.mxu0 0
    %317 = vmatprep.subr.bf16.mxu0 0
    %318 = vmatpush1.bf16.msra.mxu0 0
    %319 = vmatprep.subr.bf16.mxu0 0
    %320 = vmatpush1.bf16.msra.mxu0 0
    %321 = vmatprep.mubr.bf16.mxu0 0
    %322 = vmatmul.mubr.bf16.gmra.mrb[0].mxu0 %v287
    %v323 = vpop.f32.mrb[0].mxu0
    %v324 = vadd.f32 0.0, %v323
    %v325 = vpop.f32.mrb[0].mxu0
    %v326 = vpop.f32.mrb[0].mxu0
    %v327 = vpop.f32.mrb[0].mxu0
    %328 = vdwg.mxu0
    %v329 = vadd.f32 %v276, %v324
    %v330 = vld [vmem:[%s1] sm:$0xff]
    %332 = vset.pattern.permute.xlu0 0
    %333 = vperm.xlu0 %332, %v330
    %v334 = vpop.permute.xlu0 %333
    %v336 = vadd.f32 %v329, %v334
    %vm337 = vcmp.ge.f32.partialorder %v336, 0.0
    %v338 = vmul.f32 %v336, 0.2
    %v339 = vsel %vm337, %v336, %v338
    %v340 = vpack.c.bf16 %v339, %v339
    %341 = vst [vmem:[%s4] sm:$0xf] %v340
    // Predicated region
    $region100: #{unetwork_forward.12} parent=1 // pred_check
      _
    $region101: #{unetwork_forward.12} parent=1 // pred_check_branch
      %343 = sbr.rel (0) target = $region103
    $region102: #{unetwork_forward.12} parent=1 // pred_region
      _
    $region103: #{unetwork_forward.12} parent=1 // pred_fallthru
      _
    // Predicated region
    $region104: #{unetwork_forward.12} parent=1 // pred_check
      _
    $region105: #{unetwork_forward.12} parent=1 // pred_check_branch
      %345 = sbr.rel (0) target = $region107
    $region106: #{unetwork_forward.12} parent=1 // pred_region
      _
    $region107: #{unetwork_forward.12} parent=1 // pred_fallthru
      _

// kernel: unetwork_forward.13
$region0: #{unetwork_forward.13}
  #allocation0 [shape = 'u32[]', space=smem, size = 0x4, offset = 0x4, fixed_abs, tag = 'smem constant byte address 0x4 - core index']
  #allocation1 [shape = 'u32[144,128]{1,0:T(1,128)}', space=vmem, size = 0x12000, scoped, tag = 'internal scratch']
  %s0 = inlined_call_operand.vmem [shape: bf16[4,8,32], index: 0, kind: input, shape index: {}]
  %s1 = inlined_call_operand.vmem [shape: f32[8,1], index: 1, kind: input, shape index: {}]
  %s2 = inlined_call_operand.vmem [shape: bf16[32,256], index: 2, kind: input, shape index: {}, may-alias: {2,3}]
  %s3 = inlined_call_operand.vmem [shape: bf16[32,256], index: 3, kind: input, shape index: {}, may-alias: {2,3}]
  %s4 = inlined_call_operand.vmem [shape: bf16[8,128], index: 4, kind: output, shape index: {}]
  %s5 = sld [smem:[#allocation0]]
  $region108: #{unetwork_forward.13} parent=0
    _
  %s7 = ssub.s32 1, %s5
  %s8 = scalar_select 0, %s7, %s5
  $region1: #{unetwork_forward.13} parent=0
    #allocation2 [shape = 'u8[8192]{0}', space=vmem, size = 0x2000, scoped, tag = 'input window, operand 2, single buffered']
    #allocation3 [shape = 'u8[8192]{0}', space=vmem, size = 0x2000, scoped, tag = 'input window, operand 3, single buffered']
    // Predicated region
    $region2: #{unetwork_forward.13} parent=1 // pred_check
      _
    $region3: #{unetwork_forward.13} parent=1 // pred_check_branch
      %10 = sbr.rel (0) target = $region5
    $region4: #{unetwork_forward.13} parent=1 // pred_region
      _
    $region5: #{unetwork_forward.13} parent=1 // pred_fallthru
      _
    // Predicated region
    $region6: #{unetwork_forward.13} parent=1 // pred_check
      _
    $region7: #{unetwork_forward.13} parent=1 // pred_check_branch
      %12 = sbr.rel (0) target = $region9
    $region8: #{unetwork_forward.13} parent=1 // pred_region
      _
    $region9: #{unetwork_forward.13} parent=1 // pred_fallthru
      _
    // Predicated region
    $region10: #{unetwork_forward.13} parent=1 // pred_check
      _
    $region11: #{unetwork_forward.13} parent=1 // pred_check_branch
      %14 = sbr.rel (0) target = $region13
    $region12: #{unetwork_forward.13} parent=1 // pred_region
      // Predicated region
      $region14: #{unetwork_forward.13} parent=12 // pred_check
        _
      $region15: #{unetwork_forward.13} parent=12 // pred_check_branch
        %16 = sbr.rel (0) target = $region17
      $region16: #{unetwork_forward.13} parent=12 // pred_region
        // Predicated region
        $region18: #{unetwork_forward.13} parent=16 // pred_check
          _
        $region19: #{unetwork_forward.13} parent=16 // pred_check_branch
          %18 = sbr.rel target = $region21
        $region20: #{unetwork_forward.13} parent=16 // pred_region
          // Predicated region
          $region33: #{unetwork_forward.13} parent=20 // pred_check
            _
          $region34: #{unetwork_forward.13} parent=20 // pred_check_branch
            %39 = sbr.rel (0) target = $region36
          $region35: #{unetwork_forward.13} parent=20 // pred_region
            loop: start=0, step=1, limit=1
            $region37: #{unetwork_forward.13} parent=35 // loop_pre_header
              _
            $region38: #{unetwork_forward.13} parent=35 // loop_header
              %s41 = sphi 0, %s45
              %p42 = scmp.ge.s32.totalorder %s41, 1
              %s46 = sphi %s2, %s2
              %s47 = sphi [#allocation2], [#allocation2]
            $region39: #{unetwork_forward.13} parent=35 // loop_header_branch
              %44 = sbr.rel (%p42) target = $region43
            $region40: #{unetwork_forward.13} parent=35 // loop_body
              _
            $region41: #{unetwork_forward.13} parent=35 // loop_footer
              %s45 = sadd.s32 1, %s41
            $region42: #{unetwork_forward.13} parent=35 // loop_footer_branch
              %40 = sbr.rel target = $region38
            $region43: #{unetwork_forward.13} parent=35 // loop_exit
              _
            loop: start=0, step=1, limit=1
            $region44: #{unetwork_forward.13} parent=35 // loop_pre_header
              _
            $region45: #{unetwork_forward.13} parent=35 // loop_header
              %s50 = sphi 0, %s54
              %p51 = scmp.ge.s32.totalorder %s50, 1
              %s55 = sphi %s2, %s2
              %s56 = sphi [#allocation2], [#allocation2]
            $region46: #{unetwork_forward.13} parent=35 // loop_header_branch
              %53 = sbr.rel (%p51) target = $region50
            $region47: #{unetwork_forward.13} parent=35 // loop_body
              %v57 = vld [vmem:[%s55] sm:$0xf]
              %58 = vst [vmem:[%s56] sm:$0xf] %v57
              %v59 = vld [vmem:[%s55 + $0x8] sm:$0xf]
              %60 = vst [vmem:[%s56 + $0x4] sm:$0xf] %v59
              %v61 = vld [vmem:[%s55 + $0x10] sm:$0xf]
              %62 = vst [vmem:[%s56 + $0x8] sm:$0xf] %v61
              %v63 = vld [vmem:[%s55 + $0x18] sm:$0xf]
              %64 = vst [vmem:[%s56 + $0xc] sm:$0xf] %v63
            $region48: #{unetwork_forward.13} parent=35 // loop_footer
              %s54 = sadd.s32 1, %s50
            $region49: #{unetwork_forward.13} parent=35 // loop_footer_branch
              %49 = sbr.rel target = $region45
            $region50: #{unetwork_forward.13} parent=35 // loop_exit
              _
          $region36: #{unetwork_forward.13} parent=20 // pred_fallthru
            _
        $region21: #{unetwork_forward.13} parent=16 // pred_fallthru
          _
        // Predicated region
        $region22: #{unetwork_forward.13} parent=16 // pred_check
          _
        $region23: #{unetwork_forward.13} parent=16 // pred_check_branch
          %20 = sbr.rel (0) target = $region25
        $region24: #{unetwork_forward.13} parent=16 // pred_region
          loop: start=0, step=1, limit=1
          $region26: #{unetwork_forward.13} parent=24 // loop_pre_header
            _
          $region27: #{unetwork_forward.13} parent=24 // loop_header
            %s23 = sphi 0, %s27
            %p24 = scmp.ge.s32.totalorder %s23, 1
            %s28 = sphi %s2, %s2
            %s29 = sphi [#allocation2], [#allocation2]
          $region28: #{unetwork_forward.13} parent=24 // loop_header_branch
            %26 = sbr.rel (%p24) target = $region32
          $region29: #{unetwork_forward.13} parent=24 // loop_body
            %v30 = vld [vmem:[%s28] sm:$0xf]
            %31 = vst [vmem:[%s29] sm:$0xf] %v30
            %v32 = vld [vmem:[%s28 + $0x8] sm:$0xf]
            %33 = vst [vmem:[%s29 + $0x4] sm:$0xf] %v32
            %v34 = vld [vmem:[%s28 + $0x10] sm:$0xf]
            %35 = vst [vmem:[%s29 + $0x8] sm:$0xf] %v34
            %v36 = vld [vmem:[%s28 + $0x18] sm:$0xf]
            %37 = vst [vmem:[%s29 + $0xc] sm:$0xf] %v36
          $region30: #{unetwork_forward.13} parent=24 // loop_footer
            %s27 = sadd.s32 1, %s23
          $region31: #{unetwork_forward.13} parent=24 // loop_footer_branch
            %22 = sbr.rel target = $region27
          $region32: #{unetwork_forward.13} parent=24 // loop_exit
            _
        $region25: #{unetwork_forward.13} parent=16 // pred_fallthru
          _
      $region17: #{unetwork_forward.13} parent=12 // pred_fallthru
        _
      %65 = vnop
    $region13: #{unetwork_forward.13} parent=1 // pred_fallthru
      _
    // Predicated region
    $region51: #{unetwork_forward.13} parent=1 // pred_check
      _
    $region52: #{unetwork_forward.13} parent=1 // pred_check_branch
      %67 = sbr.rel (0) target = $region54
    $region53: #{unetwork_forward.13} parent=1 // pred_region
      %s68 = sadd.s32 0, 1
      %s69 = smul.addr %s68, 4
      %s70 = scalar_lea.vmem %s3, %s69
      // Predicated region
      $region55: #{unetwork_forward.13} parent=53 // pred_check
        _
      $region56: #{unetwork_forward.13} parent=53 // pred_check_branch
        %72 = sbr.rel (0) target = $region58
      $region57: #{unetwork_forward.13} parent=53 // pred_region
        // Predicated region
        $region59: #{unetwork_forward.13} parent=57 // pred_check
          _
        $region60: #{unetwork_forward.13} parent=57 // pred_check_branch
          %74 = sbr.rel target = $region62
        $region61: #{unetwork_forward.13} parent=57 // pred_region
          // Predicated region
          $region74: #{unetwork_forward.13} parent=61 // pred_check
            _
          $region75: #{unetwork_forward.13} parent=61 // pred_check_branch
            %95 = sbr.rel (0) target = $region77
          $region76: #{unetwork_forward.13} parent=61 // pred_region
            loop: start=0, step=1, limit=1
            $region78: #{unetwork_forward.13} parent=76 // loop_pre_header
              _
            $region79: #{unetwork_forward.13} parent=76 // loop_header
              %s97 = sphi 0, %s101
              %p98 = scmp.ge.s32.totalorder %s97, 1
              %s102 = sphi %s70, %s70
              %s103 = sphi [#allocation3], [#allocation3]
            $region80: #{unetwork_forward.13} parent=76 // loop_header_branch
              %100 = sbr.rel (%p98) target = $region84
            $region81: #{unetwork_forward.13} parent=76 // loop_body
              _
            $region82: #{unetwork_forward.13} parent=76 // loop_footer
              %s101 = sadd.s32 1, %s97
            $region83: #{unetwork_forward.13} parent=76 // loop_footer_branch
              %96 = sbr.rel target = $region79
            $region84: #{unetwork_forward.13} parent=76 // loop_exit
              _
            loop: start=0, step=1, limit=1
            $region85: #{unetwork_forward.13} parent=76 // loop_pre_header
              _
            $region86: #{unetwork_forward.13} parent=76 // loop_header
              %s106 = sphi 0, %s110
              %p107 = scmp.ge.s32.totalorder %s106, 1
              %s111 = sphi %s70, %s70
              %s112 = sphi [#allocation3], [#allocation3]
            $region87: #{unetwork_forward.13} parent=76 // loop_header_branch
              %109 = sbr.rel (%p107) target = $region91
            $region88: #{unetwork_forward.13} parent=76 // loop_body
              %v113 = vld [vmem:[%s111] sm:$0xf]
              %114 = vst [vmem:[%s112] sm:$0xf] %v113
              %v115 = vld [vmem:[%s111 + $0x8] sm:$0xf]
              %116 = vst [vmem:[%s112 + $0x4] sm:$0xf] %v115
              %v117 = vld [vmem:[%s111 + $0x10] sm:$0xf]
              %118 = vst [vmem:[%s112 + $0x8] sm:$0xf] %v117
              %v119 = vld [vmem:[%s111 + $0x18] sm:$0xf]
              %120 = vst [vmem:[%s112 + $0xc] sm:$0xf] %v119
            $region89: #{unetwork_forward.13} parent=76 // loop_footer
              %s110 = sadd.s32 1, %s106
            $region90: #{unetwork_forward.13} parent=76 // loop_footer_branch
              %105 = sbr.rel target = $region86
            $region91: #{unetwork_forward.13} parent=76 // loop_exit
              _
          $region77: #{unetwork_forward.13} parent=61 // pred_fallthru
            _
        $region62: #{unetwork_forward.13} parent=57 // pred_fallthru
          _
        // Predicated region
        $region63: #{unetwork_forward.13} parent=57 // pred_check
          _
        $region64: #{unetwork_forward.13} parent=57 // pred_check_branch
          %76 = sbr.rel (0) target = $region66
        $region65: #{unetwork_forward.13} parent=57 // pred_region
          loop: start=0, step=1, limit=1
          $region67: #{unetwork_forward.13} parent=65 // loop_pre_header
            _
          $region68: #{unetwork_forward.13} parent=65 // loop_header
            %s79 = sphi 0, %s83
            %p80 = scmp.ge.s32.totalorder %s79, 1
            %s84 = sphi %s70, %s70
            %s85 = sphi [#allocation3], [#allocation3]
          $region69: #{unetwork_forward.13} parent=65 // loop_header_branch
            %82 = sbr.rel (%p80) target = $region73
          $region70: #{unetwork_forward.13} parent=65 // loop_body
            %v86 = vld [vmem:[%s84] sm:$0xf]
            %87 = vst [vmem:[%s85] sm:$0xf] %v86
            %v88 = vld [vmem:[%s84 + $0x8] sm:$0xf]
            %89 = vst [vmem:[%s85 + $0x4] sm:$0xf] %v88
            %v90 = vld [vmem:[%s84 + $0x10] sm:$0xf]
            %91 = vst [vmem:[%s85 + $0x8] sm:$0xf] %v90
            %v92 = vld [vmem:[%s84 + $0x18] sm:$0xf]
            %93 = vst [vmem:[%s85 + $0xc] sm:$0xf] %v92
          $region71: #{unetwork_forward.13} parent=65 // loop_footer
            %s83 = sadd.s32 1, %s79
          $region72: #{unetwork_forward.13} parent=65 // loop_footer_branch
            %78 = sbr.rel target = $region68
          $region73: #{unetwork_forward.13} parent=65 // loop_exit
            _
        $region66: #{unetwork_forward.13} parent=57 // pred_fallthru
          _
      $region58: #{unetwork_forward.13} parent=53 // pred_fallthru
        _
      %121 = vnop
    $region54: #{unetwork_forward.13} parent=1 // pred_fallthru
      _
    // Predicated region
    $region92: #{unetwork_forward.13} parent=1 // pred_check
      _
    $region93: #{unetwork_forward.13} parent=1 // pred_check_branch
      %123 = sbr.rel (0) target = $region95
    $region94: #{unetwork_forward.13} parent=1 // pred_region
      _
    $region95: #{unetwork_forward.13} parent=1 // pred_fallthru
      _
    // Predicated region
    $region96: #{unetwork_forward.13} parent=1 // pred_check
      _
    $region97: #{unetwork_forward.13} parent=1 // pred_check_branch
      %125 = sbr.rel (0) target = $region99
    $region98: #{unetwork_forward.13} parent=1 // pred_region
      _
    $region99: #{unetwork_forward.13} parent=1 // pred_fallthru
      _
    %s126 = sadd.s32 0, 1
    %v128 = vld [vmem:[#allocation2] sm:$0xf]
    %v129 = vld [vmem:[#allocation2 + $0x4] sm:$0xf]
    %v130 = vld [vmem:[#allocation2 + $0x8] sm:$0xf]
    %v131 = vld [vmem:[#allocation2 + $0xc] sm:$0xf]
    %v132 = vld [vmem:[#allocation3] sm:$0xf]
    %v133 = vld [vmem:[#allocation3 + $0x4] sm:$0xf]
    %v134 = vld [vmem:[#allocation3 + $0x8] sm:$0xf]
    %v135 = vld [vmem:[#allocation3 + $0xc] sm:$0xf]
    %v140 = vunpack.c.l.b16 %v128
    %v141 = vunpack.c.l.b16 %v129
    %v142 = vunpack.c.l.b16 %v130
    %v143 = vunpack.c.l.b16 %v131
    %v144 = vpack.c.b16 %v141, %v140
    %v145 = vpack.c.b16 %v143, %v142
    %v152 = vunpack.c.l.b16 %v132
    %v153 = vunpack.c.l.b16 %v133
    %v154 = vunpack.c.l.b16 %v134
    %v155 = vunpack.c.l.b16 %v135
    %v156 = vpack.c.b16 %v153, %v152
    %v157 = vpack.c.b16 %v155, %v154
    %v158 = vld [vmem:[%s0] sm:$0xf]
    %s159 = scalar_lea.vmem %s0, 4
    %v160 = vld [vmem:[%s159] sm:$0xf]
    %161 = vrot.lane.b32.xlu0 %v144, 127
    %v162 = vpop.permute.xlu0 %161
    %163 = vrot.lane.b32.xlu0 %v156, 127
    %v164 = vpop.permute.xlu0 %163
    %165 = vrot.lane.b32.xlu0 %v145, 127
    %v166 = vpop.permute.xlu0 %165
    %167 = vrot.lane.b32.xlu0 %v157, 127
    %v168 = vpop.permute.xlu0 %167
    %vm169 = vcmask 1039360
    %v170 = vsel %vm169, %v162, %v164
    %v171 = vsel %vm169, %v166, %v168
    %vm174 = vcmask 261120
    %v176 = vsel %vm174, %v160, 0
    %178 = vmatprep.subr.bf16.mxu0 0
    %179 = vmatpush1.bf16.msra.mxu0 %v170
    %180 = vmatprep.subr.bf16.mxu0 0
    %181 = vmatpush1.bf16.msra.mxu0 %v171
    %182 = vmatprep.subr.bf16.mxu0 0
    %183 = vmatpush1.bf16.msra.mxu0 0
    %184 = vmatprep.subr.bf16.mxu0 0
    %185 = vmatpush1.bf16.msra.mxu0 0
    %186 = vmatprep.subr.bf16.mxu0 0
    %187 = vmatpush1.bf16.msra.mxu0 0
    %188 = vmatprep.subr.bf16.mxu0 0
    %189 = vmatpush1.bf16.msra.mxu0 0
    %190 = vmatprep.subr.bf16.mxu0 0
    %191 = vmatpush1.bf16.msra.mxu0 0
    %192 = vmatprep.subr.bf16.mxu0 0
    %193 = vmatpush1.bf16.msra.mxu0 0
    %194 = vmatprep.subr.bf16.mxu0 0
    %195 = vmatpush1.bf16.msra.mxu0 0
    %196 = vmatprep.subr.bf16.mxu0 0
    %197 = vmatpush1.bf16.msra.mxu0 0
    %198 = vmatprep.subr.bf16.mxu0 0
    %199 = vmatpush1.bf16.msra.mxu0 0
    %200 = vmatprep.subr.bf16.mxu0 0
    %201 = vmatpush1.bf16.msra.mxu0 0
    %202 = vmatprep.subr.bf16.mxu0 0
    %203 = vmatpush1.bf16.msra.mxu0 0
    %204 = vmatprep.subr.bf16.mxu0 0
    %205 = vmatpush1.bf16.msra.mxu0 0
    %206 = vmatprep.subr.bf16.mxu0 0
    %207 = vmatpush1.bf16.msra.mxu0 0
    %208 = vmatprep.subr.bf16.mxu0 0
    %209 = vmatpush1.bf16.msra.mxu0 0
    %210 = vmatprep.mubr.bf16.mxu0 0
    %211 = vmatmul.mubr.bf16.gmra.mrb[0].mxu0 %v176
    %v212 = vpop.f32.mrb[0].mxu0
    %v213 = vadd.f32 0.0, %v212
    %v214 = vpop.f32.mrb[0].mxu0
    %v215 = vpop.f32.mrb[0].mxu0
    %v216 = vpop.f32.mrb[0].mxu0
    %217 = vdwg.mxu0
    %v219 = vsel %vm174, %v158, 0
    %221 = vmatprep.subr.bf16.mxu0 0
    %222 = vmatpush1.bf16.msra.mxu0 %v144
    %223 = vmatprep.subr.bf16.mxu0 0
    %224 = vmatpush1.bf16.msra.mxu0 %v145
    %225 = vmatprep.subr.bf16.mxu0 0
    %226 = vmatpush1.bf16.msra.mxu0 0
    %227 = vmatprep.subr.bf16.mxu0 0
    %228 = vmatpush1.bf16.msra.mxu0 0
    %229 = vmatprep.subr.bf16.mxu0 0
    %230 = vmatpush1.bf16.msra.mxu0 0
    %231 = vmatprep.subr.bf16.mxu0 0
    %232 = vmatpush1.bf16.msra.mxu0 0
    %233 = vmatprep.subr.bf16.mxu0 0
    %234 = vmatpush1.bf16.msra.mxu0 0
    %235 = vmatprep.subr.bf16.mxu0 0
    %236 = vmatpush1.bf16.msra.mxu0 0
    %237 = vmatprep.subr.bf16.mxu0 0
    %238 = vmatpush1.bf16.msra.mxu0 0
    %239 = vmatprep.subr.bf16.mxu0 0
    %240 = vmatpush1.bf16.msra.mxu0 0
    %241 = vmatprep.subr.bf16.mxu0 0
    %242 = vmatpush1.bf16.msra.mxu0 0
    %243 = vmatprep.subr.bf16.mxu0 0
    %244 = vmatpush1.bf16.msra.mxu0 0
    %245 = vmatprep.subr.bf16.mxu0 0
    %246 = vmatpush1.bf16.msra.mxu0 0
    %247 = vmatprep.subr.bf16.mxu0 0
    %248 = vmatpush1.bf16.msra.mxu0 0
    %249 = vmatprep.subr.bf16.mxu0 0
    %250 = vmatpush1.bf16.msra.mxu0 0
    %251 = vmatprep.subr.bf16.mxu0 0
    %252 = vmatpush1.bf16.msra.mxu0 0
    %253 = vmatprep.mubr.bf16.mxu0 0
    %254 = vmatmul.mubr.bf16.gmra.mrb[0].mxu0 %v219
    %v255 = vpop.f32.mrb[0].mxu0
    %v256 = vadd.f32 %v213, %v255
    %v257 = vpop.f32.mrb[0].mxu0
    %v258 = vpop.f32.mrb[0].mxu0
    %v259 = vpop.f32.mrb[0].mxu0
    %260 = vdwg.mxu0
    %s261 = scalar_lea.vmem %s0, 8
    %v262 = vld [vmem:[%s261] sm:$0xf]
    %263 = vrot.lane.b32.xlu0 %v144, 125
    %v264 = vpop.permute.xlu0 %263
    %265 = vrot.lane.b32.xlu0 %v156, 125
    %v266 = vpop.permute.xlu0 %265
    %267 = vrot.lane.b32.xlu0 %v145, 125
    %v268 = vpop.permute.xlu0 %267
    %269 = vrot.lane.b32.xlu0 %v157, 125
    %v270 = vpop.permute.xlu0 %269
    %vm271 = vcmask 1022976
    %v272 = vsel %vm271, %v264, %v266
    %v273 = vsel %vm271, %v268, %v270
    %v277 = vsel %vm174, %v262, 0
    %279 = vmatprep.subr.bf16.mxu0 0
    %280 = vmatpush1.bf16.msra.mxu0 %v272
    %281 = vmatprep.subr.bf16.mxu0 0
    %282 = vmatpush1.bf16.msra.mxu0 %v273
    %283 = vmatprep.subr.bf16.mxu0 0
    %284 = vmatpush1.bf16.msra.mxu0 0
    %285 = vmatprep.subr.bf16.mxu0 0
    %286 = vmatpush1.bf16.msra.mxu0 0
    %287 = vmatprep.subr.bf16.mxu0 0
    %288 = vmatpush1.bf16.msra.mxu0 0
    %289 = vmatprep.subr.bf16.mxu0 0
    %290 = vmatpush1.bf16.msra.mxu0 0
    %291 = vmatprep.subr.bf16.mxu0 0
    %292 = vmatpush1.bf16.msra.mxu0 0
    %293 = vmatprep.subr.bf16.mxu0 0
    %294 = vmatpush1.bf16.msra.mxu0 0
    %295 = vmatprep.subr.bf16.mxu0 0
    %296 = vmatpush1.bf16.msra.mxu0 0
    %297 = vmatprep.subr.bf16.mxu0 0
    %298 = vmatpush1.bf16.msra.mxu0 0
    %299 = vmatprep.subr.bf16.mxu0 0
    %300 = vmatpush1.bf16.msra.mxu0 0
    %301 = vmatprep.subr.bf16.mxu0 0
    %302 = vmatpush1.bf16.msra.mxu0 0
    %303 = vmatprep.subr.bf16.mxu0 0
    %304 = vmatpush1.bf16.msra.mxu0 0
    %305 = vmatprep.subr.bf16.mxu0 0
    %306 = vmatpush1.bf16.msra.mxu0 0
    %307 = vmatprep.subr.bf16.mxu0 0
    %308 = vmatpush1.bf16.msra.mxu0 0
    %309 = vmatprep.subr.bf16.mxu0 0
    %310 = vmatpush1.bf16.msra.mxu0 0
    %311 = vmatprep.mubr.bf16.mxu0 0
    %312 = vmatmul.mubr.bf16.gmra.mrb[0].mxu0 %v277
    %v313 = vpop.f32.mrb[0].mxu0
    %v314 = vadd.f32 0.0, %v313
    %v315 = vpop.f32.mrb[0].mxu0
    %v316 = vpop.f32.mrb[0].mxu0
    %v317 = vpop.f32.mrb[0].mxu0
    %318 = vdwg.mxu0
    %v319 = vadd.f32 %v256, %v314
    %s320 = scalar_lea.vmem %s0, 12
    %v321 = vld [vmem:[%s320] sm:$0xf]
    %322 = vrot.lane.b32.xlu0 %v144, 124
    %v323 = vpop.permute.xlu0 %322
    %324 = vrot.lane.b32.xlu0 %v156, 124
    %v325 = vpop.permute.xlu0 %324
    %326 = vrot.lane.b32.xlu0 %v145, 124
    %v327 = vpop.permute.xlu0 %326
    %328 = vrot.lane.b32.xlu0 %v157, 124
    %v329 = vpop.permute.xlu0 %328
    %vm330 = vcmask 1014784
    %v331 = vsel %vm330, %v323, %v325
    %v332 = vsel %vm330, %v327, %v329
    %v336 = vsel %vm174, %v321, 0
    %338 = vmatprep.subr.bf16.mxu0 0
    %339 = vmatpush1.bf16.msra.mxu0 %v331
    %340 = vmatprep.subr.bf16.mxu0 0
    %341 = vmatpush1.bf16.msra.mxu0 %v332
    %342 = vmatprep.subr.bf16.mxu0 0
    %343 = vmatpush1.bf16.msra.mxu0 0
    %344 = vmatprep.subr.bf16.mxu0 0
    %345 = vmatpush1.bf16.msra.mxu0 0
    %346 = vmatprep.subr.bf16.mxu0 0
    %347 = vmatpush1.bf16.msra.mxu0 0
    %348 = vmatprep.subr.bf16.mxu0 0
    %349 = vmatpush1.bf16.msra.mxu0 0
    %350 = vmatprep.subr.bf16.mxu0 0
    %351 = vmatpush1.bf16.msra.mxu0 0
    %352 = vmatprep.subr.bf16.mxu0 0
    %353 = vmatpush1.bf16.msra.mxu0 0
    %354 = vmatprep.subr.bf16.mxu0 0
    %355 = vmatpush1.bf16.msra.mxu0 0
    %356 = vmatprep.subr.bf16.mxu0 0
    %357 = vmatpush1.bf16.msra.mxu0 0
    %358 = vmatprep.subr.bf16.mxu0 0
    %359 = vmatpush1.bf16.msra.mxu0 0
    %360 = vmatprep.subr.bf16.mxu0 0
    %361 = vmatpush1.bf16.msra.mxu0 0
    %362 = vmatprep.subr.bf16.mxu0 0
    %363 = vmatpush1.bf16.msra.mxu0 0
    %364 = vmatprep.subr.bf16.mxu0 0
    %365 = vmatpush1.bf16.msra.mxu0 0
    %366 = vmatprep.subr.bf16.mxu0 0
    %367 = vmatpush1.bf16.msra.mxu0 0
    %368 = vmatprep.subr.bf16.mxu0 0
    %369 = vmatpush1.bf16.msra.mxu0 0
    %370 = vmatprep.mubr.bf16.mxu0 0
    %371 = vmatmul.mubr.bf16.gmra.mrb[0].mxu0 %v336
    %v372 = vpop.f32.mrb[0].mxu0
    %v373 = vadd.f32 0.0, %v372
    %v374 = vpop.f32.mrb[0].mxu0
    %v375 = vpop.f32.mrb[0].mxu0
    %v376 = vpop.f32.mrb[0].mxu0
    %377 = vdwg.mxu0
    %v378 = vadd.f32 %v319, %v373
    %v379 = vld [vmem:[%s1] sm:$0xff]
    %381 = vset.pattern.permute.xlu0 0
    %382 = vperm.xlu0 %381, %v379
    %v383 = vpop.permute.xlu0 %382
    %v385 = vadd.f32 %v378, %v383
    %vm386 = vcmp.ge.f32.partialorder %v385, 0.0
    %v387 = vmul.f32 %v385, 0.2
    %v388 = vsel %vm386, %v385, %v387
    %v389 = vpack.c.bf16 %v388, %v388
    %390 = vst [vmem:[%s4] sm:$0xf] %v389
    // Predicated region
    $region100: #{unetwork_forward.13} parent=1 // pred_check
      _
    $region101: #{unetwork_forward.13} parent=1 // pred_check_branch
      %392 = sbr.rel (0) target = $region103
    $region102: #{unetwork_forward.13} parent=1 // pred_region
      _
    $region103: #{unetwork_forward.13} parent=1 // pred_fallthru
      _
    // Predicated region
    $region104: #{unetwork_forward.13} parent=1 // pred_check
      _
    $region105: #{unetwork_forward.13} parent=1 // pred_check_branch
      %394 = sbr.rel (0) target = $region107
    $region106: #{unetwork_forward.13} parent=1 // pred_region
      _
    $region107: #{unetwork_forward.13} parent=1 // pred_fallthru
      _

// kernel: unetwork_forward.14
$region0: #{unetwork_forward.14}
  #allocation0 [shape = 'u32[]', space=smem, size = 0x4, offset = 0x4, fixed_abs, tag = 'smem constant byte address 0x4 - core index']
  #allocation1 [shape = 'u32[144,128]{1,0:T(1,128)}', space=vmem, size = 0x12000, scoped, tag = 'internal scratch']
  %s0 = inlined_call_operand.vmem [shape: bf16[4,8,32], index: 0, kind: input, shape index: {}]
  %s1 = inlined_call_operand.vmem [shape: f32[8,1], index: 1, kind: input, shape index: {}]
  %s2 = inlined_call_operand.vmem [shape: bf16[32,256], index: 2, kind: input, shape index: {}, may-alias: {2,3}]
  %s3 = inlined_call_operand.vmem [shape: bf16[32,256], index: 3, kind: input, shape index: {}, may-alias: {2,3}]
  %s4 = inlined_call_operand.vmem [shape: bf16[8,128], index: 4, kind: output, shape index: {}]
  %s5 = sld [smem:[#allocation0]]
  $region108: #{unetwork_forward.14} parent=0
    _
  %s7 = ssub.s32 1, %s5
  %s8 = scalar_select 0, %s7, %s5
  $region1: #{unetwork_forward.14} parent=0
    #allocation2 [shape = 'u8[8192]{0}', space=vmem, size = 0x2000, scoped, tag = 'input window, operand 2, single buffered']
    #allocation3 [shape = 'u8[8192]{0}', space=vmem, size = 0x2000, scoped, tag = 'input window, operand 3, single buffered']
    // Predicated region
    $region2: #{unetwork_forward.14} parent=1 // pred_check
      _
    $region3: #{unetwork_forward.14} parent=1 // pred_check_branch
      %10 = sbr.rel (0) target = $region5
    $region4: #{unetwork_forward.14} parent=1 // pred_region
      _
    $region5: #{unetwork_forward.14} parent=1 // pred_fallthru
      _
    // Predicated region
    $region6: #{unetwork_forward.14} parent=1 // pred_check
      _
    $region7: #{unetwork_forward.14} parent=1 // pred_check_branch
      %12 = sbr.rel (0) target = $region9
    $region8: #{unetwork_forward.14} parent=1 // pred_region
      _
    $region9: #{unetwork_forward.14} parent=1 // pred_fallthru
      _
    // Predicated region
    $region10: #{unetwork_forward.14} parent=1 // pred_check
      _
    $region11: #{unetwork_forward.14} parent=1 // pred_check_branch
      %14 = sbr.rel (0) target = $region13
    $region12: #{unetwork_forward.14} parent=1 // pred_region
      // Predicated region
      $region14: #{unetwork_forward.14} parent=12 // pred_check
        _
      $region15: #{unetwork_forward.14} parent=12 // pred_check_branch
        %16 = sbr.rel (0) target = $region17
      $region16: #{unetwork_forward.14} parent=12 // pred_region
        // Predicated region
        $region18: #{unetwork_forward.14} parent=16 // pred_check
          _
        $region19: #{unetwork_forward.14} parent=16 // pred_check_branch
          %18 = sbr.rel target = $region21
        $region20: #{unetwork_forward.14} parent=16 // pred_region
          // Predicated region
          $region33: #{unetwork_forward.14} parent=20 // pred_check
            _
          $region34: #{unetwork_forward.14} parent=20 // pred_check_branch
            %39 = sbr.rel (0) target = $region36
          $region35: #{unetwork_forward.14} parent=20 // pred_region
            loop: start=0, step=1, limit=1
            $region37: #{unetwork_forward.14} parent=35 // loop_pre_header
              _
            $region38: #{unetwork_forward.14} parent=35 // loop_header
              %s41 = sphi 0, %s45
              %p42 = scmp.ge.s32.totalorder %s41, 1
              %s46 = sphi %s2, %s2
              %s47 = sphi [#allocation2], [#allocation2]
            $region39: #{unetwork_forward.14} parent=35 // loop_header_branch
              %44 = sbr.rel (%p42) target = $region43
            $region40: #{unetwork_forward.14} parent=35 // loop_body
              _
            $region41: #{unetwork_forward.14} parent=35 // loop_footer
              %s45 = sadd.s32 1, %s41
            $region42: #{unetwork_forward.14} parent=35 // loop_footer_branch
              %40 = sbr.rel target = $region38
            $region43: #{unetwork_forward.14} parent=35 // loop_exit
              _
            loop: start=0, step=1, limit=1
            $region44: #{unetwork_forward.14} parent=35 // loop_pre_header
              _
            $region45: #{unetwork_forward.14} parent=35 // loop_header
              %s50 = sphi 0, %s54
              %p51 = scmp.ge.s32.totalorder %s50, 1
              %s55 = sphi %s2, %s2
              %s56 = sphi [#allocation2], [#allocation2]
            $region46: #{unetwork_forward.14} parent=35 // loop_header_branch
              %53 = sbr.rel (%p51) target = $region50
            $region47: #{unetwork_forward.14} parent=35 // loop_body
              %v57 = vld [vmem:[%s55] sm:$0xf]
              %58 = vst [vmem:[%s56] sm:$0xf] %v57
              %v59 = vld [vmem:[%s55 + $0x8] sm:$0xf]
              %60 = vst [vmem:[%s56 + $0x4] sm:$0xf] %v59
              %v61 = vld [vmem:[%s55 + $0x10] sm:$0xf]
              %62 = vst [vmem:[%s56 + $0x8] sm:$0xf] %v61
              %v63 = vld [vmem:[%s55 + $0x18] sm:$0xf]
              %64 = vst [vmem:[%s56 + $0xc] sm:$0xf] %v63
            $region48: #{unetwork_forward.14} parent=35 // loop_footer
              %s54 = sadd.s32 1, %s50
            $region49: #{unetwork_forward.14} parent=35 // loop_footer_branch
              %49 = sbr.rel target = $region45
            $region50: #{unetwork_forward.14} parent=35 // loop_exit
              _
          $region36: #{unetwork_forward.14} parent=20 // pred_fallthru
            _
        $region21: #{unetwork_forward.14} parent=16 // pred_fallthru
          _
        // Predicated region
        $region22: #{unetwork_forward.14} parent=16 // pred_check
          _
        $region23: #{unetwork_forward.14} parent=16 // pred_check_branch
          %20 = sbr.rel (0) target = $region25
        $region24: #{unetwork_forward.14} parent=16 // pred_region
          loop: start=0, step=1, limit=1
          $region26: #{unetwork_forward.14} parent=24 // loop_pre_header
            _
          $region27: #{unetwork_forward.14} parent=24 // loop_header
            %s23 = sphi 0, %s27
            %p24 = scmp.ge.s32.totalorder %s23, 1
            %s28 = sphi %s2, %s2
            %s29 = sphi [#allocation2], [#allocation2]
          $region28: #{unetwork_forward.14} parent=24 // loop_header_branch
            %26 = sbr.rel (%p24) target = $region32
          $region29: #{unetwork_forward.14} parent=24 // loop_body
            %v30 = vld [vmem:[%s28] sm:$0xf]
            %31 = vst [vmem:[%s29] sm:$0xf] %v30
            %v32 = vld [vmem:[%s28 + $0x8] sm:$0xf]
            %33 = vst [vmem:[%s29 + $0x4] sm:$0xf] %v32
            %v34 = vld [vmem:[%s28 + $0x10] sm:$0xf]
            %35 = vst [vmem:[%s29 + $0x8] sm:$0xf] %v34
            %v36 = vld [vmem:[%s28 + $0x18] sm:$0xf]
            %37 = vst [vmem:[%s29 + $0xc] sm:$0xf] %v36
          $region30: #{unetwork_forward.14} parent=24 // loop_footer
            %s27 = sadd.s32 1, %s23
          $region31: #{unetwork_forward.14} parent=24 // loop_footer_branch
            %22 = sbr.rel target = $region27
          $region32: #{unetwork_forward.14} parent=24 // loop_exit
            _
        $region25: #{unetwork_forward.14} parent=16 // pred_fallthru
          _
      $region17: #{unetwork_forward.14} parent=12 // pred_fallthru
        _
      %65 = vnop
    $region13: #{unetwork_forward.14} parent=1 // pred_fallthru
      _
    // Predicated region
    $region51: #{unetwork_forward.14} parent=1 // pred_check
      _
    $region52: #{unetwork_forward.14} parent=1 // pred_check_branch
      %67 = sbr.rel (0) target = $region54
    $region53: #{unetwork_forward.14} parent=1 // pred_region
      %s68 = sadd.s32 0, 1
      %s69 = smul.addr %s68, 4
      %s70 = scalar_lea.vmem %s3, %s69
      // Predicated region
      $region55: #{unetwork_forward.14} parent=53 // pred_check
        _
      $region56: #{unetwork_forward.14} parent=53 // pred_check_branch
        %72 = sbr.rel (0) target = $region58
      $region57: #{unetwork_forward.14} parent=53 // pred_region
        // Predicated region
        $region59: #{unetwork_forward.14} parent=57 // pred_check
          _
        $region60: #{unetwork_forward.14} parent=57 // pred_check_branch
          %74 = sbr.rel target = $region62
        $region61: #{unetwork_forward.14} parent=57 // pred_region
          // Predicated region
          $region74: #{unetwork_forward.14} parent=61 // pred_check
            _
          $region75: #{unetwork_forward.14} parent=61 // pred_check_branch
            %95 = sbr.rel (0) target = $region77
          $region76: #{unetwork_forward.14} parent=61 // pred_region
            loop: start=0, step=1, limit=1
            $region78: #{unetwork_forward.14} parent=76 // loop_pre_header
              _
            $region79: #{unetwork_forward.14} parent=76 // loop_header
              %s97 = sphi 0, %s101
              %p98 = scmp.ge.s32.totalorder %s97, 1
              %s102 = sphi %s70, %s70
              %s103 = sphi [#allocation3], [#allocation3]
            $region80: #{unetwork_forward.14} parent=76 // loop_header_branch
              %100 = sbr.rel (%p98) target = $region84
            $region81: #{unetwork_forward.14} parent=76 // loop_body
              _
            $region82: #{unetwork_forward.14} parent=76 // loop_footer
              %s101 = sadd.s32 1, %s97
            $region83: #{unetwork_forward.14} parent=76 // loop_footer_branch
              %96 = sbr.rel target = $region79
            $region84: #{unetwork_forward.14} parent=76 // loop_exit
              _
            loop: start=0, step=1, limit=1
            $region85: #{unetwork_forward.14} parent=76 // loop_pre_header
              _
            $region86: #{unetwork_forward.14} parent=76 // loop_header
              %s106 = sphi 0, %s110
              %p107 = scmp.ge.s32.totalorder %s106, 1
              %s111 = sphi %s70, %s70
              %s112 = sphi [#allocation3], [#allocation3]
            $region87: #{unetwork_forward.14} parent=76 // loop_header_branch
              %109 = sbr.rel (%p107) target = $region91
            $region88: #{unetwork_forward.14} parent=76 // loop_body
              %v113 = vld [vmem:[%s111] sm:$0xf]
              %114 = vst [vmem:[%s112] sm:$0xf] %v113
              %v115 = vld [vmem:[%s111 + $0x8] sm:$0xf]
              %116 = vst [vmem:[%s112 + $0x4] sm:$0xf] %v115
              %v117 = vld [vmem:[%s111 + $0x10] sm:$0xf]
              %118 = vst [vmem:[%s112 + $0x8] sm:$0xf] %v117
              %v119 = vld [vmem:[%s111 + $0x18] sm:$0xf]
              %120 = vst [vmem:[%s112 + $0xc] sm:$0xf] %v119
            $region89: #{unetwork_forward.14} parent=76 // loop_footer
              %s110 = sadd.s32 1, %s106
            $region90: #{unetwork_forward.14} parent=76 // loop_footer_branch
              %105 = sbr.rel target = $region86
            $region91: #{unetwork_forward.14} parent=76 // loop_exit
              _
          $region77: #{unetwork_forward.14} parent=61 // pred_fallthru
            _
        $region62: #{unetwork_forward.14} parent=57 // pred_fallthru
          _
        // Predicated region
        $region63: #{unetwork_forward.14} parent=57 // pred_check
          _
        $region64: #{unetwork_forward.14} parent=57 // pred_check_branch
          %76 = sbr.rel (0) target = $region66
        $region65: #{unetwork_forward.14} parent=57 // pred_region
          loop: start=0, step=1, limit=1
          $region67: #{unetwork_forward.14} parent=65 // loop_pre_header
            _
          $region68: #{unetwork_forward.14} parent=65 // loop_header
            %s79 = sphi 0, %s83
            %p80 = scmp.ge.s32.totalorder %s79, 1
            %s84 = sphi %s70, %s70
            %s85 = sphi [#allocation3], [#allocation3]
          $region69: #{unetwork_forward.14} parent=65 // loop_header_branch
            %82 = sbr.rel (%p80) target = $region73
          $region70: #{unetwork_forward.14} parent=65 // loop_body
            %v86 = vld [vmem:[%s84] sm:$0xf]
            %87 = vst [vmem:[%s85] sm:$0xf] %v86
            %v88 = vld [vmem:[%s84 + $0x8] sm:$0xf]
            %89 = vst [vmem:[%s85 + $0x4] sm:$0xf] %v88
            %v90 = vld [vmem:[%s84 + $0x10] sm:$0xf]
            %91 = vst [vmem:[%s85 + $0x8] sm:$0xf] %v90
            %v92 = vld [vmem:[%s84 + $0x18] sm:$0xf]
            %93 = vst [vmem:[%s85 + $0xc] sm:$0xf] %v92
          $region71: #{unetwork_forward.14} parent=65 // loop_footer
            %s83 = sadd.s32 1, %s79
          $region72: #{unetwork_forward.14} parent=65 // loop_footer_branch
            %78 = sbr.rel target = $region68
          $region73: #{unetwork_forward.14} parent=65 // loop_exit
            _
        $region66: #{unetwork_forward.14} parent=57 // pred_fallthru
          _
      $region58: #{unetwork_forward.14} parent=53 // pred_fallthru
        _
      %121 = vnop
    $region54: #{unetwork_forward.14} parent=1 // pred_fallthru
      _
    // Predicated region
    $region92: #{unetwork_forward.14} parent=1 // pred_check
      _
    $region93: #{unetwork_forward.14} parent=1 // pred_check_branch
      %123 = sbr.rel (0) target = $region95
    $region94: #{unetwork_forward.14} parent=1 // pred_region
      _
    $region95: #{unetwork_forward.14} parent=1 // pred_fallthru
      _
    // Predicated region
    $region96: #{unetwork_forward.14} parent=1 // pred_check
      _
    $region97: #{unetwork_forward.14} parent=1 // pred_check_branch
      %125 = sbr.rel (0) target = $region99
    $region98: #{unetwork_forward.14} parent=1 // pred_region
      _
    $region99: #{unetwork_forward.14} parent=1 // pred_fallthru
      _
    %s126 = sadd.s32 0, 1
    %v128 = vld [vmem:[#allocation2] sm:$0xf]
    %v129 = vld [vmem:[#allocation2 + $0x4] sm:$0xf]
    %v130 = vld [vmem:[#allocation2 + $0x8] sm:$0xf]
    %v131 = vld [vmem:[#allocation2 + $0xc] sm:$0xf]
    %v132 = vld [vmem:[#allocation3] sm:$0xf]
    %v133 = vld [vmem:[#allocation3 + $0x4] sm:$0xf]
    %v134 = vld [vmem:[#allocation3 + $0x8] sm:$0xf]
    %v135 = vld [vmem:[#allocation3 + $0xc] sm:$0xf]
    %v140 = vunpack.c.l.b16 %v128
    %v141 = vunpack.c.l.b16 %v129
    %v142 = vunpack.c.l.b16 %v130
    %v143 = vunpack.c.l.b16 %v131
    %v144 = vpack.c.b16 %v141, %v140
    %v145 = vpack.c.b16 %v143, %v142
    %v152 = vunpack.c.l.b16 %v132
    %v153 = vunpack.c.l.b16 %v133
    %v154 = vunpack.c.l.b16 %v134
    %v155 = vunpack.c.l.b16 %v135
    %v156 = vpack.c.b16 %v153, %v152
    %v157 = vpack.c.b16 %v155, %v154
    %v158 = vld [vmem:[%s0] sm:$0xf]
    %s159 = scalar_lea.vmem %s0, 4
    %v160 = vld [vmem:[%s159] sm:$0xf]
    %161 = vrot.lane.b32.xlu0 %v144, 127
    %v162 = vpop.permute.xlu0 %161
    %163 = vrot.lane.b32.xlu0 %v156, 127
    %v164 = vpop.permute.xlu0 %163
    %165 = vrot.lane.b32.xlu0 %v145, 127
    %v166 = vpop.permute.xlu0 %165
    %167 = vrot.lane.b32.xlu0 %v157, 127
    %v168 = vpop.permute.xlu0 %167
    %vm169 = vcmask 1039360
    %v170 = vsel %vm169, %v162, %v164
    %v171 = vsel %vm169, %v166, %v168
    %vm174 = vcmask 261120
    %v176 = vsel %vm174, %v160, 0
    %178 = vmatprep.subr.bf16.mxu0 0
    %179 = vmatpush1.bf16.msra.mxu0 %v170
    %180 = vmatprep.subr.bf16.mxu0 0
    %181 = vmatpush1.bf16.msra.mxu0 %v171
    %182 = vmatprep.subr.bf16.mxu0 0
    %183 = vmatpush1.bf16.msra.mxu0 0
    %184 = vmatprep.subr.bf16.mxu0 0
    %185 = vmatpush1.bf16.msra.mxu0 0
    %186 = vmatprep.subr.bf16.mxu0 0
    %187 = vmatpush1.bf16.msra.mxu0 0
    %188 = vmatprep.subr.bf16.mxu0 0
    %189 = vmatpush1.bf16.msra.mxu0 0
    %190 = vmatprep.subr.bf16.mxu0 0
    %191 = vmatpush1.bf16.msra.mxu0 0
    %192 = vmatprep.subr.bf16.mxu0 0
    %193 = vmatpush1.bf16.msra.mxu0 0
    %194 = vmatprep.subr.bf16.mxu0 0
    %195 = vmatpush1.bf16.msra.mxu0 0
    %196 = vmatprep.subr.bf16.mxu0 0
    %197 = vmatpush1.bf16.msra.mxu0 0
    %198 = vmatprep.subr.bf16.mxu0 0
    %199 = vmatpush1.bf16.msra.mxu0 0
    %200 = vmatprep.subr.bf16.mxu0 0
    %201 = vmatpush1.bf16.msra.mxu0 0
    %202 = vmatprep.subr.bf16.mxu0 0
    %203 = vmatpush1.bf16.msra.mxu0 0
    %204 = vmatprep.subr.bf16.mxu0 0
    %205 = vmatpush1.bf16.msra.mxu0 0
    %206 = vmatprep.subr.bf16.mxu0 0
    %207 = vmatpush1.bf16.msra.mxu0 0
    %208 = vmatprep.subr.bf16.mxu0 0
    %209 = vmatpush1.bf16.msra.mxu0 0
    %210 = vmatprep.mubr.bf16.mxu0 0
    %211 = vmatmul.mubr.bf16.gmra.mrb[0].mxu0 %v176
    %v212 = vpop.f32.mrb[0].mxu0
    %v213 = vadd.f32 0.0, %v212
    %v214 = vpop.f32.mrb[0].mxu0
    %v215 = vpop.f32.mrb[0].mxu0
    %v216 = vpop.f32.mrb[0].mxu0
    %217 = vdwg.mxu0
    %v219 = vsel %vm174, %v158, 0
    %221 = vmatprep.subr.bf16.mxu0 0
    %222 = vmatpush1.bf16.msra.mxu0 %v144
    %223 = vmatprep.subr.bf16.mxu0 0
    %224 = vmatpush1.bf16.msra.mxu0 %v145
    %225 = vmatprep.subr.bf16.mxu0 0
    %226 = vmatpush1.bf16.msra.mxu0 0
    %227 = vmatprep.subr.bf16.mxu0 0
    %228 = vmatpush1.bf16.msra.mxu0 0
    %229 = vmatprep.subr.bf16.mxu0 0
    %230 = vmatpush1.bf16.msra.mxu0 0
    %231 = vmatprep.subr.bf16.mxu0 0
    %232 = vmatpush1.bf16.msra.mxu0 0
    %233 = vmatprep.subr.bf16.mxu0 0
    %234 = vmatpush1.bf16.msra.mxu0 0
    %235 = vmatprep.subr.bf16.mxu0 0
    %236 = vmatpush1.bf16.msra.mxu0 0
    %237 = vmatprep.subr.bf16.mxu0 0
    %238 = vmatpush1.bf16.msra.mxu0 0
    %239 = vmatprep.subr.bf16.mxu0 0
    %240 = vmatpush1.bf16.msra.mxu0 0
    %241 = vmatprep.subr.bf16.mxu0 0
    %242 = vmatpush1.bf16.msra.mxu0 0
    %243 = vmatprep.subr.bf16.mxu0 0
    %244 = vmatpush1.bf16.msra.mxu0 0
    %245 = vmatprep.subr.bf16.mxu0 0
    %246 = vmatpush1.bf16.msra.mxu0 0
    %247 = vmatprep.subr.bf16.mxu0 0
    %248 = vmatpush1.bf16.msra.mxu0 0
    %249 = vmatprep.subr.bf16.mxu0 0
    %250 = vmatpush1.bf16.msra.mxu0 0
    %251 = vmatprep.subr.bf16.mxu0 0
    %252 = vmatpush1.bf16.msra.mxu0 0
    %253 = vmatprep.mubr.bf16.mxu0 0
    %254 = vmatmul.mubr.bf16.gmra.mrb[0].mxu0 %v219
    %v255 = vpop.f32.mrb[0].mxu0
    %v256 = vadd.f32 %v213, %v255
    %v257 = vpop.f32.mrb[0].mxu0
    %v258 = vpop.f32.mrb[0].mxu0
    %v259 = vpop.f32.mrb[0].mxu0
    %260 = vdwg.mxu0
    %s261 = scalar_lea.vmem %s0, 8
    %v262 = vld [vmem:[%s261] sm:$0xf]
    %263 = vrot.lane.b32.xlu0 %v144, 126
    %v264 = vpop.permute.xlu0 %263
    %265 = vrot.lane.b32.xlu0 %v156, 126
    %v266 = vpop.permute.xlu0 %265
    %267 = vrot.lane.b32.xlu0 %v145, 126
    %v268 = vpop.permute.xlu0 %267
    %269 = vrot.lane.b32.xlu0 %v157, 126
    %v270 = vpop.permute.xlu0 %269
    %vm271 = vcmask 1031168
    %v272 = vsel %vm271, %v264, %v266
    %v273 = vsel %vm271, %v268, %v270
    %v277 = vsel %vm174, %v262, 0
    %279 = vmatprep.subr.bf16.mxu0 0
    %280 = vmatpush1.bf16.msra.mxu0 %v272
    %281 = vmatprep.subr.bf16.mxu0 0
    %282 = vmatpush1.bf16.msra.mxu0 %v273
    %283 = vmatprep.subr.bf16.mxu0 0
    %284 = vmatpush1.bf16.msra.mxu0 0
    %285 = vmatprep.subr.bf16.mxu0 0
    %286 = vmatpush1.bf16.msra.mxu0 0
    %287 = vmatprep.subr.bf16.mxu0 0
    %288 = vmatpush1.bf16.msra.mxu0 0
    %289 = vmatprep.subr.bf16.mxu0 0
    %290 = vmatpush1.bf16.msra.mxu0 0
    %291 = vmatprep.subr.bf16.mxu0 0
    %292 = vmatpush1.bf16.msra.mxu0 0
    %293 = vmatprep.subr.bf16.mxu0 0
    %294 = vmatpush1.bf16.msra.mxu0 0
    %295 = vmatprep.subr.bf16.mxu0 0
    %296 = vmatpush1.bf16.msra.mxu0 0
    %297 = vmatprep.subr.bf16.mxu0 0
    %298 = vmatpush1.bf16.msra.mxu0 0
    %299 = vmatprep.subr.bf16.mxu0 0
    %300 = vmatpush1.bf16.msra.mxu0 0
    %301 = vmatprep.subr.bf16.mxu0 0
    %302 = vmatpush1.bf16.msra.mxu0 0
    %303 = vmatprep.subr.bf16.mxu0 0
    %304 = vmatpush1.bf16.msra.mxu0 0
    %305 = vmatprep.subr.bf16.mxu0 0
    %306 = vmatpush1.bf16.msra.mxu0 0
    %307 = vmatprep.subr.bf16.mxu0 0
    %308 = vmatpush1.bf16.msra.mxu0 0
    %309 = vmatprep.subr.bf16.mxu0 0
    %310 = vmatpush1.bf16.msra.mxu0 0
    %311 = vmatprep.mubr.bf16.mxu0 0
    %312 = vmatmul.mubr.bf16.gmra.mrb[0].mxu0 %v277
    %v313 = vpop.f32.mrb[0].mxu0
    %v314 = vadd.f32 0.0, %v313
    %v315 = vpop.f32.mrb[0].mxu0
    %v316 = vpop.f32.mrb[0].mxu0
    %v317 = vpop.f32.mrb[0].mxu0
    %318 = vdwg.mxu0
    %v319 = vadd.f32 %v256, %v314
    %s320 = scalar_lea.vmem %s0, 12
    %v321 = vld [vmem:[%s320] sm:$0xf]
    %322 = vrot.lane.b32.xlu0 %v144, 125
    %v323 = vpop.permute.xlu0 %322
    %324 = vrot.lane.b32.xlu0 %v156, 125
    %v325 = vpop.permute.xlu0 %324
    %326 = vrot.lane.b32.xlu0 %v145, 125
    %v327 = vpop.permute.xlu0 %326
    %328 = vrot.lane.b32.xlu0 %v157, 125
    %v329 = vpop.permute.xlu0 %328
    %vm330 = vcmask 1022976
    %v331 = vsel %vm330, %v323, %v325
    %v332 = vsel %vm330, %v327, %v329
    %v336 = vsel %vm174, %v321, 0
    %338 = vmatprep.subr.bf16.mxu0 0
    %339 = vmatpush1.bf16.msra.mxu0 %v331
    %340 = vmatprep.subr.bf16.mxu0 0
    %341 = vmatpush1.bf16.msra.mxu0 %v332
    %342 = vmatprep.subr.bf16.mxu0 0
    %343 = vmatpush1.bf16.msra.mxu0 0
    %344 = vmatprep.subr.bf16.mxu0 0
    %345 = vmatpush1.bf16.msra.mxu0 0
    %346 = vmatprep.subr.bf16.mxu0 0
    %347 = vmatpush1.bf16.msra.mxu0 0
    %348 = vmatprep.subr.bf16.mxu0 0
    %349 = vmatpush1.bf16.msra.mxu0 0
    %350 = vmatprep.subr.bf16.mxu0 0
    %351 = vmatpush1.bf16.msra.mxu0 0
    %352 = vmatprep.subr.bf16.mxu0 0
    %353 = vmatpush1.bf16.msra.mxu0 0
    %354 = vmatprep.subr.bf16.mxu0 0
    %355 = vmatpush1.bf16.msra.mxu0 0
    %356 = vmatprep.subr.bf16.mxu0 0
    %357 = vmatpush1.bf16.msra.mxu0 0
    %358 = vmatprep.subr.bf16.mxu0 0
    %359 = vmatpush1.bf16.msra.mxu0 0
    %360 = vmatprep.subr.bf16.mxu0 0
    %361 = vmatpush1.bf16.msra.mxu0 0
    %362 = vmatprep.subr.bf16.mxu0 0
    %363 = vmatpush1.bf16.msra.mxu0 0
    %364 = vmatprep.subr.bf16.mxu0 0
    %365 = vmatpush1.bf16.msra.mxu0 0
    %366 = vmatprep.subr.bf16.mxu0 0
    %367 = vmatpush1.bf16.msra.mxu0 0
    %368 = vmatprep.subr.bf16.mxu0 0
    %369 = vmatpush1.bf16.msra.mxu0 0
    %370 = vmatprep.mubr.bf16.mxu0 0
    %371 = vmatmul.mubr.bf16.gmra.mrb[0].mxu0 %v336
    %v372 = vpop.f32.mrb[0].mxu0
    %v373 = vadd.f32 0.0, %v372
    %v374 = vpop.f32.mrb[0].mxu0
    %v375 = vpop.f32.mrb[0].mxu0
    %v376 = vpop.f32.mrb[0].mxu0
    %377 = vdwg.mxu0
    %v378 = vadd.f32 %v319, %v373
    %v379 = vld [vmem:[%s1] sm:$0xff]
    %381 = vset.pattern.permute.xlu0 0
    %382 = vperm.xlu0 %381, %v379
    %v383 = vpop.permute.xlu0 %382
    %v385 = vadd.f32 %v378, %v383
    %vm386 = vcmp.ge.f32.partialorder %v385, 0.0
    %v387 = vmul.f32 %v385, 0.2
    %v388 = vsel %vm386, %v385, %v387
    %v389 = vpack.c.bf16 %v388, %v388
    %390 = vst [vmem:[%s4] sm:$0xf] %v389
    // Predicated region
    $region100: #{unetwork_forward.14} parent=1 // pred_check
      _
    $region101: #{unetwork_forward.14} parent=1 // pred_check_branch
      %392 = sbr.rel (0) target = $region103
    $region102: #{unetwork_forward.14} parent=1 // pred_region
      _
    $region103: #{unetwork_forward.14} parent=1 // pred_fallthru
      _
    // Predicated region
    $region104: #{unetwork_forward.14} parent=1 // pred_check
      _
    $region105: #{unetwork_forward.14} parent=1 // pred_check_branch
      %394 = sbr.rel (0) target = $region107
    $region106: #{unetwork_forward.14} parent=1 // pred_region
      _
    $region107: #{unetwork_forward.14} parent=1 // pred_fallthru
      _

// kernel: unetwork_forward.15
$region0: #{unetwork_forward.15}
  #allocation0 [shape = 'u32[]', space=smem, size = 0x4, offset = 0x4, fixed_abs, tag = 'smem constant byte address 0x4 - core index']
  #allocation1 [shape = 'u32[144,128]{1,0:T(1,128)}', space=vmem, size = 0x12000, scoped, tag = 'internal scratch']
  %s0 = inlined_call_operand.vmem [shape: bf16[9,8,8], index: 0, kind: input, shape index: {}]
  %s1 = inlined_call_operand.vmem [shape: f32[8,1], index: 1, kind: input, shape index: {}]
  %s2 = inlined_call_operand.vmem [shape: bf16[8,256], index: 2, kind: input, shape index: {}, may-alias: {2,3}]
  %s3 = inlined_call_operand.vmem [shape: bf16[8,256], index: 3, kind: input, shape index: {}, may-alias: {2,3}]
  %s4 = inlined_call_operand.vmem [shape: bf16[8,128], index: 4, kind: output, shape index: {}]
  %s5 = sld [smem:[#allocation0]]
  $region26: #{unetwork_forward.15} parent=0
    _
  %s7 = ssub.s32 1, %s5
  %s8 = scalar_select 0, %s7, %s5
  // Predicated region
  $region2: #{unetwork_forward.15} parent=0 // pred_check
    _
  $region3: #{unetwork_forward.15} parent=0 // pred_check_branch
    %10 = sbr.rel (0) target = $region5
  $region4: #{unetwork_forward.15} parent=0 // pred_region
    _
  $region5: #{unetwork_forward.15} parent=0 // pred_fallthru
    _
  // Predicated region
  $region6: #{unetwork_forward.15} parent=0 // pred_check
    _
  $region7: #{unetwork_forward.15} parent=0 // pred_check_branch
    %12 = sbr.rel (0) target = $region9
  $region8: #{unetwork_forward.15} parent=0 // pred_region
    _
  $region9: #{unetwork_forward.15} parent=0 // pred_fallthru
    _
  // Predicated region
  $region10: #{unetwork_forward.15} parent=0 // pred_check
    _
  $region11: #{unetwork_forward.15} parent=0 // pred_check_branch
    %14 = sbr.rel (0) target = $region13
  $region12: #{unetwork_forward.15} parent=0 // pred_region
    _
  $region13: #{unetwork_forward.15} parent=0 // pred_fallthru
    _
  // Predicated region
  $region14: #{unetwork_forward.15} parent=0 // pred_check
    _
  $region15: #{unetwork_forward.15} parent=0 // pred_check_branch
    %16 = sbr.rel (0) target = $region17
  $region16: #{unetwork_forward.15} parent=0 // pred_region
    %s17 = sadd.s32 0, 1
    %p18 = scmp.lt.s32.totalorder %s17, 1
    %s19 = scalar_select %p18, %s17, 1
    %s20 = smul.addr %s19, 4
    %s21 = scalar_lea.vmem %s3, %s20
    %s22 = sadd.s32 0, 1
  $region17: #{unetwork_forward.15} parent=0 // pred_fallthru
    _
  %s23 = sadd.s32 0, 1
  %p24 = scmp.lt.s32.totalorder %s23, 1
  %s25 = scalar_select %p24, %s23, 1
  %s26 = smul.addr %s25, 4
  %s27 = scalar_lea.vmem %s3, %s26
  %s28 = sadd.s32 0, 1
  %p29 = scmp.lt.s32.totalorder %s28, 1
  %s30 = scalar_select %p29, %s28, 1
  %s31 = smul.addr %s30, 4
  %s32 = scalar_lea.vmem %s3, %s31
  %s33 = sadd.s32 0, 1
  %v35 = vld [vmem:[%s2] sm:$0xf]
  %v36 = vld [vmem:[%s32] sm:$0xf]
  %v37 = vld [vmem:[%s0] sm:$0xf]
  %s38 = scalar_lea.vmem %s0, 4
  %v39 = vld [vmem:[%s38] sm:$0xf]
  %42 = vrot.lane.b32.xlu0 %v35, 127
  %v43 = vpop.permute.xlu0 %42
  %44 = vrot.lane.b32.xlu0 %v36, 127
  %v45 = vpop.permute.xlu0 %44
  %vm46 = vcmask 1039360
  %v47 = vsel %vm46, %v43, %v45
  %vm48 = vcmask 64512
  %v50 = vsel %vm48, %v39, 0
  %vm52 = vcmask 1043456
  %v54 = vsel %vm52, %v47, 0
  %56 = vmatprep.subr.bf16.mxu0 0
  %57 = vmatpush1.bf16.msra.mxu0 %v54
  %58 = vmatprep.subr.bf16.mxu0 0
  %59 = vmatpush1.bf16.msra.mxu0 0
  %60 = vmatprep.subr.bf16.mxu0 0
  %61 = vmatpush1.bf16.msra.mxu0 0
  %62 = vmatprep.subr.bf16.mxu0 0
  %63 = vmatpush1.bf16.msra.mxu0 0
  %64 = vmatprep.subr.bf16.mxu0 0
  %65 = vmatpush1.bf16.msra.mxu0 0
  %66 = vmatprep.subr.bf16.mxu0 0
  %67 = vmatpush1.bf16.msra.mxu0 0
  %68 = vmatprep.subr.bf16.mxu0 0
  %69 = vmatpush1.bf16.msra.mxu0 0
  %70 = vmatprep.subr.bf16.mxu0 0
  %71 = vmatpush1.bf16.msra.mxu0 0
  %72 = vmatprep.subr.bf16.mxu0 0
  %73 = vmatpush1.bf16.msra.mxu0 0
  %74 = vmatprep.subr.bf16.mxu0 0
  %75 = vmatpush1.bf16.msra.mxu0 0
  %76 = vmatprep.subr.bf16.mxu0 0
  %77 = vmatpush1.bf16.msra.mxu0 0
  %78 = vmatprep.subr.bf16.mxu0 0
  %79 = vmatpush1.bf16.msra.mxu0 0
  %80 = vmatprep.subr.bf16.mxu0 0
  %81 = vmatpush1.bf16.msra.mxu0 0
  %82 = vmatprep.subr.bf16.mxu0 0
  %83 = vmatpush1.bf16.msra.mxu0 0
  %84 = vmatprep.subr.bf16.mxu0 0
  %85 = vmatpush1.bf16.msra.mxu0 0
  %86 = vmatprep.subr.bf16.mxu0 0
  %87 = vmatpush1.bf16.msra.mxu0 0
  %88 = vmatprep.mubr.bf16.mxu0 0
  %89 = vmatmul.mubr.bf16.gmra.mrb[0].mxu0 %v50
  %v90 = vpop.f32.mrb[0].mxu0
  %v91 = vadd.f32 0.0, %v90
  %v92 = vpop.f32.mrb[0].mxu0
  %v93 = vpop.f32.mrb[0].mxu0
  %v94 = vpop.f32.mrb[0].mxu0
  %95 = vdwg.mxu0
  %v97 = vsel %vm48, %v37, 0
  %v100 = vsel %vm52, %v35, 0
  %102 = vmatprep.subr.bf16.mxu0 0
  %103 = vmatpush1.bf16.msra.mxu0 %v100
  %104 = vmatprep.subr.bf16.mxu0 0
  %105 = vmatpush1.bf16.msra.mxu0 0
  %106 = vmatprep.subr.bf16.mxu0 0
  %107 = vmatpush1.bf16.msra.mxu0 0
  %108 = vmatprep.subr.bf16.mxu0 0
  %109 = vmatpush1.bf16.msra.mxu0 0
  %110 = vmatprep.subr.bf16.mxu0 0
  %111 = vmatpush1.bf16.msra.mxu0 0
  %112 = vmatprep.subr.bf16.mxu0 0
  %113 = vmatpush1.bf16.msra.mxu0 0
  %114 = vmatprep.subr.bf16.mxu0 0
  %115 = vmatpush1.bf16.msra.mxu0 0
  %116 = vmatprep.subr.bf16.mxu0 0
  %117 = vmatpush1.bf16.msra.mxu0 0
  %118 = vmatprep.subr.bf16.mxu0 0
  %119 = vmatpush1.bf16.msra.mxu0 0
  %120 = vmatprep.subr.bf16.mxu0 0
  %121 = vmatpush1.bf16.msra.mxu0 0
  %122 = vmatprep.subr.bf16.mxu0 0
  %123 = vmatpush1.bf16.msra.mxu0 0
  %124 = vmatprep.subr.bf16.mxu0 0
  %125 = vmatpush1.bf16.msra.mxu0 0
  %126 = vmatprep.subr.bf16.mxu0 0
  %127 = vmatpush1.bf16.msra.mxu0 0
  %128 = vmatprep.subr.bf16.mxu0 0
  %129 = vmatpush1.bf16.msra.mxu0 0
  %130 = vmatprep.subr.bf16.mxu0 0
  %131 = vmatpush1.bf16.msra.mxu0 0
  %132 = vmatprep.subr.bf16.mxu0 0
  %133 = vmatpush1.bf16.msra.mxu0 0
  %134 = vmatprep.mubr.bf16.mxu0 0
  %135 = vmatmul.mubr.bf16.gmra.mrb[0].mxu0 %v97
  %v136 = vpop.f32.mrb[0].mxu0
  %v137 = vadd.f32 %v91, %v136
  %v138 = vpop.f32.mrb[0].mxu0
  %v139 = vpop.f32.mrb[0].mxu0
  %v140 = vpop.f32.mrb[0].mxu0
  %141 = vdwg.mxu0
  %s142 = scalar_lea.vmem %s0, 8
  %v143 = vld [vmem:[%s142] sm:$0xf]
  %144 = vrot.lane.b32.xlu0 %v35, 126
  %v145 = vpop.permute.xlu0 %144
  %146 = vrot.lane.b32.xlu0 %v36, 126
  %v147 = vpop.permute.xlu0 %146
  %vm148 = vcmask 1031168
  %v149 = vsel %vm148, %v145, %v147
  %v151 = vsel %vm48, %v143, 0
  %v154 = vsel %vm52, %v149, 0
  %156 = vmatprep.subr.bf16.mxu0 0
  %157 = vmatpush1.bf16.msra.mxu0 %v154
  %158 = vmatprep.subr.bf16.mxu0 0
  %159 = vmatpush1.bf16.msra.mxu0 0
  %160 = vmatprep.subr.bf16.mxu0 0
  %161 = vmatpush1.bf16.msra.mxu0 0
  %162 = vmatprep.subr.bf16.mxu0 0
  %163 = vmatpush1.bf16.msra.mxu0 0
  %164 = vmatprep.subr.bf16.mxu0 0
  %165 = vmatpush1.bf16.msra.mxu0 0
  %166 = vmatprep.subr.bf16.mxu0 0
  %167 = vmatpush1.bf16.msra.mxu0 0
  %168 = vmatprep.subr.bf16.mxu0 0
  %169 = vmatpush1.bf16.msra.mxu0 0
  %170 = vmatprep.subr.bf16.mxu0 0
  %171 = vmatpush1.bf16.msra.mxu0 0
  %172 = vmatprep.subr.bf16.mxu0 0
  %173 = vmatpush1.bf16.msra.mxu0 0
  %174 = vmatprep.subr.bf16.mxu0 0
  %175 = vmatpush1.bf16.msra.mxu0 0
  %176 = vmatprep.subr.bf16.mxu0 0
  %177 = vmatpush1.bf16.msra.mxu0 0
  %178 = vmatprep.subr.bf16.mxu0 0
  %179 = vmatpush1.bf16.msra.mxu0 0
  %180 = vmatprep.subr.bf16.mxu0 0
  %181 = vmatpush1.bf16.msra.mxu0 0
  %182 = vmatprep.subr.bf16.mxu0 0
  %183 = vmatpush1.bf16.msra.mxu0 0
  %184 = vmatprep.subr.bf16.mxu0 0
  %185 = vmatpush1.bf16.msra.mxu0 0
  %186 = vmatprep.subr.bf16.mxu0 0
  %187 = vmatpush1.bf16.msra.mxu0 0
  %188 = vmatprep.mubr.bf16.mxu0 0
  %189 = vmatmul.mubr.bf16.gmra.mrb[0].mxu0 %v151
  %v190 = vpop.f32.mrb[0].mxu0
  %v191 = vadd.f32 0.0, %v190
  %v192 = vpop.f32.mrb[0].mxu0
  %v193 = vpop.f32.mrb[0].mxu0
  %v194 = vpop.f32.mrb[0].mxu0
  %195 = vdwg.mxu0
  %v196 = vadd.f32 %v137, %v191
  %s197 = scalar_lea.vmem %s0, 12
  %v198 = vld [vmem:[%s197] sm:$0xf]
  %199 = vrot.lane.b32.xlu0 %v35, 125
  %v200 = vpop.permute.xlu0 %199
  %201 = vrot.lane.b32.xlu0 %v36, 125
  %v202 = vpop.permute.xlu0 %201
  %vm203 = vcmask 1022976
  %v204 = vsel %vm203, %v200, %v202
  %v206 = vsel %vm48, %v198, 0
  %v209 = vsel %vm52, %v204, 0
  %211 = vmatprep.subr.bf16.mxu0 0
  %212 = vmatpush1.bf16.msra.mxu0 %v209
  %213 = vmatprep.subr.bf16.mxu0 0
  %214 = vmatpush1.bf16.msra.mxu0 0
  %215 = vmatprep.subr.bf16.mxu0 0
  %216 = vmatpush1.bf16.msra.mxu0 0
  %217 = vmatprep.subr.bf16.mxu0 0
  %218 = vmatpush1.bf16.msra.mxu0 0
  %219 = vmatprep.subr.bf16.mxu0 0
  %220 = vmatpush1.bf16.msra.mxu0 0
  %221 = vmatprep.subr.bf16.mxu0 0
  %222 = vmatpush1.bf16.msra.mxu0 0
  %223 = vmatprep.subr.bf16.mxu0 0
  %224 = vmatpush1.bf16.msra.mxu0 0
  %225 = vmatprep.subr.bf16.mxu0 0
  %226 = vmatpush1.bf16.msra.mxu0 0
  %227 = vmatprep.subr.bf16.mxu0 0
  %228 = vmatpush1.bf16.msra.mxu0 0
  %229 = vmatprep.subr.bf16.mxu0 0
  %230 = vmatpush1.bf16.msra.mxu0 0
  %231 = vmatprep.subr.bf16.mxu0 0
  %232 = vmatpush1.bf16.msra.mxu0 0
  %233 = vmatprep.subr.bf16.mxu0 0
  %234 = vmatpush1.bf16.msra.mxu0 0
  %235 = vmatprep.subr.bf16.mxu0 0
  %236 = vmatpush1.bf16.msra.mxu0 0
  %237 = vmatprep.subr.bf16.mxu0 0
  %238 = vmatpush1.bf16.msra.mxu0 0
  %239 = vmatprep.subr.bf16.mxu0 0
  %240 = vmatpush1.bf16.msra.mxu0 0
  %241 = vmatprep.subr.bf16.mxu0 0
  %242 = vmatpush1.bf16.msra.mxu0 0
  %243 = vmatprep.mubr.bf16.mxu0 0
  %244 = vmatmul.mubr.bf16.gmra.mrb[0].mxu0 %v206
  %v245 = vpop.f32.mrb[0].mxu0
  %v246 = vadd.f32 0.0, %v245
  %v247 = vpop.f32.mrb[0].mxu0
  %v248 = vpop.f32.mrb[0].mxu0
  %v249 = vpop.f32.mrb[0].mxu0
  %250 = vdwg.mxu0
  %v251 = vadd.f32 %v196, %v246
  %s252 = scalar_lea.vmem %s0, 16
  %v253 = vld [vmem:[%s252] sm:$0xf]
  %254 = vrot.lane.b32.xlu0 %v35, 124
  %v255 = vpop.permute.xlu0 %254
  %256 = vrot.lane.b32.xlu0 %v36, 124
  %v257 = vpop.permute.xlu0 %256
  %vm258 = vcmask 1014784
  %v259 = vsel %vm258, %v255, %v257
  %v261 = vsel %vm48, %v253, 0
  %v264 = vsel %vm52, %v259, 0
  %266 = vmatprep.subr.bf16.mxu0 0
  %267 = vmatpush1.bf16.msra.mxu0 %v264
  %268 = vmatprep.subr.bf16.mxu0 0
  %269 = vmatpush1.bf16.msra.mxu0 0
  %270 = vmatprep.subr.bf16.mxu0 0
  %271 = vmatpush1.bf16.msra.mxu0 0
  %272 = vmatprep.subr.bf16.mxu0 0
  %273 = vmatpush1.bf16.msra.mxu0 0
  %274 = vmatprep.subr.bf16.mxu0 0
  %275 = vmatpush1.bf16.msra.mxu0 0
  %276 = vmatprep.subr.bf16.mxu0 0
  %277 = vmatpush1.bf16.msra.mxu0 0
  %278 = vmatprep.subr.bf16.mxu0 0
  %279 = vmatpush1.bf16.msra.mxu0 0
  %280 = vmatprep.subr.bf16.mxu0 0
  %281 = vmatpush1.bf16.msra.mxu0 0
  %282 = vmatprep.subr.bf16.mxu0 0
  %283 = vmatpush1.bf16.msra.mxu0 0
  %284 = vmatprep.subr.bf16.mxu0 0
  %285 = vmatpush1.bf16.msra.mxu0 0
  %286 = vmatprep.subr.bf16.mxu0 0
  %287 = vmatpush1.bf16.msra.mxu0 0
  %288 = vmatprep.subr.bf16.mxu0 0
  %289 = vmatpush1.bf16.msra.mxu0 0
  %290 = vmatprep.subr.bf16.mxu0 0
  %291 = vmatpush1.bf16.msra.mxu0 0
  %292 = vmatprep.subr.bf16.mxu0 0
  %293 = vmatpush1.bf16.msra.mxu0 0
  %294 = vmatprep.subr.bf16.mxu0 0
  %295 = vmatpush1.bf16.msra.mxu0 0
  %296 = vmatprep.subr.bf16.mxu0 0
  %297 = vmatpush1.bf16.msra.mxu0 0
  %298 = vmatprep.mubr.bf16.mxu0 0
  %299 = vmatmul.mubr.bf16.gmra.mrb[0].mxu0 %v261
  %v300 = vpop.f32.mrb[0].mxu0
  %v301 = vadd.f32 0.0, %v300
  %v302 = vpop.f32.mrb[0].mxu0
  %v303 = vpop.f32.mrb[0].mxu0
  %v304 = vpop.f32.mrb[0].mxu0
  %305 = vdwg.mxu0
  %v306 = vadd.f32 %v251, %v301
  %s307 = scalar_lea.vmem %s0, 20
  %v308 = vld [vmem:[%s307] sm:$0xf]
  %309 = vrot.lane.b32.xlu0 %v35, 123
  %v310 = vpop.permute.xlu0 %309
  %311 = vrot.lane.b32.xlu0 %v36, 123
  %v312 = vpop.permute.xlu0 %311
  %vm313 = vcmask 1006592
  %v314 = vsel %vm313, %v310, %v312
  %v316 = vsel %vm48, %v308, 0
  %v319 = vsel %vm52, %v314, 0
  %321 = vmatprep.subr.bf16.mxu0 0
  %322 = vmatpush1.bf16.msra.mxu0 %v319
  %323 = vmatprep.subr.bf16.mxu0 0
  %324 = vmatpush1.bf16.msra.mxu0 0
  %325 = vmatprep.subr.bf16.mxu0 0
  %326 = vmatpush1.bf16.msra.mxu0 0
  %327 = vmatprep.subr.bf16.mxu0 0
  %328 = vmatpush1.bf16.msra.mxu0 0
  %329 = vmatprep.subr.bf16.mxu0 0
  %330 = vmatpush1.bf16.msra.mxu0 0
  %331 = vmatprep.subr.bf16.mxu0 0
  %332 = vmatpush1.bf16.msra.mxu0 0
  %333 = vmatprep.subr.bf16.mxu0 0
  %334 = vmatpush1.bf16.msra.mxu0 0
  %335 = vmatprep.subr.bf16.mxu0 0
  %336 = vmatpush1.bf16.msra.mxu0 0
  %337 = vmatprep.subr.bf16.mxu0 0
  %338 = vmatpush1.bf16.msra.mxu0 0
  %339 = vmatprep.subr.bf16.mxu0 0
  %340 = vmatpush1.bf16.msra.mxu0 0
  %341 = vmatprep.subr.bf16.mxu0 0
  %342 = vmatpush1.bf16.msra.mxu0 0
  %343 = vmatprep.subr.bf16.mxu0 0
  %344 = vmatpush1.bf16.msra.mxu0 0
  %345 = vmatprep.subr.bf16.mxu0 0
  %346 = vmatpush1.bf16.msra.mxu0 0
  %347 = vmatprep.subr.bf16.mxu0 0
  %348 = vmatpush1.bf16.msra.mxu0 0
  %349 = vmatprep.subr.bf16.mxu0 0
  %350 = vmatpush1.bf16.msra.mxu0 0
  %351 = vmatprep.subr.bf16.mxu0 0
  %352 = vmatpush1.bf16.msra.mxu0 0
  %353 = vmatprep.mubr.bf16.mxu0 0
  %354 = vmatmul.mubr.bf16.gmra.mrb[0].mxu0 %v316
  %v355 = vpop.f32.mrb[0].mxu0
  %v356 = vadd.f32 0.0, %v355
  %v357 = vpop.f32.mrb[0].mxu0
  %v358 = vpop.f32.mrb[0].mxu0
  %v359 = vpop.f32.mrb[0].mxu0
  %360 = vdwg.mxu0
  %v361 = vadd.f32 %v306, %v356
  %s362 = scalar_lea.vmem %s0, 24
  %v363 = vld [vmem:[%s362] sm:$0xf]
  %364 = vrot.lane.b32.xlu0 %v35, 122
  %v365 = vpop.permute.xlu0 %364
  %366 = vrot.lane.b32.xlu0 %v36, 122
  %v367 = vpop.permute.xlu0 %366
  %vm368 = vcmask 998400
  %v369 = vsel %vm368, %v365, %v367
  %v371 = vsel %vm48, %v363, 0
  %v374 = vsel %vm52, %v369, 0
  %376 = vmatprep.subr.bf16.mxu0 0
  %377 = vmatpush1.bf16.msra.mxu0 %v374
  %378 = vmatprep.subr.bf16.mxu0 0
  %379 = vmatpush1.bf16.msra.mxu0 0
  %380 = vmatprep.subr.bf16.mxu0 0
  %381 = vmatpush1.bf16.msra.mxu0 0
  %382 = vmatprep.subr.bf16.mxu0 0
  %383 = vmatpush1.bf16.msra.mxu0 0
  %384 = vmatprep.subr.bf16.mxu0 0
  %385 = vmatpush1.bf16.msra.mxu0 0
  %386 = vmatprep.subr.bf16.mxu0 0
  %387 = vmatpush1.bf16.msra.mxu0 0
  %388 = vmatprep.subr.bf16.mxu0 0
  %389 = vmatpush1.bf16.msra.mxu0 0
  %390 = vmatprep.subr.bf16.mxu0 0
  %391 = vmatpush1.bf16.msra.mxu0 0
  %392 = vmatprep.subr.bf16.mxu0 0
  %393 = vmatpush1.bf16.msra.mxu0 0
  %394 = vmatprep.subr.bf16.mxu0 0
  %395 = vmatpush1.bf16.msra.mxu0 0
  %396 = vmatprep.subr.bf16.mxu0 0
  %397 = vmatpush1.bf16.msra.mxu0 0
  %398 = vmatprep.subr.bf16.mxu0 0
  %399 = vmatpush1.bf16.msra.mxu0 0
  %400 = vmatprep.subr.bf16.mxu0 0
  %401 = vmatpush1.bf16.msra.mxu0 0
  %402 = vmatprep.subr.bf16.mxu0 0
  %403 = vmatpush1.bf16.msra.mxu0 0
  %404 = vmatprep.subr.bf16.mxu0 0
  %405 = vmatpush1.bf16.msra.mxu0 0
  %406 = vmatprep.subr.bf16.mxu0 0
  %407 = vmatpush1.bf16.msra.mxu0 0
  %408 = vmatprep.mubr.bf16.mxu0 0
  %409 = vmatmul.mubr.bf16.gmra.mrb[0].mxu0 %v371
  %v410 = vpop.f32.mrb[0].mxu0
  %v411 = vadd.f32 0.0, %v410
  %v412 = vpop.f32.mrb[0].mxu0
  %v413 = vpop.f32.mrb[0].mxu0
  %v414 = vpop.f32.mrb[0].mxu0
  %415 = vdwg.mxu0
  %v416 = vadd.f32 %v361, %v411
  %s417 = scalar_lea.vmem %s0, 28
  %v418 = vld [vmem:[%s417] sm:$0xf]
  %419 = vrot.lane.b32.xlu0 %v35, 121
  %v420 = vpop.permute.xlu0 %419
  %421 = vrot.lane.b32.xlu0 %v36, 121
  %v422 = vpop.permute.xlu0 %421
  %vm423 = vcmask 990208
  %v424 = vsel %vm423, %v420, %v422
  %v426 = vsel %vm48, %v418, 0
  %v429 = vsel %vm52, %v424, 0
  %431 = vmatprep.subr.bf16.mxu0 0
  %432 = vmatpush1.bf16.msra.mxu0 %v429
  %433 = vmatprep.subr.bf16.mxu0 0
  %434 = vmatpush1.bf16.msra.mxu0 0
  %435 = vmatprep.subr.bf16.mxu0 0
  %436 = vmatpush1.bf16.msra.mxu0 0
  %437 = vmatprep.subr.bf16.mxu0 0
  %438 = vmatpush1.bf16.msra.mxu0 0
  %439 = vmatprep.subr.bf16.mxu0 0
  %440 = vmatpush1.bf16.msra.mxu0 0
  %441 = vmatprep.subr.bf16.mxu0 0
  %442 = vmatpush1.bf16.msra.mxu0 0
  %443 = vmatprep.subr.bf16.mxu0 0
  %444 = vmatpush1.bf16.msra.mxu0 0
  %445 = vmatprep.subr.bf16.mxu0 0
  %446 = vmatpush1.bf16.msra.mxu0 0
  %447 = vmatprep.subr.bf16.mxu0 0
  %448 = vmatpush1.bf16.msra.mxu0 0
  %449 = vmatprep.subr.bf16.mxu0 0
  %450 = vmatpush1.bf16.msra.mxu0 0
  %451 = vmatprep.subr.bf16.mxu0 0
  %452 = vmatpush1.bf16.msra.mxu0 0
  %453 = vmatprep.subr.bf16.mxu0 0
  %454 = vmatpush1.bf16.msra.mxu0 0
  %455 = vmatprep.subr.bf16.mxu0 0
  %456 = vmatpush1.bf16.msra.mxu0 0
  %457 = vmatprep.subr.bf16.mxu0 0
  %458 = vmatpush1.bf16.msra.mxu0 0
  %459 = vmatprep.subr.bf16.mxu0 0
  %460 = vmatpush1.bf16.msra.mxu0 0
  %461 = vmatprep.subr.bf16.mxu0 0
  %462 = vmatpush1.bf16.msra.mxu0 0
  %463 = vmatprep.mubr.bf16.mxu0 0
  %464 = vmatmul.mubr.bf16.gmra.mrb[0].mxu0 %v426
  %v465 = vpop.f32.mrb[0].mxu0
  %v466 = vadd.f32 0.0, %v465
  %v467 = vpop.f32.mrb[0].mxu0
  %v468 = vpop.f32.mrb[0].mxu0
  %v469 = vpop.f32.mrb[0].mxu0
  %470 = vdwg.mxu0
  %v471 = vadd.f32 %v416, %v466
  %s472 = scalar_lea.vmem %s0, 32
  %v473 = vld [vmem:[%s472] sm:$0xf]
  %474 = vrot.lane.b32.xlu0 %v35, 120
  %v475 = vpop.permute.xlu0 %474
  %476 = vrot.lane.b32.xlu0 %v36, 120
  %v477 = vpop.permute.xlu0 %476
  %vm478 = vcmask 982016
  %v479 = vsel %vm478, %v475, %v477
  %v481 = vsel %vm48, %v473, 0
  %v484 = vsel %vm52, %v479, 0
  %486 = vmatprep.subr.bf16.mxu0 0
  %487 = vmatpush1.bf16.msra.mxu0 %v484
  %488 = vmatprep.subr.bf16.mxu0 0
  %489 = vmatpush1.bf16.msra.mxu0 0
  %490 = vmatprep.subr.bf16.mxu0 0
  %491 = vmatpush1.bf16.msra.mxu0 0
  %492 = vmatprep.subr.bf16.mxu0 0
  %493 = vmatpush1.bf16.msra.mxu0 0
  %494 = vmatprep.subr.bf16.mxu0 0
  %495 = vmatpush1.bf16.msra.mxu0 0
  %496 = vmatprep.subr.bf16.mxu0 0
  %497 = vmatpush1.bf16.msra.mxu0 0
  %498 = vmatprep.subr.bf16.mxu0 0
  %499 = vmatpush1.bf16.msra.mxu0 0
  %500 = vmatprep.subr.bf16.mxu0 0
  %501 = vmatpush1.bf16.msra.mxu0 0
  %502 = vmatprep.subr.bf16.mxu0 0
  %503 = vmatpush1.bf16.msra.mxu0 0
  %504 = vmatprep.subr.bf16.mxu0 0
  %505 = vmatpush1.bf16.msra.mxu0 0
  %506 = vmatprep.subr.bf16.mxu0 0
  %507 = vmatpush1.bf16.msra.mxu0 0
  %508 = vmatprep.subr.bf16.mxu0 0
  %509 = vmatpush1.bf16.msra.mxu0 0
  %510 = vmatprep.subr.bf16.mxu0 0
  %511 = vmatpush1.bf16.msra.mxu0 0
  %512 = vmatprep.subr.bf16.mxu0 0
  %513 = vmatpush1.bf16.msra.mxu0 0
  %514 = vmatprep.subr.bf16.mxu0 0
  %515 = vmatpush1.bf16.msra.mxu0 0
  %516 = vmatprep.subr.bf16.mxu0 0
  %517 = vmatpush1.bf16.msra.mxu0 0
  %518 = vmatprep.mubr.bf16.mxu0 0
  %519 = vmatmul.mubr.bf16.gmra.mrb[0].mxu0 %v481
  %v520 = vpop.f32.mrb[0].mxu0
  %v521 = vadd.f32 0.0, %v520
  %v522 = vpop.f32.mrb[0].mxu0
  %v523 = vpop.f32.mrb[0].mxu0
  %v524 = vpop.f32.mrb[0].mxu0
  %525 = vdwg.mxu0
  %v526 = vadd.f32 %v471, %v521
  %v527 = vld [vmem:[%s1] sm:$0xff]
  %529 = vset.pattern.permute.xlu0 0
  %530 = vperm.xlu0 %529, %v527
  %v531 = vpop.permute.xlu0 %530
  %v533 = vadd.f32 %v526, %v531
  %vm534 = vcmp.ge.f32.partialorder %v533, 0.0
  %v535 = vmul.f32 %v533, 0.2
  %v536 = vsel %vm534, %v533, %v535
  %v537 = vpack.c.bf16 %v536, %v536
  %538 = vst [vmem:[%s4] sm:$0xf] %v537
  // Predicated region
  $region18: #{unetwork_forward.15} parent=0 // pred_check
    _
  $region19: #{unetwork_forward.15} parent=0 // pred_check_branch
    %540 = sbr.rel (0) target = $region21
  $region20: #{unetwork_forward.15} parent=0 // pred_region
    _
  $region21: #{unetwork_forward.15} parent=0 // pred_fallthru
    _
  // Predicated region
  $region22: #{unetwork_forward.15} parent=0 // pred_check
    _
  $region23: #{unetwork_forward.15} parent=0 // pred_check_branch
    %542 = sbr.rel (0) target = $region25
  $region24: #{unetwork_forward.15} parent=0 // pred_region
    _
  $region25: #{unetwork_forward.15} parent=0 // pred_fallthru
    _

// kernel: unetwork_forward.16
$region0: #{unetwork_forward.16}
  #allocation0 [shape = 'u32[]', space=smem, size = 0x4, offset = 0x4, fixed_abs, tag = 'smem constant byte address 0x4 - core index']
  #allocation1 [shape = 'u32[144,128]{1,0:T(1,128)}', space=vmem, size = 0x12000, scoped, tag = 'internal scratch']
  %s0 = inlined_call_operand.vmem [shape: bf16[9,8,16], index: 0, kind: input, shape index: {}]
  %s1 = inlined_call_operand.vmem [shape: f32[8,1], index: 1, kind: input, shape index: {}]
  %s2 = inlined_call_operand.vmem [shape: bf16[16,256], index: 2, kind: input, shape index: {}, may-alias: {2,3}]
  %s3 = inlined_call_operand.vmem [shape: bf16[16,256], index: 3, kind: input, shape index: {}, may-alias: {2,3}]
  %s4 = inlined_call_operand.vmem [shape: bf16[8,128], index: 4, kind: output, shape index: {}]
  %s5 = sld [smem:[#allocation0]]
  $region108: #{unetwork_forward.16} parent=0
    _
  %s7 = ssub.s32 1, %s5
  %s8 = scalar_select 0, %s7, %s5
  $region1: #{unetwork_forward.16} parent=0
    #allocation2 [shape = 'u8[4096]{0}', space=vmem, size = 0x1000, scoped, tag = 'input window, operand 2, single buffered']
    #allocation3 [shape = 'u8[4096]{0}', space=vmem, size = 0x1000, scoped, tag = 'input window, operand 3, single buffered']
    // Predicated region
    $region2: #{unetwork_forward.16} parent=1 // pred_check
      _
    $region3: #{unetwork_forward.16} parent=1 // pred_check_branch
      %10 = sbr.rel (0) target = $region5
    $region4: #{unetwork_forward.16} parent=1 // pred_region
      _
    $region5: #{unetwork_forward.16} parent=1 // pred_fallthru
      _
    // Predicated region
    $region6: #{unetwork_forward.16} parent=1 // pred_check
      _
    $region7: #{unetwork_forward.16} parent=1 // pred_check_branch
      %12 = sbr.rel (0) target = $region9
    $region8: #{unetwork_forward.16} parent=1 // pred_region
      _
    $region9: #{unetwork_forward.16} parent=1 // pred_fallthru
      _
    // Predicated region
    $region10: #{unetwork_forward.16} parent=1 // pred_check
      _
    $region11: #{unetwork_forward.16} parent=1 // pred_check_branch
      %14 = sbr.rel (0) target = $region13
    $region12: #{unetwork_forward.16} parent=1 // pred_region
      // Predicated region
      $region14: #{unetwork_forward.16} parent=12 // pred_check
        _
      $region15: #{unetwork_forward.16} parent=12 // pred_check_branch
        %16 = sbr.rel (0) target = $region17
      $region16: #{unetwork_forward.16} parent=12 // pred_region
        // Predicated region
        $region18: #{unetwork_forward.16} parent=16 // pred_check
          _
        $region19: #{unetwork_forward.16} parent=16 // pred_check_branch
          %18 = sbr.rel target = $region21
        $region20: #{unetwork_forward.16} parent=16 // pred_region
          // Predicated region
          $region33: #{unetwork_forward.16} parent=20 // pred_check
            _
          $region34: #{unetwork_forward.16} parent=20 // pred_check_branch
            %35 = sbr.rel (0) target = $region36
          $region35: #{unetwork_forward.16} parent=20 // pred_region
            loop: start=0, step=1, limit=1
            $region37: #{unetwork_forward.16} parent=35 // loop_pre_header
              _
            $region38: #{unetwork_forward.16} parent=35 // loop_header
              %s37 = sphi 0, %s41
              %p38 = scmp.ge.s32.totalorder %s37, 1
              %s42 = sphi %s2, %s2
              %s43 = sphi [#allocation2], [#allocation2]
            $region39: #{unetwork_forward.16} parent=35 // loop_header_branch
              %40 = sbr.rel (%p38) target = $region43
            $region40: #{unetwork_forward.16} parent=35 // loop_body
              _
            $region41: #{unetwork_forward.16} parent=35 // loop_footer
              %s41 = sadd.s32 1, %s37
            $region42: #{unetwork_forward.16} parent=35 // loop_footer_branch
              %36 = sbr.rel target = $region38
            $region43: #{unetwork_forward.16} parent=35 // loop_exit
              _
            loop: start=0, step=1, limit=1
            $region44: #{unetwork_forward.16} parent=35 // loop_pre_header
              _
            $region45: #{unetwork_forward.16} parent=35 // loop_header
              %s46 = sphi 0, %s50
              %p47 = scmp.ge.s32.totalorder %s46, 1
              %s51 = sphi %s2, %s2
              %s52 = sphi [#allocation2], [#allocation2]
            $region46: #{unetwork_forward.16} parent=35 // loop_header_branch
              %49 = sbr.rel (%p47) target = $region50
            $region47: #{unetwork_forward.16} parent=35 // loop_body
              %v53 = vld [vmem:[%s51] sm:$0xf]
              %54 = vst [vmem:[%s52] sm:$0xf] %v53
              %v55 = vld [vmem:[%s51 + $0x8] sm:$0xf]
              %56 = vst [vmem:[%s52 + $0x4] sm:$0xf] %v55
            $region48: #{unetwork_forward.16} parent=35 // loop_footer
              %s50 = sadd.s32 1, %s46
            $region49: #{unetwork_forward.16} parent=35 // loop_footer_branch
              %45 = sbr.rel target = $region45
            $region50: #{unetwork_forward.16} parent=35 // loop_exit
              _
          $region36: #{unetwork_forward.16} parent=20 // pred_fallthru
            _
        $region21: #{unetwork_forward.16} parent=16 // pred_fallthru
          _
        // Predicated region
        $region22: #{unetwork_forward.16} parent=16 // pred_check
          _
        $region23: #{unetwork_forward.16} parent=16 // pred_check_branch
          %20 = sbr.rel (0) target = $region25
        $region24: #{unetwork_forward.16} parent=16 // pred_region
          loop: start=0, step=1, limit=1
          $region26: #{unetwork_forward.16} parent=24 // loop_pre_header
            _
          $region27: #{unetwork_forward.16} parent=24 // loop_header
            %s23 = sphi 0, %s27
            %p24 = scmp.ge.s32.totalorder %s23, 1
            %s28 = sphi %s2, %s2
            %s29 = sphi [#allocation2], [#allocation2]
          $region28: #{unetwork_forward.16} parent=24 // loop_header_branch
            %26 = sbr.rel (%p24) target = $region32
          $region29: #{unetwork_forward.16} parent=24 // loop_body
            %v30 = vld [vmem:[%s28] sm:$0xf]
            %31 = vst [vmem:[%s29] sm:$0xf] %v30
            %v32 = vld [vmem:[%s28 + $0x8] sm:$0xf]
            %33 = vst [vmem:[%s29 + $0x4] sm:$0xf] %v32
          $region30: #{unetwork_forward.16} parent=24 // loop_footer
            %s27 = sadd.s32 1, %s23
          $region31: #{unetwork_forward.16} parent=24 // loop_footer_branch
            %22 = sbr.rel target = $region27
          $region32: #{unetwork_forward.16} parent=24 // loop_exit
            _
        $region25: #{unetwork_forward.16} parent=16 // pred_fallthru
          _
      $region17: #{unetwork_forward.16} parent=12 // pred_fallthru
        _
      %57 = vnop
    $region13: #{unetwork_forward.16} parent=1 // pred_fallthru
      _
    // Predicated region
    $region51: #{unetwork_forward.16} parent=1 // pred_check
      _
    $region52: #{unetwork_forward.16} parent=1 // pred_check_branch
      %59 = sbr.rel (0) target = $region54
    $region53: #{unetwork_forward.16} parent=1 // pred_region
      %s60 = sadd.s32 0, 1
      %s61 = smul.addr %s60, 4
      %s62 = scalar_lea.vmem %s3, %s61
      // Predicated region
      $region55: #{unetwork_forward.16} parent=53 // pred_check
        _
      $region56: #{unetwork_forward.16} parent=53 // pred_check_branch
        %64 = sbr.rel (0) target = $region58
      $region57: #{unetwork_forward.16} parent=53 // pred_region
        // Predicated region
        $region59: #{unetwork_forward.16} parent=57 // pred_check
          _
        $region60: #{unetwork_forward.16} parent=57 // pred_check_branch
          %66 = sbr.rel target = $region62
        $region61: #{unetwork_forward.16} parent=57 // pred_region
          // Predicated region
          $region74: #{unetwork_forward.16} parent=61 // pred_check
            _
          $region75: #{unetwork_forward.16} parent=61 // pred_check_branch
            %83 = sbr.rel (0) target = $region77
          $region76: #{unetwork_forward.16} parent=61 // pred_region
            loop: start=0, step=1, limit=1
            $region78: #{unetwork_forward.16} parent=76 // loop_pre_header
              _
            $region79: #{unetwork_forward.16} parent=76 // loop_header
              %s85 = sphi 0, %s89
              %p86 = scmp.ge.s32.totalorder %s85, 1
              %s90 = sphi %s62, %s62
              %s91 = sphi [#allocation3], [#allocation3]
            $region80: #{unetwork_forward.16} parent=76 // loop_header_branch
              %88 = sbr.rel (%p86) target = $region84
            $region81: #{unetwork_forward.16} parent=76 // loop_body
              _
            $region82: #{unetwork_forward.16} parent=76 // loop_footer
              %s89 = sadd.s32 1, %s85
            $region83: #{unetwork_forward.16} parent=76 // loop_footer_branch
              %84 = sbr.rel target = $region79
            $region84: #{unetwork_forward.16} parent=76 // loop_exit
              _
            loop: start=0, step=1, limit=1
            $region85: #{unetwork_forward.16} parent=76 // loop_pre_header
              _
            $region86: #{unetwork_forward.16} parent=76 // loop_header
              %s94 = sphi 0, %s98
              %p95 = scmp.ge.s32.totalorder %s94, 1
              %s99 = sphi %s62, %s62
              %s100 = sphi [#allocation3], [#allocation3]
            $region87: #{unetwork_forward.16} parent=76 // loop_header_branch
              %97 = sbr.rel (%p95) target = $region91
            $region88: #{unetwork_forward.16} parent=76 // loop_body
              %v101 = vld [vmem:[%s99] sm:$0xf]
              %102 = vst [vmem:[%s100] sm:$0xf] %v101
              %v103 = vld [vmem:[%s99 + $0x8] sm:$0xf]
              %104 = vst [vmem:[%s100 + $0x4] sm:$0xf] %v103
            $region89: #{unetwork_forward.16} parent=76 // loop_footer
              %s98 = sadd.s32 1, %s94
            $region90: #{unetwork_forward.16} parent=76 // loop_footer_branch
              %93 = sbr.rel target = $region86
            $region91: #{unetwork_forward.16} parent=76 // loop_exit
              _
          $region77: #{unetwork_forward.16} parent=61 // pred_fallthru
            _
        $region62: #{unetwork_forward.16} parent=57 // pred_fallthru
          _
        // Predicated region
        $region63: #{unetwork_forward.16} parent=57 // pred_check
          _
        $region64: #{unetwork_forward.16} parent=57 // pred_check_branch
          %68 = sbr.rel (0) target = $region66
        $region65: #{unetwork_forward.16} parent=57 // pred_region
          loop: start=0, step=1, limit=1
          $region67: #{unetwork_forward.16} parent=65 // loop_pre_header
            _
          $region68: #{unetwork_forward.16} parent=65 // loop_header
            %s71 = sphi 0, %s75
            %p72 = scmp.ge.s32.totalorder %s71, 1
            %s76 = sphi %s62, %s62
            %s77 = sphi [#allocation3], [#allocation3]
          $region69: #{unetwork_forward.16} parent=65 // loop_header_branch
            %74 = sbr.rel (%p72) target = $region73
          $region70: #{unetwork_forward.16} parent=65 // loop_body
            %v78 = vld [vmem:[%s76] sm:$0xf]
            %79 = vst [vmem:[%s77] sm:$0xf] %v78
            %v80 = vld [vmem:[%s76 + $0x8] sm:$0xf]
            %81 = vst [vmem:[%s77 + $0x4] sm:$0xf] %v80
          $region71: #{unetwork_forward.16} parent=65 // loop_footer
            %s75 = sadd.s32 1, %s71
          $region72: #{unetwork_forward.16} parent=65 // loop_footer_branch
            %70 = sbr.rel target = $region68
          $region73: #{unetwork_forward.16} parent=65 // loop_exit
            _
        $region66: #{unetwork_forward.16} parent=57 // pred_fallthru
          _
      $region58: #{unetwork_forward.16} parent=53 // pred_fallthru
        _
      %105 = vnop
    $region54: #{unetwork_forward.16} parent=1 // pred_fallthru
      _
    // Predicated region
    $region92: #{unetwork_forward.16} parent=1 // pred_check
      _
    $region93: #{unetwork_forward.16} parent=1 // pred_check_branch
      %107 = sbr.rel (0) target = $region95
    $region94: #{unetwork_forward.16} parent=1 // pred_region
      _
    $region95: #{unetwork_forward.16} parent=1 // pred_fallthru
      _
    // Predicated region
    $region96: #{unetwork_forward.16} parent=1 // pred_check
      _
    $region97: #{unetwork_forward.16} parent=1 // pred_check_branch
      %109 = sbr.rel (0) target = $region99
    $region98: #{unetwork_forward.16} parent=1 // pred_region
      _
    $region99: #{unetwork_forward.16} parent=1 // pred_fallthru
      _
    %s110 = sadd.s32 0, 1
    %v112 = vld [vmem:[#allocation2] sm:$0xf]
    %v113 = vld [vmem:[#allocation2 + $0x4] sm:$0xf]
    %v114 = vld [vmem:[#allocation3] sm:$0xf]
    %v115 = vld [vmem:[#allocation3 + $0x4] sm:$0xf]
    %v118 = vunpack.c.l.b16 %v112
    %v119 = vunpack.c.l.b16 %v113
    %v120 = vpack.c.b16 %v119, %v118
    %v124 = vunpack.c.l.b16 %v114
    %v125 = vunpack.c.l.b16 %v115
    %v126 = vpack.c.b16 %v125, %v124
    %v127 = vld [vmem:[%s0] sm:$0xf]
    %s128 = scalar_lea.vmem %s0, 4
    %v129 = vld [vmem:[%s128] sm:$0xf]
    %130 = vrot.lane.b32.xlu0 %v120, 127
    %v131 = vpop.permute.xlu0 %130
    %132 = vrot.lane.b32.xlu0 %v126, 127
    %v133 = vpop.permute.xlu0 %132
    %vm134 = vcmask 1039360
    %v135 = vsel %vm134, %v131, %v133
    %vm137 = vcmask 130048
    %v139 = vsel %vm137, %v129, 0
    %141 = vmatprep.subr.bf16.mxu0 0
    %142 = vmatpush1.bf16.msra.mxu0 %v135
    %143 = vmatprep.subr.bf16.mxu0 0
    %144 = vmatpush1.bf16.msra.mxu0 0
    %145 = vmatprep.subr.bf16.mxu0 0
    %146 = vmatpush1.bf16.msra.mxu0 0
    %147 = vmatprep.subr.bf16.mxu0 0
    %148 = vmatpush1.bf16.msra.mxu0 0
    %149 = vmatprep.subr.bf16.mxu0 0
    %150 = vmatpush1.bf16.msra.mxu0 0
    %151 = vmatprep.subr.bf16.mxu0 0
    %152 = vmatpush1.bf16.msra.mxu0 0
    %153 = vmatprep.subr.bf16.mxu0 0
    %154 = vmatpush1.bf16.msra.mxu0 0
    %155 = vmatprep.subr.bf16.mxu0 0
    %156 = vmatpush1.bf16.msra.mxu0 0
    %157 = vmatprep.subr.bf16.mxu0 0
    %158 = vmatpush1.bf16.msra.mxu0 0
    %159 = vmatprep.subr.bf16.mxu0 0
    %160 = vmatpush1.bf16.msra.mxu0 0
    %161 = vmatprep.subr.bf16.mxu0 0
    %162 = vmatpush1.bf16.msra.mxu0 0
    %163 = vmatprep.subr.bf16.mxu0 0
    %164 = vmatpush1.bf16.msra.mxu0 0
    %165 = vmatprep.subr.bf16.mxu0 0
    %166 = vmatpush1.bf16.msra.mxu0 0
    %167 = vmatprep.subr.bf16.mxu0 0
    %168 = vmatpush1.bf16.msra.mxu0 0
    %169 = vmatprep.subr.bf16.mxu0 0
    %170 = vmatpush1.bf16.msra.mxu0 0
    %171 = vmatprep.subr.bf16.mxu0 0
    %172 = vmatpush1.bf16.msra.mxu0 0
    %173 = vmatprep.mubr.bf16.mxu0 0
    %174 = vmatmul.mubr.bf16.gmra.mrb[0].mxu0 %v139
    %v175 = vpop.f32.mrb[0].mxu0
    %v176 = vadd.f32 0.0, %v175
    %v177 = vpop.f32.mrb[0].mxu0
    %v178 = vpop.f32.mrb[0].mxu0
    %v179 = vpop.f32.mrb[0].mxu0
    %180 = vdwg.mxu0
    %v182 = vsel %vm137, %v127, 0
    %184 = vmatprep.subr.bf16.mxu0 0
    %185 = vmatpush1.bf16.msra.mxu0 %v120
    %186 = vmatprep.subr.bf16.mxu0 0
    %187 = vmatpush1.bf16.msra.mxu0 0
    %188 = vmatprep.subr.bf16.mxu0 0
    %189 = vmatpush1.bf16.msra.mxu0 0
    %190 = vmatprep.subr.bf16.mxu0 0
    %191 = vmatpush1.bf16.msra.mxu0 0
    %192 = vmatprep.subr.bf16.mxu0 0
    %193 = vmatpush1.bf16.msra.mxu0 0
    %194 = vmatprep.subr.bf16.mxu0 0
    %195 = vmatpush1.bf16.msra.mxu0 0
    %196 = vmatprep.subr.bf16.mxu0 0
    %197 = vmatpush1.bf16.msra.mxu0 0
    %198 = vmatprep.subr.bf16.mxu0 0
    %199 = vmatpush1.bf16.msra.mxu0 0
    %200 = vmatprep.subr.bf16.mxu0 0
    %201 = vmatpush1.bf16.msra.mxu0 0
    %202 = vmatprep.subr.bf16.mxu0 0
    %203 = vmatpush1.bf16.msra.mxu0 0
    %204 = vmatprep.subr.bf16.mxu0 0
    %205 = vmatpush1.bf16.msra.mxu0 0
    %206 = vmatprep.subr.bf16.mxu0 0
    %207 = vmatpush1.bf16.msra.mxu0 0
    %208 = vmatprep.subr.bf16.mxu0 0
    %209 = vmatpush1.bf16.msra.mxu0 0
    %210 = vmatprep.subr.bf16.mxu0 0
    %211 = vmatpush1.bf16.msra.mxu0 0
    %212 = vmatprep.subr.bf16.mxu0 0
    %213 = vmatpush1.bf16.msra.mxu0 0
    %214 = vmatprep.subr.bf16.mxu0 0
    %215 = vmatpush1.bf16.msra.mxu0 0
    %216 = vmatprep.mubr.bf16.mxu0 0
    %217 = vmatmul.mubr.bf16.gmra.mrb[0].mxu0 %v182
    %v218 = vpop.f32.mrb[0].mxu0
    %v219 = vadd.f32 %v176, %v218
    %v220 = vpop.f32.mrb[0].mxu0
    %v221 = vpop.f32.mrb[0].mxu0
    %v222 = vpop.f32.mrb[0].mxu0
    %223 = vdwg.mxu0
    %s224 = scalar_lea.vmem %s0, 8
    %v225 = vld [vmem:[%s224] sm:$0xf]
    %226 = vrot.lane.b32.xlu0 %v120, 126
    %v227 = vpop.permute.xlu0 %226
    %228 = vrot.lane.b32.xlu0 %v126, 126
    %v229 = vpop.permute.xlu0 %228
    %vm230 = vcmask 1031168
    %v231 = vsel %vm230, %v227, %v229
    %v234 = vsel %vm137, %v225, 0
    %236 = vmatprep.subr.bf16.mxu0 0
    %237 = vmatpush1.bf16.msra.mxu0 %v231
    %238 = vmatprep.subr.bf16.mxu0 0
    %239 = vmatpush1.bf16.msra.mxu0 0
    %240 = vmatprep.subr.bf16.mxu0 0
    %241 = vmatpush1.bf16.msra.mxu0 0
    %242 = vmatprep.subr.bf16.mxu0 0
    %243 = vmatpush1.bf16.msra.mxu0 0
    %244 = vmatprep.subr.bf16.mxu0 0
    %245 = vmatpush1.bf16.msra.mxu0 0
    %246 = vmatprep.subr.bf16.mxu0 0
    %247 = vmatpush1.bf16.msra.mxu0 0
    %248 = vmatprep.subr.bf16.mxu0 0
    %249 = vmatpush1.bf16.msra.mxu0 0
    %250 = vmatprep.subr.bf16.mxu0 0
    %251 = vmatpush1.bf16.msra.mxu0 0
    %252 = vmatprep.subr.bf16.mxu0 0
    %253 = vmatpush1.bf16.msra.mxu0 0
    %254 = vmatprep.subr.bf16.mxu0 0
    %255 = vmatpush1.bf16.msra.mxu0 0
    %256 = vmatprep.subr.bf16.mxu0 0
    %257 = vmatpush1.bf16.msra.mxu0 0
    %258 = vmatprep.subr.bf16.mxu0 0
    %259 = vmatpush1.bf16.msra.mxu0 0
    %260 = vmatprep.subr.bf16.mxu0 0
    %261 = vmatpush1.bf16.msra.mxu0 0
    %262 = vmatprep.subr.bf16.mxu0 0
    %263 = vmatpush1.bf16.msra.mxu0 0
    %264 = vmatprep.subr.bf16.mxu0 0
    %265 = vmatpush1.bf16.msra.mxu0 0
    %266 = vmatprep.subr.bf16.mxu0 0
    %267 = vmatpush1.bf16.msra.mxu0 0
    %268 = vmatprep.mubr.bf16.mxu0 0
    %269 = vmatmul.mubr.bf16.gmra.mrb[0].mxu0 %v234
    %v270 = vpop.f32.mrb[0].mxu0
    %v271 = vadd.f32 0.0, %v270
    %v272 = vpop.f32.mrb[0].mxu0
    %v273 = vpop.f32.mrb[0].mxu0
    %v274 = vpop.f32.mrb[0].mxu0
    %275 = vdwg.mxu0
    %v276 = vadd.f32 %v219, %v271
    %s277 = scalar_lea.vmem %s0, 12
    %v278 = vld [vmem:[%s277] sm:$0xf]
    %279 = vrot.lane.b32.xlu0 %v120, 124
    %v280 = vpop.permute.xlu0 %279
    %281 = vrot.lane.b32.xlu0 %v126, 124
    %v282 = vpop.permute.xlu0 %281
    %vm283 = vcmask 1014784
    %v284 = vsel %vm283, %v280, %v282
    %v287 = vsel %vm137, %v278, 0
    %289 = vmatprep.subr.bf16.mxu0 0
    %290 = vmatpush1.bf16.msra.mxu0 %v284
    %291 = vmatprep.subr.bf16.mxu0 0
    %292 = vmatpush1.bf16.msra.mxu0 0
    %293 = vmatprep.subr.bf16.mxu0 0
    %294 = vmatpush1.bf16.msra.mxu0 0
    %295 = vmatprep.subr.bf16.mxu0 0
    %296 = vmatpush1.bf16.msra.mxu0 0
    %297 = vmatprep.subr.bf16.mxu0 0
    %298 = vmatpush1.bf16.msra.mxu0 0
    %299 = vmatprep.subr.bf16.mxu0 0
    %300 = vmatpush1.bf16.msra.mxu0 0
    %301 = vmatprep.subr.bf16.mxu0 0
    %302 = vmatpush1.bf16.msra.mxu0 0
    %303 = vmatprep.subr.bf16.mxu0 0
    %304 = vmatpush1.bf16.msra.mxu0 0
    %305 = vmatprep.subr.bf16.mxu0 0
    %306 = vmatpush1.bf16.msra.mxu0 0
    %307 = vmatprep.subr.bf16.mxu0 0
    %308 = vmatpush1.bf16.msra.mxu0 0
    %309 = vmatprep.subr.bf16.mxu0 0
    %310 = vmatpush1.bf16.msra.mxu0 0
    %311 = vmatprep.subr.bf16.mxu0 0
    %312 = vmatpush1.bf16.msra.mxu0 0
    %313 = vmatprep.subr.bf16.mxu0 0
    %314 = vmatpush1.bf16.msra.mxu0 0
    %315 = vmatprep.subr.bf16.mxu0 0
    %316 = vmatpush1.bf16.msra.mxu0 0
    %317 = vmatprep.subr.bf16.mxu0 0
    %318 = vmatpush1.bf16.msra.mxu0 0
    %319 = vmatprep.subr.bf16.mxu0 0
    %320 = vmatpush1.bf16.msra.mxu0 0
    %321 = vmatprep.mubr.bf16.mxu0 0
    %322 = vmatmul.mubr.bf16.gmra.mrb[0].mxu0 %v287
    %v323 = vpop.f32.mrb[0].mxu0
    %v324 = vadd.f32 0.0, %v323
    %v325 = vpop.f32.mrb[0].mxu0
    %v326 = vpop.f32.mrb[0].mxu0
    %v327 = vpop.f32.mrb[0].mxu0
    %328 = vdwg.mxu0
    %v329 = vadd.f32 %v276, %v324
    %s330 = scalar_lea.vmem %s0, 16
    %v331 = vld [vmem:[%s330] sm:$0xf]
    %332 = vrot.lane.b32.xlu0 %v120, 123
    %v333 = vpop.permute.xlu0 %332
    %334 = vrot.lane.b32.xlu0 %v126, 123
    %v335 = vpop.permute.xlu0 %334
    %vm336 = vcmask 1006592
    %v337 = vsel %vm336, %v333, %v335
    %v340 = vsel %vm137, %v331, 0
    %342 = vmatprep.subr.bf16.mxu0 0
    %343 = vmatpush1.bf16.msra.mxu0 %v337
    %344 = vmatprep.subr.bf16.mxu0 0
    %345 = vmatpush1.bf16.msra.mxu0 0
    %346 = vmatprep.subr.bf16.mxu0 0
    %347 = vmatpush1.bf16.msra.mxu0 0
    %348 = vmatprep.subr.bf16.mxu0 0
    %349 = vmatpush1.bf16.msra.mxu0 0
    %350 = vmatprep.subr.bf16.mxu0 0
    %351 = vmatpush1.bf16.msra.mxu0 0
    %352 = vmatprep.subr.bf16.mxu0 0
    %353 = vmatpush1.bf16.msra.mxu0 0
    %354 = vmatprep.subr.bf16.mxu0 0
    %355 = vmatpush1.bf16.msra.mxu0 0
    %356 = vmatprep.subr.bf16.mxu0 0
    %357 = vmatpush1.bf16.msra.mxu0 0
    %358 = vmatprep.subr.bf16.mxu0 0
    %359 = vmatpush1.bf16.msra.mxu0 0
    %360 = vmatprep.subr.bf16.mxu0 0
    %361 = vmatpush1.bf16.msra.mxu0 0
    %362 = vmatprep.subr.bf16.mxu0 0
    %363 = vmatpush1.bf16.msra.mxu0 0
    %364 = vmatprep.subr.bf16.mxu0 0
    %365 = vmatpush1.bf16.msra.mxu0 0
    %366 = vmatprep.subr.bf16.mxu0 0
    %367 = vmatpush1.bf16.msra.mxu0 0
    %368 = vmatprep.subr.bf16.mxu0 0
    %369 = vmatpush1.bf16.msra.mxu0 0
    %370 = vmatprep.subr.bf16.mxu0 0
    %371 = vmatpush1.bf16.msra.mxu0 0
    %372 = vmatprep.subr.bf16.mxu0 0
    %373 = vmatpush1.bf16.msra.mxu0 0
    %374 = vmatprep.mubr.bf16.mxu0 0
    %375 = vmatmul.mubr.bf16.gmra.mrb[0].mxu0 %v340
    %v376 = vpop.f32.mrb[0].mxu0
    %v377 = vadd.f32 0.0, %v376
    %v378 = vpop.f32.mrb[0].mxu0
    %v379 = vpop.f32.mrb[0].mxu0
    %v380 = vpop.f32.mrb[0].mxu0
    %381 = vdwg.mxu0
    %v382 = vadd.f32 %v329, %v377
    %s383 = scalar_lea.vmem %s0, 20
    %v384 = vld [vmem:[%s383] sm:$0xf]
    %385 = vrot.lane.b32.xlu0 %v120, 122
    %v386 = vpop.permute.xlu0 %385
    %387 = vrot.lane.b32.xlu0 %v126, 122
    %v388 = vpop.permute.xlu0 %387
    %vm389 = vcmask 998400
    %v390 = vsel %vm389, %v386, %v388
    %v393 = vsel %vm137, %v384, 0
    %395 = vmatprep.subr.bf16.mxu0 0
    %396 = vmatpush1.bf16.msra.mxu0 %v390
    %397 = vmatprep.subr.bf16.mxu0 0
    %398 = vmatpush1.bf16.msra.mxu0 0
    %399 = vmatprep.subr.bf16.mxu0 0
    %400 = vmatpush1.bf16.msra.mxu0 0
    %401 = vmatprep.subr.bf16.mxu0 0
    %402 = vmatpush1.bf16.msra.mxu0 0
    %403 = vmatprep.subr.bf16.mxu0 0
    %404 = vmatpush1.bf16.msra.mxu0 0
    %405 = vmatprep.subr.bf16.mxu0 0
    %406 = vmatpush1.bf16.msra.mxu0 0
    %407 = vmatprep.subr.bf16.mxu0 0
    %408 = vmatpush1.bf16.msra.mxu0 0
    %409 = vmatprep.subr.bf16.mxu0 0
    %410 = vmatpush1.bf16.msra.mxu0 0
    %411 = vmatprep.subr.bf16.mxu0 0
    %412 = vmatpush1.bf16.msra.mxu0 0
    %413 = vmatprep.subr.bf16.mxu0 0
    %414 = vmatpush1.bf16.msra.mxu0 0
    %415 = vmatprep.subr.bf16.mxu0 0
    %416 = vmatpush1.bf16.msra.mxu0 0
    %417 = vmatprep.subr.bf16.mxu0 0
    %418 = vmatpush1.bf16.msra.mxu0 0
    %419 = vmatprep.subr.bf16.mxu0 0
    %420 = vmatpush1.bf16.msra.mxu0 0
    %421 = vmatprep.subr.bf16.mxu0 0
    %422 = vmatpush1.bf16.msra.mxu0 0
    %423 = vmatprep.subr.bf16.mxu0 0
    %424 = vmatpush1.bf16.msra.mxu0 0
    %425 = vmatprep.subr.bf16.mxu0 0
    %426 = vmatpush1.bf16.msra.mxu0 0
    %427 = vmatprep.mubr.bf16.mxu0 0
    %428 = vmatmul.mubr.bf16.gmra.mrb[0].mxu0 %v393
    %v429 = vpop.f32.mrb[0].mxu0
    %v430 = vadd.f32 0.0, %v429
    %v431 = vpop.f32.mrb[0].mxu0
    %v432 = vpop.f32.mrb[0].mxu0
    %v433 = vpop.f32.mrb[0].mxu0
    %434 = vdwg.mxu0
    %v435 = vadd.f32 %v382, %v430
    %s436 = scalar_lea.vmem %s0, 24
    %v437 = vld [vmem:[%s436] sm:$0xf]
    %438 = vrot.lane.b32.xlu0 %v120, 120
    %v439 = vpop.permute.xlu0 %438
    %440 = vrot.lane.b32.xlu0 %v126, 120
    %v441 = vpop.permute.xlu0 %440
    %vm442 = vcmask 982016
    %v443 = vsel %vm442, %v439, %v441
    %v446 = vsel %vm137, %v437, 0
    %448 = vmatprep.subr.bf16.mxu0 0
    %449 = vmatpush1.bf16.msra.mxu0 %v443
    %450 = vmatprep.subr.bf16.mxu0 0
    %451 = vmatpush1.bf16.msra.mxu0 0
    %452 = vmatprep.subr.bf16.mxu0 0
    %453 = vmatpush1.bf16.msra.mxu0 0
    %454 = vmatprep.subr.bf16.mxu0 0
    %455 = vmatpush1.bf16.msra.mxu0 0
    %456 = vmatprep.subr.bf16.mxu0 0
    %457 = vmatpush1.bf16.msra.mxu0 0
    %458 = vmatprep.subr.bf16.mxu0 0
    %459 = vmatpush1.bf16.msra.mxu0 0
    %460 = vmatprep.subr.bf16.mxu0 0
    %461 = vmatpush1.bf16.msra.mxu0 0
    %462 = vmatprep.subr.bf16.mxu0 0
    %463 = vmatpush1.bf16.msra.mxu0 0
    %464 = vmatprep.subr.bf16.mxu0 0
    %465 = vmatpush1.bf16.msra.mxu0 0
    %466 = vmatprep.subr.bf16.mxu0 0
    %467 = vmatpush1.bf16.msra.mxu0 0
    %468 = vmatprep.subr.bf16.mxu0 0
    %469 = vmatpush1.bf16.msra.mxu0 0
    %470 = vmatprep.subr.bf16.mxu0 0
    %471 = vmatpush1.bf16.msra.mxu0 0
    %472 = vmatprep.subr.bf16.mxu0 0
    %473 = vmatpush1.bf16.msra.mxu0 0
    %474 = vmatprep.subr.bf16.mxu0 0
    %475 = vmatpush1.bf16.msra.mxu0 0
    %476 = vmatprep.subr.bf16.mxu0 0
    %477 = vmatpush1.bf16.msra.mxu0 0
    %478 = vmatprep.subr.bf16.mxu0 0
    %479 = vmatpush1.bf16.msra.mxu0 0
    %480 = vmatprep.mubr.bf16.mxu0 0
    %481 = vmatmul.mubr.bf16.gmra.mrb[0].mxu0 %v446
    %v482 = vpop.f32.mrb[0].mxu0
    %v483 = vadd.f32 0.0, %v482
    %v484 = vpop.f32.mrb[0].mxu0
    %v485 = vpop.f32.mrb[0].mxu0
    %v486 = vpop.f32.mrb[0].mxu0
    %487 = vdwg.mxu0
    %v488 = vadd.f32 %v435, %v483
    %s489 = scalar_lea.vmem %s0, 28
    %v490 = vld [vmem:[%s489] sm:$0xf]
    %491 = vrot.lane.b32.xlu0 %v120, 119
    %v492 = vpop.permute.xlu0 %491
    %493 = vrot.lane.b32.xlu0 %v126, 119
    %v494 = vpop.permute.xlu0 %493
    %vm495 = vcmask 973824
    %v496 = vsel %vm495, %v492, %v494
    %v499 = vsel %vm137, %v490, 0
    %501 = vmatprep.subr.bf16.mxu0 0
    %502 = vmatpush1.bf16.msra.mxu0 %v496
    %503 = vmatprep.subr.bf16.mxu0 0
    %504 = vmatpush1.bf16.msra.mxu0 0
    %505 = vmatprep.subr.bf16.mxu0 0
    %506 = vmatpush1.bf16.msra.mxu0 0
    %507 = vmatprep.subr.bf16.mxu0 0
    %508 = vmatpush1.bf16.msra.mxu0 0
    %509 = vmatprep.subr.bf16.mxu0 0
    %510 = vmatpush1.bf16.msra.mxu0 0
    %511 = vmatprep.subr.bf16.mxu0 0
    %512 = vmatpush1.bf16.msra.mxu0 0
    %513 = vmatprep.subr.bf16.mxu0 0
    %514 = vmatpush1.bf16.msra.mxu0 0
    %515 = vmatprep.subr.bf16.mxu0 0
    %516 = vmatpush1.bf16.msra.mxu0 0
    %517 = vmatprep.subr.bf16.mxu0 0
    %518 = vmatpush1.bf16.msra.mxu0 0
    %519 = vmatprep.subr.bf16.mxu0 0
    %520 = vmatpush1.bf16.msra.mxu0 0
    %521 = vmatprep.subr.bf16.mxu0 0
    %522 = vmatpush1.bf16.msra.mxu0 0
    %523 = vmatprep.subr.bf16.mxu0 0
    %524 = vmatpush1.bf16.msra.mxu0 0
    %525 = vmatprep.subr.bf16.mxu0 0
    %526 = vmatpush1.bf16.msra.mxu0 0
    %527 = vmatprep.subr.bf16.mxu0 0
    %528 = vmatpush1.bf16.msra.mxu0 0
    %529 = vmatprep.subr.bf16.mxu0 0
    %530 = vmatpush1.bf16.msra.mxu0 0
    %531 = vmatprep.subr.bf16.mxu0 0
    %532 = vmatpush1.bf16.msra.mxu0 0
    %533 = vmatprep.mubr.bf16.mxu0 0
    %534 = vmatmul.mubr.bf16.gmra.mrb[0].mxu0 %v499
    %v535 = vpop.f32.mrb[0].mxu0
    %v536 = vadd.f32 0.0, %v535
    %v537 = vpop.f32.mrb[0].mxu0
    %v538 = vpop.f32.mrb[0].mxu0
    %v539 = vpop.f32.mrb[0].mxu0
    %540 = vdwg.mxu0
    %v541 = vadd.f32 %v488, %v536
    %s542 = scalar_lea.vmem %s0, 32
    %v543 = vld [vmem:[%s542] sm:$0xf]
    %544 = vrot.lane.b32.xlu0 %v120, 118
    %v545 = vpop.permute.xlu0 %544
    %546 = vrot.lane.b32.xlu0 %v126, 118
    %v547 = vpop.permute.xlu0 %546
    %vm548 = vcmask 965632
    %v549 = vsel %vm548, %v545, %v547
    %v552 = vsel %vm137, %v543, 0
    %554 = vmatprep.subr.bf16.mxu0 0
    %555 = vmatpush1.bf16.msra.mxu0 %v549
    %556 = vmatprep.subr.bf16.mxu0 0
    %557 = vmatpush1.bf16.msra.mxu0 0
    %558 = vmatprep.subr.bf16.mxu0 0
    %559 = vmatpush1.bf16.msra.mxu0 0
    %560 = vmatprep.subr.bf16.mxu0 0
    %561 = vmatpush1.bf16.msra.mxu0 0
    %562 = vmatprep.subr.bf16.mxu0 0
    %563 = vmatpush1.bf16.msra.mxu0 0
    %564 = vmatprep.subr.bf16.mxu0 0
    %565 = vmatpush1.bf16.msra.mxu0 0
    %566 = vmatprep.subr.bf16.mxu0 0
    %567 = vmatpush1.bf16.msra.mxu0 0
    %568 = vmatprep.subr.bf16.mxu0 0
    %569 = vmatpush1.bf16.msra.mxu0 0
    %570 = vmatprep.subr.bf16.mxu0 0
    %571 = vmatpush1.bf16.msra.mxu0 0
    %572 = vmatprep.subr.bf16.mxu0 0
    %573 = vmatpush1.bf16.msra.mxu0 0
    %574 = vmatprep.subr.bf16.mxu0 0
    %575 = vmatpush1.bf16.msra.mxu0 0
    %576 = vmatprep.subr.bf16.mxu0 0
    %577 = vmatpush1.bf16.msra.mxu0 0
    %578 = vmatprep.subr.bf16.mxu0 0
    %579 = vmatpush1.bf16.msra.mxu0 0
    %580 = vmatprep.subr.bf16.mxu0 0
    %581 = vmatpush1.bf16.msra.mxu0 0
    %582 = vmatprep.subr.bf16.mxu0 0
    %583 = vmatpush1.bf16.msra.mxu0 0
    %584 = vmatprep.subr.bf16.mxu0 0
    %585 = vmatpush1.bf16.msra.mxu0 0
    %586 = vmatprep.mubr.bf16.mxu0 0
    %587 = vmatmul.mubr.bf16.gmra.mrb[0].mxu0 %v552
    %v588 = vpop.f32.mrb[0].mxu0
    %v589 = vadd.f32 0.0, %v588
    %v590 = vpop.f32.mrb[0].mxu0
    %v591 = vpop.f32.mrb[0].mxu0
    %v592 = vpop.f32.mrb[0].mxu0
    %593 = vdwg.mxu0
    %v594 = vadd.f32 %v541, %v589
    %v595 = vld [vmem:[%s1] sm:$0xff]
    %597 = vset.pattern.permute.xlu0 0
    %598 = vperm.xlu0 %597, %v595
    %v599 = vpop.permute.xlu0 %598
    %v601 = vadd.f32 %v594, %v599
    %vm602 = vcmp.ge.f32.partialorder %v601, 0.0
    %v603 = vmul.f32 %v601, 0.2
    %v604 = vsel %vm602, %v601, %v603
    %v605 = vpack.c.bf16 %v604, %v604
    %606 = vst [vmem:[%s4] sm:$0xf] %v605
    // Predicated region
    $region100: #{unetwork_forward.16} parent=1 // pred_check
      _
    $region101: #{unetwork_forward.16} parent=1 // pred_check_branch
      %608 = sbr.rel (0) target = $region103
    $region102: #{unetwork_forward.16} parent=1 // pred_region
      _
    $region103: #{unetwork_forward.16} parent=1 // pred_fallthru
      _
    // Predicated region
    $region104: #{unetwork_forward.16} parent=1 // pred_check
      _
    $region105: #{unetwork_forward.16} parent=1 // pred_check_branch
      %610 = sbr.rel (0) target = $region107
    $region106: #{unetwork_forward.16} parent=1 // pred_region
      _
    $region107: #{unetwork_forward.16} parent=1 // pred_fallthru
      _

// kernel: unetwork_forward.17
$region0: #{unetwork_forward.17}
  #allocation0 [shape = 'u32[]', space=smem, size = 0x4, offset = 0x4, fixed_abs, tag = 'smem constant byte address 0x4 - core index']
  #allocation1 [shape = 'u32[144,128]{1,0:T(1,128)}', space=vmem, size = 0x12000, scoped, tag = 'internal scratch']
  %s0 = inlined_call_operand.vmem [shape: bf16[9,8,16], index: 0, kind: input, shape index: {}]
  %s1 = inlined_call_operand.vmem [shape: f32[8,1], index: 1, kind: input, shape index: {}]
  %s2 = inlined_call_operand.vmem [shape: bf16[16,256], index: 2, kind: input, shape index: {}, may-alias: {2,3}]
  %s3 = inlined_call_operand.vmem [shape: bf16[16,256], index: 3, kind: input, shape index: {}, may-alias: {2,3}]
  %s4 = inlined_call_operand.vmem [shape: bf16[8,128], index: 4, kind: output, shape index: {}]
  %s5 = sld [smem:[#allocation0]]
  $region108: #{unetwork_forward.17} parent=0
    _
  %s7 = ssub.s32 1, %s5
  %s8 = scalar_select 0, %s7, %s5
  $region1: #{unetwork_forward.17} parent=0
    #allocation2 [shape = 'u8[4096]{0}', space=vmem, size = 0x1000, scoped, tag = 'input window, operand 2, single buffered']
    #allocation3 [shape = 'u8[4096]{0}', space=vmem, size = 0x1000, scoped, tag = 'input window, operand 3, single buffered']
    // Predicated region
    $region2: #{unetwork_forward.17} parent=1 // pred_check
      _
    $region3: #{unetwork_forward.17} parent=1 // pred_check_branch
      %10 = sbr.rel (0) target = $region5
    $region4: #{unetwork_forward.17} parent=1 // pred_region
      _
    $region5: #{unetwork_forward.17} parent=1 // pred_fallthru
      _
    // Predicated region
    $region6: #{unetwork_forward.17} parent=1 // pred_check
      _
    $region7: #{unetwork_forward.17} parent=1 // pred_check_branch
      %12 = sbr.rel (0) target = $region9
    $region8: #{unetwork_forward.17} parent=1 // pred_region
      _
    $region9: #{unetwork_forward.17} parent=1 // pred_fallthru
      _
    // Predicated region
    $region10: #{unetwork_forward.17} parent=1 // pred_check
      _
    $region11: #{unetwork_forward.17} parent=1 // pred_check_branch
      %14 = sbr.rel (0) target = $region13
    $region12: #{unetwork_forward.17} parent=1 // pred_region
      // Predicated region
      $region14: #{unetwork_forward.17} parent=12 // pred_check
        _
      $region15: #{unetwork_forward.17} parent=12 // pred_check_branch
        %16 = sbr.rel (0) target = $region17
      $region16: #{unetwork_forward.17} parent=12 // pred_region
        // Predicated region
        $region18: #{unetwork_forward.17} parent=16 // pred_check
          _
        $region19: #{unetwork_forward.17} parent=16 // pred_check_branch
          %18 = sbr.rel target = $region21
        $region20: #{unetwork_forward.17} parent=16 // pred_region
          // Predicated region
          $region33: #{unetwork_forward.17} parent=20 // pred_check
            _
          $region34: #{unetwork_forward.17} parent=20 // pred_check_branch
            %35 = sbr.rel (0) target = $region36
          $region35: #{unetwork_forward.17} parent=20 // pred_region
            loop: start=0, step=1, limit=1
            $region37: #{unetwork_forward.17} parent=35 // loop_pre_header
              _
            $region38: #{unetwork_forward.17} parent=35 // loop_header
              %s37 = sphi 0, %s41
              %p38 = scmp.ge.s32.totalorder %s37, 1
              %s42 = sphi %s2, %s2
              %s43 = sphi [#allocation2], [#allocation2]
            $region39: #{unetwork_forward.17} parent=35 // loop_header_branch
              %40 = sbr.rel (%p38) target = $region43
            $region40: #{unetwork_forward.17} parent=35 // loop_body
              _
            $region41: #{unetwork_forward.17} parent=35 // loop_footer
              %s41 = sadd.s32 1, %s37
            $region42: #{unetwork_forward.17} parent=35 // loop_footer_branch
              %36 = sbr.rel target = $region38
            $region43: #{unetwork_forward.17} parent=35 // loop_exit
              _
            loop: start=0, step=1, limit=1
            $region44: #{unetwork_forward.17} parent=35 // loop_pre_header
              _
            $region45: #{unetwork_forward.17} parent=35 // loop_header
              %s46 = sphi 0, %s50
              %p47 = scmp.ge.s32.totalorder %s46, 1
              %s51 = sphi %s2, %s2
              %s52 = sphi [#allocation2], [#allocation2]
            $region46: #{unetwork_forward.17} parent=35 // loop_header_branch
              %49 = sbr.rel (%p47) target = $region50
            $region47: #{unetwork_forward.17} parent=35 // loop_body
              %v53 = vld [vmem:[%s51] sm:$0xf]
              %54 = vst [vmem:[%s52] sm:$0xf] %v53
              %v55 = vld [vmem:[%s51 + $0x8] sm:$0xf]
              %56 = vst [vmem:[%s52 + $0x4] sm:$0xf] %v55
            $region48: #{unetwork_forward.17} parent=35 // loop_footer
              %s50 = sadd.s32 1, %s46
            $region49: #{unetwork_forward.17} parent=35 // loop_footer_branch
              %45 = sbr.rel target = $region45
            $region50: #{unetwork_forward.17} parent=35 // loop_exit
              _
          $region36: #{unetwork_forward.17} parent=20 // pred_fallthru
            _
        $region21: #{unetwork_forward.17} parent=16 // pred_fallthru
          _
        // Predicated region
        $region22: #{unetwork_forward.17} parent=16 // pred_check
          _
        $region23: #{unetwork_forward.17} parent=16 // pred_check_branch
          %20 = sbr.rel (0) target = $region25
        $region24: #{unetwork_forward.17} parent=16 // pred_region
          loop: start=0, step=1, limit=1
          $region26: #{unetwork_forward.17} parent=24 // loop_pre_header
            _
          $region27: #{unetwork_forward.17} parent=24 // loop_header
            %s23 = sphi 0, %s27
            %p24 = scmp.ge.s32.totalorder %s23, 1
            %s28 = sphi %s2, %s2
            %s29 = sphi [#allocation2], [#allocation2]
          $region28: #{unetwork_forward.17} parent=24 // loop_header_branch
            %26 = sbr.rel (%p24) target = $region32
          $region29: #{unetwork_forward.17} parent=24 // loop_body
            %v30 = vld [vmem:[%s28] sm:$0xf]
            %31 = vst [vmem:[%s29] sm:$0xf] %v30
            %v32 = vld [vmem:[%s28 + $0x8] sm:$0xf]
            %33 = vst [vmem:[%s29 + $0x4] sm:$0xf] %v32
          $region30: #{unetwork_forward.17} parent=24 // loop_footer
            %s27 = sadd.s32 1, %s23
          $region31: #{unetwork_forward.17} parent=24 // loop_footer_branch
            %22 = sbr.rel target = $region27
          $region32: #{unetwork_forward.17} parent=24 // loop_exit
            _
        $region25: #{unetwork_forward.17} parent=16 // pred_fallthru
          _
      $region17: #{unetwork_forward.17} parent=12 // pred_fallthru
        _
      %57 = vnop
    $region13: #{unetwork_forward.17} parent=1 // pred_fallthru
      _
    // Predicated region
    $region51: #{unetwork_forward.17} parent=1 // pred_check
      _
    $region52: #{unetwork_forward.17} parent=1 // pred_check_branch
      %59 = sbr.rel (0) target = $region54
    $region53: #{unetwork_forward.17} parent=1 // pred_region
      %s60 = sadd.s32 0, 1
      %s61 = smul.addr %s60, 4
      %s62 = scalar_lea.vmem %s3, %s61
      // Predicated region
      $region55: #{unetwork_forward.17} parent=53 // pred_check
        _
      $region56: #{unetwork_forward.17} parent=53 // pred_check_branch
        %64 = sbr.rel (0) target = $region58
      $region57: #{unetwork_forward.17} parent=53 // pred_region
        // Predicated region
        $region59: #{unetwork_forward.17} parent=57 // pred_check
          _
        $region60: #{unetwork_forward.17} parent=57 // pred_check_branch
          %66 = sbr.rel target = $region62
        $region61: #{unetwork_forward.17} parent=57 // pred_region
          // Predicated region
          $region74: #{unetwork_forward.17} parent=61 // pred_check
            _
          $region75: #{unetwork_forward.17} parent=61 // pred_check_branch
            %83 = sbr.rel (0) target = $region77
          $region76: #{unetwork_forward.17} parent=61 // pred_region
            loop: start=0, step=1, limit=1
            $region78: #{unetwork_forward.17} parent=76 // loop_pre_header
              _
            $region79: #{unetwork_forward.17} parent=76 // loop_header
              %s85 = sphi 0, %s89
              %p86 = scmp.ge.s32.totalorder %s85, 1
              %s90 = sphi %s62, %s62
              %s91 = sphi [#allocation3], [#allocation3]
            $region80: #{unetwork_forward.17} parent=76 // loop_header_branch
              %88 = sbr.rel (%p86) target = $region84
            $region81: #{unetwork_forward.17} parent=76 // loop_body
              _
            $region82: #{unetwork_forward.17} parent=76 // loop_footer
              %s89 = sadd.s32 1, %s85
            $region83: #{unetwork_forward.17} parent=76 // loop_footer_branch
              %84 = sbr.rel target = $region79
            $region84: #{unetwork_forward.17} parent=76 // loop_exit
              _
            loop: start=0, step=1, limit=1
            $region85: #{unetwork_forward.17} parent=76 // loop_pre_header
              _
            $region86: #{unetwork_forward.17} parent=76 // loop_header
              %s94 = sphi 0, %s98
              %p95 = scmp.ge.s32.totalorder %s94, 1
              %s99 = sphi %s62, %s62
              %s100 = sphi [#allocation3], [#allocation3]
            $region87: #{unetwork_forward.17} parent=76 // loop_header_branch
              %97 = sbr.rel (%p95) target = $region91
            $region88: #{unetwork_forward.17} parent=76 // loop_body
              %v101 = vld [vmem:[%s99] sm:$0xf]
              %102 = vst [vmem:[%s100] sm:$0xf] %v101
              %v103 = vld [vmem:[%s99 + $0x8] sm:$0xf]
              %104 = vst [vmem:[%s100 + $0x4] sm:$0xf] %v103
            $region89: #{unetwork_forward.17} parent=76 // loop_footer
              %s98 = sadd.s32 1, %s94
            $region90: #{unetwork_forward.17} parent=76 // loop_footer_branch
              %93 = sbr.rel target = $region86
            $region91: #{unetwork_forward.17} parent=76 // loop_exit
              _
          $region77: #{unetwork_forward.17} parent=61 // pred_fallthru
            _
        $region62: #{unetwork_forward.17} parent=57 // pred_fallthru
          _
        // Predicated region
        $region63: #{unetwork_forward.17} parent=57 // pred_check
          _
        $region64: #{unetwork_forward.17} parent=57 // pred_check_branch
          %68 = sbr.rel (0) target = $region66
        $region65: #{unetwork_forward.17} parent=57 // pred_region
          loop: start=0, step=1, limit=1
          $region67: #{unetwork_forward.17} parent=65 // loop_pre_header
            _
          $region68: #{unetwork_forward.17} parent=65 // loop_header
            %s71 = sphi 0, %s75
            %p72 = scmp.ge.s32.totalorder %s71, 1
            %s76 = sphi %s62, %s62
            %s77 = sphi [#allocation3], [#allocation3]
          $region69: #{unetwork_forward.17} parent=65 // loop_header_branch
            %74 = sbr.rel (%p72) target = $region73
          $region70: #{unetwork_forward.17} parent=65 // loop_body
            %v78 = vld [vmem:[%s76] sm:$0xf]
            %79 = vst [vmem:[%s77] sm:$0xf] %v78
            %v80 = vld [vmem:[%s76 + $0x8] sm:$0xf]
            %81 = vst [vmem:[%s77 + $0x4] sm:$0xf] %v80
          $region71: #{unetwork_forward.17} parent=65 // loop_footer
            %s75 = sadd.s32 1, %s71
          $region72: #{unetwork_forward.17} parent=65 // loop_footer_branch
            %70 = sbr.rel target = $region68
          $region73: #{unetwork_forward.17} parent=65 // loop_exit
            _
        $region66: #{unetwork_forward.17} parent=57 // pred_fallthru
          _
      $region58: #{unetwork_forward.17} parent=53 // pred_fallthru
        _
      %105 = vnop
    $region54: #{unetwork_forward.17} parent=1 // pred_fallthru
      _
    // Predicated region
    $region92: #{unetwork_forward.17} parent=1 // pred_check
      _
    $region93: #{unetwork_forward.17} parent=1 // pred_check_branch
      %107 = sbr.rel (0) target = $region95
    $region94: #{unetwork_forward.17} parent=1 // pred_region
      _
    $region95: #{unetwork_forward.17} parent=1 // pred_fallthru
      _
    // Predicated region
    $region96: #{unetwork_forward.17} parent=1 // pred_check
      _
    $region97: #{unetwork_forward.17} parent=1 // pred_check_branch
      %109 = sbr.rel (0) target = $region99
    $region98: #{unetwork_forward.17} parent=1 // pred_region
      _
    $region99: #{unetwork_forward.17} parent=1 // pred_fallthru
      _
    %s110 = sadd.s32 0, 1
    %v112 = vld [vmem:[#allocation2] sm:$0xf]
    %v113 = vld [vmem:[#allocation2 + $0x4] sm:$0xf]
    %v114 = vld [vmem:[#allocation3] sm:$0xf]
    %v115 = vld [vmem:[#allocation3 + $0x4] sm:$0xf]
    %v118 = vunpack.c.l.b16 %v112
    %v119 = vunpack.c.l.b16 %v113
    %v120 = vpack.c.b16 %v119, %v118
    %v124 = vunpack.c.l.b16 %v114
    %v125 = vunpack.c.l.b16 %v115
    %v126 = vpack.c.b16 %v125, %v124
    %v127 = vld [vmem:[%s0] sm:$0xf]
    %s128 = scalar_lea.vmem %s0, 4
    %v129 = vld [vmem:[%s128] sm:$0xf]
    %130 = vrot.lane.b32.xlu0 %v120, 127
    %v131 = vpop.permute.xlu0 %130
    %132 = vrot.lane.b32.xlu0 %v126, 127
    %v133 = vpop.permute.xlu0 %132
    %vm134 = vcmask 1039360
    %v135 = vsel %vm134, %v131, %v133
    %vm137 = vcmask 130048
    %v139 = vsel %vm137, %v129, 0
    %141 = vmatprep.subr.bf16.mxu0 0
    %142 = vmatpush1.bf16.msra.mxu0 %v135
    %143 = vmatprep.subr.bf16.mxu0 0
    %144 = vmatpush1.bf16.msra.mxu0 0
    %145 = vmatprep.subr.bf16.mxu0 0
    %146 = vmatpush1.bf16.msra.mxu0 0
    %147 = vmatprep.subr.bf16.mxu0 0
    %148 = vmatpush1.bf16.msra.mxu0 0
    %149 = vmatprep.subr.bf16.mxu0 0
    %150 = vmatpush1.bf16.msra.mxu0 0
    %151 = vmatprep.subr.bf16.mxu0 0
    %152 = vmatpush1.bf16.msra.mxu0 0
    %153 = vmatprep.subr.bf16.mxu0 0
    %154 = vmatpush1.bf16.msra.mxu0 0
    %155 = vmatprep.subr.bf16.mxu0 0
    %156 = vmatpush1.bf16.msra.mxu0 0
    %157 = vmatprep.subr.bf16.mxu0 0
    %158 = vmatpush1.bf16.msra.mxu0 0
    %159 = vmatprep.subr.bf16.mxu0 0
    %160 = vmatpush1.bf16.msra.mxu0 0
    %161 = vmatprep.subr.bf16.mxu0 0
    %162 = vmatpush1.bf16.msra.mxu0 0
    %163 = vmatprep.subr.bf16.mxu0 0
    %164 = vmatpush1.bf16.msra.mxu0 0
    %165 = vmatprep.subr.bf16.mxu0 0
    %166 = vmatpush1.bf16.msra.mxu0 0
    %167 = vmatprep.subr.bf16.mxu0 0
    %168 = vmatpush1.bf16.msra.mxu0 0
    %169 = vmatprep.subr.bf16.mxu0 0
    %170 = vmatpush1.bf16.msra.mxu0 0
    %171 = vmatprep.subr.bf16.mxu0 0
    %172 = vmatpush1.bf16.msra.mxu0 0
    %173 = vmatprep.mubr.bf16.mxu0 0
    %174 = vmatmul.mubr.bf16.gmra.mrb[0].mxu0 %v139
    %v175 = vpop.f32.mrb[0].mxu0
    %v176 = vadd.f32 0.0, %v175
    %v177 = vpop.f32.mrb[0].mxu0
    %v178 = vpop.f32.mrb[0].mxu0
    %v179 = vpop.f32.mrb[0].mxu0
    %180 = vdwg.mxu0
    %v182 = vsel %vm137, %v127, 0
    %184 = vmatprep.subr.bf16.mxu0 0
    %185 = vmatpush1.bf16.msra.mxu0 %v120
    %186 = vmatprep.subr.bf16.mxu0 0
    %187 = vmatpush1.bf16.msra.mxu0 0
    %188 = vmatprep.subr.bf16.mxu0 0
    %189 = vmatpush1.bf16.msra.mxu0 0
    %190 = vmatprep.subr.bf16.mxu0 0
    %191 = vmatpush1.bf16.msra.mxu0 0
    %192 = vmatprep.subr.bf16.mxu0 0
    %193 = vmatpush1.bf16.msra.mxu0 0
    %194 = vmatprep.subr.bf16.mxu0 0
    %195 = vmatpush1.bf16.msra.mxu0 0
    %196 = vmatprep.subr.bf16.mxu0 0
    %197 = vmatpush1.bf16.msra.mxu0 0
    %198 = vmatprep.subr.bf16.mxu0 0
    %199 = vmatpush1.bf16.msra.mxu0 0
    %200 = vmatprep.subr.bf16.mxu0 0
    %201 = vmatpush1.bf16.msra.mxu0 0
    %202 = vmatprep.subr.bf16.mxu0 0
    %203 = vmatpush1.bf16.msra.mxu0 0
    %204 = vmatprep.subr.bf16.mxu0 0
    %205 = vmatpush1.bf16.msra.mxu0 0
    %206 = vmatprep.subr.bf16.mxu0 0
    %207 = vmatpush1.bf16.msra.mxu0 0
    %208 = vmatprep.subr.bf16.mxu0 0
    %209 = vmatpush1.bf16.msra.mxu0 0
    %210 = vmatprep.subr.bf16.mxu0 0
    %211 = vmatpush1.bf16.msra.mxu0 0
    %212 = vmatprep.subr.bf16.mxu0 0
    %213 = vmatpush1.bf16.msra.mxu0 0
    %214 = vmatprep.subr.bf16.mxu0 0
    %215 = vmatpush1.bf16.msra.mxu0 0
    %216 = vmatprep.mubr.bf16.mxu0 0
    %217 = vmatmul.mubr.bf16.gmra.mrb[0].mxu0 %v182
    %v218 = vpop.f32.mrb[0].mxu0
    %v219 = vadd.f32 %v176, %v218
    %v220 = vpop.f32.mrb[0].mxu0
    %v221 = vpop.f32.mrb[0].mxu0
    %v222 = vpop.f32.mrb[0].mxu0
    %223 = vdwg.mxu0
    %s224 = scalar_lea.vmem %s0, 8
    %v225 = vld [vmem:[%s224] sm:$0xf]
    %226 = vrot.lane.b32.xlu0 %v120, 126
    %v227 = vpop.permute.xlu0 %226
    %228 = vrot.lane.b32.xlu0 %v126, 126
    %v229 = vpop.permute.xlu0 %228
    %vm230 = vcmask 1031168
    %v231 = vsel %vm230, %v227, %v229
    %v234 = vsel %vm137, %v225, 0
    %236 = vmatprep.subr.bf16.mxu0 0
    %237 = vmatpush1.bf16.msra.mxu0 %v231
    %238 = vmatprep.subr.bf16.mxu0 0
    %239 = vmatpush1.bf16.msra.mxu0 0
    %240 = vmatprep.subr.bf16.mxu0 0
    %241 = vmatpush1.bf16.msra.mxu0 0
    %242 = vmatprep.subr.bf16.mxu0 0
    %243 = vmatpush1.bf16.msra.mxu0 0
    %244 = vmatprep.subr.bf16.mxu0 0
    %245 = vmatpush1.bf16.msra.mxu0 0
    %246 = vmatprep.subr.bf16.mxu0 0
    %247 = vmatpush1.bf16.msra.mxu0 0
    %248 = vmatprep.subr.bf16.mxu0 0
    %249 = vmatpush1.bf16.msra.mxu0 0
    %250 = vmatprep.subr.bf16.mxu0 0
    %251 = vmatpush1.bf16.msra.mxu0 0
    %252 = vmatprep.subr.bf16.mxu0 0
    %253 = vmatpush1.bf16.msra.mxu0 0
    %254 = vmatprep.subr.bf16.mxu0 0
    %255 = vmatpush1.bf16.msra.mxu0 0
    %256 = vmatprep.subr.bf16.mxu0 0
    %257 = vmatpush1.bf16.msra.mxu0 0
    %258 = vmatprep.subr.bf16.mxu0 0
    %259 = vmatpush1.bf16.msra.mxu0 0
    %260 = vmatprep.subr.bf16.mxu0 0
    %261 = vmatpush1.bf16.msra.mxu0 0
    %262 = vmatprep.subr.bf16.mxu0 0
    %263 = vmatpush1.bf16.msra.mxu0 0
    %264 = vmatprep.subr.bf16.mxu0 0
    %265 = vmatpush1.bf16.msra.mxu0 0
    %266 = vmatprep.subr.bf16.mxu0 0
    %267 = vmatpush1.bf16.msra.mxu0 0
    %268 = vmatprep.mubr.bf16.mxu0 0
    %269 = vmatmul.mubr.bf16.gmra.mrb[0].mxu0 %v234
    %v270 = vpop.f32.mrb[0].mxu0
    %v271 = vadd.f32 0.0, %v270
    %v272 = vpop.f32.mrb[0].mxu0
    %v273 = vpop.f32.mrb[0].mxu0
    %v274 = vpop.f32.mrb[0].mxu0
    %275 = vdwg.mxu0
    %v276 = vadd.f32 %v219, %v271
    %s277 = scalar_lea.vmem %s0, 12
    %v278 = vld [vmem:[%s277] sm:$0xf]
    %279 = vrot.lane.b32.xlu0 %v120, 122
    %v280 = vpop.permute.xlu0 %279
    %281 = vrot.lane.b32.xlu0 %v126, 122
    %v282 = vpop.permute.xlu0 %281
    %vm283 = vcmask 998400
    %v284 = vsel %vm283, %v280, %v282
    %v287 = vsel %vm137, %v278, 0
    %289 = vmatprep.subr.bf16.mxu0 0
    %290 = vmatpush1.bf16.msra.mxu0 %v284
    %291 = vmatprep.subr.bf16.mxu0 0
    %292 = vmatpush1.bf16.msra.mxu0 0
    %293 = vmatprep.subr.bf16.mxu0 0
    %294 = vmatpush1.bf16.msra.mxu0 0
    %295 = vmatprep.subr.bf16.mxu0 0
    %296 = vmatpush1.bf16.msra.mxu0 0
    %297 = vmatprep.subr.bf16.mxu0 0
    %298 = vmatpush1.bf16.msra.mxu0 0
    %299 = vmatprep.subr.bf16.mxu0 0
    %300 = vmatpush1.bf16.msra.mxu0 0
    %301 = vmatprep.subr.bf16.mxu0 0
    %302 = vmatpush1.bf16.msra.mxu0 0
    %303 = vmatprep.subr.bf16.mxu0 0
    %304 = vmatpush1.bf16.msra.mxu0 0
    %305 = vmatprep.subr.bf16.mxu0 0
    %306 = vmatpush1.bf16.msra.mxu0 0
    %307 = vmatprep.subr.bf16.mxu0 0
    %308 = vmatpush1.bf16.msra.mxu0 0
    %309 = vmatprep.subr.bf16.mxu0 0
    %310 = vmatpush1.bf16.msra.mxu0 0
    %311 = vmatprep.subr.bf16.mxu0 0
    %312 = vmatpush1.bf16.msra.mxu0 0
    %313 = vmatprep.subr.bf16.mxu0 0
    %314 = vmatpush1.bf16.msra.mxu0 0
    %315 = vmatprep.subr.bf16.mxu0 0
    %316 = vmatpush1.bf16.msra.mxu0 0
    %317 = vmatprep.subr.bf16.mxu0 0
    %318 = vmatpush1.bf16.msra.mxu0 0
    %319 = vmatprep.subr.bf16.mxu0 0
    %320 = vmatpush1.bf16.msra.mxu0 0
    %321 = vmatprep.mubr.bf16.mxu0 0
    %322 = vmatmul.mubr.bf16.gmra.mrb[0].mxu0 %v287
    %v323 = vpop.f32.mrb[0].mxu0
    %v324 = vadd.f32 0.0, %v323
    %v325 = vpop.f32.mrb[0].mxu0
    %v326 = vpop.f32.mrb[0].mxu0
    %v327 = vpop.f32.mrb[0].mxu0
    %328 = vdwg.mxu0
    %v329 = vadd.f32 %v276, %v324
    %s330 = scalar_lea.vmem %s0, 16
    %v331 = vld [vmem:[%s330] sm:$0xf]
    %332 = vrot.lane.b32.xlu0 %v120, 121
    %v333 = vpop.permute.xlu0 %332
    %334 = vrot.lane.b32.xlu0 %v126, 121
    %v335 = vpop.permute.xlu0 %334
    %vm336 = vcmask 990208
    %v337 = vsel %vm336, %v333, %v335
    %v340 = vsel %vm137, %v331, 0
    %342 = vmatprep.subr.bf16.mxu0 0
    %343 = vmatpush1.bf16.msra.mxu0 %v337
    %344 = vmatprep.subr.bf16.mxu0 0
    %345 = vmatpush1.bf16.msra.mxu0 0
    %346 = vmatprep.subr.bf16.mxu0 0
    %347 = vmatpush1.bf16.msra.mxu0 0
    %348 = vmatprep.subr.bf16.mxu0 0
    %349 = vmatpush1.bf16.msra.mxu0 0
    %350 = vmatprep.subr.bf16.mxu0 0
    %351 = vmatpush1.bf16.msra.mxu0 0
    %352 = vmatprep.subr.bf16.mxu0 0
    %353 = vmatpush1.bf16.msra.mxu0 0
    %354 = vmatprep.subr.bf16.mxu0 0
    %355 = vmatpush1.bf16.msra.mxu0 0
    %356 = vmatprep.subr.bf16.mxu0 0
    %357 = vmatpush1.bf16.msra.mxu0 0
    %358 = vmatprep.subr.bf16.mxu0 0
    %359 = vmatpush1.bf16.msra.mxu0 0
    %360 = vmatprep.subr.bf16.mxu0 0
    %361 = vmatpush1.bf16.msra.mxu0 0
    %362 = vmatprep.subr.bf16.mxu0 0
    %363 = vmatpush1.bf16.msra.mxu0 0
    %364 = vmatprep.subr.bf16.mxu0 0
    %365 = vmatpush1.bf16.msra.mxu0 0
    %366 = vmatprep.subr.bf16.mxu0 0
    %367 = vmatpush1.bf16.msra.mxu0 0
    %368 = vmatprep.subr.bf16.mxu0 0
    %369 = vmatpush1.bf16.msra.mxu0 0
    %370 = vmatprep.subr.bf16.mxu0 0
    %371 = vmatpush1.bf16.msra.mxu0 0
    %372 = vmatprep.subr.bf16.mxu0 0
    %373 = vmatpush1.bf16.msra.mxu0 0
    %374 = vmatprep.mubr.bf16.mxu0 0
    %375 = vmatmul.mubr.bf16.gmra.mrb[0].mxu0 %v340
    %v376 = vpop.f32.mrb[0].mxu0
    %v377 = vadd.f32 0.0, %v376
    %v378 = vpop.f32.mrb[0].mxu0
    %v379 = vpop.f32.mrb[0].mxu0
    %v380 = vpop.f32.mrb[0].mxu0
    %381 = vdwg.mxu0
    %v382 = vadd.f32 %v329, %v377
    %s383 = scalar_lea.vmem %s0, 20
    %v384 = vld [vmem:[%s383] sm:$0xf]
    %385 = vrot.lane.b32.xlu0 %v120, 120
    %v386 = vpop.permute.xlu0 %385
    %387 = vrot.lane.b32.xlu0 %v126, 120
    %v388 = vpop.permute.xlu0 %387
    %vm389 = vcmask 982016
    %v390 = vsel %vm389, %v386, %v388
    %v393 = vsel %vm137, %v384, 0
    %395 = vmatprep.subr.bf16.mxu0 0
    %396 = vmatpush1.bf16.msra.mxu0 %v390
    %397 = vmatprep.subr.bf16.mxu0 0
    %398 = vmatpush1.bf16.msra.mxu0 0
    %399 = vmatprep.subr.bf16.mxu0 0
    %400 = vmatpush1.bf16.msra.mxu0 0
    %401 = vmatprep.subr.bf16.mxu0 0
    %402 = vmatpush1.bf16.msra.mxu0 0
    %403 = vmatprep.subr.bf16.mxu0 0
    %404 = vmatpush1.bf16.msra.mxu0 0
    %405 = vmatprep.subr.bf16.mxu0 0
    %406 = vmatpush1.bf16.msra.mxu0 0
    %407 = vmatprep.subr.bf16.mxu0 0
    %408 = vmatpush1.bf16.msra.mxu0 0
    %409 = vmatprep.subr.bf16.mxu0 0
    %410 = vmatpush1.bf16.msra.mxu0 0
    %411 = vmatprep.subr.bf16.mxu0 0
    %412 = vmatpush1.bf16.msra.mxu0 0
    %413 = vmatprep.subr.bf16.mxu0 0
    %414 = vmatpush1.bf16.msra.mxu0 0
    %415 = vmatprep.subr.bf16.mxu0 0
    %416 = vmatpush1.bf16.msra.mxu0 0
    %417 = vmatprep.subr.bf16.mxu0 0
    %418 = vmatpush1.bf16.msra.mxu0 0
    %419 = vmatprep.subr.bf16.mxu0 0
    %420 = vmatpush1.bf16.msra.mxu0 0
    %421 = vmatprep.subr.bf16.mxu0 0
    %422 = vmatpush1.bf16.msra.mxu0 0
    %423 = vmatprep.subr.bf16.mxu0 0
    %424 = vmatpush1.bf16.msra.mxu0 0
    %425 = vmatprep.subr.bf16.mxu0 0
    %426 = vmatpush1.bf16.msra.mxu0 0
    %427 = vmatprep.mubr.bf16.mxu0 0
    %428 = vmatmul.mubr.bf16.gmra.mrb[0].mxu0 %v393
    %v429 = vpop.f32.mrb[0].mxu0
    %v430 = vadd.f32 0.0, %v429
    %v431 = vpop.f32.mrb[0].mxu0
    %v432 = vpop.f32.mrb[0].mxu0
    %v433 = vpop.f32.mrb[0].mxu0
    %434 = vdwg.mxu0
    %v435 = vadd.f32 %v382, %v430
    %s436 = scalar_lea.vmem %s0, 24
    %v437 = vld [vmem:[%s436] sm:$0xf]
    %438 = vrot.lane.b32.xlu0 %v120, 116
    %v439 = vpop.permute.xlu0 %438
    %440 = vrot.lane.b32.xlu0 %v126, 116
    %v441 = vpop.permute.xlu0 %440
    %vm442 = vcmask 949248
    %v443 = vsel %vm442, %v439, %v441
    %v446 = vsel %vm137, %v437, 0
    %448 = vmatprep.subr.bf16.mxu0 0
    %449 = vmatpush1.bf16.msra.mxu0 %v443
    %450 = vmatprep.subr.bf16.mxu0 0
    %451 = vmatpush1.bf16.msra.mxu0 0
    %452 = vmatprep.subr.bf16.mxu0 0
    %453 = vmatpush1.bf16.msra.mxu0 0
    %454 = vmatprep.subr.bf16.mxu0 0
    %455 = vmatpush1.bf16.msra.mxu0 0
    %456 = vmatprep.subr.bf16.mxu0 0
    %457 = vmatpush1.bf16.msra.mxu0 0
    %458 = vmatprep.subr.bf16.mxu0 0
    %459 = vmatpush1.bf16.msra.mxu0 0
    %460 = vmatprep.subr.bf16.mxu0 0
    %461 = vmatpush1.bf16.msra.mxu0 0
    %462 = vmatprep.subr.bf16.mxu0 0
    %463 = vmatpush1.bf16.msra.mxu0 0
    %464 = vmatprep.subr.bf16.mxu0 0
    %465 = vmatpush1.bf16.msra.mxu0 0
    %466 = vmatprep.subr.bf16.mxu0 0
    %467 = vmatpush1.bf16.msra.mxu0 0
    %468 = vmatprep.subr.bf16.mxu0 0
    %469 = vmatpush1.bf16.msra.mxu0 0
    %470 = vmatprep.subr.bf16.mxu0 0
    %471 = vmatpush1.bf16.msra.mxu0 0
    %472 = vmatprep.subr.bf16.mxu0 0
    %473 = vmatpush1.bf16.msra.mxu0 0
    %474 = vmatprep.subr.bf16.mxu0 0
    %475 = vmatpush1.bf16.msra.mxu0 0
    %476 = vmatprep.subr.bf16.mxu0 0
    %477 = vmatpush1.bf16.msra.mxu0 0
    %478 = vmatprep.subr.bf16.mxu0 0
    %479 = vmatpush1.bf16.msra.mxu0 0
    %480 = vmatprep.mubr.bf16.mxu0 0
    %481 = vmatmul.mubr.bf16.gmra.mrb[0].mxu0 %v446
    %v482 = vpop.f32.mrb[0].mxu0
    %v483 = vadd.f32 0.0, %v482
    %v484 = vpop.f32.mrb[0].mxu0
    %v485 = vpop.f32.mrb[0].mxu0
    %v486 = vpop.f32.mrb[0].mxu0
    %487 = vdwg.mxu0
    %v488 = vadd.f32 %v435, %v483
    %s489 = scalar_lea.vmem %s0, 28
    %v490 = vld [vmem:[%s489] sm:$0xf]
    %491 = vrot.lane.b32.xlu0 %v120, 115
    %v492 = vpop.permute.xlu0 %491
    %493 = vrot.lane.b32.xlu0 %v126, 115
    %v494 = vpop.permute.xlu0 %493
    %vm495 = vcmask 941056
    %v496 = vsel %vm495, %v492, %v494
    %v499 = vsel %vm137, %v490, 0
    %501 = vmatprep.subr.bf16.mxu0 0
    %502 = vmatpush1.bf16.msra.mxu0 %v496
    %503 = vmatprep.subr.bf16.mxu0 0
    %504 = vmatpush1.bf16.msra.mxu0 0
    %505 = vmatprep.subr.bf16.mxu0 0
    %506 = vmatpush1.bf16.msra.mxu0 0
    %507 = vmatprep.subr.bf16.mxu0 0
    %508 = vmatpush1.bf16.msra.mxu0 0
    %509 = vmatprep.subr.bf16.mxu0 0
    %510 = vmatpush1.bf16.msra.mxu0 0
    %511 = vmatprep.subr.bf16.mxu0 0
    %512 = vmatpush1.bf16.msra.mxu0 0
    %513 = vmatprep.subr.bf16.mxu0 0
    %514 = vmatpush1.bf16.msra.mxu0 0
    %515 = vmatprep.subr.bf16.mxu0 0
    %516 = vmatpush1.bf16.msra.mxu0 0
    %517 = vmatprep.subr.bf16.mxu0 0
    %518 = vmatpush1.bf16.msra.mxu0 0
    %519 = vmatprep.subr.bf16.mxu0 0
    %520 = vmatpush1.bf16.msra.mxu0 0
    %521 = vmatprep.subr.bf16.mxu0 0
    %522 = vmatpush1.bf16.msra.mxu0 0
    %523 = vmatprep.subr.bf16.mxu0 0
    %524 = vmatpush1.bf16.msra.mxu0 0
    %525 = vmatprep.subr.bf16.mxu0 0
    %526 = vmatpush1.bf16.msra.mxu0 0
    %527 = vmatprep.subr.bf16.mxu0 0
    %528 = vmatpush1.bf16.msra.mxu0 0
    %529 = vmatprep.subr.bf16.mxu0 0
    %530 = vmatpush1.bf16.msra.mxu0 0
    %531 = vmatprep.subr.bf16.mxu0 0
    %532 = vmatpush1.bf16.msra.mxu0 0
    %533 = vmatprep.mubr.bf16.mxu0 0
    %534 = vmatmul.mubr.bf16.gmra.mrb[0].mxu0 %v499
    %v535 = vpop.f32.mrb[0].mxu0
    %v536 = vadd.f32 0.0, %v535
    %v537 = vpop.f32.mrb[0].mxu0
    %v538 = vpop.f32.mrb[0].mxu0
    %v539 = vpop.f32.mrb[0].mxu0
    %540 = vdwg.mxu0
    %v541 = vadd.f32 %v488, %v536
    %s542 = scalar_lea.vmem %s0, 32
    %v543 = vld [vmem:[%s542] sm:$0xf]
    %544 = vrot.lane.b32.xlu0 %v120, 114
    %v545 = vpop.permute.xlu0 %544
    %546 = vrot.lane.b32.xlu0 %v126, 114
    %v547 = vpop.permute.xlu0 %546
    %vm548 = vcmask 932864
    %v549 = vsel %vm548, %v545, %v547
    %v552 = vsel %vm137, %v543, 0
    %554 = vmatprep.subr.bf16.mxu0 0
    %555 = vmatpush1.bf16.msra.mxu0 %v549
    %556 = vmatprep.subr.bf16.mxu0 0
    %557 = vmatpush1.bf16.msra.mxu0 0
    %558 = vmatprep.subr.bf16.mxu0 0
    %559 = vmatpush1.bf16.msra.mxu0 0
    %560 = vmatprep.subr.bf16.mxu0 0
    %561 = vmatpush1.bf16.msra.mxu0 0
    %562 = vmatprep.subr.bf16.mxu0 0
    %563 = vmatpush1.bf16.msra.mxu0 0
    %564 = vmatprep.subr.bf16.mxu0 0
    %565 = vmatpush1.bf16.msra.mxu0 0
    %566 = vmatprep.subr.bf16.mxu0 0
    %567 = vmatpush1.bf16.msra.mxu0 0
    %568 = vmatprep.subr.bf16.mxu0 0
    %569 = vmatpush1.bf16.msra.mxu0 0
    %570 = vmatprep.subr.bf16.mxu0 0
    %571 = vmatpush1.bf16.msra.mxu0 0
    %572 = vmatprep.subr.bf16.mxu0 0
    %573 = vmatpush1.bf16.msra.mxu0 0
    %574 = vmatprep.subr.bf16.mxu0 0
    %575 = vmatpush1.bf16.msra.mxu0 0
    %576 = vmatprep.subr.bf16.mxu0 0
    %577 = vmatpush1.bf16.msra.mxu0 0
    %578 = vmatprep.subr.bf16.mxu0 0
    %579 = vmatpush1.bf16.msra.mxu0 0
    %580 = vmatprep.subr.bf16.mxu0 0
    %581 = vmatpush1.bf16.msra.mxu0 0
    %582 = vmatprep.subr.bf16.mxu0 0
    %583 = vmatpush1.bf16.msra.mxu0 0
    %584 = vmatprep.subr.bf16.mxu0 0
    %585 = vmatpush1.bf16.msra.mxu0 0
    %586 = vmatprep.mubr.bf16.mxu0 0
    %587 = vmatmul.mubr.bf16.gmra.mrb[0].mxu0 %v552
    %v588 = vpop.f32.mrb[0].mxu0
    %v589 = vadd.f32 0.0, %v588
    %v590 = vpop.f32.mrb[0].mxu0
    %v591 = vpop.f32.mrb[0].mxu0
    %v592 = vpop.f32.mrb[0].mxu0
    %593 = vdwg.mxu0
    %v594 = vadd.f32 %v541, %v589
    %v595 = vld [vmem:[%s1] sm:$0xff]
    %597 = vset.pattern.permute.xlu0 0
    %598 = vperm.xlu0 %597, %v595
    %v599 = vpop.permute.xlu0 %598
    %v601 = vadd.f32 %v594, %v599
    %vm602 = vcmp.ge.f32.partialorder %v601, 0.0
    %v603 = vmul.f32 %v601, 0.2
    %v604 = vsel %vm602, %v601, %v603
    %v605 = vpack.c.bf16 %v604, %v604
    %606 = vst [vmem:[%s4] sm:$0xf] %v605
    // Predicated region
    $region100: #{unetwork_forward.17} parent=1 // pred_check
      _
    $region101: #{unetwork_forward.17} parent=1 // pred_check_branch
      %608 = sbr.rel (0) target = $region103
    $region102: #{unetwork_forward.17} parent=1 // pred_region
      _
    $region103: #{unetwork_forward.17} parent=1 // pred_fallthru
      _
    // Predicated region
    $region104: #{unetwork_forward.17} parent=1 // pred_check
      _
    $region105: #{unetwork_forward.17} parent=1 // pred_check_branch
      %610 = sbr.rel (0) target = $region107
    $region106: #{unetwork_forward.17} parent=1 // pred_region
      _
    $region107: #{unetwork_forward.17} parent=1 // pred_fallthru
      _

// kernel: unetwork_forward.18
$region0: #{unetwork_forward.18}
  #allocation0 [shape = 'u32[]', space=smem, size = 0x4, offset = 0x4, fixed_abs, tag = 'smem constant byte address 0x4 - core index']
  #allocation1 [shape = 'u32[144,128]{1,0:T(1,128)}', space=vmem, size = 0x12000, scoped, tag = 'internal scratch']
  %s0 = inlined_call_operand.vmem [shape: bf16[9,8,12], index: 0, kind: input, shape index: {}]
  %s1 = inlined_call_operand.vmem [shape: f32[8,1], index: 1, kind: input, shape index: {}]
  %s2 = inlined_call_operand.vmem [shape: bf16[12,384], index: 2, kind: input, shape index: {}, may-alias: {2,3}]
  %s3 = inlined_call_operand.vmem [shape: bf16[12,384], index: 3, kind: input, shape index: {}, may-alias: {2,3}]
  %s4 = inlined_call_operand.vmem [shape: bf16[8,256], index: 4, kind: output, shape index: {}]
  %s5 = sld [smem:[#allocation0]]
  $region131: #{unetwork_forward.18} parent=0
    _
  %s7 = ssub.s32 1, %s5
  %s8 = scalar_select 0, %s7, %s5
  $region1: #{unetwork_forward.18} parent=0
    #allocation2 [shape = 'u8[8192]{0}', space=vmem, size = 0x2000, scoped, tag = 'input window, operand 2']
    #allocation3 [shape = 'u8[8192]{0}', space=vmem, size = 0x2000, scoped, tag = 'input window, operand 3']
    loop: start=0, step=1, limit=4
    $region2: #{unetwork_forward.18} parent=1 // loop_pre_header
      _
    $region3: #{unetwork_forward.18} parent=1 // loop_header
      %s10 = sphi 0, %s14
      %p11 = scmp.ge.s32.totalorder %s10, 4
      %s18 = sphi 0, %s18
      %s20 = sphi 0, %s18
      %s21 = sphi 0, %s20
      %s35 = sphi 0, %s21
      %s39 = sphi 0, %s39
      %s41 = sphi 0, %s39
      %s42 = sphi 0, %s41
      %s56 = sphi 0, %s42
      %s62 = sphi 0, %s64
      %s65 = sphi 0, %s62
      %s66 = sphi 0, %s65
      %s82 = sphi 0, %s66
      %s90 = sphi 0, %s92
      %s93 = sphi 0, %s90
      %s94 = sphi 0, %s93
      %s110 = sphi 0, %s94
      %s116 = sphi 0, %s118
      %s119 = sphi 0, %s116
      %s120 = sphi 0, %s119
      %s136 = sphi 0, %s120
    $region4: #{unetwork_forward.18} parent=1 // loop_header_branch
      %13 = sbr.rel (%p11) target = $region8
    $region5: #{unetwork_forward.18} parent=1 // loop_body
      %s15 = ssub.s32 %s10, 1
      %s16 = ssub.s32 %s10, 2
      %s17 = sadd.s32 %s10, 1
      %s19 = sadd.s32 %s18, 1
      %p22 = scmp.eq.s32.totalorder %s10, 1
      %p23 = scmp.ne.s32.totalorder %s18, %s20
      %p24 = scmp.eq.s32.totalorder %s10, 0
      %p25 = por %p23, %p24
      %p26 = scmp.ne.s32.totalorder %s18, %s20
      %p27 = scmp.eq.s32.totalorder %s15, 1
      %p28 = por %p26, %p27
      %p29 = scmp.ne.s32.totalorder %s20, %s21
      %p30 = scmp.eq.s32.totalorder %s15, 0
      %p31 = por %p29, %p30
      %p32 = scmp.ne.s32.totalorder %s20, %s21
      %p33 = scmp.eq.s32.totalorder %s16, 1
      %p34 = por %p32, %p33
      %p36 = scmp.ne.s32.totalorder %s21, %s35
      %p37 = scmp.eq.s32.totalorder %s16, 0
      %p38 = por %p36, %p37
      %s40 = sadd.s32 %s39, 1
      %p43 = scmp.eq.s32.totalorder %s10, 1
      %p44 = scmp.ne.s32.totalorder %s39, %s41
      %p45 = scmp.eq.s32.totalorder %s10, 0
      %p46 = por %p44, %p45
      %p47 = scmp.ne.s32.totalorder %s39, %s41
      %p48 = scmp.eq.s32.totalorder %s15, 1
      %p49 = por %p47, %p48
      %p50 = scmp.ne.s32.totalorder %s41, %s42
      %p51 = scmp.eq.s32.totalorder %s15, 0
      %p52 = por %p50, %p51
      %p53 = scmp.ne.s32.totalorder %s41, %s42
      %p54 = scmp.eq.s32.totalorder %s16, 1
      %p55 = por %p53, %p54
      %p57 = scmp.ne.s32.totalorder %s42, %s56
      %p58 = scmp.eq.s32.totalorder %s16, 0
      %p59 = por %p57, %p58
      %s60 = ssub.s32 %s10, %s17
      %p61 = scmp.eq.s32.totalorder %s60, 0
      %s63 = sadd.s32 %s62, 1
      %s64 = scalar_select %p61, %s62, %s63
      %p67 = pneg %p61
      %p68 = scmp.eq.s32.totalorder %s10, 1
      %p69 = por %p67, %p68
      %p70 = scmp.ne.s32.totalorder %s62, %s65
      %p71 = scmp.eq.s32.totalorder %s10, 0
      %p72 = por %p70, %p71
      %p73 = scmp.ne.s32.totalorder %s62, %s65
      %p74 = scmp.eq.s32.totalorder %s15, 1
      %p75 = por %p73, %p74
      %p76 = scmp.ne.s32.totalorder %s65, %s66
      %p77 = scmp.eq.s32.totalorder %s15, 0
      %p78 = por %p76, %p77
      %p79 = scmp.ne.s32.totalorder %s65, %s66
      %p80 = scmp.eq.s32.totalorder %s16, 1
      %p81 = por %p79, %p80
      %p83 = scmp.ne.s32.totalorder %s66, %s82
      %p84 = scmp.eq.s32.totalorder %s16, 0
      %p85 = por %p83, %p84
      %s86 = sadd.s32 %s10, 1
      %s87 = sadd.s32 %s17, 1
      %s88 = ssub.s32 %s86, %s87
      %p89 = scmp.eq.s32.totalorder %s88, 0
      %s91 = sadd.s32 %s90, 1
      %s92 = scalar_select %p89, %s90, %s91
      %p95 = pneg %p89
      %p96 = scmp.eq.s32.totalorder %s10, 1
      %p97 = por %p95, %p96
      %p98 = scmp.ne.s32.totalorder %s90, %s93
      %p99 = scmp.eq.s32.totalorder %s10, 0
      %p100 = por %p98, %p99
      %p101 = scmp.ne.s32.totalorder %s90, %s93
      %p102 = scmp.eq.s32.totalorder %s15, 1
      %p103 = por %p101, %p102
      %p104 = scmp.ne.s32.totalorder %s93, %s94
      %p105 = scmp.eq.s32.totalorder %s15, 0
      %p106 = por %p104, %p105
      %p107 = scmp.ne.s32.totalorder %s93, %s94
      %p108 = scmp.eq.s32.totalorder %s16, 1
      %p109 = por %p107, %p108
      %p111 = scmp.ne.s32.totalorder %s94, %s110
      %p112 = scmp.eq.s32.totalorder %s16, 0
      %p113 = por %p111, %p112
      %s114 = ssub.s32 %s10, %s17
      %p115 = scmp.eq.s32.totalorder %s114, 0
      %s117 = sadd.s32 %s116, 1
      %s118 = scalar_select %p115, %s116, %s117
      %p121 = pneg %p115
      %p122 = scmp.eq.s32.totalorder %s10, 1
      %p123 = por %p121, %p122
      %p124 = scmp.ne.s32.totalorder %s116, %s119
      %p125 = scmp.eq.s32.totalorder %s10, 0
      %p126 = por %p124, %p125
      %p127 = scmp.ne.s32.totalorder %s116, %s119
      %p128 = scmp.eq.s32.totalorder %s15, 1
      %p129 = por %p127, %p128
      %p130 = scmp.ne.s32.totalorder %s119, %s120
      %p131 = scmp.eq.s32.totalorder %s15, 0
      %p132 = por %p130, %p131
      %p133 = scmp.ne.s32.totalorder %s119, %s120
      %p134 = scmp.eq.s32.totalorder %s16, 1
      %p135 = por %p133, %p134
      %p137 = scmp.ne.s32.totalorder %s120, %s136
      %p138 = scmp.eq.s32.totalorder %s16, 0
      %p139 = por %p137, %p138
      %p140 = scmp.le.s32.totalorder 1, %s10
      %p141 = scmp.lt.s32.totalorder %s10, 3
      %p142 = pnand %p140, %p141
      %p143 = pneg %p142
      // Predicated region
      $region9: #{unetwork_forward.18} parent=5 // pred_check
        _
      $region10: #{unetwork_forward.18} parent=5 // pred_check_branch
        %145 = sbr.rel (%p142) target = $region12
      $region11: #{unetwork_forward.18} parent=5 // pred_region
        %s146 = ssub.s32 %s10, 1
        // Predicated region
        $region13: #{unetwork_forward.18} parent=11 // pred_check
          %p147 = pneg %p31
        $region14: #{unetwork_forward.18} parent=11 // pred_check_branch
          %149 = sbr.rel (%p147) target = $region16
        $region15: #{unetwork_forward.18} parent=11 // pred_region
          _
        $region16: #{unetwork_forward.18} parent=11 // pred_fallthru
          _
        // Predicated region
        $region17: #{unetwork_forward.18} parent=11 // pred_check
          %p150 = pneg %p52
        $region18: #{unetwork_forward.18} parent=11 // pred_check_branch
          %152 = sbr.rel (%p150) target = $region20
        $region19: #{unetwork_forward.18} parent=11 // pred_region
          _
        $region20: #{unetwork_forward.18} parent=11 // pred_fallthru
          _
      $region12: #{unetwork_forward.18} parent=5 // pred_fallthru
        _
      %p153 = scmp.lt.s32.totalorder %s10, 2
      // Predicated region
      $region21: #{unetwork_forward.18} parent=5 // pred_check
        %p154 = pneg %p153
      $region22: #{unetwork_forward.18} parent=5 // pred_check_branch
        %156 = sbr.rel (%p154) target = $region24
      $region23: #{unetwork_forward.18} parent=5 // pred_region
        // Predicated region
        $region25: #{unetwork_forward.18} parent=23 // pred_check
          %p157 = pneg %p72
        $region26: #{unetwork_forward.18} parent=23 // pred_check_branch
          %159 = sbr.rel (%p157) target = $region28
        $region27: #{unetwork_forward.18} parent=23 // pred_region
          %s160 = sand.u32 %s62, 1
          %s161 = sand.u32 %s62, 1
          %s162 = smul.addr %s161, 8
          %s163 = scalar_lea.vmem [#allocation2], %s162
          %s164 = smul.addr %s10, 4
          %s165 = scalar_lea.vmem %s2, %s164
          // Predicated region
          $region29: #{unetwork_forward.18} parent=27 // pred_check
            _
          $region30: #{unetwork_forward.18} parent=27 // pred_check_branch
            %167 = sbr.rel (0) target = $region32
          $region31: #{unetwork_forward.18} parent=27 // pred_region
            // Predicated region
            $region33: #{unetwork_forward.18} parent=31 // pred_check
              _
            $region34: #{unetwork_forward.18} parent=31 // pred_check_branch
              %169 = sbr.rel target = $region36
            $region35: #{unetwork_forward.18} parent=31 // pred_region
              // Predicated region
              $region48: #{unetwork_forward.18} parent=35 // pred_check
                _
              $region49: #{unetwork_forward.18} parent=35 // pred_check_branch
                %186 = sbr.rel (0) target = $region51
              $region50: #{unetwork_forward.18} parent=35 // pred_region
                loop: start=0, step=1, limit=1
                $region52: #{unetwork_forward.18} parent=50 // loop_pre_header
                  _
                $region53: #{unetwork_forward.18} parent=50 // loop_header
                  %s188 = sphi 0, %s192
                  %p189 = scmp.ge.s32.totalorder %s188, 1
                  %s193 = sphi %s165, %s165
                  %s194 = sphi %s163, %s163
                $region54: #{unetwork_forward.18} parent=50 // loop_header_branch
                  %191 = sbr.rel (%p189) target = $region58
                $region55: #{unetwork_forward.18} parent=50 // loop_body
                  _
                $region56: #{unetwork_forward.18} parent=50 // loop_footer
                  %s192 = sadd.s32 1, %s188
                $region57: #{unetwork_forward.18} parent=50 // loop_footer_branch
                  %187 = sbr.rel target = $region53
                $region58: #{unetwork_forward.18} parent=50 // loop_exit
                  _
                loop: start=0, step=1, limit=1
                $region59: #{unetwork_forward.18} parent=50 // loop_pre_header
                  _
                $region60: #{unetwork_forward.18} parent=50 // loop_header
                  %s197 = sphi 0, %s201
                  %p198 = scmp.ge.s32.totalorder %s197, 1
                  %s202 = sphi %s165, %s165
                  %s203 = sphi %s163, %s163
                $region61: #{unetwork_forward.18} parent=50 // loop_header_branch
                  %200 = sbr.rel (%p198) target = $region65
                $region62: #{unetwork_forward.18} parent=50 // loop_body
                  %v204 = vld [vmem:[%s202] sm:$0xf]
                  %205 = vst [vmem:[%s203] sm:$0xf] %v204
                  %v206 = vld [vmem:[%s202 + $0xc] sm:$0xf]
                  %207 = vst [vmem:[%s203 + $0x4] sm:$0xf] %v206
                $region63: #{unetwork_forward.18} parent=50 // loop_footer
                  %s201 = sadd.s32 1, %s197
                $region64: #{unetwork_forward.18} parent=50 // loop_footer_branch
                  %196 = sbr.rel target = $region60
                $region65: #{unetwork_forward.18} parent=50 // loop_exit
                  _
              $region51: #{unetwork_forward.18} parent=35 // pred_fallthru
                _
            $region36: #{unetwork_forward.18} parent=31 // pred_fallthru
              _
            // Predicated region
            $region37: #{unetwork_forward.18} parent=31 // pred_check
              _
            $region38: #{unetwork_forward.18} parent=31 // pred_check_branch
              %171 = sbr.rel (0) target = $region40
            $region39: #{unetwork_forward.18} parent=31 // pred_region
              loop: start=0, step=1, limit=1
              $region41: #{unetwork_forward.18} parent=39 // loop_pre_header
                _
              $region42: #{unetwork_forward.18} parent=39 // loop_header
                %s174 = sphi 0, %s178
                %p175 = scmp.ge.s32.totalorder %s174, 1
                %s179 = sphi %s165, %s165
                %s180 = sphi %s163, %s163
              $region43: #{unetwork_forward.18} parent=39 // loop_header_branch
                %177 = sbr.rel (%p175) target = $region47
              $region44: #{unetwork_forward.18} parent=39 // loop_body
                %v181 = vld [vmem:[%s179] sm:$0xf]
                %182 = vst [vmem:[%s180] sm:$0xf] %v181
                %v183 = vld [vmem:[%s179 + $0xc] sm:$0xf]
                %184 = vst [vmem:[%s180 + $0x4] sm:$0xf] %v183
              $region45: #{unetwork_forward.18} parent=39 // loop_footer
                %s178 = sadd.s32 1, %s174
              $region46: #{unetwork_forward.18} parent=39 // loop_footer_branch
                %173 = sbr.rel target = $region42
              $region47: #{unetwork_forward.18} parent=39 // loop_exit
                _
            $region40: #{unetwork_forward.18} parent=31 // pred_fallthru
              _
          $region32: #{unetwork_forward.18} parent=27 // pred_fallthru
            _
          %208 = vnop
        $region28: #{unetwork_forward.18} parent=23 // pred_fallthru
          _
        // Predicated region
        $region66: #{unetwork_forward.18} parent=23 // pred_check
          %p209 = pneg %p100
        $region67: #{unetwork_forward.18} parent=23 // pred_check_branch
          %211 = sbr.rel (%p209) target = $region69
        $region68: #{unetwork_forward.18} parent=23 // pred_region
          %s212 = sand.u32 %s90, 1
          %s213 = sand.u32 %s90, 1
          %s214 = smul.addr %s213, 8
          %s215 = scalar_lea.vmem [#allocation3], %s214
          %s216 = sadd.s32 %s10, 1
          %s217 = smul.addr %s216, 4
          %s218 = scalar_lea.vmem %s3, %s217
          // Predicated region
          $region70: #{unetwork_forward.18} parent=68 // pred_check
            _
          $region71: #{unetwork_forward.18} parent=68 // pred_check_branch
            %220 = sbr.rel (0) target = $region73
          $region72: #{unetwork_forward.18} parent=68 // pred_region
            // Predicated region
            $region74: #{unetwork_forward.18} parent=72 // pred_check
              _
            $region75: #{unetwork_forward.18} parent=72 // pred_check_branch
              %222 = sbr.rel target = $region77
            $region76: #{unetwork_forward.18} parent=72 // pred_region
              // Predicated region
              $region89: #{unetwork_forward.18} parent=76 // pred_check
                _
              $region90: #{unetwork_forward.18} parent=76 // pred_check_branch
                %239 = sbr.rel (0) target = $region92
              $region91: #{unetwork_forward.18} parent=76 // pred_region
                loop: start=0, step=1, limit=1
                $region93: #{unetwork_forward.18} parent=91 // loop_pre_header
                  _
                $region94: #{unetwork_forward.18} parent=91 // loop_header
                  %s241 = sphi 0, %s245
                  %p242 = scmp.ge.s32.totalorder %s241, 1
                  %s246 = sphi %s218, %s218
                  %s247 = sphi %s215, %s215
                $region95: #{unetwork_forward.18} parent=91 // loop_header_branch
                  %244 = sbr.rel (%p242) target = $region99
                $region96: #{unetwork_forward.18} parent=91 // loop_body
                  _
                $region97: #{unetwork_forward.18} parent=91 // loop_footer
                  %s245 = sadd.s32 1, %s241
                $region98: #{unetwork_forward.18} parent=91 // loop_footer_branch
                  %240 = sbr.rel target = $region94
                $region99: #{unetwork_forward.18} parent=91 // loop_exit
                  _
                loop: start=0, step=1, limit=1
                $region100: #{unetwork_forward.18} parent=91 // loop_pre_header
                  _
                $region101: #{unetwork_forward.18} parent=91 // loop_header
                  %s250 = sphi 0, %s254
                  %p251 = scmp.ge.s32.totalorder %s250, 1
                  %s255 = sphi %s218, %s218
                  %s256 = sphi %s215, %s215
                $region102: #{unetwork_forward.18} parent=91 // loop_header_branch
                  %253 = sbr.rel (%p251) target = $region106
                $region103: #{unetwork_forward.18} parent=91 // loop_body
                  %v257 = vld [vmem:[%s255] sm:$0xf]
                  %258 = vst [vmem:[%s256] sm:$0xf] %v257
                  %v259 = vld [vmem:[%s255 + $0xc] sm:$0xf]
                  %260 = vst [vmem:[%s256 + $0x4] sm:$0xf] %v259
                $region104: #{unetwork_forward.18} parent=91 // loop_footer
                  %s254 = sadd.s32 1, %s250
                $region105: #{unetwork_forward.18} parent=91 // loop_footer_branch
                  %249 = sbr.rel target = $region101
                $region106: #{unetwork_forward.18} parent=91 // loop_exit
                  _
              $region92: #{unetwork_forward.18} parent=76 // pred_fallthru
                _
            $region77: #{unetwork_forward.18} parent=72 // pred_fallthru
              _
            // Predicated region
            $region78: #{unetwork_forward.18} parent=72 // pred_check
              _
            $region79: #{unetwork_forward.18} parent=72 // pred_check_branch
              %224 = sbr.rel (0) target = $region81
            $region80: #{unetwork_forward.18} parent=72 // pred_region
              loop: start=0, step=1, limit=1
              $region82: #{unetwork_forward.18} parent=80 // loop_pre_header
                _
              $region83: #{unetwork_forward.18} parent=80 // loop_header
                %s227 = sphi 0, %s231
                %p228 = scmp.ge.s32.totalorder %s227, 1
                %s232 = sphi %s218, %s218
                %s233 = sphi %s215, %s215
              $region84: #{unetwork_forward.18} parent=80 // loop_header_branch
                %230 = sbr.rel (%p228) target = $region88
              $region85: #{unetwork_forward.18} parent=80 // loop_body
                %v234 = vld [vmem:[%s232] sm:$0xf]
                %235 = vst [vmem:[%s233] sm:$0xf] %v234
                %v236 = vld [vmem:[%s232 + $0xc] sm:$0xf]
                %237 = vst [vmem:[%s233 + $0x4] sm:$0xf] %v236
              $region86: #{unetwork_forward.18} parent=80 // loop_footer
                %s231 = sadd.s32 1, %s227
              $region87: #{unetwork_forward.18} parent=80 // loop_footer_branch
                %226 = sbr.rel target = $region83
              $region88: #{unetwork_forward.18} parent=80 // loop_exit
                _
            $region81: #{unetwork_forward.18} parent=72 // pred_fallthru
              _
          $region73: #{unetwork_forward.18} parent=68 // pred_fallthru
            _
          %261 = vnop
        $region69: #{unetwork_forward.18} parent=23 // pred_fallthru
          _
      $region24: #{unetwork_forward.18} parent=5 // pred_fallthru
        _
      %p262 = scmp.le.s32.totalorder 1, %s10
      %p263 = scmp.lt.s32.totalorder %s10, 3
      %p264 = pnand %p262, %p263
      %p265 = pneg %p264
      // Predicated region
      $region107: #{unetwork_forward.18} parent=5 // pred_check
        _
      $region108: #{unetwork_forward.18} parent=5 // pred_check_branch
        %267 = sbr.rel (%p264) target = $region110
      $region109: #{unetwork_forward.18} parent=5 // pred_region
        %s268 = ssub.s32 %s10, 1
        %s269 = sand.u32 %s65, 1
        %s270 = sand.u32 %s65, 1
        %s271 = smul.addr %s270, 8
        %s272 = scalar_lea.vmem [#allocation2], %s271
        // Predicated region
        $region111: #{unetwork_forward.18} parent=109 // pred_check
          %p273 = pneg %p78
        $region112: #{unetwork_forward.18} parent=109 // pred_check_branch
          %275 = sbr.rel (%p273) target = $region114
        $region113: #{unetwork_forward.18} parent=109 // pred_region
          _
        $region114: #{unetwork_forward.18} parent=109 // pred_fallthru
          _
        %s276 = sand.u32 %s93, 1
        %s277 = sand.u32 %s93, 1
        %s278 = smul.addr %s277, 8
        %s279 = scalar_lea.vmem [#allocation3], %s278
        // Predicated region
        $region115: #{unetwork_forward.18} parent=109 // pred_check
          %p280 = pneg %p106
        $region116: #{unetwork_forward.18} parent=109 // pred_check_branch
          %282 = sbr.rel (%p280) target = $region118
        $region117: #{unetwork_forward.18} parent=109 // pred_region
          _
        $region118: #{unetwork_forward.18} parent=109 // pred_fallthru
          _
        %p283 = pneg %p31
        %p284 = pneg %p28
        %p285 = pneg %p52
        %p286 = pneg %p49
        %s287 = sand.u32 %s65, 1
        %s288 = sand.u32 %s65, 1
        %s289 = smul.addr %s288, 8
        %s290 = scalar_lea.vmem [#allocation2], %s289
        %p291 = pneg %p78
        %p292 = pneg %p75
        %s293 = sand.u32 %s93, 1
        %s294 = sand.u32 %s93, 1
        %s295 = smul.addr %s294, 8
        %s296 = scalar_lea.vmem [#allocation3], %s295
        %p297 = pneg %p106
        %p298 = pneg %p103
        %p299 = pneg %p132
        %p300 = pneg %p129
        %p301 = scmp.lt.s32.totalorder %s15, 1
        %s302 = scalar_select %p301, %s15, 1
        %s303 = smul.addr %s302, 4
        %s304 = scalar_lea.vmem %s4, %s303
        %s305 = sadd.s32 %s15, 1
        %p306 = scmp.lt.s32.totalorder %s15, 1
        %s307 = scalar_select %p306, %s15, 1
        %s308 = smul.addr %s307, 4
        %s309 = scalar_lea.vmem %s4, %s308
        %v311 = vld [vmem:[%s272] sm:$0xf]
        %v312 = vld [vmem:[%s272 + $0x4] sm:$0x3]
        %v313 = vld [vmem:[%s279] sm:$0xf]
        %v314 = vld [vmem:[%s279 + $0x4] sm:$0x3]
        %v317 = vunpack.c.l.b16 %v311
        %v318 = vunpack.c.l.b16 %v312
        %v319 = vpack.c.b16 %v318, %v317
        %v322 = vunpack.c.l.b16 %v313
        %v323 = vunpack.c.l.b16 %v314
        %v324 = vpack.c.b16 %v323, %v322
        %v325 = vld [vmem:[%s0] sm:$0xf]
        %s326 = scalar_lea.vmem %s0, 4
        %v327 = vld [vmem:[%s326] sm:$0xf]
        %328 = vrot.lane.b32.xlu0 %v319, 127
        %v329 = vpop.permute.xlu0 %328
        %330 = vrot.lane.b32.xlu0 %v324, 127
        %v331 = vpop.permute.xlu0 %330
        %vm332 = vcmask 1039360
        %v333 = vsel %vm332, %v329, %v331
        %vm334 = vcmask 97280
        %v336 = vsel %vm334, %v327, 0
        %vm338 = vcmask 1045504
        %v340 = vsel %vm338, %v333, 0
        %342 = vmatprep.subr.bf16.mxu0 0
        %343 = vmatpush1.bf16.msra.mxu0 %v340
        %344 = vmatprep.subr.bf16.mxu0 0
        %345 = vmatpush1.bf16.msra.mxu0 0
        %346 = vmatprep.subr.bf16.mxu0 0
        %347 = vmatpush1.bf16.msra.mxu0 0
        %348 = vmatprep.subr.bf16.mxu0 0
        %349 = vmatpush1.bf16.msra.mxu0 0
        %350 = vmatprep.subr.bf16.mxu0 0
        %351 = vmatpush1.bf16.msra.mxu0 0
        %352 = vmatprep.subr.bf16.mxu0 0
        %353 = vmatpush1.bf16.msra.mxu0 0
        %354 = vmatprep.subr.bf16.mxu0 0
        %355 = vmatpush1.bf16.msra.mxu0 0
        %356 = vmatprep.subr.bf16.mxu0 0
        %357 = vmatpush1.bf16.msra.mxu0 0
        %358 = vmatprep.subr.bf16.mxu0 0
        %359 = vmatpush1.bf16.msra.mxu0 0
        %360 = vmatprep.subr.bf16.mxu0 0
        %361 = vmatpush1.bf16.msra.mxu0 0
        %362 = vmatprep.subr.bf16.mxu0 0
        %363 = vmatpush1.bf16.msra.mxu0 0
        %364 = vmatprep.subr.bf16.mxu0 0
        %365 = vmatpush1.bf16.msra.mxu0 0
        %366 = vmatprep.subr.bf16.mxu0 0
        %367 = vmatpush1.bf16.msra.mxu0 0
        %368 = vmatprep.subr.bf16.mxu0 0
        %369 = vmatpush1.bf16.msra.mxu0 0
        %370 = vmatprep.subr.bf16.mxu0 0
        %371 = vmatpush1.bf16.msra.mxu0 0
        %372 = vmatprep.subr.bf16.mxu0 0
        %373 = vmatpush1.bf16.msra.mxu0 0
        %374 = vmatprep.mubr.bf16.mxu0 0
        %375 = vmatmul.mubr.bf16.gmra.mrb[0].mxu0 %v336
        %v376 = vpop.f32.mrb[0].mxu0
        %v377 = vadd.f32 0.0, %v376
        %v378 = vpop.f32.mrb[0].mxu0
        %v379 = vpop.f32.mrb[0].mxu0
        %v380 = vpop.f32.mrb[0].mxu0
        %381 = vdwg.mxu0
        %v383 = vsel %vm334, %v325, 0
        %v386 = vsel %vm338, %v319, 0
        %388 = vmatprep.subr.bf16.mxu0 0
        %389 = vmatpush1.bf16.msra.mxu0 %v386
        %390 = vmatprep.subr.bf16.mxu0 0
        %391 = vmatpush1.bf16.msra.mxu0 0
        %392 = vmatprep.subr.bf16.mxu0 0
        %393 = vmatpush1.bf16.msra.mxu0 0
        %394 = vmatprep.subr.bf16.mxu0 0
        %395 = vmatpush1.bf16.msra.mxu0 0
        %396 = vmatprep.subr.bf16.mxu0 0
        %397 = vmatpush1.bf16.msra.mxu0 0
        %398 = vmatprep.subr.bf16.mxu0 0
        %399 = vmatpush1.bf16.msra.mxu0 0
        %400 = vmatprep.subr.bf16.mxu0 0
        %401 = vmatpush1.bf16.msra.mxu0 0
        %402 = vmatprep.subr.bf16.mxu0 0
        %403 = vmatpush1.bf16.msra.mxu0 0
        %404 = vmatprep.subr.bf16.mxu0 0
        %405 = vmatpush1.bf16.msra.mxu0 0
        %406 = vmatprep.subr.bf16.mxu0 0
        %407 = vmatpush1.bf16.msra.mxu0 0
        %408 = vmatprep.subr.bf16.mxu0 0
        %409 = vmatpush1.bf16.msra.mxu0 0
        %410 = vmatprep.subr.bf16.mxu0 0
        %411 = vmatpush1.bf16.msra.mxu0 0
        %412 = vmatprep.subr.bf16.mxu0 0
        %413 = vmatpush1.bf16.msra.mxu0 0
        %414 = vmatprep.subr.bf16.mxu0 0
        %415 = vmatpush1.bf16.msra.mxu0 0
        %416 = vmatprep.subr.bf16.mxu0 0
        %417 = vmatpush1.bf16.msra.mxu0 0
        %418 = vmatprep.subr.bf16.mxu0 0
        %419 = vmatpush1.bf16.msra.mxu0 0
        %420 = vmatprep.mubr.bf16.mxu0 0
        %421 = vmatmul.mubr.bf16.gmra.mrb[0].mxu0 %v383
        %v422 = vpop.f32.mrb[0].mxu0
        %v423 = vadd.f32 %v377, %v422
        %v424 = vpop.f32.mrb[0].mxu0
        %v425 = vpop.f32.mrb[0].mxu0
        %v426 = vpop.f32.mrb[0].mxu0
        %427 = vdwg.mxu0
        %s428 = scalar_lea.vmem %s0, 8
        %v429 = vld [vmem:[%s428] sm:$0xf]
        %430 = vrot.lane.b32.xlu0 %v319, 126
        %v431 = vpop.permute.xlu0 %430
        %432 = vrot.lane.b32.xlu0 %v324, 126
        %v433 = vpop.permute.xlu0 %432
        %vm434 = vcmask 1031168
        %v435 = vsel %vm434, %v431, %v433
        %v437 = vsel %vm334, %v429, 0
        %v440 = vsel %vm338, %v435, 0
        %442 = vmatprep.subr.bf16.mxu0 0
        %443 = vmatpush1.bf16.msra.mxu0 %v440
        %444 = vmatprep.subr.bf16.mxu0 0
        %445 = vmatpush1.bf16.msra.mxu0 0
        %446 = vmatprep.subr.bf16.mxu0 0
        %447 = vmatpush1.bf16.msra.mxu0 0
        %448 = vmatprep.subr.bf16.mxu0 0
        %449 = vmatpush1.bf16.msra.mxu0 0
        %450 = vmatprep.subr.bf16.mxu0 0
        %451 = vmatpush1.bf16.msra.mxu0 0
        %452 = vmatprep.subr.bf16.mxu0 0
        %453 = vmatpush1.bf16.msra.mxu0 0
        %454 = vmatprep.subr.bf16.mxu0 0
        %455 = vmatpush1.bf16.msra.mxu0 0
        %456 = vmatprep.subr.bf16.mxu0 0
        %457 = vmatpush1.bf16.msra.mxu0 0
        %458 = vmatprep.subr.bf16.mxu0 0
        %459 = vmatpush1.bf16.msra.mxu0 0
        %460 = vmatprep.subr.bf16.mxu0 0
        %461 = vmatpush1.bf16.msra.mxu0 0
        %462 = vmatprep.subr.bf16.mxu0 0
        %463 = vmatpush1.bf16.msra.mxu0 0
        %464 = vmatprep.subr.bf16.mxu0 0
        %465 = vmatpush1.bf16.msra.mxu0 0
        %466 = vmatprep.subr.bf16.mxu0 0
        %467 = vmatpush1.bf16.msra.mxu0 0
        %468 = vmatprep.subr.bf16.mxu0 0
        %469 = vmatpush1.bf16.msra.mxu0 0
        %470 = vmatprep.subr.bf16.mxu0 0
        %471 = vmatpush1.bf16.msra.mxu0 0
        %472 = vmatprep.subr.bf16.mxu0 0
        %473 = vmatpush1.bf16.msra.mxu0 0
        %474 = vmatprep.mubr.bf16.mxu0 0
        %475 = vmatmul.mubr.bf16.gmra.mrb[0].mxu0 %v437
        %v476 = vpop.f32.mrb[0].mxu0
        %v477 = vadd.f32 0.0, %v476
        %v478 = vpop.f32.mrb[0].mxu0
        %v479 = vpop.f32.mrb[0].mxu0
        %v480 = vpop.f32.mrb[0].mxu0
        %481 = vdwg.mxu0
        %v482 = vadd.f32 %v423, %v477
        %s483 = scalar_lea.vmem %s0, 12
        %v484 = vld [vmem:[%s483] sm:$0xf]
        %485 = vrot.lane.b32.xlu0 %v319, 118
        %v486 = vpop.permute.xlu0 %485
        %487 = vrot.lane.b32.xlu0 %v324, 118
        %v488 = vpop.permute.xlu0 %487
        %vm489 = vcmask 965632
        %v490 = vsel %vm489, %v486, %v488
        %v492 = vsel %vm334, %v484, 0
        %v495 = vsel %vm338, %v490, 0
        %497 = vmatprep.subr.bf16.mxu0 0
        %498 = vmatpush1.bf16.msra.mxu0 %v495
        %499 = vmatprep.subr.bf16.mxu0 0
        %500 = vmatpush1.bf16.msra.mxu0 0
        %501 = vmatprep.subr.bf16.mxu0 0
        %502 = vmatpush1.bf16.msra.mxu0 0
        %503 = vmatprep.subr.bf16.mxu0 0
        %504 = vmatpush1.bf16.msra.mxu0 0
        %505 = vmatprep.subr.bf16.mxu0 0
        %506 = vmatpush1.bf16.msra.mxu0 0
        %507 = vmatprep.subr.bf16.mxu0 0
        %508 = vmatpush1.bf16.msra.mxu0 0
        %509 = vmatprep.subr.bf16.mxu0 0
        %510 = vmatpush1.bf16.msra.mxu0 0
        %511 = vmatprep.subr.bf16.mxu0 0
        %512 = vmatpush1.bf16.msra.mxu0 0
        %513 = vmatprep.subr.bf16.mxu0 0
        %514 = vmatpush1.bf16.msra.mxu0 0
        %515 = vmatprep.subr.bf16.mxu0 0
        %516 = vmatpush1.bf16.msra.mxu0 0
        %517 = vmatprep.subr.bf16.mxu0 0
        %518 = vmatpush1.bf16.msra.mxu0 0
        %519 = vmatprep.subr.bf16.mxu0 0
        %520 = vmatpush1.bf16.msra.mxu0 0
        %521 = vmatprep.subr.bf16.mxu0 0
        %522 = vmatpush1.bf16.msra.mxu0 0
        %523 = vmatprep.subr.bf16.mxu0 0
        %524 = vmatpush1.bf16.msra.mxu0 0
        %525 = vmatprep.subr.bf16.mxu0 0
        %526 = vmatpush1.bf16.msra.mxu0 0
        %527 = vmatprep.subr.bf16.mxu0 0
        %528 = vmatpush1.bf16.msra.mxu0 0
        %529 = vmatprep.mubr.bf16.mxu0 0
        %530 = vmatmul.mubr.bf16.gmra.mrb[0].mxu0 %v492
        %v531 = vpop.f32.mrb[0].mxu0
        %v532 = vadd.f32 0.0, %v531
        %v533 = vpop.f32.mrb[0].mxu0
        %v534 = vpop.f32.mrb[0].mxu0
        %v535 = vpop.f32.mrb[0].mxu0
        %536 = vdwg.mxu0
        %v537 = vadd.f32 %v482, %v532
        %s538 = scalar_lea.vmem %s0, 16
        %v539 = vld [vmem:[%s538] sm:$0xf]
        %540 = vrot.lane.b32.xlu0 %v319, 117
        %v541 = vpop.permute.xlu0 %540
        %542 = vrot.lane.b32.xlu0 %v324, 117
        %v543 = vpop.permute.xlu0 %542
        %vm544 = vcmask 957440
        %v545 = vsel %vm544, %v541, %v543
        %v547 = vsel %vm334, %v539, 0
        %v550 = vsel %vm338, %v545, 0
        %552 = vmatprep.subr.bf16.mxu0 0
        %553 = vmatpush1.bf16.msra.mxu0 %v550
        %554 = vmatprep.subr.bf16.mxu0 0
        %555 = vmatpush1.bf16.msra.mxu0 0
        %556 = vmatprep.subr.bf16.mxu0 0
        %557 = vmatpush1.bf16.msra.mxu0 0
        %558 = vmatprep.subr.bf16.mxu0 0
        %559 = vmatpush1.bf16.msra.mxu0 0
        %560 = vmatprep.subr.bf16.mxu0 0
        %561 = vmatpush1.bf16.msra.mxu0 0
        %562 = vmatprep.subr.bf16.mxu0 0
        %563 = vmatpush1.bf16.msra.mxu0 0
        %564 = vmatprep.subr.bf16.mxu0 0
        %565 = vmatpush1.bf16.msra.mxu0 0
        %566 = vmatprep.subr.bf16.mxu0 0
        %567 = vmatpush1.bf16.msra.mxu0 0
        %568 = vmatprep.subr.bf16.mxu0 0
        %569 = vmatpush1.bf16.msra.mxu0 0
        %570 = vmatprep.subr.bf16.mxu0 0
        %571 = vmatpush1.bf16.msra.mxu0 0
        %572 = vmatprep.subr.bf16.mxu0 0
        %573 = vmatpush1.bf16.msra.mxu0 0
        %574 = vmatprep.subr.bf16.mxu0 0
        %575 = vmatpush1.bf16.msra.mxu0 0
        %576 = vmatprep.subr.bf16.mxu0 0
        %577 = vmatpush1.bf16.msra.mxu0 0
        %578 = vmatprep.subr.bf16.mxu0 0
        %579 = vmatpush1.bf16.msra.mxu0 0
        %580 = vmatprep.subr.bf16.mxu0 0
        %581 = vmatpush1.bf16.msra.mxu0 0
        %582 = vmatprep.subr.bf16.mxu0 0
        %583 = vmatpush1.bf16.msra.mxu0 0
        %584 = vmatprep.mubr.bf16.mxu0 0
        %585 = vmatmul.mubr.bf16.gmra.mrb[0].mxu0 %v547
        %v586 = vpop.f32.mrb[0].mxu0
        %v587 = vadd.f32 0.0, %v586
        %v588 = vpop.f32.mrb[0].mxu0
        %v589 = vpop.f32.mrb[0].mxu0
        %v590 = vpop.f32.mrb[0].mxu0
        %591 = vdwg.mxu0
        %v592 = vadd.f32 %v537, %v587
        %s593 = scalar_lea.vmem %s0, 20
        %v594 = vld [vmem:[%s593] sm:$0xf]
        %595 = vrot.lane.b32.xlu0 %v319, 116
        %v596 = vpop.permute.xlu0 %595
        %597 = vrot.lane.b32.xlu0 %v324, 116
        %v598 = vpop.permute.xlu0 %597
        %vm599 = vcmask 949248
        %v600 = vsel %vm599, %v596, %v598
        %v602 = vsel %vm334, %v594, 0
        %v605 = vsel %vm338, %v600, 0
        %607 = vmatprep.subr.bf16.mxu0 0
        %608 = vmatpush1.bf16.msra.mxu0 %v605
        %609 = vmatprep.subr.bf16.mxu0 0
        %610 = vmatpush1.bf16.msra.mxu0 0
        %611 = vmatprep.subr.bf16.mxu0 0
        %612 = vmatpush1.bf16.msra.mxu0 0
        %613 = vmatprep.subr.bf16.mxu0 0
        %614 = vmatpush1.bf16.msra.mxu0 0
        %615 = vmatprep.subr.bf16.mxu0 0
        %616 = vmatpush1.bf16.msra.mxu0 0
        %617 = vmatprep.subr.bf16.mxu0 0
        %618 = vmatpush1.bf16.msra.mxu0 0
        %619 = vmatprep.subr.bf16.mxu0 0
        %620 = vmatpush1.bf16.msra.mxu0 0
        %621 = vmatprep.subr.bf16.mxu0 0
        %622 = vmatpush1.bf16.msra.mxu0 0
        %623 = vmatprep.subr.bf16.mxu0 0
        %624 = vmatpush1.bf16.msra.mxu0 0
        %625 = vmatprep.subr.bf16.mxu0 0
        %626 = vmatpush1.bf16.msra.mxu0 0
        %627 = vmatprep.subr.bf16.mxu0 0
        %628 = vmatpush1.bf16.msra.mxu0 0
        %629 = vmatprep.subr.bf16.mxu0 0
        %630 = vmatpush1.bf16.msra.mxu0 0
        %631 = vmatprep.subr.bf16.mxu0 0
        %632 = vmatpush1.bf16.msra.mxu0 0
        %633 = vmatprep.subr.bf16.mxu0 0
        %634 = vmatpush1.bf16.msra.mxu0 0
        %635 = vmatprep.subr.bf16.mxu0 0
        %636 = vmatpush1.bf16.msra.mxu0 0
        %637 = vmatprep.subr.bf16.mxu0 0
        %638 = vmatpush1.bf16.msra.mxu0 0
        %639 = vmatprep.mubr.bf16.mxu0 0
        %640 = vmatmul.mubr.bf16.gmra.mrb[0].mxu0 %v602
        %v641 = vpop.f32.mrb[0].mxu0
        %v642 = vadd.f32 0.0, %v641
        %v643 = vpop.f32.mrb[0].mxu0
        %v644 = vpop.f32.mrb[0].mxu0
        %v645 = vpop.f32.mrb[0].mxu0
        %646 = vdwg.mxu0
        %v647 = vadd.f32 %v592, %v642
        %s648 = scalar_lea.vmem %s0, 24
        %v649 = vld [vmem:[%s648] sm:$0xf]
        %650 = vrot.lane.b32.xlu0 %v319, 108
        %v651 = vpop.permute.xlu0 %650
        %652 = vrot.lane.b32.xlu0 %v324, 108
        %v653 = vpop.permute.xlu0 %652
        %vm654 = vcmask 883712
        %v655 = vsel %vm654, %v651, %v653
        %v657 = vsel %vm334, %v649, 0
        %v660 = vsel %vm338, %v655, 0
        %662 = vmatprep.subr.bf16.mxu0 0
        %663 = vmatpush1.bf16.msra.mxu0 %v660
        %664 = vmatprep.subr.bf16.mxu0 0
        %665 = vmatpush1.bf16.msra.mxu0 0
        %666 = vmatprep.subr.bf16.mxu0 0
        %667 = vmatpush1.bf16.msra.mxu0 0
        %668 = vmatprep.subr.bf16.mxu0 0
        %669 = vmatpush1.bf16.msra.mxu0 0
        %670 = vmatprep.subr.bf16.mxu0 0
        %671 = vmatpush1.bf16.msra.mxu0 0
        %672 = vmatprep.subr.bf16.mxu0 0
        %673 = vmatpush1.bf16.msra.mxu0 0
        %674 = vmatprep.subr.bf16.mxu0 0
        %675 = vmatpush1.bf16.msra.mxu0 0
        %676 = vmatprep.subr.bf16.mxu0 0
        %677 = vmatpush1.bf16.msra.mxu0 0
        %678 = vmatprep.subr.bf16.mxu0 0
        %679 = vmatpush1.bf16.msra.mxu0 0
        %680 = vmatprep.subr.bf16.mxu0 0
        %681 = vmatpush1.bf16.msra.mxu0 0
        %682 = vmatprep.subr.bf16.mxu0 0
        %683 = vmatpush1.bf16.msra.mxu0 0
        %684 = vmatprep.subr.bf16.mxu0 0
        %685 = vmatpush1.bf16.msra.mxu0 0
        %686 = vmatprep.subr.bf16.mxu0 0
        %687 = vmatpush1.bf16.msra.mxu0 0
        %688 = vmatprep.subr.bf16.mxu0 0
        %689 = vmatpush1.bf16.msra.mxu0 0
        %690 = vmatprep.subr.bf16.mxu0 0
        %691 = vmatpush1.bf16.msra.mxu0 0
        %692 = vmatprep.subr.bf16.mxu0 0
        %693 = vmatpush1.bf16.msra.mxu0 0
        %694 = vmatprep.mubr.bf16.mxu0 0
        %695 = vmatmul.mubr.bf16.gmra.mrb[0].mxu0 %v657
        %v696 = vpop.f32.mrb[0].mxu0
        %v697 = vadd.f32 0.0, %v696
        %v698 = vpop.f32.mrb[0].mxu0
        %v699 = vpop.f32.mrb[0].mxu0
        %v700 = vpop.f32.mrb[0].mxu0
        %701 = vdwg.mxu0
        %v702 = vadd.f32 %v647, %v697
        %s703 = scalar_lea.vmem %s0, 28
        %v704 = vld [vmem:[%s703] sm:$0xf]
        %705 = vrot.lane.b32.xlu0 %v319, 107
        %v706 = vpop.permute.xlu0 %705
        %707 = vrot.lane.b32.xlu0 %v324, 107
        %v708 = vpop.permute.xlu0 %707
        %vm709 = vcmask 875520
        %v710 = vsel %vm709, %v706, %v708
        %v712 = vsel %vm334, %v704, 0
        %v715 = vsel %vm338, %v710, 0
        %717 = vmatprep.subr.bf16.mxu0 0
        %718 = vmatpush1.bf16.msra.mxu0 %v715
        %719 = vmatprep.subr.bf16.mxu0 0
        %720 = vmatpush1.bf16.msra.mxu0 0
        %721 = vmatprep.subr.bf16.mxu0 0
        %722 = vmatpush1.bf16.msra.mxu0 0
        %723 = vmatprep.subr.bf16.mxu0 0
        %724 = vmatpush1.bf16.msra.mxu0 0
        %725 = vmatprep.subr.bf16.mxu0 0
        %726 = vmatpush1.bf16.msra.mxu0 0
        %727 = vmatprep.subr.bf16.mxu0 0
        %728 = vmatpush1.bf16.msra.mxu0 0
        %729 = vmatprep.subr.bf16.mxu0 0
        %730 = vmatpush1.bf16.msra.mxu0 0
        %731 = vmatprep.subr.bf16.mxu0 0
        %732 = vmatpush1.bf16.msra.mxu0 0
        %733 = vmatprep.subr.bf16.mxu0 0
        %734 = vmatpush1.bf16.msra.mxu0 0
        %735 = vmatprep.subr.bf16.mxu0 0
        %736 = vmatpush1.bf16.msra.mxu0 0
        %737 = vmatprep.subr.bf16.mxu0 0
        %738 = vmatpush1.bf16.msra.mxu0 0
        %739 = vmatprep.subr.bf16.mxu0 0
        %740 = vmatpush1.bf16.msra.mxu0 0
        %741 = vmatprep.subr.bf16.mxu0 0
        %742 = vmatpush1.bf16.msra.mxu0 0
        %743 = vmatprep.subr.bf16.mxu0 0
        %744 = vmatpush1.bf16.msra.mxu0 0
        %745 = vmatprep.subr.bf16.mxu0 0
        %746 = vmatpush1.bf16.msra.mxu0 0
        %747 = vmatprep.subr.bf16.mxu0 0
        %748 = vmatpush1.bf16.msra.mxu0 0
        %749 = vmatprep.mubr.bf16.mxu0 0
        %750 = vmatmul.mubr.bf16.gmra.mrb[0].mxu0 %v712
        %v751 = vpop.f32.mrb[0].mxu0
        %v752 = vadd.f32 0.0, %v751
        %v753 = vpop.f32.mrb[0].mxu0
        %v754 = vpop.f32.mrb[0].mxu0
        %v755 = vpop.f32.mrb[0].mxu0
        %756 = vdwg.mxu0
        %v757 = vadd.f32 %v702, %v752
        %s758 = scalar_lea.vmem %s0, 32
        %v759 = vld [vmem:[%s758] sm:$0xf]
        %760 = vrot.lane.b32.xlu0 %v319, 106
        %v761 = vpop.permute.xlu0 %760
        %762 = vrot.lane.b32.xlu0 %v324, 106
        %v763 = vpop.permute.xlu0 %762
        %vm764 = vcmask 867328
        %v765 = vsel %vm764, %v761, %v763
        %v767 = vsel %vm334, %v759, 0
        %v770 = vsel %vm338, %v765, 0
        %772 = vmatprep.subr.bf16.mxu0 0
        %773 = vmatpush1.bf16.msra.mxu0 %v770
        %774 = vmatprep.subr.bf16.mxu0 0
        %775 = vmatpush1.bf16.msra.mxu0 0
        %776 = vmatprep.subr.bf16.mxu0 0
        %777 = vmatpush1.bf16.msra.mxu0 0
        %778 = vmatprep.subr.bf16.mxu0 0
        %779 = vmatpush1.bf16.msra.mxu0 0
        %780 = vmatprep.subr.bf16.mxu0 0
        %781 = vmatpush1.bf16.msra.mxu0 0
        %782 = vmatprep.subr.bf16.mxu0 0
        %783 = vmatpush1.bf16.msra.mxu0 0
        %784 = vmatprep.subr.bf16.mxu0 0
        %785 = vmatpush1.bf16.msra.mxu0 0
        %786 = vmatprep.subr.bf16.mxu0 0
        %787 = vmatpush1.bf16.msra.mxu0 0
        %788 = vmatprep.subr.bf16.mxu0 0
        %789 = vmatpush1.bf16.msra.mxu0 0
        %790 = vmatprep.subr.bf16.mxu0 0
        %791 = vmatpush1.bf16.msra.mxu0 0
        %792 = vmatprep.subr.bf16.mxu0 0
        %793 = vmatpush1.bf16.msra.mxu0 0
        %794 = vmatprep.subr.bf16.mxu0 0
        %795 = vmatpush1.bf16.msra.mxu0 0
        %796 = vmatprep.subr.bf16.mxu0 0
        %797 = vmatpush1.bf16.msra.mxu0 0
        %798 = vmatprep.subr.bf16.mxu0 0
        %799 = vmatpush1.bf16.msra.mxu0 0
        %800 = vmatprep.subr.bf16.mxu0 0
        %801 = vmatpush1.bf16.msra.mxu0 0
        %802 = vmatprep.subr.bf16.mxu0 0
        %803 = vmatpush1.bf16.msra.mxu0 0
        %804 = vmatprep.mubr.bf16.mxu0 0
        %805 = vmatmul.mubr.bf16.gmra.mrb[0].mxu0 %v767
        %v806 = vpop.f32.mrb[0].mxu0
        %v807 = vadd.f32 0.0, %v806
        %v808 = vpop.f32.mrb[0].mxu0
        %v809 = vpop.f32.mrb[0].mxu0
        %v810 = vpop.f32.mrb[0].mxu0
        %811 = vdwg.mxu0
        %v812 = vadd.f32 %v757, %v807
        %v813 = vld [vmem:[%s1] sm:$0xff]
        %815 = vset.pattern.permute.xlu0 0
        %816 = vperm.xlu0 %815, %v813
        %v817 = vpop.permute.xlu0 %816
        %v819 = vadd.f32 %v812, %v817
        %vm820 = vcmp.ge.f32.partialorder %v819, 0.0
        %v821 = vmul.f32 %v819, 0.2
        %v822 = vsel %vm820, %v819, %v821
        %v823 = vpack.c.bf16 %v822, %v822
        %824 = vst [vmem:[%s309] sm:$0xf] %v823
        %p825 = scmp.lt.s32.totalorder %s15, 1
        %s826 = scalar_select %p825, %s15, 1
        %s827 = smul.addr %s826, 4
        %s828 = scalar_lea.vmem %s4, %s827
        // Predicated region
        $region119: #{unetwork_forward.18} parent=109 // pred_check
          %p829 = pneg %p129
        $region120: #{unetwork_forward.18} parent=109 // pred_check_branch
          %831 = sbr.rel (%p829) target = $region122
        $region121: #{unetwork_forward.18} parent=109 // pred_region
          _
        $region122: #{unetwork_forward.18} parent=109 // pred_fallthru
          _
      $region110: #{unetwork_forward.18} parent=5 // pred_fallthru
        _
      %p832 = scmp.le.s32.totalorder 2, %s10
      // Predicated region
      $region123: #{unetwork_forward.18} parent=5 // pred_check
        %p833 = pneg %p832
      $region124: #{unetwork_forward.18} parent=5 // pred_check_branch
        %835 = sbr.rel (%p833) target = $region126
      $region125: #{unetwork_forward.18} parent=5 // pred_region
        %s836 = ssub.s32 %s10, 2
        // Predicated region
        $region127: #{unetwork_forward.18} parent=125 // pred_check
          %p837 = pneg %p135
        $region128: #{unetwork_forward.18} parent=125 // pred_check_branch
          %839 = sbr.rel (%p837) target = $region130
        $region129: #{unetwork_forward.18} parent=125 // pred_region
          %p840 = scmp.lt.s32.totalorder %s16, 1
          %s841 = scalar_select %p840, %s16, 1
          %s842 = smul.addr %s841, 4
          %s843 = scalar_lea.vmem %s4, %s842
        $region130: #{unetwork_forward.18} parent=125 // pred_fallthru
          _
      $region126: #{unetwork_forward.18} parent=5 // pred_fallthru
        _
    $region6: #{unetwork_forward.18} parent=1 // loop_footer
      %s14 = sadd.s32 1, %s10
    $region7: #{unetwork_forward.18} parent=1 // loop_footer_branch
      %9 = sbr.rel target = $region3
    $region8: #{unetwork_forward.18} parent=1 // loop_exit
      _

// kernel: unetwork_forward.19
$region0: #{unetwork_forward.19}
  #allocation0 [shape = 'u32[]', space=smem, size = 0x4, offset = 0x4, fixed_abs, tag = 'smem constant byte address 0x4 - core index']
  #allocation1 [shape = 'u32[144,128]{1,0:T(1,128)}', space=vmem, size = 0x12000, scoped, tag = 'internal scratch']
  %s0 = inlined_call_operand.vmem [shape: bf16[9,4,8], index: 0, kind: input, shape index: {}]
  %s1 = inlined_call_operand.vmem [shape: f32[4,1], index: 1, kind: input, shape index: {}]
  %s2 = inlined_call_operand.vmem [shape: bf16[8,384], index: 2, kind: input, shape index: {}, may-alias: {2,3}]
  %s3 = inlined_call_operand.vmem [shape: bf16[8,384], index: 3, kind: input, shape index: {}, may-alias: {2,3}]
  %s4 = inlined_call_operand.vmem [shape: bf16[4,256], index: 4, kind: output, shape index: {}]
  %s5 = sld [smem:[#allocation0]]
  $region49: #{unetwork_forward.19} parent=0
    _
  %s7 = ssub.s32 1, %s5
  %s8 = scalar_select 0, %s7, %s5
  loop: start=0, step=1, limit=4
  $region2: #{unetwork_forward.19} parent=0 // loop_pre_header
    _
  $region3: #{unetwork_forward.19} parent=0 // loop_header
    %s10 = sphi 0, %s14
    %p11 = scmp.ge.s32.totalorder %s10, 4
    %s18 = sphi 0, %s18
    %s20 = sphi 0, %s18
    %s21 = sphi 0, %s20
    %s35 = sphi 0, %s21
    %s39 = sphi 0, %s39
    %s41 = sphi 0, %s39
    %s42 = sphi 0, %s41
    %s56 = sphi 0, %s42
    %s62 = sphi 0, %s64
    %s65 = sphi 0, %s62
    %s66 = sphi 0, %s65
    %s82 = sphi 0, %s66
    %s90 = sphi 0, %s92
    %s93 = sphi 0, %s90
    %s94 = sphi 0, %s93
    %s110 = sphi 0, %s94
    %s116 = sphi 0, %s118
    %s119 = sphi 0, %s116
    %s120 = sphi 0, %s119
    %s136 = sphi 0, %s120
  $region4: #{unetwork_forward.19} parent=0 // loop_header_branch
    %13 = sbr.rel (%p11) target = $region8
  $region5: #{unetwork_forward.19} parent=0 // loop_body
    %s15 = ssub.s32 %s10, 1
    %s16 = ssub.s32 %s10, 2
    %s17 = sadd.s32 %s10, 1
    %s19 = sadd.s32 %s18, 1
    %p22 = scmp.eq.s32.totalorder %s10, 1
    %p23 = scmp.ne.s32.totalorder %s18, %s20
    %p24 = scmp.eq.s32.totalorder %s10, 0
    %p25 = por %p23, %p24
    %p26 = scmp.ne.s32.totalorder %s18, %s20
    %p27 = scmp.eq.s32.totalorder %s15, 1
    %p28 = por %p26, %p27
    %p29 = scmp.ne.s32.totalorder %s20, %s21
    %p30 = scmp.eq.s32.totalorder %s15, 0
    %p31 = por %p29, %p30
    %p32 = scmp.ne.s32.totalorder %s20, %s21
    %p33 = scmp.eq.s32.totalorder %s16, 1
    %p34 = por %p32, %p33
    %p36 = scmp.ne.s32.totalorder %s21, %s35
    %p37 = scmp.eq.s32.totalorder %s16, 0
    %p38 = por %p36, %p37
    %s40 = sadd.s32 %s39, 1
    %p43 = scmp.eq.s32.totalorder %s10, 1
    %p44 = scmp.ne.s32.totalorder %s39, %s41
    %p45 = scmp.eq.s32.totalorder %s10, 0
    %p46 = por %p44, %p45
    %p47 = scmp.ne.s32.totalorder %s39, %s41
    %p48 = scmp.eq.s32.totalorder %s15, 1
    %p49 = por %p47, %p48
    %p50 = scmp.ne.s32.totalorder %s41, %s42
    %p51 = scmp.eq.s32.totalorder %s15, 0
    %p52 = por %p50, %p51
    %p53 = scmp.ne.s32.totalorder %s41, %s42
    %p54 = scmp.eq.s32.totalorder %s16, 1
    %p55 = por %p53, %p54
    %p57 = scmp.ne.s32.totalorder %s42, %s56
    %p58 = scmp.eq.s32.totalorder %s16, 0
    %p59 = por %p57, %p58
    %s60 = ssub.s32 %s10, %s17
    %p61 = scmp.eq.s32.totalorder %s60, 0
    %s63 = sadd.s32 %s62, 1
    %s64 = scalar_select %p61, %s62, %s63
    %p67 = pneg %p61
    %p68 = scmp.eq.s32.totalorder %s10, 1
    %p69 = por %p67, %p68
    %p70 = scmp.ne.s32.totalorder %s62, %s65
    %p71 = scmp.eq.s32.totalorder %s10, 0
    %p72 = por %p70, %p71
    %p73 = scmp.ne.s32.totalorder %s62, %s65
    %p74 = scmp.eq.s32.totalorder %s15, 1
    %p75 = por %p73, %p74
    %p76 = scmp.ne.s32.totalorder %s65, %s66
    %p77 = scmp.eq.s32.totalorder %s15, 0
    %p78 = por %p76, %p77
    %p79 = scmp.ne.s32.totalorder %s65, %s66
    %p80 = scmp.eq.s32.totalorder %s16, 1
    %p81 = por %p79, %p80
    %p83 = scmp.ne.s32.totalorder %s66, %s82
    %p84 = scmp.eq.s32.totalorder %s16, 0
    %p85 = por %p83, %p84
    %s86 = sadd.s32 %s10, 1
    %s87 = sadd.s32 %s17, 1
    %s88 = ssub.s32 %s86, %s87
    %p89 = scmp.eq.s32.totalorder %s88, 0
    %s91 = sadd.s32 %s90, 1
    %s92 = scalar_select %p89, %s90, %s91
    %p95 = pneg %p89
    %p96 = scmp.eq.s32.totalorder %s10, 1
    %p97 = por %p95, %p96
    %p98 = scmp.ne.s32.totalorder %s90, %s93
    %p99 = scmp.eq.s32.totalorder %s10, 0
    %p100 = por %p98, %p99
    %p101 = scmp.ne.s32.totalorder %s90, %s93
    %p102 = scmp.eq.s32.totalorder %s15, 1
    %p103 = por %p101, %p102
    %p104 = scmp.ne.s32.totalorder %s93, %s94
    %p105 = scmp.eq.s32.totalorder %s15, 0
    %p106 = por %p104, %p105
    %p107 = scmp.ne.s32.totalorder %s93, %s94
    %p108 = scmp.eq.s32.totalorder %s16, 1
    %p109 = por %p107, %p108
    %p111 = scmp.ne.s32.totalorder %s94, %s110
    %p112 = scmp.eq.s32.totalorder %s16, 0
    %p113 = por %p111, %p112
    %s114 = ssub.s32 %s10, %s17
    %p115 = scmp.eq.s32.totalorder %s114, 0
    %s117 = sadd.s32 %s116, 1
    %s118 = scalar_select %p115, %s116, %s117
    %p121 = pneg %p115
    %p122 = scmp.eq.s32.totalorder %s10, 1
    %p123 = por %p121, %p122
    %p124 = scmp.ne.s32.totalorder %s116, %s119
    %p125 = scmp.eq.s32.totalorder %s10, 0
    %p126 = por %p124, %p125
    %p127 = scmp.ne.s32.totalorder %s116, %s119
    %p128 = scmp.eq.s32.totalorder %s15, 1
    %p129 = por %p127, %p128
    %p130 = scmp.ne.s32.totalorder %s119, %s120
    %p131 = scmp.eq.s32.totalorder %s15, 0
    %p132 = por %p130, %p131
    %p133 = scmp.ne.s32.totalorder %s119, %s120
    %p134 = scmp.eq.s32.totalorder %s16, 1
    %p135 = por %p133, %p134
    %p137 = scmp.ne.s32.totalorder %s120, %s136
    %p138 = scmp.eq.s32.totalorder %s16, 0
    %p139 = por %p137, %p138
    %p140 = scmp.le.s32.totalorder 1, %s10
    %p141 = scmp.lt.s32.totalorder %s10, 3
    %p142 = pnand %p140, %p141
    %p143 = pneg %p142
    // Predicated region
    $region9: #{unetwork_forward.19} parent=5 // pred_check
      _
    $region10: #{unetwork_forward.19} parent=5 // pred_check_branch
      %145 = sbr.rel (%p142) target = $region12
    $region11: #{unetwork_forward.19} parent=5 // pred_region
      %s146 = ssub.s32 %s10, 1
      // Predicated region
      $region13: #{unetwork_forward.19} parent=11 // pred_check
        %p147 = pneg %p31
      $region14: #{unetwork_forward.19} parent=11 // pred_check_branch
        %149 = sbr.rel (%p147) target = $region16
      $region15: #{unetwork_forward.19} parent=11 // pred_region
        _
      $region16: #{unetwork_forward.19} parent=11 // pred_fallthru
        _
      // Predicated region
      $region17: #{unetwork_forward.19} parent=11 // pred_check
        %p150 = pneg %p52
      $region18: #{unetwork_forward.19} parent=11 // pred_check_branch
        %152 = sbr.rel (%p150) target = $region20
      $region19: #{unetwork_forward.19} parent=11 // pred_region
        _
      $region20: #{unetwork_forward.19} parent=11 // pred_fallthru
        _
    $region12: #{unetwork_forward.19} parent=5 // pred_fallthru
      _
    %p153 = scmp.lt.s32.totalorder %s10, 2
    // Predicated region
    $region21: #{unetwork_forward.19} parent=5 // pred_check
      %p154 = pneg %p153
    $region22: #{unetwork_forward.19} parent=5 // pred_check_branch
      %156 = sbr.rel (%p154) target = $region24
    $region23: #{unetwork_forward.19} parent=5 // pred_region
      // Predicated region
      $region25: #{unetwork_forward.19} parent=23 // pred_check
        %p157 = pneg %p72
      $region26: #{unetwork_forward.19} parent=23 // pred_check_branch
        %159 = sbr.rel (%p157) target = $region28
      $region27: #{unetwork_forward.19} parent=23 // pred_region
        %p160 = scmp.lt.s32.totalorder %s10, 2
        %s161 = scalar_select %p160, %s10, 2
        %s162 = smul.addr %s161, 4
        %s163 = scalar_lea.vmem %s2, %s162
      $region28: #{unetwork_forward.19} parent=23 // pred_fallthru
        _
      // Predicated region
      $region29: #{unetwork_forward.19} parent=23 // pred_check
        %p164 = pneg %p100
      $region30: #{unetwork_forward.19} parent=23 // pred_check_branch
        %166 = sbr.rel (%p164) target = $region32
      $region31: #{unetwork_forward.19} parent=23 // pred_region
        %s167 = sadd.s32 %s10, 1
        %p168 = scmp.lt.s32.totalorder %s167, 2
        %s169 = scalar_select %p168, %s167, 2
        %s170 = smul.addr %s169, 4
        %s171 = scalar_lea.vmem %s3, %s170
        %s172 = sadd.s32 %s10, 1
      $region32: #{unetwork_forward.19} parent=23 // pred_fallthru
        _
    $region24: #{unetwork_forward.19} parent=5 // pred_fallthru
      _
    %p173 = scmp.le.s32.totalorder 1, %s10
    %p174 = scmp.lt.s32.totalorder %s10, 3
    %p175 = pnand %p173, %p174
    %p176 = pneg %p175
    // Predicated region
    $region33: #{unetwork_forward.19} parent=5 // pred_check
      _
    $region34: #{unetwork_forward.19} parent=5 // pred_check_branch
      %178 = sbr.rel (%p175) target = $region36
    $region35: #{unetwork_forward.19} parent=5 // pred_region
      %s179 = ssub.s32 %s10, 1
      %p180 = pneg %p31
      %p181 = pneg %p28
      %p182 = pneg %p52
      %p183 = pneg %p49
      %p184 = scmp.lt.s32.totalorder %s15, 2
      %s185 = scalar_select %p184, %s15, 2
      %s186 = smul.addr %s185, 4
      %s187 = scalar_lea.vmem %s2, %s186
      %p188 = pneg %p78
      %p189 = pneg %p75
      %s190 = sadd.s32 %s15, 1
      %p191 = scmp.lt.s32.totalorder %s190, 2
      %s192 = scalar_select %p191, %s190, 2
      %s193 = smul.addr %s192, 4
      %s194 = scalar_lea.vmem %s3, %s193
      %p195 = pneg %p106
      %p196 = pneg %p103
      %p197 = pneg %p132
      %p198 = pneg %p129
      %p199 = scmp.lt.s32.totalorder %s15, 1
      %s200 = scalar_select %p199, %s15, 1
      %s201 = smul.addr %s200, 2
      %s202 = scalar_lea.vmem %s4, %s201
      %p203 = scmp.lt.s32.totalorder %s15, 2
      %s204 = scalar_select %p203, %s15, 2
      %s205 = smul.addr %s204, 4
      %s206 = scalar_lea.vmem %s2, %s205
      %s207 = sadd.s32 %s15, 1
      %p208 = scmp.lt.s32.totalorder %s207, 2
      %s209 = scalar_select %p208, %s207, 2
      %s210 = smul.addr %s209, 4
      %s211 = scalar_lea.vmem %s3, %s210
      %s212 = sadd.s32 %s15, 1
      %p213 = scmp.lt.s32.totalorder %s15, 1
      %s214 = scalar_select %p213, %s15, 1
      %s215 = smul.addr %s214, 2
      %s216 = scalar_lea.vmem %s4, %s215
      %v218 = vld [vmem:[%s206] sm:$0xf]
      %v219 = vld [vmem:[%s211] sm:$0xf]
      %v220 = vld [vmem:[%s0] sm:$0x3]
      %s221 = scalar_lea.vmem %s0, 2
      %v222 = vld [vmem:[%s221] sm:$0x3]
      %225 = vrot.lane.b32.xlu0 %v218, 127
      %v226 = vpop.permute.xlu0 %225
      %227 = vrot.lane.b32.xlu0 %v219, 127
      %v228 = vpop.permute.xlu0 %227
      %vm229 = vcmask 1039360
      %v230 = vsel %vm229, %v226, %v228
      %vm231 = vcmask 64512
      %v233 = vsel %vm231, %v222, 0
      %vm235 = vcmask 1043456
      %v237 = vsel %vm235, %v230, 0
      %239 = vmatprep.subr.bf16.mxu0 0
      %240 = vmatpush1.bf16.msra.mxu0 %v237
      %241 = vmatprep.subr.bf16.mxu0 0
      %242 = vmatpush1.bf16.msra.mxu0 0
      %243 = vmatprep.subr.bf16.mxu0 0
      %244 = vmatpush1.bf16.msra.mxu0 0
      %245 = vmatprep.subr.bf16.mxu0 0
      %246 = vmatpush1.bf16.msra.mxu0 0
      %247 = vmatprep.subr.bf16.mxu0 0
      %248 = vmatpush1.bf16.msra.mxu0 0
      %249 = vmatprep.subr.bf16.mxu0 0
      %250 = vmatpush1.bf16.msra.mxu0 0
      %251 = vmatprep.subr.bf16.mxu0 0
      %252 = vmatpush1.bf16.msra.mxu0 0
      %253 = vmatprep.subr.bf16.mxu0 0
      %254 = vmatpush1.bf16.msra.mxu0 0
      %255 = vmatprep.subr.bf16.mxu0 0
      %256 = vmatpush1.bf16.msra.mxu0 0
      %257 = vmatprep.subr.bf16.mxu0 0
      %258 = vmatpush1.bf16.msra.mxu0 0
      %259 = vmatprep.subr.bf16.mxu0 0
      %260 = vmatpush1.bf16.msra.mxu0 0
      %261 = vmatprep.subr.bf16.mxu0 0
      %262 = vmatpush1.bf16.msra.mxu0 0
      %263 = vmatprep.subr.bf16.mxu0 0
      %264 = vmatpush1.bf16.msra.mxu0 0
      %265 = vmatprep.subr.bf16.mxu0 0
      %266 = vmatpush1.bf16.msra.mxu0 0
      %267 = vmatprep.subr.bf16.mxu0 0
      %268 = vmatpush1.bf16.msra.mxu0 0
      %269 = vmatprep.subr.bf16.mxu0 0
      %270 = vmatpush1.bf16.msra.mxu0 0
      %271 = vmatprep.mubr.bf16.mxu0 0
      %272 = vmatmul.mubr.bf16.gmra.mrb[0].mxu0 %v233
      %v273 = vpop.f32.mrb[0].mxu0
      %v274 = vadd.f32 0.0, %v273
      %v275 = vpop.f32.mrb[0].mxu0
      %v276 = vpop.f32.mrb[0].mxu0
      %v277 = vpop.f32.mrb[0].mxu0
      %278 = vdwg.mxu0
      %v280 = vsel %vm231, %v220, 0
      %v283 = vsel %vm235, %v218, 0
      %285 = vmatprep.subr.bf16.mxu0 0
      %286 = vmatpush1.bf16.msra.mxu0 %v283
      %287 = vmatprep.subr.bf16.mxu0 0
      %288 = vmatpush1.bf16.msra.mxu0 0
      %289 = vmatprep.subr.bf16.mxu0 0
      %290 = vmatpush1.bf16.msra.mxu0 0
      %291 = vmatprep.subr.bf16.mxu0 0
      %292 = vmatpush1.bf16.msra.mxu0 0
      %293 = vmatprep.subr.bf16.mxu0 0
      %294 = vmatpush1.bf16.msra.mxu0 0
      %295 = vmatprep.subr.bf16.mxu0 0
      %296 = vmatpush1.bf16.msra.mxu0 0
      %297 = vmatprep.subr.bf16.mxu0 0
      %298 = vmatpush1.bf16.msra.mxu0 0
      %299 = vmatprep.subr.bf16.mxu0 0
      %300 = vmatpush1.bf16.msra.mxu0 0
      %301 = vmatprep.subr.bf16.mxu0 0
      %302 = vmatpush1.bf16.msra.mxu0 0
      %303 = vmatprep.subr.bf16.mxu0 0
      %304 = vmatpush1.bf16.msra.mxu0 0
      %305 = vmatprep.subr.bf16.mxu0 0
      %306 = vmatpush1.bf16.msra.mxu0 0
      %307 = vmatprep.subr.bf16.mxu0 0
      %308 = vmatpush1.bf16.msra.mxu0 0
      %309 = vmatprep.subr.bf16.mxu0 0
      %310 = vmatpush1.bf16.msra.mxu0 0
      %311 = vmatprep.subr.bf16.mxu0 0
      %312 = vmatpush1.bf16.msra.mxu0 0
      %313 = vmatprep.subr.bf16.mxu0 0
      %314 = vmatpush1.bf16.msra.mxu0 0
      %315 = vmatprep.subr.bf16.mxu0 0
      %316 = vmatpush1.bf16.msra.mxu0 0
      %317 = vmatprep.mubr.bf16.mxu0 0
      %318 = vmatmul.mubr.bf16.gmra.mrb[0].mxu0 %v280
      %v319 = vpop.f32.mrb[0].mxu0
      %v320 = vadd.f32 %v274, %v319
      %v321 = vpop.f32.mrb[0].mxu0
      %v322 = vpop.f32.mrb[0].mxu0
      %v323 = vpop.f32.mrb[0].mxu0
      %324 = vdwg.mxu0
      %s325 = scalar_lea.vmem %s0, 4
      %v326 = vld [vmem:[%s325] sm:$0x3]
      %327 = vrot.lane.b32.xlu0 %v218, 126
      %v328 = vpop.permute.xlu0 %327
      %329 = vrot.lane.b32.xlu0 %v219, 126
      %v330 = vpop.permute.xlu0 %329
      %vm331 = vcmask 1031168
      %v332 = vsel %vm331, %v328, %v330
      %v334 = vsel %vm231, %v326, 0
      %v337 = vsel %vm235, %v332, 0
      %339 = vmatprep.subr.bf16.mxu0 0
      %340 = vmatpush1.bf16.msra.mxu0 %v337
      %341 = vmatprep.subr.bf16.mxu0 0
      %342 = vmatpush1.bf16.msra.mxu0 0
      %343 = vmatprep.subr.bf16.mxu0 0
      %344 = vmatpush1.bf16.msra.mxu0 0
      %345 = vmatprep.subr.bf16.mxu0 0
      %346 = vmatpush1.bf16.msra.mxu0 0
      %347 = vmatprep.subr.bf16.mxu0 0
      %348 = vmatpush1.bf16.msra.mxu0 0
      %349 = vmatprep.subr.bf16.mxu0 0
      %350 = vmatpush1.bf16.msra.mxu0 0
      %351 = vmatprep.subr.bf16.mxu0 0
      %352 = vmatpush1.bf16.msra.mxu0 0
      %353 = vmatprep.subr.bf16.mxu0 0
      %354 = vmatpush1.bf16.msra.mxu0 0
      %355 = vmatprep.subr.bf16.mxu0 0
      %356 = vmatpush1.bf16.msra.mxu0 0
      %357 = vmatprep.subr.bf16.mxu0 0
      %358 = vmatpush1.bf16.msra.mxu0 0
      %359 = vmatprep.subr.bf16.mxu0 0
      %360 = vmatpush1.bf16.msra.mxu0 0
      %361 = vmatprep.subr.bf16.mxu0 0
      %362 = vmatpush1.bf16.msra.mxu0 0
      %363 = vmatprep.subr.bf16.mxu0 0
      %364 = vmatpush1.bf16.msra.mxu0 0
      %365 = vmatprep.subr.bf16.mxu0 0
      %366 = vmatpush1.bf16.msra.mxu0 0
      %367 = vmatprep.subr.bf16.mxu0 0
      %368 = vmatpush1.bf16.msra.mxu0 0
      %369 = vmatprep.subr.bf16.mxu0 0
      %370 = vmatpush1.bf16.msra.mxu0 0
      %371 = vmatprep.mubr.bf16.mxu0 0
      %372 = vmatmul.mubr.bf16.gmra.mrb[0].mxu0 %v334
      %v373 = vpop.f32.mrb[0].mxu0
      %v374 = vadd.f32 0.0, %v373
      %v375 = vpop.f32.mrb[0].mxu0
      %v376 = vpop.f32.mrb[0].mxu0
      %v377 = vpop.f32.mrb[0].mxu0
      %378 = vdwg.mxu0
      %v379 = vadd.f32 %v320, %v374
      %s380 = scalar_lea.vmem %s0, 6
      %v381 = vld [vmem:[%s380] sm:$0x3]
      %382 = vrot.lane.b32.xlu0 %v218, 118
      %v383 = vpop.permute.xlu0 %382
      %384 = vrot.lane.b32.xlu0 %v219, 118
      %v385 = vpop.permute.xlu0 %384
      %vm386 = vcmask 965632
      %v387 = vsel %vm386, %v383, %v385
      %v389 = vsel %vm231, %v381, 0
      %v392 = vsel %vm235, %v387, 0
      %394 = vmatprep.subr.bf16.mxu0 0
      %395 = vmatpush1.bf16.msra.mxu0 %v392
      %396 = vmatprep.subr.bf16.mxu0 0
      %397 = vmatpush1.bf16.msra.mxu0 0
      %398 = vmatprep.subr.bf16.mxu0 0
      %399 = vmatpush1.bf16.msra.mxu0 0
      %400 = vmatprep.subr.bf16.mxu0 0
      %401 = vmatpush1.bf16.msra.mxu0 0
      %402 = vmatprep.subr.bf16.mxu0 0
      %403 = vmatpush1.bf16.msra.mxu0 0
      %404 = vmatprep.subr.bf16.mxu0 0
      %405 = vmatpush1.bf16.msra.mxu0 0
      %406 = vmatprep.subr.bf16.mxu0 0
      %407 = vmatpush1.bf16.msra.mxu0 0
      %408 = vmatprep.subr.bf16.mxu0 0
      %409 = vmatpush1.bf16.msra.mxu0 0
      %410 = vmatprep.subr.bf16.mxu0 0
      %411 = vmatpush1.bf16.msra.mxu0 0
      %412 = vmatprep.subr.bf16.mxu0 0
      %413 = vmatpush1.bf16.msra.mxu0 0
      %414 = vmatprep.subr.bf16.mxu0 0
      %415 = vmatpush1.bf16.msra.mxu0 0
      %416 = vmatprep.subr.bf16.mxu0 0
      %417 = vmatpush1.bf16.msra.mxu0 0
      %418 = vmatprep.subr.bf16.mxu0 0
      %419 = vmatpush1.bf16.msra.mxu0 0
      %420 = vmatprep.subr.bf16.mxu0 0
      %421 = vmatpush1.bf16.msra.mxu0 0
      %422 = vmatprep.subr.bf16.mxu0 0
      %423 = vmatpush1.bf16.msra.mxu0 0
      %424 = vmatprep.subr.bf16.mxu0 0
      %425 = vmatpush1.bf16.msra.mxu0 0
      %426 = vmatprep.mubr.bf16.mxu0 0
      %427 = vmatmul.mubr.bf16.gmra.mrb[0].mxu0 %v389
      %v428 = vpop.f32.mrb[0].mxu0
      %v429 = vadd.f32 0.0, %v428
      %v430 = vpop.f32.mrb[0].mxu0
      %v431 = vpop.f32.mrb[0].mxu0
      %v432 = vpop.f32.mrb[0].mxu0
      %433 = vdwg.mxu0
      %v434 = vadd.f32 %v379, %v429
      %s435 = scalar_lea.vmem %s0, 8
      %v436 = vld [vmem:[%s435] sm:$0x3]
      %437 = vrot.lane.b32.xlu0 %v218, 117
      %v438 = vpop.permute.xlu0 %437
      %439 = vrot.lane.b32.xlu0 %v219, 117
      %v440 = vpop.permute.xlu0 %439
      %vm441 = vcmask 957440
      %v442 = vsel %vm441, %v438, %v440
      %v444 = vsel %vm231, %v436, 0
      %v447 = vsel %vm235, %v442, 0
      %449 = vmatprep.subr.bf16.mxu0 0
      %450 = vmatpush1.bf16.msra.mxu0 %v447
      %451 = vmatprep.subr.bf16.mxu0 0
      %452 = vmatpush1.bf16.msra.mxu0 0
      %453 = vmatprep.subr.bf16.mxu0 0
      %454 = vmatpush1.bf16.msra.mxu0 0
      %455 = vmatprep.subr.bf16.mxu0 0
      %456 = vmatpush1.bf16.msra.mxu0 0
      %457 = vmatprep.subr.bf16.mxu0 0
      %458 = vmatpush1.bf16.msra.mxu0 0
      %459 = vmatprep.subr.bf16.mxu0 0
      %460 = vmatpush1.bf16.msra.mxu0 0
      %461 = vmatprep.subr.bf16.mxu0 0
      %462 = vmatpush1.bf16.msra.mxu0 0
      %463 = vmatprep.subr.bf16.mxu0 0
      %464 = vmatpush1.bf16.msra.mxu0 0
      %465 = vmatprep.subr.bf16.mxu0 0
      %466 = vmatpush1.bf16.msra.mxu0 0
      %467 = vmatprep.subr.bf16.mxu0 0
      %468 = vmatpush1.bf16.msra.mxu0 0
      %469 = vmatprep.subr.bf16.mxu0 0
      %470 = vmatpush1.bf16.msra.mxu0 0
      %471 = vmatprep.subr.bf16.mxu0 0
      %472 = vmatpush1.bf16.msra.mxu0 0
      %473 = vmatprep.subr.bf16.mxu0 0
      %474 = vmatpush1.bf16.msra.mxu0 0
      %475 = vmatprep.subr.bf16.mxu0 0
      %476 = vmatpush1.bf16.msra.mxu0 0
      %477 = vmatprep.subr.bf16.mxu0 0
      %478 = vmatpush1.bf16.msra.mxu0 0
      %479 = vmatprep.subr.bf16.mxu0 0
      %480 = vmatpush1.bf16.msra.mxu0 0
      %481 = vmatprep.mubr.bf16.mxu0 0
      %482 = vmatmul.mubr.bf16.gmra.mrb[0].mxu0 %v444
      %v483 = vpop.f32.mrb[0].mxu0
      %v484 = vadd.f32 0.0, %v483
      %v485 = vpop.f32.mrb[0].mxu0
      %v486 = vpop.f32.mrb[0].mxu0
      %v487 = vpop.f32.mrb[0].mxu0
      %488 = vdwg.mxu0
      %v489 = vadd.f32 %v434, %v484
      %s490 = scalar_lea.vmem %s0, 10
      %v491 = vld [vmem:[%s490] sm:$0x3]
      %492 = vrot.lane.b32.xlu0 %v218, 116
      %v493 = vpop.permute.xlu0 %492
      %494 = vrot.lane.b32.xlu0 %v219, 116
      %v495 = vpop.permute.xlu0 %494
      %vm496 = vcmask 949248
      %v497 = vsel %vm496, %v493, %v495
      %v499 = vsel %vm231, %v491, 0
      %v502 = vsel %vm235, %v497, 0
      %504 = vmatprep.subr.bf16.mxu0 0
      %505 = vmatpush1.bf16.msra.mxu0 %v502
      %506 = vmatprep.subr.bf16.mxu0 0
      %507 = vmatpush1.bf16.msra.mxu0 0
      %508 = vmatprep.subr.bf16.mxu0 0
      %509 = vmatpush1.bf16.msra.mxu0 0
      %510 = vmatprep.subr.bf16.mxu0 0
      %511 = vmatpush1.bf16.msra.mxu0 0
      %512 = vmatprep.subr.bf16.mxu0 0
      %513 = vmatpush1.bf16.msra.mxu0 0
      %514 = vmatprep.subr.bf16.mxu0 0
      %515 = vmatpush1.bf16.msra.mxu0 0
      %516 = vmatprep.subr.bf16.mxu0 0
      %517 = vmatpush1.bf16.msra.mxu0 0
      %518 = vmatprep.subr.bf16.mxu0 0
      %519 = vmatpush1.bf16.msra.mxu0 0
      %520 = vmatprep.subr.bf16.mxu0 0
      %521 = vmatpush1.bf16.msra.mxu0 0
      %522 = vmatprep.subr.bf16.mxu0 0
      %523 = vmatpush1.bf16.msra.mxu0 0
      %524 = vmatprep.subr.bf16.mxu0 0
      %525 = vmatpush1.bf16.msra.mxu0 0
      %526 = vmatprep.subr.bf16.mxu0 0
      %527 = vmatpush1.bf16.msra.mxu0 0
      %528 = vmatprep.subr.bf16.mxu0 0
      %529 = vmatpush1.bf16.msra.mxu0 0
      %530 = vmatprep.subr.bf16.mxu0 0
      %531 = vmatpush1.bf16.msra.mxu0 0
      %532 = vmatprep.subr.bf16.mxu0 0
      %533 = vmatpush1.bf16.msra.mxu0 0
      %534 = vmatprep.subr.bf16.mxu0 0
      %535 = vmatpush1.bf16.msra.mxu0 0
      %536 = vmatprep.mubr.bf16.mxu0 0
      %537 = vmatmul.mubr.bf16.gmra.mrb[0].mxu0 %v499
      %v538 = vpop.f32.mrb[0].mxu0
      %v539 = vadd.f32 0.0, %v538
      %v540 = vpop.f32.mrb[0].mxu0
      %v541 = vpop.f32.mrb[0].mxu0
      %v542 = vpop.f32.mrb[0].mxu0
      %543 = vdwg.mxu0
      %v544 = vadd.f32 %v489, %v539
      %s545 = scalar_lea.vmem %s0, 12
      %v546 = vld [vmem:[%s545] sm:$0x3]
      %547 = vrot.lane.b32.xlu0 %v218, 108
      %v548 = vpop.permute.xlu0 %547
      %549 = vrot.lane.b32.xlu0 %v219, 108
      %v550 = vpop.permute.xlu0 %549
      %vm551 = vcmask 883712
      %v552 = vsel %vm551, %v548, %v550
      %v554 = vsel %vm231, %v546, 0
      %v557 = vsel %vm235, %v552, 0
      %559 = vmatprep.subr.bf16.mxu0 0
      %560 = vmatpush1.bf16.msra.mxu0 %v557
      %561 = vmatprep.subr.bf16.mxu0 0
      %562 = vmatpush1.bf16.msra.mxu0 0
      %563 = vmatprep.subr.bf16.mxu0 0
      %564 = vmatpush1.bf16.msra.mxu0 0
      %565 = vmatprep.subr.bf16.mxu0 0
      %566 = vmatpush1.bf16.msra.mxu0 0
      %567 = vmatprep.subr.bf16.mxu0 0
      %568 = vmatpush1.bf16.msra.mxu0 0
      %569 = vmatprep.subr.bf16.mxu0 0
      %570 = vmatpush1.bf16.msra.mxu0 0
      %571 = vmatprep.subr.bf16.mxu0 0
      %572 = vmatpush1.bf16.msra.mxu0 0
      %573 = vmatprep.subr.bf16.mxu0 0
      %574 = vmatpush1.bf16.msra.mxu0 0
      %575 = vmatprep.subr.bf16.mxu0 0
      %576 = vmatpush1.bf16.msra.mxu0 0
      %577 = vmatprep.subr.bf16.mxu0 0
      %578 = vmatpush1.bf16.msra.mxu0 0
      %579 = vmatprep.subr.bf16.mxu0 0
      %580 = vmatpush1.bf16.msra.mxu0 0
      %581 = vmatprep.subr.bf16.mxu0 0
      %582 = vmatpush1.bf16.msra.mxu0 0
      %583 = vmatprep.subr.bf16.mxu0 0
      %584 = vmatpush1.bf16.msra.mxu0 0
      %585 = vmatprep.subr.bf16.mxu0 0
      %586 = vmatpush1.bf16.msra.mxu0 0
      %587 = vmatprep.subr.bf16.mxu0 0
      %588 = vmatpush1.bf16.msra.mxu0 0
      %589 = vmatprep.subr.bf16.mxu0 0
      %590 = vmatpush1.bf16.msra.mxu0 0
      %591 = vmatprep.mubr.bf16.mxu0 0
      %592 = vmatmul.mubr.bf16.gmra.mrb[0].mxu0 %v554
      %v593 = vpop.f32.mrb[0].mxu0
      %v594 = vadd.f32 0.0, %v593
      %v595 = vpop.f32.mrb[0].mxu0
      %v596 = vpop.f32.mrb[0].mxu0
      %v597 = vpop.f32.mrb[0].mxu0
      %598 = vdwg.mxu0
      %v599 = vadd.f32 %v544, %v594
      %s600 = scalar_lea.vmem %s0, 14
      %v601 = vld [vmem:[%s600] sm:$0x3]
      %602 = vrot.lane.b32.xlu0 %v218, 107
      %v603 = vpop.permute.xlu0 %602
      %604 = vrot.lane.b32.xlu0 %v219, 107
      %v605 = vpop.permute.xlu0 %604
      %vm606 = vcmask 875520
      %v607 = vsel %vm606, %v603, %v605
      %v609 = vsel %vm231, %v601, 0
      %v612 = vsel %vm235, %v607, 0
      %614 = vmatprep.subr.bf16.mxu0 0
      %615 = vmatpush1.bf16.msra.mxu0 %v612
      %616 = vmatprep.subr.bf16.mxu0 0
      %617 = vmatpush1.bf16.msra.mxu0 0
      %618 = vmatprep.subr.bf16.mxu0 0
      %619 = vmatpush1.bf16.msra.mxu0 0
      %620 = vmatprep.subr.bf16.mxu0 0
      %621 = vmatpush1.bf16.msra.mxu0 0
      %622 = vmatprep.subr.bf16.mxu0 0
      %623 = vmatpush1.bf16.msra.mxu0 0
      %624 = vmatprep.subr.bf16.mxu0 0
      %625 = vmatpush1.bf16.msra.mxu0 0
      %626 = vmatprep.subr.bf16.mxu0 0
      %627 = vmatpush1.bf16.msra.mxu0 0
      %628 = vmatprep.subr.bf16.mxu0 0
      %629 = vmatpush1.bf16.msra.mxu0 0
      %630 = vmatprep.subr.bf16.mxu0 0
      %631 = vmatpush1.bf16.msra.mxu0 0
      %632 = vmatprep.subr.bf16.mxu0 0
      %633 = vmatpush1.bf16.msra.mxu0 0
      %634 = vmatprep.subr.bf16.mxu0 0
      %635 = vmatpush1.bf16.msra.mxu0 0
      %636 = vmatprep.subr.bf16.mxu0 0
      %637 = vmatpush1.bf16.msra.mxu0 0
      %638 = vmatprep.subr.bf16.mxu0 0
      %639 = vmatpush1.bf16.msra.mxu0 0
      %640 = vmatprep.subr.bf16.mxu0 0
      %641 = vmatpush1.bf16.msra.mxu0 0
      %642 = vmatprep.subr.bf16.mxu0 0
      %643 = vmatpush1.bf16.msra.mxu0 0
      %644 = vmatprep.subr.bf16.mxu0 0
      %645 = vmatpush1.bf16.msra.mxu0 0
      %646 = vmatprep.mubr.bf16.mxu0 0
      %647 = vmatmul.mubr.bf16.gmra.mrb[0].mxu0 %v609
      %v648 = vpop.f32.mrb[0].mxu0
      %v649 = vadd.f32 0.0, %v648
      %v650 = vpop.f32.mrb[0].mxu0
      %v651 = vpop.f32.mrb[0].mxu0
      %v652 = vpop.f32.mrb[0].mxu0
      %653 = vdwg.mxu0
      %v654 = vadd.f32 %v599, %v649
      %s655 = scalar_lea.vmem %s0, 16
      %v656 = vld [vmem:[%s655] sm:$0x3]
      %657 = vrot.lane.b32.xlu0 %v218, 106
      %v658 = vpop.permute.xlu0 %657
      %659 = vrot.lane.b32.xlu0 %v219, 106
      %v660 = vpop.permute.xlu0 %659
      %vm661 = vcmask 867328
      %v662 = vsel %vm661, %v658, %v660
      %v664 = vsel %vm231, %v656, 0
      %v667 = vsel %vm235, %v662, 0
      %669 = vmatprep.subr.bf16.mxu0 0
      %670 = vmatpush1.bf16.msra.mxu0 %v667
      %671 = vmatprep.subr.bf16.mxu0 0
      %672 = vmatpush1.bf16.msra.mxu0 0
      %673 = vmatprep.subr.bf16.mxu0 0
      %674 = vmatpush1.bf16.msra.mxu0 0
      %675 = vmatprep.subr.bf16.mxu0 0
      %676 = vmatpush1.bf16.msra.mxu0 0
      %677 = vmatprep.subr.bf16.mxu0 0
      %678 = vmatpush1.bf16.msra.mxu0 0
      %679 = vmatprep.subr.bf16.mxu0 0
      %680 = vmatpush1.bf16.msra.mxu0 0
      %681 = vmatprep.subr.bf16.mxu0 0
      %682 = vmatpush1.bf16.msra.mxu0 0
      %683 = vmatprep.subr.bf16.mxu0 0
      %684 = vmatpush1.bf16.msra.mxu0 0
      %685 = vmatprep.subr.bf16.mxu0 0
      %686 = vmatpush1.bf16.msra.mxu0 0
      %687 = vmatprep.subr.bf16.mxu0 0
      %688 = vmatpush1.bf16.msra.mxu0 0
      %689 = vmatprep.subr.bf16.mxu0 0
      %690 = vmatpush1.bf16.msra.mxu0 0
      %691 = vmatprep.subr.bf16.mxu0 0
      %692 = vmatpush1.bf16.msra.mxu0 0
      %693 = vmatprep.subr.bf16.mxu0 0
      %694 = vmatpush1.bf16.msra.mxu0 0
      %695 = vmatprep.subr.bf16.mxu0 0
      %696 = vmatpush1.bf16.msra.mxu0 0
      %697 = vmatprep.subr.bf16.mxu0 0
      %698 = vmatpush1.bf16.msra.mxu0 0
      %699 = vmatprep.subr.bf16.mxu0 0
      %700 = vmatpush1.bf16.msra.mxu0 0
      %701 = vmatprep.mubr.bf16.mxu0 0
      %702 = vmatmul.mubr.bf16.gmra.mrb[0].mxu0 %v664
      %v703 = vpop.f32.mrb[0].mxu0
      %v704 = vadd.f32 0.0, %v703
      %v705 = vpop.f32.mrb[0].mxu0
      %v706 = vpop.f32.mrb[0].mxu0
      %v707 = vpop.f32.mrb[0].mxu0
      %708 = vdwg.mxu0
      %v709 = vadd.f32 %v654, %v704
      %v710 = vld [vmem:[%s1] sm:$0xf]
      %712 = vset.pattern.permute.xlu0 0
      %713 = vperm.xlu0 %712, %v710
      %v714 = vpop.permute.xlu0 %713
      %v716 = vadd.f32 %v709, %v714
      %vm717 = vcmp.ge.f32.partialorder %v716, 0.0
      %v718 = vmul.f32 %v716, 0.2
      %v719 = vsel %vm717, %v716, %v718
      %v720 = vpack.c.bf16 %v719, %v719
      %721 = vst [vmem:[%s216] sm:$0x3] %v720
      %p722 = scmp.lt.s32.totalorder %s15, 1
      %s723 = scalar_select %p722, %s15, 1
      %s724 = smul.addr %s723, 2
      %s725 = scalar_lea.vmem %s4, %s724
      // Predicated region
      $region37: #{unetwork_forward.19} parent=35 // pred_check
        %p726 = pneg %p129
      $region38: #{unetwork_forward.19} parent=35 // pred_check_branch
        %728 = sbr.rel (%p726) target = $region40
      $region39: #{unetwork_forward.19} parent=35 // pred_region
        _
      $region40: #{unetwork_forward.19} parent=35 // pred_fallthru
        _
    $region36: #{unetwork_forward.19} parent=5 // pred_fallthru
      _
    %p729 = scmp.le.s32.totalorder 2, %s10
    // Predicated region
    $region41: #{unetwork_forward.19} parent=5 // pred_check
      %p730 = pneg %p729
    $region42: #{unetwork_forward.19} parent=5 // pred_check_branch
      %732 = sbr.rel (%p730) target = $region44
    $region43: #{unetwork_forward.19} parent=5 // pred_region
      %s733 = ssub.s32 %s10, 2
      // Predicated region
      $region45: #{unetwork_forward.19} parent=43 // pred_check
        %p734 = pneg %p135
      $region46: #{unetwork_forward.19} parent=43 // pred_check_branch
        %736 = sbr.rel (%p734) target = $region48
      $region47: #{unetwork_forward.19} parent=43 // pred_region
        %p737 = scmp.lt.s32.totalorder %s16, 1
        %s738 = scalar_select %p737, %s16, 1
        %s739 = smul.addr %s738, 2
        %s740 = scalar_lea.vmem %s4, %s739
      $region48: #{unetwork_forward.19} parent=43 // pred_fallthru
        _
    $region44: #{unetwork_forward.19} parent=5 // pred_fallthru
      _
  $region6: #{unetwork_forward.19} parent=0 // loop_footer
    %s14 = sadd.s32 1, %s10
  $region7: #{unetwork_forward.19} parent=0 // loop_footer_branch
    %9 = sbr.rel target = $region3
  $region8: #{unetwork_forward.19} parent=0 // loop_exit
    _

// kernel: unetwork_forward.20
$region0: #{unetwork_forward.20}
  #allocation0 [shape = 'u32[]', space=smem, size = 0x4, offset = 0x4, fixed_abs, tag = 'smem constant byte address 0x4 - core index']
  #allocation1 [shape = 'u32[144,128]{1,0:T(1,128)}', space=vmem, size = 0x12000, scoped, tag = 'internal scratch']
  %s0 = inlined_call_operand.vmem [shape: bf16[9,4,6], index: 0, kind: input, shape index: {}]
  %s1 = inlined_call_operand.vmem [shape: f32[4,1], index: 1, kind: input, shape index: {}]
  %s2 = inlined_call_operand.vmem [shape: bf16[6,1152], index: 2, kind: input, shape index: {}, may-alias: {2,3}]
  %s3 = inlined_call_operand.vmem [shape: bf16[6,1152], index: 3, kind: input, shape index: {}, may-alias: {2,3}]
  %s4 = inlined_call_operand.vmem [shape: bf16[4,768], index: 4, kind: output, shape index: {}]
  %s5 = sld [smem:[#allocation0]]
  $region49: #{unetwork_forward.20} parent=0
    _
  %s7 = ssub.s32 1, %s5
  %s8 = scalar_select 0, %s7, %s5
  loop: start=0, step=1, limit=4
  $region2: #{unetwork_forward.20} parent=0 // loop_pre_header
    _
  $region3: #{unetwork_forward.20} parent=0 // loop_header
    %s10 = sphi 0, %s14
    %p11 = scmp.ge.s32.totalorder %s10, 4
    %s18 = sphi 0, %s18
    %s20 = sphi 0, %s18
    %s21 = sphi 0, %s20
    %s35 = sphi 0, %s21
    %s39 = sphi 0, %s39
    %s41 = sphi 0, %s39
    %s42 = sphi 0, %s41
    %s56 = sphi 0, %s42
    %s62 = sphi 0, %s64
    %s65 = sphi 0, %s62
    %s66 = sphi 0, %s65
    %s82 = sphi 0, %s66
    %s90 = sphi 0, %s92
    %s93 = sphi 0, %s90
    %s94 = sphi 0, %s93
    %s110 = sphi 0, %s94
    %s116 = sphi 0, %s118
    %s119 = sphi 0, %s116
    %s120 = sphi 0, %s119
    %s136 = sphi 0, %s120
  $region4: #{unetwork_forward.20} parent=0 // loop_header_branch
    %13 = sbr.rel (%p11) target = $region8
  $region5: #{unetwork_forward.20} parent=0 // loop_body
    %s15 = ssub.s32 %s10, 1
    %s16 = ssub.s32 %s10, 2
    %s17 = sadd.s32 %s10, 1
    %s19 = sadd.s32 %s18, 1
    %p22 = scmp.eq.s32.totalorder %s10, 1
    %p23 = scmp.ne.s32.totalorder %s18, %s20
    %p24 = scmp.eq.s32.totalorder %s10, 0
    %p25 = por %p23, %p24
    %p26 = scmp.ne.s32.totalorder %s18, %s20
    %p27 = scmp.eq.s32.totalorder %s15, 1
    %p28 = por %p26, %p27
    %p29 = scmp.ne.s32.totalorder %s20, %s21
    %p30 = scmp.eq.s32.totalorder %s15, 0
    %p31 = por %p29, %p30
    %p32 = scmp.ne.s32.totalorder %s20, %s21
    %p33 = scmp.eq.s32.totalorder %s16, 1
    %p34 = por %p32, %p33
    %p36 = scmp.ne.s32.totalorder %s21, %s35
    %p37 = scmp.eq.s32.totalorder %s16, 0
    %p38 = por %p36, %p37
    %s40 = sadd.s32 %s39, 1
    %p43 = scmp.eq.s32.totalorder %s10, 1
    %p44 = scmp.ne.s32.totalorder %s39, %s41
    %p45 = scmp.eq.s32.totalorder %s10, 0
    %p46 = por %p44, %p45
    %p47 = scmp.ne.s32.totalorder %s39, %s41
    %p48 = scmp.eq.s32.totalorder %s15, 1
    %p49 = por %p47, %p48
    %p50 = scmp.ne.s32.totalorder %s41, %s42
    %p51 = scmp.eq.s32.totalorder %s15, 0
    %p52 = por %p50, %p51
    %p53 = scmp.ne.s32.totalorder %s41, %s42
    %p54 = scmp.eq.s32.totalorder %s16, 1
    %p55 = por %p53, %p54
    %p57 = scmp.ne.s32.totalorder %s42, %s56
    %p58 = scmp.eq.s32.totalorder %s16, 0
    %p59 = por %p57, %p58
    %s60 = ssub.s32 %s10, %s17
    %p61 = scmp.eq.s32.totalorder %s60, 0
    %s63 = sadd.s32 %s62, 1
    %s64 = scalar_select %p61, %s62, %s63
    %p67 = pneg %p61
    %p68 = scmp.eq.s32.totalorder %s10, 1
    %p69 = por %p67, %p68
    %p70 = scmp.ne.s32.totalorder %s62, %s65
    %p71 = scmp.eq.s32.totalorder %s10, 0
    %p72 = por %p70, %p71
    %p73 = scmp.ne.s32.totalorder %s62, %s65
    %p74 = scmp.eq.s32.totalorder %s15, 1
    %p75 = por %p73, %p74
    %p76 = scmp.ne.s32.totalorder %s65, %s66
    %p77 = scmp.eq.s32.totalorder %s15, 0
    %p78 = por %p76, %p77
    %p79 = scmp.ne.s32.totalorder %s65, %s66
    %p80 = scmp.eq.s32.totalorder %s16, 1
    %p81 = por %p79, %p80
    %p83 = scmp.ne.s32.totalorder %s66, %s82
    %p84 = scmp.eq.s32.totalorder %s16, 0
    %p85 = por %p83, %p84
    %s86 = sadd.s32 %s10, 1
    %s87 = sadd.s32 %s17, 1
    %s88 = ssub.s32 %s86, %s87
    %p89 = scmp.eq.s32.totalorder %s88, 0
    %s91 = sadd.s32 %s90, 1
    %s92 = scalar_select %p89, %s90, %s91
    %p95 = pneg %p89
    %p96 = scmp.eq.s32.totalorder %s10, 1
    %p97 = por %p95, %p96
    %p98 = scmp.ne.s32.totalorder %s90, %s93
    %p99 = scmp.eq.s32.totalorder %s10, 0
    %p100 = por %p98, %p99
    %p101 = scmp.ne.s32.totalorder %s90, %s93
    %p102 = scmp.eq.s32.totalorder %s15, 1
    %p103 = por %p101, %p102
    %p104 = scmp.ne.s32.totalorder %s93, %s94
    %p105 = scmp.eq.s32.totalorder %s15, 0
    %p106 = por %p104, %p105
    %p107 = scmp.ne.s32.totalorder %s93, %s94
    %p108 = scmp.eq.s32.totalorder %s16, 1
    %p109 = por %p107, %p108
    %p111 = scmp.ne.s32.totalorder %s94, %s110
    %p112 = scmp.eq.s32.totalorder %s16, 0
    %p113 = por %p111, %p112
    %s114 = ssub.s32 %s10, %s17
    %p115 = scmp.eq.s32.totalorder %s114, 0
    %s117 = sadd.s32 %s116, 1
    %s118 = scalar_select %p115, %s116, %s117
    %p121 = pneg %p115
    %p122 = scmp.eq.s32.totalorder %s10, 1
    %p123 = por %p121, %p122
    %p124 = scmp.ne.s32.totalorder %s116, %s119
    %p125 = scmp.eq.s32.totalorder %s10, 0
    %p126 = por %p124, %p125
    %p127 = scmp.ne.s32.totalorder %s116, %s119
    %p128 = scmp.eq.s32.totalorder %s15, 1
    %p129 = por %p127, %p128
    %p130 = scmp.ne.s32.totalorder %s119, %s120
    %p131 = scmp.eq.s32.totalorder %s15, 0
    %p132 = por %p130, %p131
    %p133 = scmp.ne.s32.totalorder %s119, %s120
    %p134 = scmp.eq.s32.totalorder %s16, 1
    %p135 = por %p133, %p134
    %p137 = scmp.ne.s32.totalorder %s120, %s136
    %p138 = scmp.eq.s32.totalorder %s16, 0
    %p139 = por %p137, %p138
    %p140 = scmp.le.s32.totalorder 1, %s10
    %p141 = scmp.lt.s32.totalorder %s10, 3
    %p142 = pnand %p140, %p141
    %p143 = pneg %p142
    // Predicated region
    $region9: #{unetwork_forward.20} parent=5 // pred_check
      _
    $region10: #{unetwork_forward.20} parent=5 // pred_check_branch
      %145 = sbr.rel (%p142) target = $region12
    $region11: #{unetwork_forward.20} parent=5 // pred_region
      %s146 = ssub.s32 %s10, 1
      // Predicated region
      $region13: #{unetwork_forward.20} parent=11 // pred_check
        %p147 = pneg %p31
      $region14: #{unetwork_forward.20} parent=11 // pred_check_branch
        %149 = sbr.rel (%p147) target = $region16
      $region15: #{unetwork_forward.20} parent=11 // pred_region
        _
      $region16: #{unetwork_forward.20} parent=11 // pred_fallthru
        _
      // Predicated region
      $region17: #{unetwork_forward.20} parent=11 // pred_check
        %p150 = pneg %p52
      $region18: #{unetwork_forward.20} parent=11 // pred_check_branch
        %152 = sbr.rel (%p150) target = $region20
      $region19: #{unetwork_forward.20} parent=11 // pred_region
        _
      $region20: #{unetwork_forward.20} parent=11 // pred_fallthru
        _
    $region12: #{unetwork_forward.20} parent=5 // pred_fallthru
      _
    %p153 = scmp.lt.s32.totalorder %s10, 2
    // Predicated region
    $region21: #{unetwork_forward.20} parent=5 // pred_check
      %p154 = pneg %p153
    $region22: #{unetwork_forward.20} parent=5 // pred_check_branch
      %156 = sbr.rel (%p154) target = $region24
    $region23: #{unetwork_forward.20} parent=5 // pred_region
      // Predicated region
      $region25: #{unetwork_forward.20} parent=23 // pred_check
        %p157 = pneg %p72
      $region26: #{unetwork_forward.20} parent=23 // pred_check_branch
        %159 = sbr.rel (%p157) target = $region28
      $region27: #{unetwork_forward.20} parent=23 // pred_region
        %s160 = smul.u32 3, %s10
        %p161 = scmp.lt.s32.totalorder %s160, 8
        %s162 = scalar_select %p161, %s160, 8
        %s163 = smul.addr %s162, 4
        %s164 = scalar_lea.vmem %s2, %s163
        %s165 = smul.u32 3, %s10
      $region28: #{unetwork_forward.20} parent=23 // pred_fallthru
        _
      // Predicated region
      $region29: #{unetwork_forward.20} parent=23 // pred_check
        %p166 = pneg %p100
      $region30: #{unetwork_forward.20} parent=23 // pred_check_branch
        %168 = sbr.rel (%p166) target = $region32
      $region31: #{unetwork_forward.20} parent=23 // pred_region
        %s169 = sadd.s32 %s10, 1
        %s170 = smul.u32 3, %s169
        %p171 = scmp.lt.s32.totalorder %s170, 8
        %s172 = scalar_select %p171, %s170, 8
        %s173 = smul.addr %s172, 4
        %s174 = scalar_lea.vmem %s3, %s173
        %s175 = sadd.s32 %s10, 1
        %s176 = smul.u32 3, %s175
      $region32: #{unetwork_forward.20} parent=23 // pred_fallthru
        _
    $region24: #{unetwork_forward.20} parent=5 // pred_fallthru
      _
    %p177 = scmp.le.s32.totalorder 1, %s10
    %p178 = scmp.lt.s32.totalorder %s10, 3
    %p179 = pnand %p177, %p178
    %p180 = pneg %p179
    // Predicated region
    $region33: #{unetwork_forward.20} parent=5 // pred_check
      _
    $region34: #{unetwork_forward.20} parent=5 // pred_check_branch
      %182 = sbr.rel (%p179) target = $region36
    $region35: #{unetwork_forward.20} parent=5 // pred_region
      %s183 = ssub.s32 %s10, 1
      %p184 = pneg %p31
      %p185 = pneg %p28
      %p186 = pneg %p52
      %p187 = pneg %p49
      %s188 = smul.u32 3, %s15
      %p189 = scmp.lt.s32.totalorder %s188, 8
      %s190 = scalar_select %p189, %s188, 8
      %s191 = smul.addr %s190, 4
      %s192 = scalar_lea.vmem %s2, %s191
      %p193 = pneg %p78
      %p194 = pneg %p75
      %s195 = sadd.s32 %s15, 1
      %s196 = smul.u32 3, %s195
      %p197 = scmp.lt.s32.totalorder %s196, 8
      %s198 = scalar_select %p197, %s196, 8
      %s199 = smul.addr %s198, 4
      %s200 = scalar_lea.vmem %s3, %s199
      %p201 = pneg %p106
      %p202 = pneg %p103
      %p203 = pneg %p132
      %p204 = pneg %p129
      %s205 = smul.u32 3, %s15
      %p206 = scmp.lt.s32.totalorder %s205, 5
      %s207 = scalar_select %p206, %s205, 5
      %s208 = smul.addr %s207, 2
      %s209 = scalar_lea.vmem %s4, %s208
      %s210 = smul.u32 3, %s15
      %p211 = scmp.lt.s32.totalorder %s210, 8
      %s212 = scalar_select %p211, %s210, 8
      %s213 = smul.addr %s212, 4
      %s214 = scalar_lea.vmem %s2, %s213
      %s215 = smul.u32 3, %s15
      %s216 = sadd.s32 %s15, 1
      %s217 = smul.u32 3, %s216
      %p218 = scmp.lt.s32.totalorder %s217, 8
      %s219 = scalar_select %p218, %s217, 8
      %s220 = smul.addr %s219, 4
      %s221 = scalar_lea.vmem %s3, %s220
      %s222 = sadd.s32 %s15, 1
      %s223 = smul.u32 3, %s222
      %s224 = smul.u32 3, %s15
      %p225 = scmp.lt.s32.totalorder %s224, 5
      %s226 = scalar_select %p225, %s224, 5
      %s227 = smul.addr %s226, 2
      %s228 = scalar_lea.vmem %s4, %s227
      %s229 = smul.u32 3, %s15
      %v231 = vld [vmem:[%s214] sm:$0x77]
      %v232 = vld [vmem:[%s214 + $0x8] sm:$0x7]
      %v233 = vld [vmem:[%s221] sm:$0x77]
      %v236 = vunpack.c.l.b16 %v231
      %v237 = vunpack.c.h.b16 %v231
      %v238 = vunpack.c.l.b16 %v232
      %v239 = vpack.c.b16 %v236, %v236
      %v240 = vpack.c.b16 %v237, %v237
      %v241 = vpack.c.b16 %v238, %v238
      %v243 = vunpack.c.l.b16 %v233
      %v244 = vpack.c.b16 %v243, %v243
      %v245 = vld [vmem:[%s0] sm:$0x3]
      %s246 = scalar_lea.vmem %s0, 2
      %v247 = vld [vmem:[%s246] sm:$0x3]
      %248 = vrot.lane.b32.xlu0 %v239, 127
      %v249 = vpop.permute.xlu0 %248
      %250 = vrot.lane.b32.xlu0 %v240, 127
      %v251 = vpop.permute.xlu0 %250
      %252 = vrot.lane.b32.xlu0 %v241, 127
      %v253 = vpop.permute.xlu0 %252
      %254 = vrot.lane.b32.xlu0 %v244, 127
      %v255 = vpop.permute.xlu0 %254
      %vm256 = vcmask 1039360
      %v257 = vsel %vm256, %v249, %v251
      %v258 = vsel %vm256, %v251, %v253
      %v259 = vsel %vm256, %v253, %v255
      %vm260 = vcmask 48128
      %v262 = vsel %vm260, %v247, 0
      %vm264 = vcmask 1042432
      %v266 = vsel %vm264, %v257, 0
      %v269 = vsel %vm264, %v258, 0
      %v272 = vsel %vm264, %v259, 0
      %274 = vmatprep.subr.bf16.mxu0 %v269
      %275 = vmatpush1.bf16.msra.mxu0 %v266
      %276 = vmatprep.subr.bf16.mxu0 0
      %277 = vmatpush1.bf16.msra.mxu0 0
      %278 = vmatprep.subr.bf16.mxu0 0
      %279 = vmatpush1.bf16.msra.mxu0 0
      %280 = vmatprep.subr.bf16.mxu0 0
      %281 = vmatpush1.bf16.msra.mxu0 0
      %282 = vmatprep.subr.bf16.mxu0 0
      %283 = vmatpush1.bf16.msra.mxu0 0
      %284 = vmatprep.subr.bf16.mxu0 0
      %285 = vmatpush1.bf16.msra.mxu0 0
      %286 = vmatprep.subr.bf16.mxu0 0
      %287 = vmatpush1.bf16.msra.mxu0 0
      %288 = vmatprep.subr.bf16.mxu0 0
      %289 = vmatpush1.bf16.msra.mxu0 0
      %290 = vmatprep.subr.bf16.mxu0 0
      %291 = vmatpush1.bf16.msra.mxu0 0
      %292 = vmatprep.subr.bf16.mxu0 0
      %293 = vmatpush1.bf16.msra.mxu0 0
      %294 = vmatprep.subr.bf16.mxu0 0
      %295 = vmatpush1.bf16.msra.mxu0 0
      %296 = vmatprep.subr.bf16.mxu0 0
      %297 = vmatpush1.bf16.msra.mxu0 0
      %298 = vmatprep.subr.bf16.mxu0 0
      %299 = vmatpush1.bf16.msra.mxu0 0
      %300 = vmatprep.subr.bf16.mxu0 0
      %301 = vmatpush1.bf16.msra.mxu0 0
      %302 = vmatprep.subr.bf16.mxu0 0
      %303 = vmatpush1.bf16.msra.mxu0 0
      %304 = vmatprep.subr.bf16.mxu0 0
      %305 = vmatpush1.bf16.msra.mxu0 0
      %306 = vmatprep.mubr.bf16.mxu0 0
      %307 = vmatmul.mubr.bf16.gmra.mrb[0].mxu0 %v262
      %v308 = vpop.f32.mrb[0].mxu0
      %v309 = vadd.f32 0.0, %v308
      %v310 = vpop.f32.mrb[0].mxu0
      %v311 = vadd.f32 0.0, %v310
      %v312 = vpop.f32.mrb[0].mxu0
      %v313 = vpop.f32.mrb[0].mxu0
      %314 = vdwg.mxu0
      %315 = vmatprep.subr.bf16.mxu0 0
      %316 = vmatpush1.bf16.msra.mxu0 %v272
      %317 = vmatprep.subr.bf16.mxu0 0
      %318 = vmatpush1.bf16.msra.mxu0 0
      %319 = vmatprep.subr.bf16.mxu0 0
      %320 = vmatpush1.bf16.msra.mxu0 0
      %321 = vmatprep.subr.bf16.mxu0 0
      %322 = vmatpush1.bf16.msra.mxu0 0
      %323 = vmatprep.subr.bf16.mxu0 0
      %324 = vmatpush1.bf16.msra.mxu0 0
      %325 = vmatprep.subr.bf16.mxu0 0
      %326 = vmatpush1.bf16.msra.mxu0 0
      %327 = vmatprep.subr.bf16.mxu0 0
      %328 = vmatpush1.bf16.msra.mxu0 0
      %329 = vmatprep.subr.bf16.mxu0 0
      %330 = vmatpush1.bf16.msra.mxu0 0
      %331 = vmatprep.subr.bf16.mxu0 0
      %332 = vmatpush1.bf16.msra.mxu0 0
      %333 = vmatprep.subr.bf16.mxu0 0
      %334 = vmatpush1.bf16.msra.mxu0 0
      %335 = vmatprep.subr.bf16.mxu0 0
      %336 = vmatpush1.bf16.msra.mxu0 0
      %337 = vmatprep.subr.bf16.mxu0 0
      %338 = vmatpush1.bf16.msra.mxu0 0
      %339 = vmatprep.subr.bf16.mxu0 0
      %340 = vmatpush1.bf16.msra.mxu0 0
      %341 = vmatprep.subr.bf16.mxu0 0
      %342 = vmatpush1.bf16.msra.mxu0 0
      %343 = vmatprep.subr.bf16.mxu0 0
      %344 = vmatpush1.bf16.msra.mxu0 0
      %345 = vmatprep.subr.bf16.mxu0 0
      %346 = vmatpush1.bf16.msra.mxu0 0
      %347 = vmatprep.mubr.bf16.mxu0 0
      %348 = vmatmul.mubr.bf16.gmra.mrb[0].mxu0 %v262
      %v349 = vpop.f32.mrb[0].mxu0
      %v350 = vadd.f32 0.0, %v349
      %v351 = vpop.f32.mrb[0].mxu0
      %v352 = vpop.f32.mrb[0].mxu0
      %v353 = vpop.f32.mrb[0].mxu0
      %354 = vdwg.mxu0
      %v356 = vsel %vm260, %v245, 0
      %v359 = vsel %vm264, %v239, 0
      %v362 = vsel %vm264, %v240, 0
      %v365 = vsel %vm264, %v241, 0
      %367 = vmatprep.subr.bf16.mxu0 %v362
      %368 = vmatpush1.bf16.msra.mxu0 %v359
      %369 = vmatprep.subr.bf16.mxu0 0
      %370 = vmatpush1.bf16.msra.mxu0 0
      %371 = vmatprep.subr.bf16.mxu0 0
      %372 = vmatpush1.bf16.msra.mxu0 0
      %373 = vmatprep.subr.bf16.mxu0 0
      %374 = vmatpush1.bf16.msra.mxu0 0
      %375 = vmatprep.subr.bf16.mxu0 0
      %376 = vmatpush1.bf16.msra.mxu0 0
      %377 = vmatprep.subr.bf16.mxu0 0
      %378 = vmatpush1.bf16.msra.mxu0 0
      %379 = vmatprep.subr.bf16.mxu0 0
      %380 = vmatpush1.bf16.msra.mxu0 0
      %381 = vmatprep.subr.bf16.mxu0 0
      %382 = vmatpush1.bf16.msra.mxu0 0
      %383 = vmatprep.subr.bf16.mxu0 0
      %384 = vmatpush1.bf16.msra.mxu0 0
      %385 = vmatprep.subr.bf16.mxu0 0
      %386 = vmatpush1.bf16.msra.mxu0 0
      %387 = vmatprep.subr.bf16.mxu0 0
      %388 = vmatpush1.bf16.msra.mxu0 0
      %389 = vmatprep.subr.bf16.mxu0 0
      %390 = vmatpush1.bf16.msra.mxu0 0
      %391 = vmatprep.subr.bf16.mxu0 0
      %392 = vmatpush1.bf16.msra.mxu0 0
      %393 = vmatprep.subr.bf16.mxu0 0
      %394 = vmatpush1.bf16.msra.mxu0 0
      %395 = vmatprep.subr.bf16.mxu0 0
      %396 = vmatpush1.bf16.msra.mxu0 0
      %397 = vmatprep.subr.bf16.mxu0 0
      %398 = vmatpush1.bf16.msra.mxu0 0
      %399 = vmatprep.mubr.bf16.mxu0 0
      %400 = vmatmul.mubr.bf16.gmra.mrb[0].mxu0 %v356
      %v401 = vpop.f32.mrb[0].mxu0
      %v402 = vadd.f32 %v309, %v401
      %v403 = vpop.f32.mrb[0].mxu0
      %v404 = vadd.f32 %v311, %v403
      %v405 = vpop.f32.mrb[0].mxu0
      %v406 = vpop.f32.mrb[0].mxu0
      %407 = vdwg.mxu0
      %408 = vmatprep.subr.bf16.mxu0 0
      %409 = vmatpush1.bf16.msra.mxu0 %v365
      %410 = vmatprep.subr.bf16.mxu0 0
      %411 = vmatpush1.bf16.msra.mxu0 0
      %412 = vmatprep.subr.bf16.mxu0 0
      %413 = vmatpush1.bf16.msra.mxu0 0
      %414 = vmatprep.subr.bf16.mxu0 0
      %415 = vmatpush1.bf16.msra.mxu0 0
      %416 = vmatprep.subr.bf16.mxu0 0
      %417 = vmatpush1.bf16.msra.mxu0 0
      %418 = vmatprep.subr.bf16.mxu0 0
      %419 = vmatpush1.bf16.msra.mxu0 0
      %420 = vmatprep.subr.bf16.mxu0 0
      %421 = vmatpush1.bf16.msra.mxu0 0
      %422 = vmatprep.subr.bf16.mxu0 0
      %423 = vmatpush1.bf16.msra.mxu0 0
      %424 = vmatprep.subr.bf16.mxu0 0
      %425 = vmatpush1.bf16.msra.mxu0 0
      %426 = vmatprep.subr.bf16.mxu0 0
      %427 = vmatpush1.bf16.msra.mxu0 0
      %428 = vmatprep.subr.bf16.mxu0 0
      %429 = vmatpush1.bf16.msra.mxu0 0
      %430 = vmatprep.subr.bf16.mxu0 0
      %431 = vmatpush1.bf16.msra.mxu0 0
      %432 = vmatprep.subr.bf16.mxu0 0
      %433 = vmatpush1.bf16.msra.mxu0 0
      %434 = vmatprep.subr.bf16.mxu0 0
      %435 = vmatpush1.bf16.msra.mxu0 0
      %436 = vmatprep.subr.bf16.mxu0 0
      %437 = vmatpush1.bf16.msra.mxu0 0
      %438 = vmatprep.subr.bf16.mxu0 0
      %439 = vmatpush1.bf16.msra.mxu0 0
      %440 = vmatprep.mubr.bf16.mxu0 0
      %441 = vmatmul.mubr.bf16.gmra.mrb[0].mxu0 %v356
      %v442 = vpop.f32.mrb[0].mxu0
      %v443 = vadd.f32 %v350, %v442
      %v444 = vpop.f32.mrb[0].mxu0
      %v445 = vpop.f32.mrb[0].mxu0
      %v446 = vpop.f32.mrb[0].mxu0
      %447 = vdwg.mxu0
      %s448 = scalar_lea.vmem %s0, 4
      %v449 = vld [vmem:[%s448] sm:$0x3]
      %450 = vrot.lane.b32.xlu0 %v239, 126
      %v451 = vpop.permute.xlu0 %450
      %452 = vrot.lane.b32.xlu0 %v240, 126
      %v453 = vpop.permute.xlu0 %452
      %454 = vrot.lane.b32.xlu0 %v241, 126
      %v455 = vpop.permute.xlu0 %454
      %456 = vrot.lane.b32.xlu0 %v244, 126
      %v457 = vpop.permute.xlu0 %456
      %vm458 = vcmask 1031168
      %v459 = vsel %vm458, %v451, %v453
      %v460 = vsel %vm458, %v453, %v455
      %v461 = vsel %vm458, %v455, %v457
      %v463 = vsel %vm260, %v449, 0
      %v466 = vsel %vm264, %v459, 0
      %v469 = vsel %vm264, %v460, 0
      %v472 = vsel %vm264, %v461, 0
      %474 = vmatprep.subr.bf16.mxu0 %v469
      %475 = vmatpush1.bf16.msra.mxu0 %v466
      %476 = vmatprep.subr.bf16.mxu0 0
      %477 = vmatpush1.bf16.msra.mxu0 0
      %478 = vmatprep.subr.bf16.mxu0 0
      %479 = vmatpush1.bf16.msra.mxu0 0
      %480 = vmatprep.subr.bf16.mxu0 0
      %481 = vmatpush1.bf16.msra.mxu0 0
      %482 = vmatprep.subr.bf16.mxu0 0
      %483 = vmatpush1.bf16.msra.mxu0 0
      %484 = vmatprep.subr.bf16.mxu0 0
      %485 = vmatpush1.bf16.msra.mxu0 0
      %486 = vmatprep.subr.bf16.mxu0 0
      %487 = vmatpush1.bf16.msra.mxu0 0
      %488 = vmatprep.subr.bf16.mxu0 0
      %489 = vmatpush1.bf16.msra.mxu0 0
      %490 = vmatprep.subr.bf16.mxu0 0
      %491 = vmatpush1.bf16.msra.mxu0 0
      %492 = vmatprep.subr.bf16.mxu0 0
      %493 = vmatpush1.bf16.msra.mxu0 0
      %494 = vmatprep.subr.bf16.mxu0 0
      %495 = vmatpush1.bf16.msra.mxu0 0
      %496 = vmatprep.subr.bf16.mxu0 0
      %497 = vmatpush1.bf16.msra.mxu0 0
      %498 = vmatprep.subr.bf16.mxu0 0
      %499 = vmatpush1.bf16.msra.mxu0 0
      %500 = vmatprep.subr.bf16.mxu0 0
      %501 = vmatpush1.bf16.msra.mxu0 0
      %502 = vmatprep.subr.bf16.mxu0 0
      %503 = vmatpush1.bf16.msra.mxu0 0
      %504 = vmatprep.subr.bf16.mxu0 0
      %505 = vmatpush1.bf16.msra.mxu0 0
      %506 = vmatprep.mubr.bf16.mxu0 0
      %507 = vmatmul.mubr.bf16.gmra.mrb[0].mxu0 %v463
      %v508 = vpop.f32.mrb[0].mxu0
      %v509 = vadd.f32 0.0, %v508
      %v510 = vpop.f32.mrb[0].mxu0
      %v511 = vadd.f32 0.0, %v510
      %v512 = vpop.f32.mrb[0].mxu0
      %v513 = vpop.f32.mrb[0].mxu0
      %514 = vdwg.mxu0
      %515 = vmatprep.subr.bf16.mxu0 0
      %516 = vmatpush1.bf16.msra.mxu0 %v472
      %517 = vmatprep.subr.bf16.mxu0 0
      %518 = vmatpush1.bf16.msra.mxu0 0
      %519 = vmatprep.subr.bf16.mxu0 0
      %520 = vmatpush1.bf16.msra.mxu0 0
      %521 = vmatprep.subr.bf16.mxu0 0
      %522 = vmatpush1.bf16.msra.mxu0 0
      %523 = vmatprep.subr.bf16.mxu0 0
      %524 = vmatpush1.bf16.msra.mxu0 0
      %525 = vmatprep.subr.bf16.mxu0 0
      %526 = vmatpush1.bf16.msra.mxu0 0
      %527 = vmatprep.subr.bf16.mxu0 0
      %528 = vmatpush1.bf16.msra.mxu0 0
      %529 = vmatprep.subr.bf16.mxu0 0
      %530 = vmatpush1.bf16.msra.mxu0 0
      %531 = vmatprep.subr.bf16.mxu0 0
      %532 = vmatpush1.bf16.msra.mxu0 0
      %533 = vmatprep.subr.bf16.mxu0 0
      %534 = vmatpush1.bf16.msra.mxu0 0
      %535 = vmatprep.subr.bf16.mxu0 0
      %536 = vmatpush1.bf16.msra.mxu0 0
      %537 = vmatprep.subr.bf16.mxu0 0
      %538 = vmatpush1.bf16.msra.mxu0 0
      %539 = vmatprep.subr.bf16.mxu0 0
      %540 = vmatpush1.bf16.msra.mxu0 0
      %541 = vmatprep.subr.bf16.mxu0 0
      %542 = vmatpush1.bf16.msra.mxu0 0
      %543 = vmatprep.subr.bf16.mxu0 0
      %544 = vmatpush1.bf16.msra.mxu0 0
      %545 = vmatprep.subr.bf16.mxu0 0
      %546 = vmatpush1.bf16.msra.mxu0 0
      %547 = vmatprep.mubr.bf16.mxu0 0
      %548 = vmatmul.mubr.bf16.gmra.mrb[0].mxu0 %v463
      %v549 = vpop.f32.mrb[0].mxu0
      %v550 = vadd.f32 0.0, %v549
      %v551 = vpop.f32.mrb[0].mxu0
      %v552 = vpop.f32.mrb[0].mxu0
      %v553 = vpop.f32.mrb[0].mxu0
      %554 = vdwg.mxu0
      %v555 = vadd.f32 %v402, %v509
      %v556 = vadd.f32 %v404, %v511
      %v557 = vadd.f32 %v443, %v550
      %s558 = scalar_lea.vmem %s0, 6
      %v559 = vld [vmem:[%s558] sm:$0x3]
      %560 = vrot.lane.b32.xlu0 %v239, 110
      %v561 = vpop.permute.xlu0 %560
      %562 = vrot.lane.b32.xlu0 %v240, 110
      %v563 = vpop.permute.xlu0 %562
      %564 = vrot.lane.b32.xlu0 %v241, 110
      %v565 = vpop.permute.xlu0 %564
      %566 = vrot.lane.b32.xlu0 %v244, 110
      %v567 = vpop.permute.xlu0 %566
      %vm568 = vcmask 900096
      %v569 = vsel %vm568, %v561, %v563
      %v570 = vsel %vm568, %v563, %v565
      %v571 = vsel %vm568, %v565, %v567
      %v573 = vsel %vm260, %v559, 0
      %v576 = vsel %vm264, %v569, 0
      %v579 = vsel %vm264, %v570, 0
      %v582 = vsel %vm264, %v571, 0
      %584 = vmatprep.subr.bf16.mxu0 %v579
      %585 = vmatpush1.bf16.msra.mxu0 %v576
      %586 = vmatprep.subr.bf16.mxu0 0
      %587 = vmatpush1.bf16.msra.mxu0 0
      %588 = vmatprep.subr.bf16.mxu0 0
      %589 = vmatpush1.bf16.msra.mxu0 0
      %590 = vmatprep.subr.bf16.mxu0 0
      %591 = vmatpush1.bf16.msra.mxu0 0
      %592 = vmatprep.subr.bf16.mxu0 0
      %593 = vmatpush1.bf16.msra.mxu0 0
      %594 = vmatprep.subr.bf16.mxu0 0
      %595 = vmatpush1.bf16.msra.mxu0 0
      %596 = vmatprep.subr.bf16.mxu0 0
      %597 = vmatpush1.bf16.msra.mxu0 0
      %598 = vmatprep.subr.bf16.mxu0 0
      %599 = vmatpush1.bf16.msra.mxu0 0
      %600 = vmatprep.subr.bf16.mxu0 0
      %601 = vmatpush1.bf16.msra.mxu0 0
      %602 = vmatprep.subr.bf16.mxu0 0
      %603 = vmatpush1.bf16.msra.mxu0 0
      %604 = vmatprep.subr.bf16.mxu0 0
      %605 = vmatpush1.bf16.msra.mxu0 0
      %606 = vmatprep.subr.bf16.mxu0 0
      %607 = vmatpush1.bf16.msra.mxu0 0
      %608 = vmatprep.subr.bf16.mxu0 0
      %609 = vmatpush1.bf16.msra.mxu0 0
      %610 = vmatprep.subr.bf16.mxu0 0
      %611 = vmatpush1.bf16.msra.mxu0 0
      %612 = vmatprep.subr.bf16.mxu0 0
      %613 = vmatpush1.bf16.msra.mxu0 0
      %614 = vmatprep.subr.bf16.mxu0 0
      %615 = vmatpush1.bf16.msra.mxu0 0
      %616 = vmatprep.mubr.bf16.mxu0 0
      %617 = vmatmul.mubr.bf16.gmra.mrb[0].mxu0 %v573
      %v618 = vpop.f32.mrb[0].mxu0
      %v619 = vadd.f32 0.0, %v618
      %v620 = vpop.f32.mrb[0].mxu0
      %v621 = vadd.f32 0.0, %v620
      %v622 = vpop.f32.mrb[0].mxu0
      %v623 = vpop.f32.mrb[0].mxu0
      %624 = vdwg.mxu0
      %625 = vmatprep.subr.bf16.mxu0 0
      %626 = vmatpush1.bf16.msra.mxu0 %v582
      %627 = vmatprep.subr.bf16.mxu0 0
      %628 = vmatpush1.bf16.msra.mxu0 0
      %629 = vmatprep.subr.bf16.mxu0 0
      %630 = vmatpush1.bf16.msra.mxu0 0
      %631 = vmatprep.subr.bf16.mxu0 0
      %632 = vmatpush1.bf16.msra.mxu0 0
      %633 = vmatprep.subr.bf16.mxu0 0
      %634 = vmatpush1.bf16.msra.mxu0 0
      %635 = vmatprep.subr.bf16.mxu0 0
      %636 = vmatpush1.bf16.msra.mxu0 0
      %637 = vmatprep.subr.bf16.mxu0 0
      %638 = vmatpush1.bf16.msra.mxu0 0
      %639 = vmatprep.subr.bf16.mxu0 0
      %640 = vmatpush1.bf16.msra.mxu0 0
      %641 = vmatprep.subr.bf16.mxu0 0
      %642 = vmatpush1.bf16.msra.mxu0 0
      %643 = vmatprep.subr.bf16.mxu0 0
      %644 = vmatpush1.bf16.msra.mxu0 0
      %645 = vmatprep.subr.bf16.mxu0 0
      %646 = vmatpush1.bf16.msra.mxu0 0
      %647 = vmatprep.subr.bf16.mxu0 0
      %648 = vmatpush1.bf16.msra.mxu0 0
      %649 = vmatprep.subr.bf16.mxu0 0
      %650 = vmatpush1.bf16.msra.mxu0 0
      %651 = vmatprep.subr.bf16.mxu0 0
      %652 = vmatpush1.bf16.msra.mxu0 0
      %653 = vmatprep.subr.bf16.mxu0 0
      %654 = vmatpush1.bf16.msra.mxu0 0
      %655 = vmatprep.subr.bf16.mxu0 0
      %656 = vmatpush1.bf16.msra.mxu0 0
      %657 = vmatprep.mubr.bf16.mxu0 0
      %658 = vmatmul.mubr.bf16.gmra.mrb[0].mxu0 %v573
      %v659 = vpop.f32.mrb[0].mxu0
      %v660 = vadd.f32 0.0, %v659
      %v661 = vpop.f32.mrb[0].mxu0
      %v662 = vpop.f32.mrb[0].mxu0
      %v663 = vpop.f32.mrb[0].mxu0
      %664 = vdwg.mxu0
      %v665 = vadd.f32 %v555, %v619
      %v666 = vadd.f32 %v556, %v621
      %v667 = vadd.f32 %v557, %v660
      %s668 = scalar_lea.vmem %s0, 8
      %v669 = vld [vmem:[%s668] sm:$0x3]
      %670 = vrot.lane.b32.xlu0 %v239, 109
      %v671 = vpop.permute.xlu0 %670
      %672 = vrot.lane.b32.xlu0 %v240, 109
      %v673 = vpop.permute.xlu0 %672
      %674 = vrot.lane.b32.xlu0 %v241, 109
      %v675 = vpop.permute.xlu0 %674
      %676 = vrot.lane.b32.xlu0 %v244, 109
      %v677 = vpop.permute.xlu0 %676
      %vm678 = vcmask 891904
      %v679 = vsel %vm678, %v671, %v673
      %v680 = vsel %vm678, %v673, %v675
      %v681 = vsel %vm678, %v675, %v677
      %v683 = vsel %vm260, %v669, 0
      %v686 = vsel %vm264, %v679, 0
      %v689 = vsel %vm264, %v680, 0
      %v692 = vsel %vm264, %v681, 0
      %694 = vmatprep.subr.bf16.mxu0 %v689
      %695 = vmatpush1.bf16.msra.mxu0 %v686
      %696 = vmatprep.subr.bf16.mxu0 0
      %697 = vmatpush1.bf16.msra.mxu0 0
      %698 = vmatprep.subr.bf16.mxu0 0
      %699 = vmatpush1.bf16.msra.mxu0 0
      %700 = vmatprep.subr.bf16.mxu0 0
      %701 = vmatpush1.bf16.msra.mxu0 0
      %702 = vmatprep.subr.bf16.mxu0 0
      %703 = vmatpush1.bf16.msra.mxu0 0
      %704 = vmatprep.subr.bf16.mxu0 0
      %705 = vmatpush1.bf16.msra.mxu0 0
      %706 = vmatprep.subr.bf16.mxu0 0
      %707 = vmatpush1.bf16.msra.mxu0 0
      %708 = vmatprep.subr.bf16.mxu0 0
      %709 = vmatpush1.bf16.msra.mxu0 0
      %710 = vmatprep.subr.bf16.mxu0 0
      %711 = vmatpush1.bf16.msra.mxu0 0
      %712 = vmatprep.subr.bf16.mxu0 0
      %713 = vmatpush1.bf16.msra.mxu0 0
      %714 = vmatprep.subr.bf16.mxu0 0
      %715 = vmatpush1.bf16.msra.mxu0 0
      %716 = vmatprep.subr.bf16.mxu0 0
      %717 = vmatpush1.bf16.msra.mxu0 0
      %718 = vmatprep.subr.bf16.mxu0 0
      %719 = vmatpush1.bf16.msra.mxu0 0
      %720 = vmatprep.subr.bf16.mxu0 0
      %721 = vmatpush1.bf16.msra.mxu0 0
      %722 = vmatprep.subr.bf16.mxu0 0
      %723 = vmatpush1.bf16.msra.mxu0 0
      %724 = vmatprep.subr.bf16.mxu0 0
      %725 = vmatpush1.bf16.msra.mxu0 0
      %726 = vmatprep.mubr.bf16.mxu0 0
      %727 = vmatmul.mubr.bf16.gmra.mrb[0].mxu0 %v683
      %v728 = vpop.f32.mrb[0].mxu0
      %v729 = vadd.f32 0.0, %v728
      %v730 = vpop.f32.mrb[0].mxu0
      %v731 = vadd.f32 0.0, %v730
      %v732 = vpop.f32.mrb[0].mxu0
      %v733 = vpop.f32.mrb[0].mxu0
      %734 = vdwg.mxu0
      %735 = vmatprep.subr.bf16.mxu0 0
      %736 = vmatpush1.bf16.msra.mxu0 %v692
      %737 = vmatprep.subr.bf16.mxu0 0
      %738 = vmatpush1.bf16.msra.mxu0 0
      %739 = vmatprep.subr.bf16.mxu0 0
      %740 = vmatpush1.bf16.msra.mxu0 0
      %741 = vmatprep.subr.bf16.mxu0 0
      %742 = vmatpush1.bf16.msra.mxu0 0
      %743 = vmatprep.subr.bf16.mxu0 0
      %744 = vmatpush1.bf16.msra.mxu0 0
      %745 = vmatprep.subr.bf16.mxu0 0
      %746 = vmatpush1.bf16.msra.mxu0 0
      %747 = vmatprep.subr.bf16.mxu0 0
      %748 = vmatpush1.bf16.msra.mxu0 0
      %749 = vmatprep.subr.bf16.mxu0 0
      %750 = vmatpush1.bf16.msra.mxu0 0
      %751 = vmatprep.subr.bf16.mxu0 0
      %752 = vmatpush1.bf16.msra.mxu0 0
      %753 = vmatprep.subr.bf16.mxu0 0
      %754 = vmatpush1.bf16.msra.mxu0 0
      %755 = vmatprep.subr.bf16.mxu0 0
      %756 = vmatpush1.bf16.msra.mxu0 0
      %757 = vmatprep.subr.bf16.mxu0 0
      %758 = vmatpush1.bf16.msra.mxu0 0
      %759 = vmatprep.subr.bf16.mxu0 0
      %760 = vmatpush1.bf16.msra.mxu0 0
      %761 = vmatprep.subr.bf16.mxu0 0
      %762 = vmatpush1.bf16.msra.mxu0 0
      %763 = vmatprep.subr.bf16.mxu0 0
      %764 = vmatpush1.bf16.msra.mxu0 0
      %765 = vmatprep.subr.bf16.mxu0 0
      %766 = vmatpush1.bf16.msra.mxu0 0
      %767 = vmatprep.mubr.bf16.mxu0 0
      %768 = vmatmul.mubr.bf16.gmra.mrb[0].mxu0 %v683
      %v769 = vpop.f32.mrb[0].mxu0
      %v770 = vadd.f32 0.0, %v769
      %v771 = vpop.f32.mrb[0].mxu0
      %v772 = vpop.f32.mrb[0].mxu0
      %v773 = vpop.f32.mrb[0].mxu0
      %774 = vdwg.mxu0
      %v775 = vadd.f32 %v665, %v729
      %v776 = vadd.f32 %v666, %v731
      %v777 = vadd.f32 %v667, %v770
      %s778 = scalar_lea.vmem %s0, 10
      %v779 = vld [vmem:[%s778] sm:$0x3]
      %780 = vrot.lane.b32.xlu0 %v239, 108
      %v781 = vpop.permute.xlu0 %780
      %782 = vrot.lane.b32.xlu0 %v240, 108
      %v783 = vpop.permute.xlu0 %782
      %784 = vrot.lane.b32.xlu0 %v241, 108
      %v785 = vpop.permute.xlu0 %784
      %786 = vrot.lane.b32.xlu0 %v244, 108
      %v787 = vpop.permute.xlu0 %786
      %vm788 = vcmask 883712
      %v789 = vsel %vm788, %v781, %v783
      %v790 = vsel %vm788, %v783, %v785
      %v791 = vsel %vm788, %v785, %v787
      %v793 = vsel %vm260, %v779, 0
      %v796 = vsel %vm264, %v789, 0
      %v799 = vsel %vm264, %v790, 0
      %v802 = vsel %vm264, %v791, 0
      %804 = vmatprep.subr.bf16.mxu0 %v799
      %805 = vmatpush1.bf16.msra.mxu0 %v796
      %806 = vmatprep.subr.bf16.mxu0 0
      %807 = vmatpush1.bf16.msra.mxu0 0
      %808 = vmatprep.subr.bf16.mxu0 0
      %809 = vmatpush1.bf16.msra.mxu0 0
      %810 = vmatprep.subr.bf16.mxu0 0
      %811 = vmatpush1.bf16.msra.mxu0 0
      %812 = vmatprep.subr.bf16.mxu0 0
      %813 = vmatpush1.bf16.msra.mxu0 0
      %814 = vmatprep.subr.bf16.mxu0 0
      %815 = vmatpush1.bf16.msra.mxu0 0
      %816 = vmatprep.subr.bf16.mxu0 0
      %817 = vmatpush1.bf16.msra.mxu0 0
      %818 = vmatprep.subr.bf16.mxu0 0
      %819 = vmatpush1.bf16.msra.mxu0 0
      %820 = vmatprep.subr.bf16.mxu0 0
      %821 = vmatpush1.bf16.msra.mxu0 0
      %822 = vmatprep.subr.bf16.mxu0 0
      %823 = vmatpush1.bf16.msra.mxu0 0
      %824 = vmatprep.subr.bf16.mxu0 0
      %825 = vmatpush1.bf16.msra.mxu0 0
      %826 = vmatprep.subr.bf16.mxu0 0
      %827 = vmatpush1.bf16.msra.mxu0 0
      %828 = vmatprep.subr.bf16.mxu0 0
      %829 = vmatpush1.bf16.msra.mxu0 0
      %830 = vmatprep.subr.bf16.mxu0 0
      %831 = vmatpush1.bf16.msra.mxu0 0
      %832 = vmatprep.subr.bf16.mxu0 0
      %833 = vmatpush1.bf16.msra.mxu0 0
      %834 = vmatprep.subr.bf16.mxu0 0
      %835 = vmatpush1.bf16.msra.mxu0 0
      %836 = vmatprep.mubr.bf16.mxu0 0
      %837 = vmatmul.mubr.bf16.gmra.mrb[0].mxu0 %v793
      %v838 = vpop.f32.mrb[0].mxu0
      %v839 = vadd.f32 0.0, %v838
      %v840 = vpop.f32.mrb[0].mxu0
      %v841 = vadd.f32 0.0, %v840
      %v842 = vpop.f32.mrb[0].mxu0
      %v843 = vpop.f32.mrb[0].mxu0
      %844 = vdwg.mxu0
      %845 = vmatprep.subr.bf16.mxu0 0
      %846 = vmatpush1.bf16.msra.mxu0 %v802
      %847 = vmatprep.subr.bf16.mxu0 0
      %848 = vmatpush1.bf16.msra.mxu0 0
      %849 = vmatprep.subr.bf16.mxu0 0
      %850 = vmatpush1.bf16.msra.mxu0 0
      %851 = vmatprep.subr.bf16.mxu0 0
      %852 = vmatpush1.bf16.msra.mxu0 0
      %853 = vmatprep.subr.bf16.mxu0 0
      %854 = vmatpush1.bf16.msra.mxu0 0
      %855 = vmatprep.subr.bf16.mxu0 0
      %856 = vmatpush1.bf16.msra.mxu0 0
      %857 = vmatprep.subr.bf16.mxu0 0
      %858 = vmatpush1.bf16.msra.mxu0 0
      %859 = vmatprep.subr.bf16.mxu0 0
      %860 = vmatpush1.bf16.msra.mxu0 0
      %861 = vmatprep.subr.bf16.mxu0 0
      %862 = vmatpush1.bf16.msra.mxu0 0
      %863 = vmatprep.subr.bf16.mxu0 0
      %864 = vmatpush1.bf16.msra.mxu0 0
      %865 = vmatprep.subr.bf16.mxu0 0
      %866 = vmatpush1.bf16.msra.mxu0 0
      %867 = vmatprep.subr.bf16.mxu0 0
      %868 = vmatpush1.bf16.msra.mxu0 0
      %869 = vmatprep.subr.bf16.mxu0 0
      %870 = vmatpush1.bf16.msra.mxu0 0
      %871 = vmatprep.subr.bf16.mxu0 0
      %872 = vmatpush1.bf16.msra.mxu0 0
      %873 = vmatprep.subr.bf16.mxu0 0
      %874 = vmatpush1.bf16.msra.mxu0 0
      %875 = vmatprep.subr.bf16.mxu0 0
      %876 = vmatpush1.bf16.msra.mxu0 0
      %877 = vmatprep.mubr.bf16.mxu0 0
      %878 = vmatmul.mubr.bf16.gmra.mrb[0].mxu0 %v793
      %v879 = vpop.f32.mrb[0].mxu0
      %v880 = vadd.f32 0.0, %v879
      %v881 = vpop.f32.mrb[0].mxu0
      %v882 = vpop.f32.mrb[0].mxu0
      %v883 = vpop.f32.mrb[0].mxu0
      %884 = vdwg.mxu0
      %v885 = vadd.f32 %v775, %v839
      %v886 = vadd.f32 %v776, %v841
      %v887 = vadd.f32 %v777, %v880
      %s888 = scalar_lea.vmem %s0, 12
      %v889 = vld [vmem:[%s888] sm:$0x3]
      %890 = vrot.lane.b32.xlu0 %v239, 92
      %v891 = vpop.permute.xlu0 %890
      %892 = vrot.lane.b32.xlu0 %v240, 92
      %v893 = vpop.permute.xlu0 %892
      %894 = vrot.lane.b32.xlu0 %v241, 92
      %v895 = vpop.permute.xlu0 %894
      %896 = vrot.lane.b32.xlu0 %v244, 92
      %v897 = vpop.permute.xlu0 %896
      %vm898 = vcmask 752640
      %v899 = vsel %vm898, %v891, %v893
      %v900 = vsel %vm898, %v893, %v895
      %v901 = vsel %vm898, %v895, %v897
      %v903 = vsel %vm260, %v889, 0
      %v906 = vsel %vm264, %v899, 0
      %v909 = vsel %vm264, %v900, 0
      %v912 = vsel %vm264, %v901, 0
      %914 = vmatprep.subr.bf16.mxu0 %v909
      %915 = vmatpush1.bf16.msra.mxu0 %v906
      %916 = vmatprep.subr.bf16.mxu0 0
      %917 = vmatpush1.bf16.msra.mxu0 0
      %918 = vmatprep.subr.bf16.mxu0 0
      %919 = vmatpush1.bf16.msra.mxu0 0
      %920 = vmatprep.subr.bf16.mxu0 0
      %921 = vmatpush1.bf16.msra.mxu0 0
      %922 = vmatprep.subr.bf16.mxu0 0
      %923 = vmatpush1.bf16.msra.mxu0 0
      %924 = vmatprep.subr.bf16.mxu0 0
      %925 = vmatpush1.bf16.msra.mxu0 0
      %926 = vmatprep.subr.bf16.mxu0 0
      %927 = vmatpush1.bf16.msra.mxu0 0
      %928 = vmatprep.subr.bf16.mxu0 0
      %929 = vmatpush1.bf16.msra.mxu0 0
      %930 = vmatprep.subr.bf16.mxu0 0
      %931 = vmatpush1.bf16.msra.mxu0 0
      %932 = vmatprep.subr.bf16.mxu0 0
      %933 = vmatpush1.bf16.msra.mxu0 0
      %934 = vmatprep.subr.bf16.mxu0 0
      %935 = vmatpush1.bf16.msra.mxu0 0
      %936 = vmatprep.subr.bf16.mxu0 0
      %937 = vmatpush1.bf16.msra.mxu0 0
      %938 = vmatprep.subr.bf16.mxu0 0
      %939 = vmatpush1.bf16.msra.mxu0 0
      %940 = vmatprep.subr.bf16.mxu0 0
      %941 = vmatpush1.bf16.msra.mxu0 0
      %942 = vmatprep.subr.bf16.mxu0 0
      %943 = vmatpush1.bf16.msra.mxu0 0
      %944 = vmatprep.subr.bf16.mxu0 0
      %945 = vmatpush1.bf16.msra.mxu0 0
      %946 = vmatprep.mubr.bf16.mxu0 0
      %947 = vmatmul.mubr.bf16.gmra.mrb[0].mxu0 %v903
      %v948 = vpop.f32.mrb[0].mxu0
      %v949 = vadd.f32 0.0, %v948
      %v950 = vpop.f32.mrb[0].mxu0
      %v951 = vadd.f32 0.0, %v950
      %v952 = vpop.f32.mrb[0].mxu0
      %v953 = vpop.f32.mrb[0].mxu0
      %954 = vdwg.mxu0
      %955 = vmatprep.subr.bf16.mxu0 0
      %956 = vmatpush1.bf16.msra.mxu0 %v912
      %957 = vmatprep.subr.bf16.mxu0 0
      %958 = vmatpush1.bf16.msra.mxu0 0
      %959 = vmatprep.subr.bf16.mxu0 0
      %960 = vmatpush1.bf16.msra.mxu0 0
      %961 = vmatprep.subr.bf16.mxu0 0
      %962 = vmatpush1.bf16.msra.mxu0 0
      %963 = vmatprep.subr.bf16.mxu0 0
      %964 = vmatpush1.bf16.msra.mxu0 0
      %965 = vmatprep.subr.bf16.mxu0 0
      %966 = vmatpush1.bf16.msra.mxu0 0
      %967 = vmatprep.subr.bf16.mxu0 0
      %968 = vmatpush1.bf16.msra.mxu0 0
      %969 = vmatprep.subr.bf16.mxu0 0
      %970 = vmatpush1.bf16.msra.mxu0 0
      %971 = vmatprep.subr.bf16.mxu0 0
      %972 = vmatpush1.bf16.msra.mxu0 0
      %973 = vmatprep.subr.bf16.mxu0 0
      %974 = vmatpush1.bf16.msra.mxu0 0
      %975 = vmatprep.subr.bf16.mxu0 0
      %976 = vmatpush1.bf16.msra.mxu0 0
      %977 = vmatprep.subr.bf16.mxu0 0
      %978 = vmatpush1.bf16.msra.mxu0 0
      %979 = vmatprep.subr.bf16.mxu0 0
      %980 = vmatpush1.bf16.msra.mxu0 0
      %981 = vmatprep.subr.bf16.mxu0 0
      %982 = vmatpush1.bf16.msra.mxu0 0
      %983 = vmatprep.subr.bf16.mxu0 0
      %984 = vmatpush1.bf16.msra.mxu0 0
      %985 = vmatprep.subr.bf16.mxu0 0
      %986 = vmatpush1.bf16.msra.mxu0 0
      %987 = vmatprep.mubr.bf16.mxu0 0
      %988 = vmatmul.mubr.bf16.gmra.mrb[0].mxu0 %v903
      %v989 = vpop.f32.mrb[0].mxu0
      %v990 = vadd.f32 0.0, %v989
      %v991 = vpop.f32.mrb[0].mxu0
      %v992 = vpop.f32.mrb[0].mxu0
      %v993 = vpop.f32.mrb[0].mxu0
      %994 = vdwg.mxu0
      %v995 = vadd.f32 %v885, %v949
      %v996 = vadd.f32 %v886, %v951
      %v997 = vadd.f32 %v887, %v990
      %s998 = scalar_lea.vmem %s0, 14
      %v999 = vld [vmem:[%s998] sm:$0x3]
      %1000 = vrot.lane.b32.xlu0 %v239, 91
      %v1001 = vpop.permute.xlu0 %1000
      %1002 = vrot.lane.b32.xlu0 %v240, 91
      %v1003 = vpop.permute.xlu0 %1002
      %1004 = vrot.lane.b32.xlu0 %v241, 91
      %v1005 = vpop.permute.xlu0 %1004
      %1006 = vrot.lane.b32.xlu0 %v244, 91
      %v1007 = vpop.permute.xlu0 %1006
      %vm1008 = vcmask 744448
      %v1009 = vsel %vm1008, %v1001, %v1003
      %v1010 = vsel %vm1008, %v1003, %v1005
      %v1011 = vsel %vm1008, %v1005, %v1007
      %v1013 = vsel %vm260, %v999, 0
      %v1016 = vsel %vm264, %v1009, 0
      %v1019 = vsel %vm264, %v1010, 0
      %v1022 = vsel %vm264, %v1011, 0
      %1024 = vmatprep.subr.bf16.mxu0 %v1019
      %1025 = vmatpush1.bf16.msra.mxu0 %v1016
      %1026 = vmatprep.subr.bf16.mxu0 0
      %1027 = vmatpush1.bf16.msra.mxu0 0
      %1028 = vmatprep.subr.bf16.mxu0 0
      %1029 = vmatpush1.bf16.msra.mxu0 0
      %1030 = vmatprep.subr.bf16.mxu0 0
      %1031 = vmatpush1.bf16.msra.mxu0 0
      %1032 = vmatprep.subr.bf16.mxu0 0
      %1033 = vmatpush1.bf16.msra.mxu0 0
      %1034 = vmatprep.subr.bf16.mxu0 0
      %1035 = vmatpush1.bf16.msra.mxu0 0
      %1036 = vmatprep.subr.bf16.mxu0 0
      %1037 = vmatpush1.bf16.msra.mxu0 0
      %1038 = vmatprep.subr.bf16.mxu0 0
      %1039 = vmatpush1.bf16.msra.mxu0 0
      %1040 = vmatprep.subr.bf16.mxu0 0
      %1041 = vmatpush1.bf16.msra.mxu0 0
      %1042 = vmatprep.subr.bf16.mxu0 0
      %1043 = vmatpush1.bf16.msra.mxu0 0
      %1044 = vmatprep.subr.bf16.mxu0 0
      %1045 = vmatpush1.bf16.msra.mxu0 0
      %1046 = vmatprep.subr.bf16.mxu0 0
      %1047 = vmatpush1.bf16.msra.mxu0 0
      %1048 = vmatprep.subr.bf16.mxu0 0
      %1049 = vmatpush1.bf16.msra.mxu0 0
      %1050 = vmatprep.subr.bf16.mxu0 0
      %1051 = vmatpush1.bf16.msra.mxu0 0
      %1052 = vmatprep.subr.bf16.mxu0 0
      %1053 = vmatpush1.bf16.msra.mxu0 0
      %1054 = vmatprep.subr.bf16.mxu0 0
      %1055 = vmatpush1.bf16.msra.mxu0 0
      %1056 = vmatprep.mubr.bf16.mxu0 0
      %1057 = vmatmul.mubr.bf16.gmra.mrb[0].mxu0 %v1013
      %v1058 = vpop.f32.mrb[0].mxu0
      %v1059 = vadd.f32 0.0, %v1058
      %v1060 = vpop.f32.mrb[0].mxu0
      %v1061 = vadd.f32 0.0, %v1060
      %v1062 = vpop.f32.mrb[0].mxu0
      %v1063 = vpop.f32.mrb[0].mxu0
      %1064 = vdwg.mxu0
      %1065 = vmatprep.subr.bf16.mxu0 0
      %1066 = vmatpush1.bf16.msra.mxu0 %v1022
      %1067 = vmatprep.subr.bf16.mxu0 0
      %1068 = vmatpush1.bf16.msra.mxu0 0
      %1069 = vmatprep.subr.bf16.mxu0 0
      %1070 = vmatpush1.bf16.msra.mxu0 0
      %1071 = vmatprep.subr.bf16.mxu0 0
      %1072 = vmatpush1.bf16.msra.mxu0 0
      %1073 = vmatprep.subr.bf16.mxu0 0
      %1074 = vmatpush1.bf16.msra.mxu0 0
      %1075 = vmatprep.subr.bf16.mxu0 0
      %1076 = vmatpush1.bf16.msra.mxu0 0
      %1077 = vmatprep.subr.bf16.mxu0 0
      %1078 = vmatpush1.bf16.msra.mxu0 0
      %1079 = vmatprep.subr.bf16.mxu0 0
      %1080 = vmatpush1.bf16.msra.mxu0 0
      %1081 = vmatprep.subr.bf16.mxu0 0
      %1082 = vmatpush1.bf16.msra.mxu0 0
      %1083 = vmatprep.subr.bf16.mxu0 0
      %1084 = vmatpush1.bf16.msra.mxu0 0
      %1085 = vmatprep.subr.bf16.mxu0 0
      %1086 = vmatpush1.bf16.msra.mxu0 0
      %1087 = vmatprep.subr.bf16.mxu0 0
      %1088 = vmatpush1.bf16.msra.mxu0 0
      %1089 = vmatprep.subr.bf16.mxu0 0
      %1090 = vmatpush1.bf16.msra.mxu0 0
      %1091 = vmatprep.subr.bf16.mxu0 0
      %1092 = vmatpush1.bf16.msra.mxu0 0
      %1093 = vmatprep.subr.bf16.mxu0 0
      %1094 = vmatpush1.bf16.msra.mxu0 0
      %1095 = vmatprep.subr.bf16.mxu0 0
      %1096 = vmatpush1.bf16.msra.mxu0 0
      %1097 = vmatprep.mubr.bf16.mxu0 0
      %1098 = vmatmul.mubr.bf16.gmra.mrb[0].mxu0 %v1013
      %v1099 = vpop.f32.mrb[0].mxu0
      %v1100 = vadd.f32 0.0, %v1099
      %v1101 = vpop.f32.mrb[0].mxu0
      %v1102 = vpop.f32.mrb[0].mxu0
      %v1103 = vpop.f32.mrb[0].mxu0
      %1104 = vdwg.mxu0
      %v1105 = vadd.f32 %v995, %v1059
      %v1106 = vadd.f32 %v996, %v1061
      %v1107 = vadd.f32 %v997, %v1100
      %s1108 = scalar_lea.vmem %s0, 16
      %v1109 = vld [vmem:[%s1108] sm:$0x3]
      %1110 = vrot.lane.b32.xlu0 %v239, 90
      %v1111 = vpop.permute.xlu0 %1110
      %1112 = vrot.lane.b32.xlu0 %v240, 90
      %v1113 = vpop.permute.xlu0 %1112
      %1114 = vrot.lane.b32.xlu0 %v241, 90
      %v1115 = vpop.permute.xlu0 %1114
      %1116 = vrot.lane.b32.xlu0 %v244, 90
      %v1117 = vpop.permute.xlu0 %1116
      %vm1118 = vcmask 736256
      %v1119 = vsel %vm1118, %v1111, %v1113
      %v1120 = vsel %vm1118, %v1113, %v1115
      %v1121 = vsel %vm1118, %v1115, %v1117
      %v1123 = vsel %vm260, %v1109, 0
      %v1126 = vsel %vm264, %v1119, 0
      %v1129 = vsel %vm264, %v1120, 0
      %v1132 = vsel %vm264, %v1121, 0
      %1134 = vmatprep.subr.bf16.mxu0 %v1129
      %1135 = vmatpush1.bf16.msra.mxu0 %v1126
      %1136 = vmatprep.subr.bf16.mxu0 0
      %1137 = vmatpush1.bf16.msra.mxu0 0
      %1138 = vmatprep.subr.bf16.mxu0 0
      %1139 = vmatpush1.bf16.msra.mxu0 0
      %1140 = vmatprep.subr.bf16.mxu0 0
      %1141 = vmatpush1.bf16.msra.mxu0 0
      %1142 = vmatprep.subr.bf16.mxu0 0
      %1143 = vmatpush1.bf16.msra.mxu0 0
      %1144 = vmatprep.subr.bf16.mxu0 0
      %1145 = vmatpush1.bf16.msra.mxu0 0
      %1146 = vmatprep.subr.bf16.mxu0 0
      %1147 = vmatpush1.bf16.msra.mxu0 0
      %1148 = vmatprep.subr.bf16.mxu0 0
      %1149 = vmatpush1.bf16.msra.mxu0 0
      %1150 = vmatprep.subr.bf16.mxu0 0
      %1151 = vmatpush1.bf16.msra.mxu0 0
      %1152 = vmatprep.subr.bf16.mxu0 0
      %1153 = vmatpush1.bf16.msra.mxu0 0
      %1154 = vmatprep.subr.bf16.mxu0 0
      %1155 = vmatpush1.bf16.msra.mxu0 0
      %1156 = vmatprep.subr.bf16.mxu0 0
      %1157 = vmatpush1.bf16.msra.mxu0 0
      %1158 = vmatprep.subr.bf16.mxu0 0
      %1159 = vmatpush1.bf16.msra.mxu0 0
      %1160 = vmatprep.subr.bf16.mxu0 0
      %1161 = vmatpush1.bf16.msra.mxu0 0
      %1162 = vmatprep.subr.bf16.mxu0 0
      %1163 = vmatpush1.bf16.msra.mxu0 0
      %1164 = vmatprep.subr.bf16.mxu0 0
      %1165 = vmatpush1.bf16.msra.mxu0 0
      %1166 = vmatprep.mubr.bf16.mxu0 0
      %1167 = vmatmul.mubr.bf16.gmra.mrb[0].mxu0 %v1123
      %v1168 = vpop.f32.mrb[0].mxu0
      %v1169 = vadd.f32 0.0, %v1168
      %v1170 = vpop.f32.mrb[0].mxu0
      %v1171 = vadd.f32 0.0, %v1170
      %v1172 = vpop.f32.mrb[0].mxu0
      %v1173 = vpop.f32.mrb[0].mxu0
      %1174 = vdwg.mxu0
      %1175 = vmatprep.subr.bf16.mxu0 0
      %1176 = vmatpush1.bf16.msra.mxu0 %v1132
      %1177 = vmatprep.subr.bf16.mxu0 0
      %1178 = vmatpush1.bf16.msra.mxu0 0
      %1179 = vmatprep.subr.bf16.mxu0 0
      %1180 = vmatpush1.bf16.msra.mxu0 0
      %1181 = vmatprep.subr.bf16.mxu0 0
      %1182 = vmatpush1.bf16.msra.mxu0 0
      %1183 = vmatprep.subr.bf16.mxu0 0
      %1184 = vmatpush1.bf16.msra.mxu0 0
      %1185 = vmatprep.subr.bf16.mxu0 0
      %1186 = vmatpush1.bf16.msra.mxu0 0
      %1187 = vmatprep.subr.bf16.mxu0 0
      %1188 = vmatpush1.bf16.msra.mxu0 0
      %1189 = vmatprep.subr.bf16.mxu0 0
      %1190 = vmatpush1.bf16.msra.mxu0 0
      %1191 = vmatprep.subr.bf16.mxu0 0
      %1192 = vmatpush1.bf16.msra.mxu0 0
      %1193 = vmatprep.subr.bf16.mxu0 0
      %1194 = vmatpush1.bf16.msra.mxu0 0
      %1195 = vmatprep.subr.bf16.mxu0 0
      %1196 = vmatpush1.bf16.msra.mxu0 0
      %1197 = vmatprep.subr.bf16.mxu0 0
      %1198 = vmatpush1.bf16.msra.mxu0 0
      %1199 = vmatprep.subr.bf16.mxu0 0
      %1200 = vmatpush1.bf16.msra.mxu0 0
      %1201 = vmatprep.subr.bf16.mxu0 0
      %1202 = vmatpush1.bf16.msra.mxu0 0
      %1203 = vmatprep.subr.bf16.mxu0 0
      %1204 = vmatpush1.bf16.msra.mxu0 0
      %1205 = vmatprep.subr.bf16.mxu0 0
      %1206 = vmatpush1.bf16.msra.mxu0 0
      %1207 = vmatprep.mubr.bf16.mxu0 0
      %1208 = vmatmul.mubr.bf16.gmra.mrb[0].mxu0 %v1123
      %v1209 = vpop.f32.mrb[0].mxu0
      %v1210 = vadd.f32 0.0, %v1209
      %v1211 = vpop.f32.mrb[0].mxu0
      %v1212 = vpop.f32.mrb[0].mxu0
      %v1213 = vpop.f32.mrb[0].mxu0
      %1214 = vdwg.mxu0
      %v1215 = vadd.f32 %v1105, %v1169
      %v1216 = vadd.f32 %v1106, %v1171
      %v1217 = vadd.f32 %v1107, %v1210
      %v1218 = vld [vmem:[%s1] sm:$0xf]
      %1220 = vset.pattern.permute.xlu0 0
      %1221 = vperm.xlu0 %1220, %v1218
      %v1222 = vpop.permute.xlu0 %1221
      %v1224 = vadd.f32 %v1215, %v1222
      %v1225 = vadd.f32 %v1216, %v1222
      %v1226 = vadd.f32 %v1217, %v1222
      %vm1227 = vcmp.ge.f32.partialorder %v1224, 0.0
      %vm1228 = vcmp.ge.f32.partialorder %v1225, 0.0
      %vm1229 = vcmp.ge.f32.partialorder %v1226, 0.0
      %v1230 = vmul.f32 %v1224, 0.2
      %v1231 = vmul.f32 %v1225, 0.2
      %v1232 = vmul.f32 %v1226, 0.2
      %v1233 = vsel %vm1227, %v1224, %v1230
      %v1234 = vsel %vm1228, %v1225, %v1231
      %v1235 = vsel %vm1229, %v1226, %v1232
      %v1236 = vpack.c.bf16 %v1233, %v1233
      %v1237 = vpack.c.bf16 %v1234, %v1234
      %v1238 = vpack.c.bf16 %v1235, %v1235
      %v1242 = vcombine.low %v1236, %v1237
      %v1244 = vunpack.c.l.s4 1983009808
      %v1245 = vunpack.c.0.s8 %v1244
      %v1246 = vlaneseq
      %v1247 = vshrl.u32 %v1246, 7
      %v1248 = vsub.s32 %v1245, %v1247
      %v1249 = vrot.slane %v1242, %v1248
      %v1251 = vunpack.c.l.s4 1983009808
      %v1252 = vunpack.c.0.s8 %v1251
      %v1253 = vlaneseq
      %v1254 = vshrl.u32 %v1253, 7
      %v1255 = vsub.s32 %v1252, %v1254
      %v1256 = vrot.slane %v1238, %v1255
      %v1257 = vcombine.low %v1249, %v1256
      %1259 = vst [vmem:[%s228] sm:$0x3f] %v1257
      %s1260 = smul.u32 3, %s15
      %p1261 = scmp.lt.s32.totalorder %s1260, 5
      %s1262 = scalar_select %p1261, %s1260, 5
      %s1263 = smul.addr %s1262, 2
      %s1264 = scalar_lea.vmem %s4, %s1263
      // Predicated region
      $region37: #{unetwork_forward.20} parent=35 // pred_check
        %p1265 = pneg %p129
      $region38: #{unetwork_forward.20} parent=35 // pred_check_branch
        %1267 = sbr.rel (%p1265) target = $region40
      $region39: #{unetwork_forward.20} parent=35 // pred_region
        %s1268 = smul.u32 3, %s15
      $region40: #{unetwork_forward.20} parent=35 // pred_fallthru
        _
    $region36: #{unetwork_forward.20} parent=5 // pred_fallthru
      _
    %p1269 = scmp.le.s32.totalorder 2, %s10
    // Predicated region
    $region41: #{unetwork_forward.20} parent=5 // pred_check
      %p1270 = pneg %p1269
    $region42: #{unetwork_forward.20} parent=5 // pred_check_branch
      %1272 = sbr.rel (%p1270) target = $region44
    $region43: #{unetwork_forward.20} parent=5 // pred_region
      %s1273 = ssub.s32 %s10, 2
      // Predicated region
      $region45: #{unetwork_forward.20} parent=43 // pred_check
        %p1274 = pneg %p135
      $region46: #{unetwork_forward.20} parent=43 // pred_check_branch
        %1276 = sbr.rel (%p1274) target = $region48
      $region47: #{unetwork_forward.20} parent=43 // pred_region
        %s1277 = smul.u32 3, %s16
        %p1278 = scmp.lt.s32.totalorder %s1277, 5
        %s1279 = scalar_select %p1278, %s1277, 5
        %s1280 = smul.addr %s1279, 2
        %s1281 = scalar_lea.vmem %s4, %s1280
      $region48: #{unetwork_forward.20} parent=43 // pred_fallthru
        _
    $region44: #{unetwork_forward.20} parent=5 // pred_fallthru
      _
  $region6: #{unetwork_forward.20} parent=0 // loop_footer
    %s14 = sadd.s32 1, %s10
  $region7: #{unetwork_forward.20} parent=0 // loop_footer_branch
    %9 = sbr.rel target = $region3
  $region8: #{unetwork_forward.20} parent=0 // loop_exit
    _

// kernel: unetwork_forward.21
$region0: #{unetwork_forward.21}
  #allocation0 [shape = 'u32[]', space=smem, size = 0x4, offset = 0x4, fixed_abs, tag = 'smem constant byte address 0x4 - core index']
  #allocation1 [shape = 'u32[144,128]{1,0:T(1,128)}', space=vmem, size = 0x12000, scoped, tag = 'internal scratch']
  %s0 = inlined_call_operand.vmem [shape: bf16[9,2,4], index: 0, kind: input, shape index: {}]
  %s1 = inlined_call_operand.vmem [shape: f32[2,1], index: 1, kind: input, shape index: {}]
  %s2 = inlined_call_operand.vmem [shape: bf16[4,1152], index: 2, kind: input, shape index: {}, may-alias: {2,3}]
  %s3 = inlined_call_operand.vmem [shape: bf16[4,1152], index: 3, kind: input, shape index: {}, may-alias: {2,3}]
  %s4 = inlined_call_operand.vmem [shape: f32[2,768], index: 4, kind: output, shape index: {}]
  %s5 = sld [smem:[#allocation0]]
  $region49: #{unetwork_forward.21} parent=0
    _
  %s7 = ssub.s32 1, %s5
  %s8 = scalar_select 0, %s7, %s5
  loop: start=0, step=1, limit=4
  $region2: #{unetwork_forward.21} parent=0 // loop_pre_header
    _
  $region3: #{unetwork_forward.21} parent=0 // loop_header
    %s10 = sphi 0, %s14
    %p11 = scmp.ge.s32.totalorder %s10, 4
    %s18 = sphi 0, %s18
    %s20 = sphi 0, %s18
    %s21 = sphi 0, %s20
    %s35 = sphi 0, %s21
    %s39 = sphi 0, %s39
    %s41 = sphi 0, %s39
    %s42 = sphi 0, %s41
    %s56 = sphi 0, %s42
    %s62 = sphi 0, %s64
    %s65 = sphi 0, %s62
    %s66 = sphi 0, %s65
    %s82 = sphi 0, %s66
    %s90 = sphi 0, %s92
    %s93 = sphi 0, %s90
    %s94 = sphi 0, %s93
    %s110 = sphi 0, %s94
    %s116 = sphi 0, %s118
    %s119 = sphi 0, %s116
    %s120 = sphi 0, %s119
    %s136 = sphi 0, %s120
  $region4: #{unetwork_forward.21} parent=0 // loop_header_branch
    %13 = sbr.rel (%p11) target = $region8
  $region5: #{unetwork_forward.21} parent=0 // loop_body
    %s15 = ssub.s32 %s10, 1
    %s16 = ssub.s32 %s10, 2
    %s17 = sadd.s32 %s10, 1
    %s19 = sadd.s32 %s18, 1
    %p22 = scmp.eq.s32.totalorder %s10, 1
    %p23 = scmp.ne.s32.totalorder %s18, %s20
    %p24 = scmp.eq.s32.totalorder %s10, 0
    %p25 = por %p23, %p24
    %p26 = scmp.ne.s32.totalorder %s18, %s20
    %p27 = scmp.eq.s32.totalorder %s15, 1
    %p28 = por %p26, %p27
    %p29 = scmp.ne.s32.totalorder %s20, %s21
    %p30 = scmp.eq.s32.totalorder %s15, 0
    %p31 = por %p29, %p30
    %p32 = scmp.ne.s32.totalorder %s20, %s21
    %p33 = scmp.eq.s32.totalorder %s16, 1
    %p34 = por %p32, %p33
    %p36 = scmp.ne.s32.totalorder %s21, %s35
    %p37 = scmp.eq.s32.totalorder %s16, 0
    %p38 = por %p36, %p37
    %s40 = sadd.s32 %s39, 1
    %p43 = scmp.eq.s32.totalorder %s10, 1
    %p44 = scmp.ne.s32.totalorder %s39, %s41
    %p45 = scmp.eq.s32.totalorder %s10, 0
    %p46 = por %p44, %p45
    %p47 = scmp.ne.s32.totalorder %s39, %s41
    %p48 = scmp.eq.s32.totalorder %s15, 1
    %p49 = por %p47, %p48
    %p50 = scmp.ne.s32.totalorder %s41, %s42
    %p51 = scmp.eq.s32.totalorder %s15, 0
    %p52 = por %p50, %p51
    %p53 = scmp.ne.s32.totalorder %s41, %s42
    %p54 = scmp.eq.s32.totalorder %s16, 1
    %p55 = por %p53, %p54
    %p57 = scmp.ne.s32.totalorder %s42, %s56
    %p58 = scmp.eq.s32.totalorder %s16, 0
    %p59 = por %p57, %p58
    %s60 = ssub.s32 %s10, %s17
    %p61 = scmp.eq.s32.totalorder %s60, 0
    %s63 = sadd.s32 %s62, 1
    %s64 = scalar_select %p61, %s62, %s63
    %p67 = pneg %p61
    %p68 = scmp.eq.s32.totalorder %s10, 1
    %p69 = por %p67, %p68
    %p70 = scmp.ne.s32.totalorder %s62, %s65
    %p71 = scmp.eq.s32.totalorder %s10, 0
    %p72 = por %p70, %p71
    %p73 = scmp.ne.s32.totalorder %s62, %s65
    %p74 = scmp.eq.s32.totalorder %s15, 1
    %p75 = por %p73, %p74
    %p76 = scmp.ne.s32.totalorder %s65, %s66
    %p77 = scmp.eq.s32.totalorder %s15, 0
    %p78 = por %p76, %p77
    %p79 = scmp.ne.s32.totalorder %s65, %s66
    %p80 = scmp.eq.s32.totalorder %s16, 1
    %p81 = por %p79, %p80
    %p83 = scmp.ne.s32.totalorder %s66, %s82
    %p84 = scmp.eq.s32.totalorder %s16, 0
    %p85 = por %p83, %p84
    %s86 = sadd.s32 %s10, 1
    %s87 = sadd.s32 %s17, 1
    %s88 = ssub.s32 %s86, %s87
    %p89 = scmp.eq.s32.totalorder %s88, 0
    %s91 = sadd.s32 %s90, 1
    %s92 = scalar_select %p89, %s90, %s91
    %p95 = pneg %p89
    %p96 = scmp.eq.s32.totalorder %s10, 1
    %p97 = por %p95, %p96
    %p98 = scmp.ne.s32.totalorder %s90, %s93
    %p99 = scmp.eq.s32.totalorder %s10, 0
    %p100 = por %p98, %p99
    %p101 = scmp.ne.s32.totalorder %s90, %s93
    %p102 = scmp.eq.s32.totalorder %s15, 1
    %p103 = por %p101, %p102
    %p104 = scmp.ne.s32.totalorder %s93, %s94
    %p105 = scmp.eq.s32.totalorder %s15, 0
    %p106 = por %p104, %p105
    %p107 = scmp.ne.s32.totalorder %s93, %s94
    %p108 = scmp.eq.s32.totalorder %s16, 1
    %p109 = por %p107, %p108
    %p111 = scmp.ne.s32.totalorder %s94, %s110
    %p112 = scmp.eq.s32.totalorder %s16, 0
    %p113 = por %p111, %p112
    %s114 = ssub.s32 %s10, %s17
    %p115 = scmp.eq.s32.totalorder %s114, 0
    %s117 = sadd.s32 %s116, 1
    %s118 = scalar_select %p115, %s116, %s117
    %p121 = pneg %p115
    %p122 = scmp.eq.s32.totalorder %s10, 1
    %p123 = por %p121, %p122
    %p124 = scmp.ne.s32.totalorder %s116, %s119
    %p125 = scmp.eq.s32.totalorder %s10, 0
    %p126 = por %p124, %p125
    %p127 = scmp.ne.s32.totalorder %s116, %s119
    %p128 = scmp.eq.s32.totalorder %s15, 1
    %p129 = por %p127, %p128
    %p130 = scmp.ne.s32.totalorder %s119, %s120
    %p131 = scmp.eq.s32.totalorder %s15, 0
    %p132 = por %p130, %p131
    %p133 = scmp.ne.s32.totalorder %s119, %s120
    %p134 = scmp.eq.s32.totalorder %s16, 1
    %p135 = por %p133, %p134
    %p137 = scmp.ne.s32.totalorder %s120, %s136
    %p138 = scmp.eq.s32.totalorder %s16, 0
    %p139 = por %p137, %p138
    %p140 = scmp.le.s32.totalorder 1, %s10
    %p141 = scmp.lt.s32.totalorder %s10, 3
    %p142 = pnand %p140, %p141
    %p143 = pneg %p142
    // Predicated region
    $region9: #{unetwork_forward.21} parent=5 // pred_check
      _
    $region10: #{unetwork_forward.21} parent=5 // pred_check_branch
      %145 = sbr.rel (%p142) target = $region12
    $region11: #{unetwork_forward.21} parent=5 // pred_region
      %s146 = ssub.s32 %s10, 1
      // Predicated region
      $region13: #{unetwork_forward.21} parent=11 // pred_check
        %p147 = pneg %p31
      $region14: #{unetwork_forward.21} parent=11 // pred_check_branch
        %149 = sbr.rel (%p147) target = $region16
      $region15: #{unetwork_forward.21} parent=11 // pred_region
        _
      $region16: #{unetwork_forward.21} parent=11 // pred_fallthru
        _
      // Predicated region
      $region17: #{unetwork_forward.21} parent=11 // pred_check
        %p150 = pneg %p52
      $region18: #{unetwork_forward.21} parent=11 // pred_check_branch
        %152 = sbr.rel (%p150) target = $region20
      $region19: #{unetwork_forward.21} parent=11 // pred_region
        _
      $region20: #{unetwork_forward.21} parent=11 // pred_fallthru
        _
    $region12: #{unetwork_forward.21} parent=5 // pred_fallthru
      _
    %p153 = scmp.lt.s32.totalorder %s10, 2
    // Predicated region
    $region21: #{unetwork_forward.21} parent=5 // pred_check
      %p154 = pneg %p153
    $region22: #{unetwork_forward.21} parent=5 // pred_check_branch
      %156 = sbr.rel (%p154) target = $region24
    $region23: #{unetwork_forward.21} parent=5 // pred_region
      // Predicated region
      $region25: #{unetwork_forward.21} parent=23 // pred_check
        %p157 = pneg %p72
      $region26: #{unetwork_forward.21} parent=23 // pred_check_branch
        %159 = sbr.rel (%p157) target = $region28
      $region27: #{unetwork_forward.21} parent=23 // pred_region
        %s160 = smul.u32 3, %s10
        %p161 = scmp.lt.s32.totalorder %s160, 8
        %s162 = scalar_select %p161, %s160, 8
        %s163 = smul.addr %s162, 2
        %s164 = scalar_lea.vmem %s2, %s163
        %s165 = smul.u32 3, %s10
      $region28: #{unetwork_forward.21} parent=23 // pred_fallthru
        _
      // Predicated region
      $region29: #{unetwork_forward.21} parent=23 // pred_check
        %p166 = pneg %p100
      $region30: #{unetwork_forward.21} parent=23 // pred_check_branch
        %168 = sbr.rel (%p166) target = $region32
      $region31: #{unetwork_forward.21} parent=23 // pred_region
        %s169 = sadd.s32 %s10, 1
        %s170 = smul.u32 3, %s169
        %p171 = scmp.lt.s32.totalorder %s170, 8
        %s172 = scalar_select %p171, %s170, 8
        %s173 = smul.addr %s172, 2
        %s174 = scalar_lea.vmem %s3, %s173
        %s175 = sadd.s32 %s10, 1
        %s176 = smul.u32 3, %s175
      $region32: #{unetwork_forward.21} parent=23 // pred_fallthru
        _
    $region24: #{unetwork_forward.21} parent=5 // pred_fallthru
      _
    %p177 = scmp.le.s32.totalorder 1, %s10
    %p178 = scmp.lt.s32.totalorder %s10, 3
    %p179 = pnand %p177, %p178
    %p180 = pneg %p179
    // Predicated region
    $region33: #{unetwork_forward.21} parent=5 // pred_check
      _
    $region34: #{unetwork_forward.21} parent=5 // pred_check_branch
      %182 = sbr.rel (%p179) target = $region36
    $region35: #{unetwork_forward.21} parent=5 // pred_region
      %s183 = ssub.s32 %s10, 1
      %p184 = pneg %p31
      %p185 = pneg %p28
      %p186 = pneg %p52
      %p187 = pneg %p49
      %s188 = smul.u32 3, %s15
      %p189 = scmp.lt.s32.totalorder %s188, 8
      %s190 = scalar_select %p189, %s188, 8
      %s191 = smul.addr %s190, 2
      %s192 = scalar_lea.vmem %s2, %s191
      %p193 = pneg %p78
      %p194 = pneg %p75
      %s195 = sadd.s32 %s15, 1
      %s196 = smul.u32 3, %s195
      %p197 = scmp.lt.s32.totalorder %s196, 8
      %s198 = scalar_select %p197, %s196, 8
      %s199 = smul.addr %s198, 2
      %s200 = scalar_lea.vmem %s3, %s199
      %p201 = pneg %p106
      %p202 = pneg %p103
      %p203 = pneg %p132
      %p204 = pneg %p129
      %s205 = smul.u32 3, %s15
      %p206 = scmp.lt.s32.totalorder %s205, 5
      %s207 = scalar_select %p206, %s205, 5
      %s208 = smul.addr %s207, 2
      %s209 = scalar_lea.vmem %s4, %s208
      %s210 = smul.u32 3, %s15
      %p211 = scmp.lt.s32.totalorder %s210, 8
      %s212 = scalar_select %p211, %s210, 8
      %s213 = smul.addr %s212, 2
      %s214 = scalar_lea.vmem %s2, %s213
      %s215 = smul.u32 3, %s15
      %s216 = sadd.s32 %s15, 1
      %s217 = smul.u32 3, %s216
      %p218 = scmp.lt.s32.totalorder %s217, 8
      %s219 = scalar_select %p218, %s217, 8
      %s220 = smul.addr %s219, 2
      %s221 = scalar_lea.vmem %s3, %s220
      %s222 = sadd.s32 %s15, 1
      %s223 = smul.u32 3, %s222
      %s224 = smul.u32 3, %s15
      %p225 = scmp.lt.s32.totalorder %s224, 5
      %s226 = scalar_select %p225, %s224, 5
      %s227 = smul.addr %s226, 2
      %s228 = scalar_lea.vmem %s4, %s227
      %s229 = smul.u32 3, %s15
      %v231 = vld [vmem:[%s214] sm:$0x3f]
      %v232 = vld [vmem:[%s221] sm:$0x3f]
      %v234 = vcombine.high %v231, %v231
      %v236 = vunpack.c.l.s4 1983009808
      %v237 = vunpack.c.0.s8 %v236
      %v238 = vlaneseq
      %v239 = vshrl.u32 %v238, 7
      %v240 = vsub.s32 %v237, %v239
      %v241 = vrot.slane %v231, %v240
      %v243 = vunpack.c.l.s4 1983009808
      %v244 = vunpack.c.0.s8 %v243
      %v245 = vlaneseq
      %v246 = vshrl.u32 %v245, 7
      %v247 = vsub.s32 %v244, %v246
      %v248 = vrot.slane %v234, %v247
      %v249 = vcombine.high %v241, %v241
      %v252 = vunpack.c.l.s4 1983009808
      %v253 = vunpack.c.0.s8 %v252
      %v254 = vlaneseq
      %v255 = vshrl.u32 %v254, 7
      %v256 = vsub.s32 %v253, %v255
      %v257 = vrot.slane %v232, %v256
      %v258 = vld [vmem:[%s0] sm:$0x1]
      %s259 = scalar_lea.vmem %s0, 1
      %v260 = vld [vmem:[%s259] sm:$0x1]
      %261 = vrot.lane.b32.xlu0 %v241, 127
      %v262 = vpop.permute.xlu0 %261
      %263 = vrot.lane.b32.xlu0 %v249, 127
      %v264 = vpop.permute.xlu0 %263
      %265 = vrot.lane.b32.xlu0 %v248, 127
      %v266 = vpop.permute.xlu0 %265
      %267 = vrot.lane.b32.xlu0 %v257, 127
      %v268 = vpop.permute.xlu0 %267
      %vm269 = vcmask 1039360
      %v270 = vsel %vm269, %v262, %v264
      %v271 = vsel %vm269, %v264, %v266
      %v272 = vsel %vm269, %v266, %v268
      %vm273 = vcmask 31744
      %v275 = vsel %vm273, %v260, 0
      %vm277 = vcmask 1041408
      %v279 = vsel %vm277, %v270, 0
      %v282 = vsel %vm277, %v271, 0
      %v285 = vsel %vm277, %v272, 0
      %287 = vmatprep.subr.bf16.mxu0 %v282
      %288 = vmatpush1.bf16.msra.mxu0 %v279
      %289 = vmatprep.subr.bf16.mxu0 0
      %290 = vmatpush1.bf16.msra.mxu0 0
      %291 = vmatprep.subr.bf16.mxu0 0
      %292 = vmatpush1.bf16.msra.mxu0 0
      %293 = vmatprep.subr.bf16.mxu0 0
      %294 = vmatpush1.bf16.msra.mxu0 0
      %295 = vmatprep.subr.bf16.mxu0 0
      %296 = vmatpush1.bf16.msra.mxu0 0
      %297 = vmatprep.subr.bf16.mxu0 0
      %298 = vmatpush1.bf16.msra.mxu0 0
      %299 = vmatprep.subr.bf16.mxu0 0
      %300 = vmatpush1.bf16.msra.mxu0 0
      %301 = vmatprep.subr.bf16.mxu0 0
      %302 = vmatpush1.bf16.msra.mxu0 0
      %303 = vmatprep.subr.bf16.mxu0 0
      %304 = vmatpush1.bf16.msra.mxu0 0
      %305 = vmatprep.subr.bf16.mxu0 0
      %306 = vmatpush1.bf16.msra.mxu0 0
      %307 = vmatprep.subr.bf16.mxu0 0
      %308 = vmatpush1.bf16.msra.mxu0 0
      %309 = vmatprep.subr.bf16.mxu0 0
      %310 = vmatpush1.bf16.msra.mxu0 0
      %311 = vmatprep.subr.bf16.mxu0 0
      %312 = vmatpush1.bf16.msra.mxu0 0
      %313 = vmatprep.subr.bf16.mxu0 0
      %314 = vmatpush1.bf16.msra.mxu0 0
      %315 = vmatprep.subr.bf16.mxu0 0
      %316 = vmatpush1.bf16.msra.mxu0 0
      %317 = vmatprep.subr.bf16.mxu0 0
      %318 = vmatpush1.bf16.msra.mxu0 0
      %319 = vmatprep.mubr.bf16.mxu0 0
      %320 = vmatmul.mubr.bf16.gmra.mrb[0].mxu0 %v275
      %v321 = vpop.f32.mrb[0].mxu0
      %v322 = vadd.f32 0.0, %v321
      %v323 = vpop.f32.mrb[0].mxu0
      %v324 = vadd.f32 0.0, %v323
      %v325 = vpop.f32.mrb[0].mxu0
      %v326 = vpop.f32.mrb[0].mxu0
      %327 = vdwg.mxu0
      %328 = vmatprep.subr.bf16.mxu0 0
      %329 = vmatpush1.bf16.msra.mxu0 %v285
      %330 = vmatprep.subr.bf16.mxu0 0
      %331 = vmatpush1.bf16.msra.mxu0 0
      %332 = vmatprep.subr.bf16.mxu0 0
      %333 = vmatpush1.bf16.msra.mxu0 0
      %334 = vmatprep.subr.bf16.mxu0 0
      %335 = vmatpush1.bf16.msra.mxu0 0
      %336 = vmatprep.subr.bf16.mxu0 0
      %337 = vmatpush1.bf16.msra.mxu0 0
      %338 = vmatprep.subr.bf16.mxu0 0
      %339 = vmatpush1.bf16.msra.mxu0 0
      %340 = vmatprep.subr.bf16.mxu0 0
      %341 = vmatpush1.bf16.msra.mxu0 0
      %342 = vmatprep.subr.bf16.mxu0 0
      %343 = vmatpush1.bf16.msra.mxu0 0
      %344 = vmatprep.subr.bf16.mxu0 0
      %345 = vmatpush1.bf16.msra.mxu0 0
      %346 = vmatprep.subr.bf16.mxu0 0
      %347 = vmatpush1.bf16.msra.mxu0 0
      %348 = vmatprep.subr.bf16.mxu0 0
      %349 = vmatpush1.bf16.msra.mxu0 0
      %350 = vmatprep.subr.bf16.mxu0 0
      %351 = vmatpush1.bf16.msra.mxu0 0
      %352 = vmatprep.subr.bf16.mxu0 0
      %353 = vmatpush1.bf16.msra.mxu0 0
      %354 = vmatprep.subr.bf16.mxu0 0
      %355 = vmatpush1.bf16.msra.mxu0 0
      %356 = vmatprep.subr.bf16.mxu0 0
      %357 = vmatpush1.bf16.msra.mxu0 0
      %358 = vmatprep.subr.bf16.mxu0 0
      %359 = vmatpush1.bf16.msra.mxu0 0
      %360 = vmatprep.mubr.bf16.mxu0 0
      %361 = vmatmul.mubr.bf16.gmra.mrb[0].mxu0 %v275
      %v362 = vpop.f32.mrb[0].mxu0
      %v363 = vadd.f32 0.0, %v362
      %v364 = vpop.f32.mrb[0].mxu0
      %v365 = vpop.f32.mrb[0].mxu0
      %v366 = vpop.f32.mrb[0].mxu0
      %367 = vdwg.mxu0
      %v369 = vsel %vm273, %v258, 0
      %v372 = vsel %vm277, %v241, 0
      %v375 = vsel %vm277, %v249, 0
      %v378 = vsel %vm277, %v248, 0
      %380 = vmatprep.subr.bf16.mxu0 %v375
      %381 = vmatpush1.bf16.msra.mxu0 %v372
      %382 = vmatprep.subr.bf16.mxu0 0
      %383 = vmatpush1.bf16.msra.mxu0 0
      %384 = vmatprep.subr.bf16.mxu0 0
      %385 = vmatpush1.bf16.msra.mxu0 0
      %386 = vmatprep.subr.bf16.mxu0 0
      %387 = vmatpush1.bf16.msra.mxu0 0
      %388 = vmatprep.subr.bf16.mxu0 0
      %389 = vmatpush1.bf16.msra.mxu0 0
      %390 = vmatprep.subr.bf16.mxu0 0
      %391 = vmatpush1.bf16.msra.mxu0 0
      %392 = vmatprep.subr.bf16.mxu0 0
      %393 = vmatpush1.bf16.msra.mxu0 0
      %394 = vmatprep.subr.bf16.mxu0 0
      %395 = vmatpush1.bf16.msra.mxu0 0
      %396 = vmatprep.subr.bf16.mxu0 0
      %397 = vmatpush1.bf16.msra.mxu0 0
      %398 = vmatprep.subr.bf16.mxu0 0
      %399 = vmatpush1.bf16.msra.mxu0 0
      %400 = vmatprep.subr.bf16.mxu0 0
      %401 = vmatpush1.bf16.msra.mxu0 0
      %402 = vmatprep.subr.bf16.mxu0 0
      %403 = vmatpush1.bf16.msra.mxu0 0
      %404 = vmatprep.subr.bf16.mxu0 0
      %405 = vmatpush1.bf16.msra.mxu0 0
      %406 = vmatprep.subr.bf16.mxu0 0
      %407 = vmatpush1.bf16.msra.mxu0 0
      %408 = vmatprep.subr.bf16.mxu0 0
      %409 = vmatpush1.bf16.msra.mxu0 0
      %410 = vmatprep.subr.bf16.mxu0 0
      %411 = vmatpush1.bf16.msra.mxu0 0
      %412 = vmatprep.mubr.bf16.mxu0 0
      %413 = vmatmul.mubr.bf16.gmra.mrb[0].mxu0 %v369
      %v414 = vpop.f32.mrb[0].mxu0
      %v415 = vadd.f32 %v322, %v414
      %v416 = vpop.f32.mrb[0].mxu0
      %v417 = vadd.f32 %v324, %v416
      %v418 = vpop.f32.mrb[0].mxu0
      %v419 = vpop.f32.mrb[0].mxu0
      %420 = vdwg.mxu0
      %421 = vmatprep.subr.bf16.mxu0 0
      %422 = vmatpush1.bf16.msra.mxu0 %v378
      %423 = vmatprep.subr.bf16.mxu0 0
      %424 = vmatpush1.bf16.msra.mxu0 0
      %425 = vmatprep.subr.bf16.mxu0 0
      %426 = vmatpush1.bf16.msra.mxu0 0
      %427 = vmatprep.subr.bf16.mxu0 0
      %428 = vmatpush1.bf16.msra.mxu0 0
      %429 = vmatprep.subr.bf16.mxu0 0
      %430 = vmatpush1.bf16.msra.mxu0 0
      %431 = vmatprep.subr.bf16.mxu0 0
      %432 = vmatpush1.bf16.msra.mxu0 0
      %433 = vmatprep.subr.bf16.mxu0 0
      %434 = vmatpush1.bf16.msra.mxu0 0
      %435 = vmatprep.subr.bf16.mxu0 0
      %436 = vmatpush1.bf16.msra.mxu0 0
      %437 = vmatprep.subr.bf16.mxu0 0
      %438 = vmatpush1.bf16.msra.mxu0 0
      %439 = vmatprep.subr.bf16.mxu0 0
      %440 = vmatpush1.bf16.msra.mxu0 0
      %441 = vmatprep.subr.bf16.mxu0 0
      %442 = vmatpush1.bf16.msra.mxu0 0
      %443 = vmatprep.subr.bf16.mxu0 0
      %444 = vmatpush1.bf16.msra.mxu0 0
      %445 = vmatprep.subr.bf16.mxu0 0
      %446 = vmatpush1.bf16.msra.mxu0 0
      %447 = vmatprep.subr.bf16.mxu0 0
      %448 = vmatpush1.bf16.msra.mxu0 0
      %449 = vmatprep.subr.bf16.mxu0 0
      %450 = vmatpush1.bf16.msra.mxu0 0
      %451 = vmatprep.subr.bf16.mxu0 0
      %452 = vmatpush1.bf16.msra.mxu0 0
      %453 = vmatprep.mubr.bf16.mxu0 0
      %454 = vmatmul.mubr.bf16.gmra.mrb[0].mxu0 %v369
      %v455 = vpop.f32.mrb[0].mxu0
      %v456 = vadd.f32 %v363, %v455
      %v457 = vpop.f32.mrb[0].mxu0
      %v458 = vpop.f32.mrb[0].mxu0
      %v459 = vpop.f32.mrb[0].mxu0
      %460 = vdwg.mxu0
      %s461 = scalar_lea.vmem %s0, 2
      %v462 = vld [vmem:[%s461] sm:$0x1]
      %463 = vrot.lane.b32.xlu0 %v241, 126
      %v464 = vpop.permute.xlu0 %463
      %465 = vrot.lane.b32.xlu0 %v249, 126
      %v466 = vpop.permute.xlu0 %465
      %467 = vrot.lane.b32.xlu0 %v248, 126
      %v468 = vpop.permute.xlu0 %467
      %469 = vrot.lane.b32.xlu0 %v257, 126
      %v470 = vpop.permute.xlu0 %469
      %vm471 = vcmask 1031168
      %v472 = vsel %vm471, %v464, %v466
      %v473 = vsel %vm471, %v466, %v468
      %v474 = vsel %vm471, %v468, %v470
      %v476 = vsel %vm273, %v462, 0
      %v479 = vsel %vm277, %v472, 0
      %v482 = vsel %vm277, %v473, 0
      %v485 = vsel %vm277, %v474, 0
      %487 = vmatprep.subr.bf16.mxu0 %v482
      %488 = vmatpush1.bf16.msra.mxu0 %v479
      %489 = vmatprep.subr.bf16.mxu0 0
      %490 = vmatpush1.bf16.msra.mxu0 0
      %491 = vmatprep.subr.bf16.mxu0 0
      %492 = vmatpush1.bf16.msra.mxu0 0
      %493 = vmatprep.subr.bf16.mxu0 0
      %494 = vmatpush1.bf16.msra.mxu0 0
      %495 = vmatprep.subr.bf16.mxu0 0
      %496 = vmatpush1.bf16.msra.mxu0 0
      %497 = vmatprep.subr.bf16.mxu0 0
      %498 = vmatpush1.bf16.msra.mxu0 0
      %499 = vmatprep.subr.bf16.mxu0 0
      %500 = vmatpush1.bf16.msra.mxu0 0
      %501 = vmatprep.subr.bf16.mxu0 0
      %502 = vmatpush1.bf16.msra.mxu0 0
      %503 = vmatprep.subr.bf16.mxu0 0
      %504 = vmatpush1.bf16.msra.mxu0 0
      %505 = vmatprep.subr.bf16.mxu0 0
      %506 = vmatpush1.bf16.msra.mxu0 0
      %507 = vmatprep.subr.bf16.mxu0 0
      %508 = vmatpush1.bf16.msra.mxu0 0
      %509 = vmatprep.subr.bf16.mxu0 0
      %510 = vmatpush1.bf16.msra.mxu0 0
      %511 = vmatprep.subr.bf16.mxu0 0
      %512 = vmatpush1.bf16.msra.mxu0 0
      %513 = vmatprep.subr.bf16.mxu0 0
      %514 = vmatpush1.bf16.msra.mxu0 0
      %515 = vmatprep.subr.bf16.mxu0 0
      %516 = vmatpush1.bf16.msra.mxu0 0
      %517 = vmatprep.subr.bf16.mxu0 0
      %518 = vmatpush1.bf16.msra.mxu0 0
      %519 = vmatprep.mubr.bf16.mxu0 0
      %520 = vmatmul.mubr.bf16.gmra.mrb[0].mxu0 %v476
      %v521 = vpop.f32.mrb[0].mxu0
      %v522 = vadd.f32 0.0, %v521
      %v523 = vpop.f32.mrb[0].mxu0
      %v524 = vadd.f32 0.0, %v523
      %v525 = vpop.f32.mrb[0].mxu0
      %v526 = vpop.f32.mrb[0].mxu0
      %527 = vdwg.mxu0
      %528 = vmatprep.subr.bf16.mxu0 0
      %529 = vmatpush1.bf16.msra.mxu0 %v485
      %530 = vmatprep.subr.bf16.mxu0 0
      %531 = vmatpush1.bf16.msra.mxu0 0
      %532 = vmatprep.subr.bf16.mxu0 0
      %533 = vmatpush1.bf16.msra.mxu0 0
      %534 = vmatprep.subr.bf16.mxu0 0
      %535 = vmatpush1.bf16.msra.mxu0 0
      %536 = vmatprep.subr.bf16.mxu0 0
      %537 = vmatpush1.bf16.msra.mxu0 0
      %538 = vmatprep.subr.bf16.mxu0 0
      %539 = vmatpush1.bf16.msra.mxu0 0
      %540 = vmatprep.subr.bf16.mxu0 0
      %541 = vmatpush1.bf16.msra.mxu0 0
      %542 = vmatprep.subr.bf16.mxu0 0
      %543 = vmatpush1.bf16.msra.mxu0 0
      %544 = vmatprep.subr.bf16.mxu0 0
      %545 = vmatpush1.bf16.msra.mxu0 0
      %546 = vmatprep.subr.bf16.mxu0 0
      %547 = vmatpush1.bf16.msra.mxu0 0
      %548 = vmatprep.subr.bf16.mxu0 0
      %549 = vmatpush1.bf16.msra.mxu0 0
      %550 = vmatprep.subr.bf16.mxu0 0
      %551 = vmatpush1.bf16.msra.mxu0 0
      %552 = vmatprep.subr.bf16.mxu0 0
      %553 = vmatpush1.bf16.msra.mxu0 0
      %554 = vmatprep.subr.bf16.mxu0 0
      %555 = vmatpush1.bf16.msra.mxu0 0
      %556 = vmatprep.subr.bf16.mxu0 0
      %557 = vmatpush1.bf16.msra.mxu0 0
      %558 = vmatprep.subr.bf16.mxu0 0
      %559 = vmatpush1.bf16.msra.mxu0 0
      %560 = vmatprep.mubr.bf16.mxu0 0
      %561 = vmatmul.mubr.bf16.gmra.mrb[0].mxu0 %v476
      %v562 = vpop.f32.mrb[0].mxu0
      %v563 = vadd.f32 0.0, %v562
      %v564 = vpop.f32.mrb[0].mxu0
      %v565 = vpop.f32.mrb[0].mxu0
      %v566 = vpop.f32.mrb[0].mxu0
      %567 = vdwg.mxu0
      %v568 = vadd.f32 %v415, %v522
      %v569 = vadd.f32 %v417, %v524
      %v570 = vadd.f32 %v456, %v563
      %s571 = scalar_lea.vmem %s0, 3
      %v572 = vld [vmem:[%s571] sm:$0x1]
      %573 = vrot.lane.b32.xlu0 %v241, 110
      %v574 = vpop.permute.xlu0 %573
      %575 = vrot.lane.b32.xlu0 %v249, 110
      %v576 = vpop.permute.xlu0 %575
      %577 = vrot.lane.b32.xlu0 %v248, 110
      %v578 = vpop.permute.xlu0 %577
      %579 = vrot.lane.b32.xlu0 %v257, 110
      %v580 = vpop.permute.xlu0 %579
      %vm581 = vcmask 900096
      %v582 = vsel %vm581, %v574, %v576
      %v583 = vsel %vm581, %v576, %v578
      %v584 = vsel %vm581, %v578, %v580
      %v586 = vsel %vm273, %v572, 0
      %v589 = vsel %vm277, %v582, 0
      %v592 = vsel %vm277, %v583, 0
      %v595 = vsel %vm277, %v584, 0
      %597 = vmatprep.subr.bf16.mxu0 %v592
      %598 = vmatpush1.bf16.msra.mxu0 %v589
      %599 = vmatprep.subr.bf16.mxu0 0
      %600 = vmatpush1.bf16.msra.mxu0 0
      %601 = vmatprep.subr.bf16.mxu0 0
      %602 = vmatpush1.bf16.msra.mxu0 0
      %603 = vmatprep.subr.bf16.mxu0 0
      %604 = vmatpush1.bf16.msra.mxu0 0
      %605 = vmatprep.subr.bf16.mxu0 0
      %606 = vmatpush1.bf16.msra.mxu0 0
      %607 = vmatprep.subr.bf16.mxu0 0
      %608 = vmatpush1.bf16.msra.mxu0 0
      %609 = vmatprep.subr.bf16.mxu0 0
      %610 = vmatpush1.bf16.msra.mxu0 0
      %611 = vmatprep.subr.bf16.mxu0 0
      %612 = vmatpush1.bf16.msra.mxu0 0
      %613 = vmatprep.subr.bf16.mxu0 0
      %614 = vmatpush1.bf16.msra.mxu0 0
      %615 = vmatprep.subr.bf16.mxu0 0
      %616 = vmatpush1.bf16.msra.mxu0 0
      %617 = vmatprep.subr.bf16.mxu0 0
      %618 = vmatpush1.bf16.msra.mxu0 0
      %619 = vmatprep.subr.bf16.mxu0 0
      %620 = vmatpush1.bf16.msra.mxu0 0
      %621 = vmatprep.subr.bf16.mxu0 0
      %622 = vmatpush1.bf16.msra.mxu0 0
      %623 = vmatprep.subr.bf16.mxu0 0
      %624 = vmatpush1.bf16.msra.mxu0 0
      %625 = vmatprep.subr.bf16.mxu0 0
      %626 = vmatpush1.bf16.msra.mxu0 0
      %627 = vmatprep.subr.bf16.mxu0 0
      %628 = vmatpush1.bf16.msra.mxu0 0
      %629 = vmatprep.mubr.bf16.mxu0 0
      %630 = vmatmul.mubr.bf16.gmra.mrb[0].mxu0 %v586
      %v631 = vpop.f32.mrb[0].mxu0
      %v632 = vadd.f32 0.0, %v631
      %v633 = vpop.f32.mrb[0].mxu0
      %v634 = vadd.f32 0.0, %v633
      %v635 = vpop.f32.mrb[0].mxu0
      %v636 = vpop.f32.mrb[0].mxu0
      %637 = vdwg.mxu0
      %638 = vmatprep.subr.bf16.mxu0 0
      %639 = vmatpush1.bf16.msra.mxu0 %v595
      %640 = vmatprep.subr.bf16.mxu0 0
      %641 = vmatpush1.bf16.msra.mxu0 0
      %642 = vmatprep.subr.bf16.mxu0 0
      %643 = vmatpush1.bf16.msra.mxu0 0
      %644 = vmatprep.subr.bf16.mxu0 0
      %645 = vmatpush1.bf16.msra.mxu0 0
      %646 = vmatprep.subr.bf16.mxu0 0
      %647 = vmatpush1.bf16.msra.mxu0 0
      %648 = vmatprep.subr.bf16.mxu0 0
      %649 = vmatpush1.bf16.msra.mxu0 0
      %650 = vmatprep.subr.bf16.mxu0 0
      %651 = vmatpush1.bf16.msra.mxu0 0
      %652 = vmatprep.subr.bf16.mxu0 0
      %653 = vmatpush1.bf16.msra.mxu0 0
      %654 = vmatprep.subr.bf16.mxu0 0
      %655 = vmatpush1.bf16.msra.mxu0 0
      %656 = vmatprep.subr.bf16.mxu0 0
      %657 = vmatpush1.bf16.msra.mxu0 0
      %658 = vmatprep.subr.bf16.mxu0 0
      %659 = vmatpush1.bf16.msra.mxu0 0
      %660 = vmatprep.subr.bf16.mxu0 0
      %661 = vmatpush1.bf16.msra.mxu0 0
      %662 = vmatprep.subr.bf16.mxu0 0
      %663 = vmatpush1.bf16.msra.mxu0 0
      %664 = vmatprep.subr.bf16.mxu0 0
      %665 = vmatpush1.bf16.msra.mxu0 0
      %666 = vmatprep.subr.bf16.mxu0 0
      %667 = vmatpush1.bf16.msra.mxu0 0
      %668 = vmatprep.subr.bf16.mxu0 0
      %669 = vmatpush1.bf16.msra.mxu0 0
      %670 = vmatprep.mubr.bf16.mxu0 0
      %671 = vmatmul.mubr.bf16.gmra.mrb[0].mxu0 %v586
      %v672 = vpop.f32.mrb[0].mxu0
      %v673 = vadd.f32 0.0, %v672
      %v674 = vpop.f32.mrb[0].mxu0
      %v675 = vpop.f32.mrb[0].mxu0
      %v676 = vpop.f32.mrb[0].mxu0
      %677 = vdwg.mxu0
      %v678 = vadd.f32 %v568, %v632
      %v679 = vadd.f32 %v569, %v634
      %v680 = vadd.f32 %v570, %v673
      %s681 = scalar_lea.vmem %s0, 4
      %v682 = vld [vmem:[%s681] sm:$0x1]
      %683 = vrot.lane.b32.xlu0 %v241, 109
      %v684 = vpop.permute.xlu0 %683
      %685 = vrot.lane.b32.xlu0 %v249, 109
      %v686 = vpop.permute.xlu0 %685
      %687 = vrot.lane.b32.xlu0 %v248, 109
      %v688 = vpop.permute.xlu0 %687
      %689 = vrot.lane.b32.xlu0 %v257, 109
      %v690 = vpop.permute.xlu0 %689
      %vm691 = vcmask 891904
      %v692 = vsel %vm691, %v684, %v686
      %v693 = vsel %vm691, %v686, %v688
      %v694 = vsel %vm691, %v688, %v690
      %v696 = vsel %vm273, %v682, 0
      %v699 = vsel %vm277, %v692, 0
      %v702 = vsel %vm277, %v693, 0
      %v705 = vsel %vm277, %v694, 0
      %707 = vmatprep.subr.bf16.mxu0 %v702
      %708 = vmatpush1.bf16.msra.mxu0 %v699
      %709 = vmatprep.subr.bf16.mxu0 0
      %710 = vmatpush1.bf16.msra.mxu0 0
      %711 = vmatprep.subr.bf16.mxu0 0
      %712 = vmatpush1.bf16.msra.mxu0 0
      %713 = vmatprep.subr.bf16.mxu0 0
      %714 = vmatpush1.bf16.msra.mxu0 0
      %715 = vmatprep.subr.bf16.mxu0 0
      %716 = vmatpush1.bf16.msra.mxu0 0
      %717 = vmatprep.subr.bf16.mxu0 0
      %718 = vmatpush1.bf16.msra.mxu0 0
      %719 = vmatprep.subr.bf16.mxu0 0
      %720 = vmatpush1.bf16.msra.mxu0 0
      %721 = vmatprep.subr.bf16.mxu0 0
      %722 = vmatpush1.bf16.msra.mxu0 0
      %723 = vmatprep.subr.bf16.mxu0 0
      %724 = vmatpush1.bf16.msra.mxu0 0
      %725 = vmatprep.subr.bf16.mxu0 0
      %726 = vmatpush1.bf16.msra.mxu0 0
      %727 = vmatprep.subr.bf16.mxu0 0
      %728 = vmatpush1.bf16.msra.mxu0 0
      %729 = vmatprep.subr.bf16.mxu0 0
      %730 = vmatpush1.bf16.msra.mxu0 0
      %731 = vmatprep.subr.bf16.mxu0 0
      %732 = vmatpush1.bf16.msra.mxu0 0
      %733 = vmatprep.subr.bf16.mxu0 0
      %734 = vmatpush1.bf16.msra.mxu0 0
      %735 = vmatprep.subr.bf16.mxu0 0
      %736 = vmatpush1.bf16.msra.mxu0 0
      %737 = vmatprep.subr.bf16.mxu0 0
      %738 = vmatpush1.bf16.msra.mxu0 0
      %739 = vmatprep.mubr.bf16.mxu0 0
      %740 = vmatmul.mubr.bf16.gmra.mrb[0].mxu0 %v696
      %v741 = vpop.f32.mrb[0].mxu0
      %v742 = vadd.f32 0.0, %v741
      %v743 = vpop.f32.mrb[0].mxu0
      %v744 = vadd.f32 0.0, %v743
      %v745 = vpop.f32.mrb[0].mxu0
      %v746 = vpop.f32.mrb[0].mxu0
      %747 = vdwg.mxu0
      %748 = vmatprep.subr.bf16.mxu0 0
      %749 = vmatpush1.bf16.msra.mxu0 %v705
      %750 = vmatprep.subr.bf16.mxu0 0
      %751 = vmatpush1.bf16.msra.mxu0 0
      %752 = vmatprep.subr.bf16.mxu0 0
      %753 = vmatpush1.bf16.msra.mxu0 0
      %754 = vmatprep.subr.bf16.mxu0 0
      %755 = vmatpush1.bf16.msra.mxu0 0
      %756 = vmatprep.subr.bf16.mxu0 0
      %757 = vmatpush1.bf16.msra.mxu0 0
      %758 = vmatprep.subr.bf16.mxu0 0
      %759 = vmatpush1.bf16.msra.mxu0 0
      %760 = vmatprep.subr.bf16.mxu0 0
      %761 = vmatpush1.bf16.msra.mxu0 0
      %762 = vmatprep.subr.bf16.mxu0 0
      %763 = vmatpush1.bf16.msra.mxu0 0
      %764 = vmatprep.subr.bf16.mxu0 0
      %765 = vmatpush1.bf16.msra.mxu0 0
      %766 = vmatprep.subr.bf16.mxu0 0
      %767 = vmatpush1.bf16.msra.mxu0 0
      %768 = vmatprep.subr.bf16.mxu0 0
      %769 = vmatpush1.bf16.msra.mxu0 0
      %770 = vmatprep.subr.bf16.mxu0 0
      %771 = vmatpush1.bf16.msra.mxu0 0
      %772 = vmatprep.subr.bf16.mxu0 0
      %773 = vmatpush1.bf16.msra.mxu0 0
      %774 = vmatprep.subr.bf16.mxu0 0
      %775 = vmatpush1.bf16.msra.mxu0 0
      %776 = vmatprep.subr.bf16.mxu0 0
      %777 = vmatpush1.bf16.msra.mxu0 0
      %778 = vmatprep.subr.bf16.mxu0 0
      %779 = vmatpush1.bf16.msra.mxu0 0
      %780 = vmatprep.mubr.bf16.mxu0 0
      %781 = vmatmul.mubr.bf16.gmra.mrb[0].mxu0 %v696
      %v782 = vpop.f32.mrb[0].mxu0
      %v783 = vadd.f32 0.0, %v782
      %v784 = vpop.f32.mrb[0].mxu0
      %v785 = vpop.f32.mrb[0].mxu0
      %v786 = vpop.f32.mrb[0].mxu0
      %787 = vdwg.mxu0
      %v788 = vadd.f32 %v678, %v742
      %v789 = vadd.f32 %v679, %v744
      %v790 = vadd.f32 %v680, %v783
      %s791 = scalar_lea.vmem %s0, 5
      %v792 = vld [vmem:[%s791] sm:$0x1]
      %793 = vrot.lane.b32.xlu0 %v241, 108
      %v794 = vpop.permute.xlu0 %793
      %795 = vrot.lane.b32.xlu0 %v249, 108
      %v796 = vpop.permute.xlu0 %795
      %797 = vrot.lane.b32.xlu0 %v248, 108
      %v798 = vpop.permute.xlu0 %797
      %799 = vrot.lane.b32.xlu0 %v257, 108
      %v800 = vpop.permute.xlu0 %799
      %vm801 = vcmask 883712
      %v802 = vsel %vm801, %v794, %v796
      %v803 = vsel %vm801, %v796, %v798
      %v804 = vsel %vm801, %v798, %v800
      %v806 = vsel %vm273, %v792, 0
      %v809 = vsel %vm277, %v802, 0
      %v812 = vsel %vm277, %v803, 0
      %v815 = vsel %vm277, %v804, 0
      %817 = vmatprep.subr.bf16.mxu0 %v812
      %818 = vmatpush1.bf16.msra.mxu0 %v809
      %819 = vmatprep.subr.bf16.mxu0 0
      %820 = vmatpush1.bf16.msra.mxu0 0
      %821 = vmatprep.subr.bf16.mxu0 0
      %822 = vmatpush1.bf16.msra.mxu0 0
      %823 = vmatprep.subr.bf16.mxu0 0
      %824 = vmatpush1.bf16.msra.mxu0 0
      %825 = vmatprep.subr.bf16.mxu0 0
      %826 = vmatpush1.bf16.msra.mxu0 0
      %827 = vmatprep.subr.bf16.mxu0 0
      %828 = vmatpush1.bf16.msra.mxu0 0
      %829 = vmatprep.subr.bf16.mxu0 0
      %830 = vmatpush1.bf16.msra.mxu0 0
      %831 = vmatprep.subr.bf16.mxu0 0
      %832 = vmatpush1.bf16.msra.mxu0 0
      %833 = vmatprep.subr.bf16.mxu0 0
      %834 = vmatpush1.bf16.msra.mxu0 0
      %835 = vmatprep.subr.bf16.mxu0 0
      %836 = vmatpush1.bf16.msra.mxu0 0
      %837 = vmatprep.subr.bf16.mxu0 0
      %838 = vmatpush1.bf16.msra.mxu0 0
      %839 = vmatprep.subr.bf16.mxu0 0
      %840 = vmatpush1.bf16.msra.mxu0 0
      %841 = vmatprep.subr.bf16.mxu0 0
      %842 = vmatpush1.bf16.msra.mxu0 0
      %843 = vmatprep.subr.bf16.mxu0 0
      %844 = vmatpush1.bf16.msra.mxu0 0
      %845 = vmatprep.subr.bf16.mxu0 0
      %846 = vmatpush1.bf16.msra.mxu0 0
      %847 = vmatprep.subr.bf16.mxu0 0
      %848 = vmatpush1.bf16.msra.mxu0 0
      %849 = vmatprep.mubr.bf16.mxu0 0
      %850 = vmatmul.mubr.bf16.gmra.mrb[0].mxu0 %v806
      %v851 = vpop.f32.mrb[0].mxu0
      %v852 = vadd.f32 0.0, %v851
      %v853 = vpop.f32.mrb[0].mxu0
      %v854 = vadd.f32 0.0, %v853
      %v855 = vpop.f32.mrb[0].mxu0
      %v856 = vpop.f32.mrb[0].mxu0
      %857 = vdwg.mxu0
      %858 = vmatprep.subr.bf16.mxu0 0
      %859 = vmatpush1.bf16.msra.mxu0 %v815
      %860 = vmatprep.subr.bf16.mxu0 0
      %861 = vmatpush1.bf16.msra.mxu0 0
      %862 = vmatprep.subr.bf16.mxu0 0
      %863 = vmatpush1.bf16.msra.mxu0 0
      %864 = vmatprep.subr.bf16.mxu0 0
      %865 = vmatpush1.bf16.msra.mxu0 0
      %866 = vmatprep.subr.bf16.mxu0 0
      %867 = vmatpush1.bf16.msra.mxu0 0
      %868 = vmatprep.subr.bf16.mxu0 0
      %869 = vmatpush1.bf16.msra.mxu0 0
      %870 = vmatprep.subr.bf16.mxu0 0
      %871 = vmatpush1.bf16.msra.mxu0 0
      %872 = vmatprep.subr.bf16.mxu0 0
      %873 = vmatpush1.bf16.msra.mxu0 0
      %874 = vmatprep.subr.bf16.mxu0 0
      %875 = vmatpush1.bf16.msra.mxu0 0
      %876 = vmatprep.subr.bf16.mxu0 0
      %877 = vmatpush1.bf16.msra.mxu0 0
      %878 = vmatprep.subr.bf16.mxu0 0
      %879 = vmatpush1.bf16.msra.mxu0 0
      %880 = vmatprep.subr.bf16.mxu0 0
      %881 = vmatpush1.bf16.msra.mxu0 0
      %882 = vmatprep.subr.bf16.mxu0 0
      %883 = vmatpush1.bf16.msra.mxu0 0
      %884 = vmatprep.subr.bf16.mxu0 0
      %885 = vmatpush1.bf16.msra.mxu0 0
      %886 = vmatprep.subr.bf16.mxu0 0
      %887 = vmatpush1.bf16.msra.mxu0 0
      %888 = vmatprep.subr.bf16.mxu0 0
      %889 = vmatpush1.bf16.msra.mxu0 0
      %890 = vmatprep.mubr.bf16.mxu0 0
      %891 = vmatmul.mubr.bf16.gmra.mrb[0].mxu0 %v806
      %v892 = vpop.f32.mrb[0].mxu0
      %v893 = vadd.f32 0.0, %v892
      %v894 = vpop.f32.mrb[0].mxu0
      %v895 = vpop.f32.mrb[0].mxu0
      %v896 = vpop.f32.mrb[0].mxu0
      %897 = vdwg.mxu0
      %v898 = vadd.f32 %v788, %v852
      %v899 = vadd.f32 %v789, %v854
      %v900 = vadd.f32 %v790, %v893
      %s901 = scalar_lea.vmem %s0, 6
      %v902 = vld [vmem:[%s901] sm:$0x1]
      %903 = vrot.lane.b32.xlu0 %v241, 92
      %v904 = vpop.permute.xlu0 %903
      %905 = vrot.lane.b32.xlu0 %v249, 92
      %v906 = vpop.permute.xlu0 %905
      %907 = vrot.lane.b32.xlu0 %v248, 92
      %v908 = vpop.permute.xlu0 %907
      %909 = vrot.lane.b32.xlu0 %v257, 92
      %v910 = vpop.permute.xlu0 %909
      %vm911 = vcmask 752640
      %v912 = vsel %vm911, %v904, %v906
      %v913 = vsel %vm911, %v906, %v908
      %v914 = vsel %vm911, %v908, %v910
      %v916 = vsel %vm273, %v902, 0
      %v919 = vsel %vm277, %v912, 0
      %v922 = vsel %vm277, %v913, 0
      %v925 = vsel %vm277, %v914, 0
      %927 = vmatprep.subr.bf16.mxu0 %v922
      %928 = vmatpush1.bf16.msra.mxu0 %v919
      %929 = vmatprep.subr.bf16.mxu0 0
      %930 = vmatpush1.bf16.msra.mxu0 0
      %931 = vmatprep.subr.bf16.mxu0 0
      %932 = vmatpush1.bf16.msra.mxu0 0
      %933 = vmatprep.subr.bf16.mxu0 0
      %934 = vmatpush1.bf16.msra.mxu0 0
      %935 = vmatprep.subr.bf16.mxu0 0
      %936 = vmatpush1.bf16.msra.mxu0 0
      %937 = vmatprep.subr.bf16.mxu0 0
      %938 = vmatpush1.bf16.msra.mxu0 0
      %939 = vmatprep.subr.bf16.mxu0 0
      %940 = vmatpush1.bf16.msra.mxu0 0
      %941 = vmatprep.subr.bf16.mxu0 0
      %942 = vmatpush1.bf16.msra.mxu0 0
      %943 = vmatprep.subr.bf16.mxu0 0
      %944 = vmatpush1.bf16.msra.mxu0 0
      %945 = vmatprep.subr.bf16.mxu0 0
      %946 = vmatpush1.bf16.msra.mxu0 0
      %947 = vmatprep.subr.bf16.mxu0 0
      %948 = vmatpush1.bf16.msra.mxu0 0
      %949 = vmatprep.subr.bf16.mxu0 0
      %950 = vmatpush1.bf16.msra.mxu0 0
      %951 = vmatprep.subr.bf16.mxu0 0
      %952 = vmatpush1.bf16.msra.mxu0 0
      %953 = vmatprep.subr.bf16.mxu0 0
      %954 = vmatpush1.bf16.msra.mxu0 0
      %955 = vmatprep.subr.bf16.mxu0 0
      %956 = vmatpush1.bf16.msra.mxu0 0
      %957 = vmatprep.subr.bf16.mxu0 0
      %958 = vmatpush1.bf16.msra.mxu0 0
      %959 = vmatprep.mubr.bf16.mxu0 0
      %960 = vmatmul.mubr.bf16.gmra.mrb[0].mxu0 %v916
      %v961 = vpop.f32.mrb[0].mxu0
      %v962 = vadd.f32 0.0, %v961
      %v963 = vpop.f32.mrb[0].mxu0
      %v964 = vadd.f32 0.0, %v963
      %v965 = vpop.f32.mrb[0].mxu0
      %v966 = vpop.f32.mrb[0].mxu0
      %967 = vdwg.mxu0
      %968 = vmatprep.subr.bf16.mxu0 0
      %969 = vmatpush1.bf16.msra.mxu0 %v925
      %970 = vmatprep.subr.bf16.mxu0 0
      %971 = vmatpush1.bf16.msra.mxu0 0
      %972 = vmatprep.subr.bf16.mxu0 0
      %973 = vmatpush1.bf16.msra.mxu0 0
      %974 = vmatprep.subr.bf16.mxu0 0
      %975 = vmatpush1.bf16.msra.mxu0 0
      %976 = vmatprep.subr.bf16.mxu0 0
      %977 = vmatpush1.bf16.msra.mxu0 0
      %978 = vmatprep.subr.bf16.mxu0 0
      %979 = vmatpush1.bf16.msra.mxu0 0
      %980 = vmatprep.subr.bf16.mxu0 0
      %981 = vmatpush1.bf16.msra.mxu0 0
      %982 = vmatprep.subr.bf16.mxu0 0
      %983 = vmatpush1.bf16.msra.mxu0 0
      %984 = vmatprep.subr.bf16.mxu0 0
      %985 = vmatpush1.bf16.msra.mxu0 0
      %986 = vmatprep.subr.bf16.mxu0 0
      %987 = vmatpush1.bf16.msra.mxu0 0
      %988 = vmatprep.subr.bf16.mxu0 0
      %989 = vmatpush1.bf16.msra.mxu0 0
      %990 = vmatprep.subr.bf16.mxu0 0
      %991 = vmatpush1.bf16.msra.mxu0 0
      %992 = vmatprep.subr.bf16.mxu0 0
      %993 = vmatpush1.bf16.msra.mxu0 0
      %994 = vmatprep.subr.bf16.mxu0 0
      %995 = vmatpush1.bf16.msra.mxu0 0
      %996 = vmatprep.subr.bf16.mxu0 0
      %997 = vmatpush1.bf16.msra.mxu0 0
      %998 = vmatprep.subr.bf16.mxu0 0
      %999 = vmatpush1.bf16.msra.mxu0 0
      %1000 = vmatprep.mubr.bf16.mxu0 0
      %1001 = vmatmul.mubr.bf16.gmra.mrb[0].mxu0 %v916
      %v1002 = vpop.f32.mrb[0].mxu0
      %v1003 = vadd.f32 0.0, %v1002
      %v1004 = vpop.f32.mrb[0].mxu0
      %v1005 = vpop.f32.mrb[0].mxu0
      %v1006 = vpop.f32.mrb[0].mxu0
      %1007 = vdwg.mxu0
      %v1008 = vadd.f32 %v898, %v962
      %v1009 = vadd.f32 %v899, %v964
      %v1010 = vadd.f32 %v900, %v1003
      %s1011 = scalar_lea.vmem %s0, 7
      %v1012 = vld [vmem:[%s1011] sm:$0x1]
      %1013 = vrot.lane.b32.xlu0 %v241, 91
      %v1014 = vpop.permute.xlu0 %1013
      %1015 = vrot.lane.b32.xlu0 %v249, 91
      %v1016 = vpop.permute.xlu0 %1015
      %1017 = vrot.lane.b32.xlu0 %v248, 91
      %v1018 = vpop.permute.xlu0 %1017
      %1019 = vrot.lane.b32.xlu0 %v257, 91
      %v1020 = vpop.permute.xlu0 %1019
      %vm1021 = vcmask 744448
      %v1022 = vsel %vm1021, %v1014, %v1016
      %v1023 = vsel %vm1021, %v1016, %v1018
      %v1024 = vsel %vm1021, %v1018, %v1020
      %v1026 = vsel %vm273, %v1012, 0
      %v1029 = vsel %vm277, %v1022, 0
      %v1032 = vsel %vm277, %v1023, 0
      %v1035 = vsel %vm277, %v1024, 0
      %1037 = vmatprep.subr.bf16.mxu0 %v1032
      %1038 = vmatpush1.bf16.msra.mxu0 %v1029
      %1039 = vmatprep.subr.bf16.mxu0 0
      %1040 = vmatpush1.bf16.msra.mxu0 0
      %1041 = vmatprep.subr.bf16.mxu0 0
      %1042 = vmatpush1.bf16.msra.mxu0 0
      %1043 = vmatprep.subr.bf16.mxu0 0
      %1044 = vmatpush1.bf16.msra.mxu0 0
      %1045 = vmatprep.subr.bf16.mxu0 0
      %1046 = vmatpush1.bf16.msra.mxu0 0
      %1047 = vmatprep.subr.bf16.mxu0 0
      %1048 = vmatpush1.bf16.msra.mxu0 0
      %1049 = vmatprep.subr.bf16.mxu0 0
      %1050 = vmatpush1.bf16.msra.mxu0 0
      %1051 = vmatprep.subr.bf16.mxu0 0
      %1052 = vmatpush1.bf16.msra.mxu0 0
      %1053 = vmatprep.subr.bf16.mxu0 0
      %1054 = vmatpush1.bf16.msra.mxu0 0
      %1055 = vmatprep.subr.bf16.mxu0 0
      %1056 = vmatpush1.bf16.msra.mxu0 0
      %1057 = vmatprep.subr.bf16.mxu0 0
      %1058 = vmatpush1.bf16.msra.mxu0 0
      %1059 = vmatprep.subr.bf16.mxu0 0
      %1060 = vmatpush1.bf16.msra.mxu0 0
      %1061 = vmatprep.subr.bf16.mxu0 0
      %1062 = vmatpush1.bf16.msra.mxu0 0
      %1063 = vmatprep.subr.bf16.mxu0 0
      %1064 = vmatpush1.bf16.msra.mxu0 0
      %1065 = vmatprep.subr.bf16.mxu0 0
      %1066 = vmatpush1.bf16.msra.mxu0 0
      %1067 = vmatprep.subr.bf16.mxu0 0
      %1068 = vmatpush1.bf16.msra.mxu0 0
      %1069 = vmatprep.mubr.bf16.mxu0 0
      %1070 = vmatmul.mubr.bf16.gmra.mrb[0].mxu0 %v1026
      %v1071 = vpop.f32.mrb[0].mxu0
      %v1072 = vadd.f32 0.0, %v1071
      %v1073 = vpop.f32.mrb[0].mxu0
      %v1074 = vadd.f32 0.0, %v1073
      %v1075 = vpop.f32.mrb[0].mxu0
      %v1076 = vpop.f32.mrb[0].mxu0
      %1077 = vdwg.mxu0
      %1078 = vmatprep.subr.bf16.mxu0 0
      %1079 = vmatpush1.bf16.msra.mxu0 %v1035
      %1080 = vmatprep.subr.bf16.mxu0 0
      %1081 = vmatpush1.bf16.msra.mxu0 0
      %1082 = vmatprep.subr.bf16.mxu0 0
      %1083 = vmatpush1.bf16.msra.mxu0 0
      %1084 = vmatprep.subr.bf16.mxu0 0
      %1085 = vmatpush1.bf16.msra.mxu0 0
      %1086 = vmatprep.subr.bf16.mxu0 0
      %1087 = vmatpush1.bf16.msra.mxu0 0
      %1088 = vmatprep.subr.bf16.mxu0 0
      %1089 = vmatpush1.bf16.msra.mxu0 0
      %1090 = vmatprep.subr.bf16.mxu0 0
      %1091 = vmatpush1.bf16.msra.mxu0 0
      %1092 = vmatprep.subr.bf16.mxu0 0
      %1093 = vmatpush1.bf16.msra.mxu0 0
      %1094 = vmatprep.subr.bf16.mxu0 0
      %1095 = vmatpush1.bf16.msra.mxu0 0
      %1096 = vmatprep.subr.bf16.mxu0 0
      %1097 = vmatpush1.bf16.msra.mxu0 0
      %1098 = vmatprep.subr.bf16.mxu0 0
      %1099 = vmatpush1.bf16.msra.mxu0 0
      %1100 = vmatprep.subr.bf16.mxu0 0
      %1101 = vmatpush1.bf16.msra.mxu0 0
      %1102 = vmatprep.subr.bf16.mxu0 0
      %1103 = vmatpush1.bf16.msra.mxu0 0
      %1104 = vmatprep.subr.bf16.mxu0 0
      %1105 = vmatpush1.bf16.msra.mxu0 0
      %1106 = vmatprep.subr.bf16.mxu0 0
      %1107 = vmatpush1.bf16.msra.mxu0 0
      %1108 = vmatprep.subr.bf16.mxu0 0
      %1109 = vmatpush1.bf16.msra.mxu0 0
      %1110 = vmatprep.mubr.bf16.mxu0 0
      %1111 = vmatmul.mubr.bf16.gmra.mrb[0].mxu0 %v1026
      %v1112 = vpop.f32.mrb[0].mxu0
      %v1113 = vadd.f32 0.0, %v1112
      %v1114 = vpop.f32.mrb[0].mxu0
      %v1115 = vpop.f32.mrb[0].mxu0
      %v1116 = vpop.f32.mrb[0].mxu0
      %1117 = vdwg.mxu0
      %v1118 = vadd.f32 %v1008, %v1072
      %v1119 = vadd.f32 %v1009, %v1074
      %v1120 = vadd.f32 %v1010, %v1113
      %s1121 = scalar_lea.vmem %s0, 8
      %v1122 = vld [vmem:[%s1121] sm:$0x1]
      %1123 = vrot.lane.b32.xlu0 %v241, 90
      %v1124 = vpop.permute.xlu0 %1123
      %1125 = vrot.lane.b32.xlu0 %v249, 90
      %v1126 = vpop.permute.xlu0 %1125
      %1127 = vrot.lane.b32.xlu0 %v248, 90
      %v1128 = vpop.permute.xlu0 %1127
      %1129 = vrot.lane.b32.xlu0 %v257, 90
      %v1130 = vpop.permute.xlu0 %1129
      %vm1131 = vcmask 736256
      %v1132 = vsel %vm1131, %v1124, %v1126
      %v1133 = vsel %vm1131, %v1126, %v1128
      %v1134 = vsel %vm1131, %v1128, %v1130
      %v1136 = vsel %vm273, %v1122, 0
      %v1139 = vsel %vm277, %v1132, 0
      %v1142 = vsel %vm277, %v1133, 0
      %v1145 = vsel %vm277, %v1134, 0
      %1147 = vmatprep.subr.bf16.mxu0 %v1142
      %1148 = vmatpush1.bf16.msra.mxu0 %v1139
      %1149 = vmatprep.subr.bf16.mxu0 0
      %1150 = vmatpush1.bf16.msra.mxu0 0
      %1151 = vmatprep.subr.bf16.mxu0 0
      %1152 = vmatpush1.bf16.msra.mxu0 0
      %1153 = vmatprep.subr.bf16.mxu0 0
      %1154 = vmatpush1.bf16.msra.mxu0 0
      %1155 = vmatprep.subr.bf16.mxu0 0
      %1156 = vmatpush1.bf16.msra.mxu0 0
      %1157 = vmatprep.subr.bf16.mxu0 0
      %1158 = vmatpush1.bf16.msra.mxu0 0
      %1159 = vmatprep.subr.bf16.mxu0 0
      %1160 = vmatpush1.bf16.msra.mxu0 0
      %1161 = vmatprep.subr.bf16.mxu0 0
      %1162 = vmatpush1.bf16.msra.mxu0 0
      %1163 = vmatprep.subr.bf16.mxu0 0
      %1164 = vmatpush1.bf16.msra.mxu0 0
      %1165 = vmatprep.subr.bf16.mxu0 0
      %1166 = vmatpush1.bf16.msra.mxu0 0
      %1167 = vmatprep.subr.bf16.mxu0 0
      %1168 = vmatpush1.bf16.msra.mxu0 0
      %1169 = vmatprep.subr.bf16.mxu0 0
      %1170 = vmatpush1.bf16.msra.mxu0 0
      %1171 = vmatprep.subr.bf16.mxu0 0
      %1172 = vmatpush1.bf16.msra.mxu0 0
      %1173 = vmatprep.subr.bf16.mxu0 0
      %1174 = vmatpush1.bf16.msra.mxu0 0
      %1175 = vmatprep.subr.bf16.mxu0 0
      %1176 = vmatpush1.bf16.msra.mxu0 0
      %1177 = vmatprep.subr.bf16.mxu0 0
      %1178 = vmatpush1.bf16.msra.mxu0 0
      %1179 = vmatprep.mubr.bf16.mxu0 0
      %1180 = vmatmul.mubr.bf16.gmra.mrb[0].mxu0 %v1136
      %v1181 = vpop.f32.mrb[0].mxu0
      %v1182 = vadd.f32 0.0, %v1181
      %v1183 = vpop.f32.mrb[0].mxu0
      %v1184 = vadd.f32 0.0, %v1183
      %v1185 = vpop.f32.mrb[0].mxu0
      %v1186 = vpop.f32.mrb[0].mxu0
      %1187 = vdwg.mxu0
      %1188 = vmatprep.subr.bf16.mxu0 0
      %1189 = vmatpush1.bf16.msra.mxu0 %v1145
      %1190 = vmatprep.subr.bf16.mxu0 0
      %1191 = vmatpush1.bf16.msra.mxu0 0
      %1192 = vmatprep.subr.bf16.mxu0 0
      %1193 = vmatpush1.bf16.msra.mxu0 0
      %1194 = vmatprep.subr.bf16.mxu0 0
      %1195 = vmatpush1.bf16.msra.mxu0 0
      %1196 = vmatprep.subr.bf16.mxu0 0
      %1197 = vmatpush1.bf16.msra.mxu0 0
      %1198 = vmatprep.subr.bf16.mxu0 0
      %1199 = vmatpush1.bf16.msra.mxu0 0
      %1200 = vmatprep.subr.bf16.mxu0 0
      %1201 = vmatpush1.bf16.msra.mxu0 0
      %1202 = vmatprep.subr.bf16.mxu0 0
      %1203 = vmatpush1.bf16.msra.mxu0 0
      %1204 = vmatprep.subr.bf16.mxu0 0
      %1205 = vmatpush1.bf16.msra.mxu0 0
      %1206 = vmatprep.subr.bf16.mxu0 0
      %1207 = vmatpush1.bf16.msra.mxu0 0
      %1208 = vmatprep.subr.bf16.mxu0 0
      %1209 = vmatpush1.bf16.msra.mxu0 0
      %1210 = vmatprep.subr.bf16.mxu0 0
      %1211 = vmatpush1.bf16.msra.mxu0 0
      %1212 = vmatprep.subr.bf16.mxu0 0
      %1213 = vmatpush1.bf16.msra.mxu0 0
      %1214 = vmatprep.subr.bf16.mxu0 0
      %1215 = vmatpush1.bf16.msra.mxu0 0
      %1216 = vmatprep.subr.bf16.mxu0 0
      %1217 = vmatpush1.bf16.msra.mxu0 0
      %1218 = vmatprep.subr.bf16.mxu0 0
      %1219 = vmatpush1.bf16.msra.mxu0 0
      %1220 = vmatprep.mubr.bf16.mxu0 0
      %1221 = vmatmul.mubr.bf16.gmra.mrb[0].mxu0 %v1136
      %v1222 = vpop.f32.mrb[0].mxu0
      %v1223 = vadd.f32 0.0, %v1222
      %v1224 = vpop.f32.mrb[0].mxu0
      %v1225 = vpop.f32.mrb[0].mxu0
      %v1226 = vpop.f32.mrb[0].mxu0
      %1227 = vdwg.mxu0
      %v1228 = vadd.f32 %v1118, %v1182
      %v1229 = vadd.f32 %v1119, %v1184
      %v1230 = vadd.f32 %v1120, %v1223
      %v1231 = vld [vmem:[%s1] sm:$0x3]
      %1233 = vset.pattern.permute.xlu0 0
      %1234 = vperm.xlu0 %1233, %v1231
      %v1235 = vpop.permute.xlu0 %1234
      %v1237 = vadd.f32 %v1228, %v1235
      %v1238 = vadd.f32 %v1229, %v1235
      %v1239 = vadd.f32 %v1230, %v1235
      %v1243 = vcombine.low %v1237, %v1238
      %v1245 = vunpack.c.l.s4 1983009808
      %v1246 = vunpack.c.0.s8 %v1245
      %v1247 = vlaneseq
      %v1248 = vshrl.u32 %v1247, 7
      %v1249 = vsub.s32 %v1246, %v1248
      %v1250 = vrot.slane %v1243, %v1249
      %v1252 = vunpack.c.l.s4 1983009808
      %v1253 = vunpack.c.0.s8 %v1252
      %v1254 = vlaneseq
      %v1255 = vshrl.u32 %v1254, 7
      %v1256 = vsub.s32 %v1253, %v1255
      %v1257 = vrot.slane %v1239, %v1256
      %v1258 = vcombine.low %v1250, %v1257
      %1260 = vst [vmem:[%s228] sm:$0x3f] %v1258
      %s1261 = smul.u32 3, %s15
      %p1262 = scmp.lt.s32.totalorder %s1261, 5
      %s1263 = scalar_select %p1262, %s1261, 5
      %s1264 = smul.addr %s1263, 2
      %s1265 = scalar_lea.vmem %s4, %s1264
      // Predicated region
      $region37: #{unetwork_forward.21} parent=35 // pred_check
        %p1266 = pneg %p129
      $region38: #{unetwork_forward.21} parent=35 // pred_check_branch
        %1268 = sbr.rel (%p1266) target = $region40
      $region39: #{unetwork_forward.21} parent=35 // pred_region
        %s1269 = smul.u32 3, %s15
      $region40: #{unetwork_forward.21} parent=35 // pred_fallthru
        _
    $region36: #{unetwork_forward.21} parent=5 // pred_fallthru
      _
    %p1270 = scmp.le.s32.totalorder 2, %s10
    // Predicated region
    $region41: #{unetwork_forward.21} parent=5 // pred_check
      %p1271 = pneg %p1270
    $region42: #{unetwork_forward.21} parent=5 // pred_check_branch
      %1273 = sbr.rel (%p1271) target = $region44
    $region43: #{unetwork_forward.21} parent=5 // pred_region
      %s1274 = ssub.s32 %s10, 2
      // Predicated region
      $region45: #{unetwork_forward.21} parent=43 // pred_check
        %p1275 = pneg %p135
      $region46: #{unetwork_forward.21} parent=43 // pred_check_branch
        %1277 = sbr.rel (%p1275) target = $region48
      $region47: #{unetwork_forward.21} parent=43 // pred_region
        %s1278 = smul.u32 3, %s16
        %p1279 = scmp.lt.s32.totalorder %s1278, 5
        %s1280 = scalar_select %p1279, %s1278, 5
        %s1281 = smul.addr %s1280, 2
        %s1282 = scalar_lea.vmem %s4, %s1281
      $region48: #{unetwork_forward.21} parent=43 // pred_fallthru
        _
    $region44: #{unetwork_forward.21} parent=5 // pred_fallthru
      _
  $region6: #{unetwork_forward.21} parent=0 // loop_footer
    %s14 = sadd.s32 1, %s10
  $region7: #{unetwork_forward.21} parent=0 // loop_footer_branch
    %9 = sbr.rel target = $region3
  $region8: #{unetwork_forward.21} parent=0 // loop_exit
    _

</llo_original>
